<compile_context>
chip_gen: v6e
topology: v6e:2x2x1
jax: 0.10.0
libtpu: 0.0.40
codegen_flags: <defaults>
</compile_context>

<pallas_src>
import functools
import math

import jax
import jax.numpy as jnp
from jax.experimental import pallas as pl
from jax.experimental.pallas import tpu as pltpu


# -----------------------------------------------------------------------------
# Pallas kernel
# -----------------------------------------------------------------------------
def th_lstm_kernel(memory_size,
                   x_ref,                         # (T, B, F)   time-major input (F = D+1, last col = delta_t), f32
                   whs_ref,                       # (Hp, Hp)    bf16  h -> s-gate block
                   wmg_ref,                       # (2Hp, 5Hp)  bf16  [h ; s] -> f,i,T,u,o  (Whx_rest stacked over Ws)
                   wxf_ref,                       # (F, 6Hp)    bf16  x (+ delta row -> s gate) -> all 6 gates
                   b6_ref,                        # (1, 6Hp)    f32   all gate biases pre-summed
                   waq_ref, wah_ref, batt_ref,    # (2Hp, Hp) bf16, (Hp, Hp) bf16, (1, Hp) f32
                   vt_ref,                        # (1, Hp)     f32
                   wh_ref, we_ref, wgf_ref,       # (Hp, Hp) bf16, (Hp, Hp) bf16, (F, Hp) bf16 [delta row zero]
                   bfin_ref,                      # (1, Hp)     f32
                   wc_ref, bc_ref,                # (1, Hp) f32, (1, 1) f32
                   y_ref,                         # (B, 1)      output
                   prex_ref,                      # scratch: (T*B, 6Hp) f32  hoisted input projection (flat)
                   hist_ref):                     # scratch: (M+T, B, Hp) f32  hidden-state history ring
    T, B, F = x_ref.shape
    H = whs_ref.shape[0]          # padded hidden dim (multiple of 128)
    M = memory_size

    # ---- (1) hoisted input-side projection for the whole sequence ------------
    # x@Wx + delta*Wt (folded into the s block) + all biases, one bf16 matmul.
    x_flat = x_ref[...].reshape(T * B, F).astype(jnp.bfloat16)
    prex = jnp.dot(x_flat, wxf_ref[...], preferred_element_type=jnp.float32)
    prex_ref[...] = prex + b6_ref[...]                                       # (T*B, 6H) f32, no reshape

    # ---- (2) zero only the M prefix rows of the history ring -----------------
    # Rows M..M+T-1 are overwritten inside the loop before the window read.
    hist_ref[pl.ds(0, M)] = jnp.zeros((M, B, H), jnp.float32)

    def step(t, carry):
        h, c = carry
        row = pl.multiple_of(t * B, 8)
        prex_t = prex_ref[pl.ds(row, B), :]                                   # (B, 6H) f32, aligned slice
        h_bf = h.astype(jnp.bfloat16)

        # s-gate first: one 128-col output tile before the tanh.
        pre_s = prex_t[:, :H] + jnp.dot(h_bf, whs_ref[...],
                                        preferred_element_type=jnp.float32)  # (B, H)
        s = jnp.tanh(pre_s)

        # One merged K=2Hp matmul produces the remaining 5 gate blocks
        # ( == h @ Whx_rest + s @ Ws ).
        hs = jnp.concatenate([h_bf, s.astype(jnp.bfloat16)], axis=1)          # (B, 2H) bf16
        rest = prex_t[:, H:] + jnp.dot(hs, wmg_ref[...],
                                       preferred_element_type=jnp.float32)   # (B, 5H)

        f    = jax.nn.sigmoid(rest[:, 0 * H:1 * H])
        i    = jax.nn.sigmoid(rest[:, 1 * H:2 * H])
        Tg   = jax.nn.sigmoid(rest[:, 2 * H:3 * H])
        zeta = jnp.tanh(rest[:, 3 * H:4 * H])
        o    = jax.nn.sigmoid(rest[:, 4 * H:5 * H])

        c_new = f * c + i * zeta + Tg * s
        h_new = o * jnp.tanh(c_new)

        hist_ref[M + t] = h_new          # ring write replaces per-step concatenate
        return h_new, c_new

    h0 = jnp.zeros((B, H), jnp.float32)
    c0 = jnp.zeros((B, H), jnp.float32)
    h, c = jax.lax.fori_loop(0, T, step, (h0, c0), unroll=True)

    # ---- attention over historical states -----------------------------------
    hist = hist_ref[T:T + M]                                                  # (M, B, H) oldest-first, f32
    q = jnp.concatenate([h, c], axis=1)                                       # (B, 2H) f32
    aq = jnp.dot(q.astype(jnp.bfloat16), waq_ref[...],
                 preferred_element_type=jnp.float32)                          # (B, H)
    ah = jnp.dot(hist.reshape(M * B, H).astype(jnp.bfloat16), wah_ref[...],
                 preferred_element_type=jnp.float32).reshape(M, B, H)
    o_att = jnp.tanh(aq[None] + ah + batt_ref[...])                           # (M, B, H)
    scores = jnp.sum(o_att * vt_ref[...], axis=-1, keepdims=True)             # (M, B, 1)
    scores = scores - jnp.max(scores, axis=0, keepdims=True)                  # stable softmax (same result)
    alpha = jnp.exp(scores)
    alpha = alpha * pl.reciprocal(jnp.sum(alpha, axis=0, keepdims=True), approx=True)
    e = jnp.sum(alpha * hist, axis=0)                                         # (B, H)

    # ---- final projection + classifier --------------------------------------
    x_last = x_ref[T - 1].astype(jnp.bfloat16)                                # (B, F); delta row of wgf is zero
    h_t = jnp.tanh(jnp.dot(h.astype(jnp.bfloat16), wh_ref[...], preferred_element_type=jnp.float32)
                   + jnp.dot(e.astype(jnp.bfloat16), we_ref[...], preferred_element_type=jnp.float32)
                   + jnp.dot(x_last, wgf_ref[...], preferred_element_type=jnp.float32)
                   + bfin_ref[...])
    y = jax.nn.sigmoid(jnp.sum(h_t * wc_ref[...], axis=-1, keepdims=True) + bc_ref[...])
    y_ref[...] = y.astype(y_ref.dtype)


# -----------------------------------------------------------------------------
# Parameter init (deterministic, nn.Linear-style fan-in uniform)
# -----------------------------------------------------------------------------
def init_raw_params(key, input_dim, hidden_dim):
    D, H = input_dim, hidden_dim
    keys = iter(jax.random.split(key, 64))

    def lin(in_dim, out_dim):
        bound = 1.0 / math.sqrt(in_dim)
        w = jax.random.uniform(next(keys), (out_dim, in_dim), jnp.float32, -bound, bound)
        b = jax.random.uniform(next(keys), (out_dim,), jnp.float32, -bound, bound)
        return w, b

    p = {}
    for name, (ind, outd) in {
        'Wsh': (H, H), 'Wsx': (D, H), 'Wst': (1, H),
        'Wfh': (H, H), 'Wfx': (D, H), 'Wfs': (H, H),
        'Wih': (H, H), 'Wix': (D, H), 'Wis': (H, H),
        'Wuh': (H, H), 'Wux': (D, H), 'Wus': (H, H),
        'WTh': (H, H), 'WTx': (D, H), 'WTs': (H, H),
        'Woh': (H, H), 'Wox': (D, H), 'Wos': (H, H),
        'Waq': (2 * H, H), 'Wah': (H, H),
        'W_h': (H, H), 'We': (H, H), 'Wg': (D, H),
        'classifier': (H, 1),
    }.items():
        p[name] = lin(ind, outd)
    for name in ('bs', 'bf', 'bi', 'bu', 'bT', 'bo', 'ba', 'bh'):
        p[name] = jnp.zeros((H,), jnp.float32)
    p['vt'] = jax.random.normal(next(keys), (H, 1), jnp.float32)
    return p


# -----------------------------------------------------------------------------
# Weight stacking + lane padding (H -> Hp multiple of 128) + bf16 matmul weights
# -----------------------------------------------------------------------------
def stack_params(p, input_dim, hidden_dim):
    D, H = input_dim, hidden_dim
    Hp = ((H + 127) // 128) * 128
    F = D + 1

    def wT(name):
        return p[name][0].T                         # (in, H)

    def b(name):
        return p[name][1]

    def pad2(a, rows, cols):
        out = jnp.zeros((rows, cols), jnp.float32)
        return out.at[:a.shape[0], :a.shape[1]].set(a)

    def pad_row(v, cols):
        return pad2(jnp.asarray(v).reshape(1, -1), 1, cols)

    # Padded-lane invariant (load-bearing): all padded weight rows/cols and all
    # padded bias lanes are exactly 0 so padded h/c lanes remain exactly 0
    # through the recurrence.  Do not change padding to nonzero values.

    # gate order: s, f, i, T, u, o
    gates_rest_h = ['Wfh', 'Wih', 'WTh', 'Wuh', 'Woh']
    gates_x = ['Wsx', 'Wfx', 'Wix', 'WTx', 'Wux', 'Wox']
    gates_s = ['Wfs', 'Wis', 'WTs', 'Wus', 'Wos']

    whs = pad2(wT('Wsh'), Hp, Hp)                                            # (Hp, Hp)   h -> s gate
    whx_rest = jnp.concatenate([pad2(wT(n), Hp, Hp) for n in gates_rest_h], axis=1)  # (Hp, 5Hp)
    ws = jnp.concatenate([pad2(wT(n), Hp, Hp) for n in gates_s], axis=1)     # (Hp, 5Hp)
    wmg = jnp.concatenate([whx_rest, ws], axis=0)                            # (2Hp, 5Hp)  merged [h;s] weight

    # Input projection folds x@Wx and delta*Wt: the delta row (row D) feeds only the s gate.
    wx_blocks = []
    for gi, n in enumerate(gates_x):
        blk = jnp.zeros((F, Hp), jnp.float32)
        blk = blk.at[:D, :H].set(wT(n))
        if gi == 0:
            blk = blk.at[D, :H].set(wT('Wst')[0])
        wx_blocks.append(blk)
    wxf = jnp.concatenate(wx_blocks, axis=1)                                 # (F, 6Hp)

    b_s = b('Wsh') + b('Wsx') + b('Wst') + p['bs']
    b_f = b('Wfh') + b('Wfx') + b('Wfs') + p['bf']
    b_i = b('Wih') + b('Wix') + b('Wis') + p['bi']
    b_T = b('WTh') + b('WTx') + b('WTs') + p['bT']
    b_u = b('Wuh') + b('Wux') + b('Wus') + p['bu']
    b_o = b('Woh') + b('Wox') + b('Wos') + p['bo']
    b6 = jnp.concatenate([pad_row(v, Hp) for v in (b_s, b_f, b_i, b_T, b_u, b_o)],
                         axis=1)                                             # (1, 6Hp)

    waq_t = wT('Waq')                                                        # (2H, H)
    waq = jnp.zeros((2 * Hp, Hp), jnp.float32)
    waq = waq.at[:H, :H].set(waq_t[:H])           # rows matching padded h block
    waq = waq.at[Hp:Hp + H, :H].set(waq_t[H:])    # rows matching padded c block
    wah = pad2(wT('Wah'), Hp, Hp)
    batt = pad_row(b('Waq') + b('Wah'), Hp)       # (PyTorch forward does not add self.ba)
    vt = pad_row(p['vt'][:, 0], Hp)

    wh = pad2(wT('W_h'), Hp, Hp)
    we = pad2(wT('We'), Hp, Hp)
    wgf = pad2(wT('Wg'), F, Hp)                   # row D (delta) stays zero
    bfin = pad_row(b('W_h') + b('We') + b('Wg') + p['bh'], Hp)
    wc = pad_row(p['classifier'][0][0], Hp)       # classifier weight (1, H) as a row
    bc = b('classifier').reshape(1, 1)

    bf16 = jnp.bfloat16
    return (whs.astype(bf16), wmg.astype(bf16), wxf.astype(bf16), b6,
            waq.astype(bf16), wah.astype(bf16), batt, vt,
            wh.astype(bf16), we.astype(bf16), wgf.astype(bf16), bfin, wc, bc)


# -----------------------------------------------------------------------------
# Wrapper
# -----------------------------------------------------------------------------
def th_lstm_forward(x_seq, stacked, memory_size):
    # x_seq: (B, T, F) batch-major like PyTorch; pad batch to sublanes, go time-major.
    B, T, F = x_seq.shape
    Bp = ((B + 7) // 8) * 8
    Hp = stacked[0].shape[0]

    x_pad = jnp.zeros((Bp, T, F), jnp.float32).at[:B].set(x_seq.astype(jnp.float32))
    x_tm = jnp.transpose(x_pad, (1, 0, 2))        # (T, Bp, F)

    args = (x_tm,) + tuple(stacked)
    kernel = functools.partial(th_lstm_kernel, memory_size)
    y = pl.pallas_call(
        kernel,
        out_shape=jax.ShapeDtypeStruct((Bp, 1), jnp.float32),
        in_specs=[pl.BlockSpec(memory_space=pltpu.MemorySpace.VMEM)] * len(args),
        out_specs=pl.BlockSpec(memory_space=pltpu.MemorySpace.VMEM),
        scratch_shapes=[
            pltpu.VMEM((T * Bp, 6 * Hp), jnp.float32),             # hoisted input projection (flat)
            pltpu.VMEM((memory_size + T, Bp, Hp), jnp.float32),    # history ring
        ],
        compiler_params=pltpu.CompilerParams(vmem_limit_bytes=32 * 1024 * 1024),
    )(*args)
    return y[:B]


# -----------------------------------------------------------------------------
# Pure-JAX reference (mirrors the PyTorch forward exactly, all f32)
# -----------------------------------------------------------------------------
def ref_forward(x_seq, p, memory_size):
    B, T, F = x_seq.shape
    D = F - 1
    H = p['Wsh'][0].shape[0]

    def lin(name, v):
        w, bb = p[name]
        return v @ w.T + bb

    h = jnp.zeros((B, H), jnp.float32)
    c = jnp.zeros((B, H), jnp.float32)
    hist = jnp.zeros((B, memory_size, H), jnp.float32)
    for t in range(T):
        x = x_seq[:, t, :D]
        delta = x_seq[:, t, D:]
        s = jnp.tanh(lin('Wsh', h) + lin('Wsx', x) + lin('Wst', delta) + p['bs'])
        f = jax.nn.sigmoid(lin('Wfh', h) + lin('Wfx', x) + lin('Wfs', s) + p['bf'])
        i = jax.nn.sigmoid(lin('Wih', h) + lin('Wix', x) + lin('Wis', s) + p['bi'])
        Tg = jax.nn.sigmoid(lin('WTh', h) + lin('WTx', x) + lin('WTs', s) + p['bT'])
        zeta = jnp.tanh(lin('Wuh', h) + lin('Wux', x) + lin('Wus', s) + p['bu'])
        c_new = f * c + i * zeta + Tg * s
        o = jax.nn.sigmoid(lin('Woh', h) + lin('Wox', x) + lin('Wos', s) + p['bo'])
        h = o * jnp.tanh(c_new)
        c = c_new
        hist = jnp.concatenate([hist[:, 1:], h[:, None]], axis=1)
    q = jnp.concatenate([h, c], axis=1)
    o_att = jnp.tanh(lin('Waq', q)[:, None, :] + hist @ p['Wah'][0].T + p['Wah'][1])
    alpha = jnp.exp(jnp.einsum('bmh,hk->bmk', o_att, p['vt'])[..., 0])
    alpha = alpha / alpha.sum(axis=1, keepdims=True)
    e = (alpha[..., None] * hist).sum(axis=1)
    h_t = jnp.tanh(lin('W_h', h) + lin('We', e) + lin('Wg', x_seq[:, -1, :D]) + p['bh'])
    return jax.nn.sigmoid(lin('classifier', h_t))


if __name__ == "__main__":
    B, T, INPUT_DIM, HIDDEN_DIM, MEMORY_SIZE = 4, 8, 8, 32, 5
    F = INPUT_DIM + 1  # last feature is delta_t

    key = jax.random.PRNGKey(0)
    kx, kp = jax.random.split(key)
    x_seq = jax.random.normal(kx, (B, T, F), jnp.float32)

    raw = init_raw_params(kp, INPUT_DIM, HIDDEN_DIM)
    stacked = stack_params(raw, INPUT_DIM, HIDDEN_DIM)

    y = th_lstm_forward(x_seq, stacked, MEMORY_SIZE)
    y = jax.block_until_ready(y)

    y_ref = ref_forward(x_seq, raw, MEMORY_SIZE)
    assert y.shape == (B, 1)
    assert bool(jnp.all(jnp.isfinite(y)))
    # Tolerance loosened vs. the all-f32 reference because the kernel stores
    # matmul weights in bf16 and casts matmul LHS operands to bf16 (per perf
    # review); accumulation and all elementwise math remain f32.
    assert bool(jnp.allclose(y, y_ref, atol=2e-2, rtol=2e-2)), (y, y_ref)
    print("KERNEL_OK")
</pallas_src>

<mosaic_0001>
module attributes {stable_mosaic.version = 11 : i64} {
  func.func @th_lstm_kernel(%arg0: memref<8x8x9xf32, #tpu.memory_space<vmem>>, %arg1: memref<128x128xbf16, #tpu.memory_space<vmem>>, %arg2: memref<256x640xbf16, #tpu.memory_space<vmem>>, %arg3: memref<9x768xbf16, #tpu.memory_space<vmem>>, %arg4: memref<1x768xf32, #tpu.memory_space<vmem>>, %arg5: memref<256x128xbf16, #tpu.memory_space<vmem>>, %arg6: memref<128x128xbf16, #tpu.memory_space<vmem>>, %arg7: memref<1x128xf32, #tpu.memory_space<vmem>>, %arg8: memref<1x128xf32, #tpu.memory_space<vmem>>, %arg9: memref<128x128xbf16, #tpu.memory_space<vmem>>, %arg10: memref<128x128xbf16, #tpu.memory_space<vmem>>, %arg11: memref<9x128xbf16, #tpu.memory_space<vmem>>, %arg12: memref<1x128xf32, #tpu.memory_space<vmem>>, %arg13: memref<1x128xf32, #tpu.memory_space<vmem>>, %arg14: memref<1x1xf32, #tpu.memory_space<vmem>>, %arg15: memref<8x1xf32, #tpu.memory_space<vmem>>, %arg16: memref<64x768xf32, #tpu.memory_space<vmem>>, %arg17: memref<13x8x128xf32, #tpu.memory_space<vmem>>) attributes {dimension_semantics = [], scalar_prefetch = 0 : i64, scratch_operands = 2 : i64, tpu.core_type = #tpu.core_type<tc>} {
    %c0 = arith.constant 0 : index
    %c0_0 = arith.constant 0 : index
    %c0_1 = arith.constant 0 : index
    %0 = vector.load %arg0[%c0, %c0_0, %c0_1] : memref<8x8x9xf32, #tpu.memory_space<vmem>>, vector<8x8x9xf32>
    %1 = vector.shape_cast %0 : vector<8x8x9xf32> to vector<64x9xf32>
    %2 = arith.truncf %1 : vector<64x9xf32> to vector<64x9xbf16>
    %c0_2 = arith.constant 0 : index
    %c0_3 = arith.constant 0 : index
    %3 = vector.load %arg3[%c0_2, %c0_3] : memref<9x768xbf16, #tpu.memory_space<vmem>>, vector<9x768xbf16>
    %cst = arith.constant dense<0.000000e+00> : vector<64x768xf32>
    %4 = tpu.matmul %2, %3, %cst {dimension_numbers = #tpu.dot_dimension_numbers<[1], [0], [0], [1], [0, 0, 1, 1], [], []>} : vector<64x9xbf16>, vector<9x768xbf16>, vector<64x768xf32> -> vector<64x768xf32>
    %c0_4 = arith.constant 0 : index
    %c0_5 = arith.constant 0 : index
    %5 = vector.load %arg4[%c0_4, %c0_5] : memref<1x768xf32, #tpu.memory_space<vmem>>, vector<1x768xf32>
    %6 = vector.broadcast %5 : vector<1x768xf32> to vector<64x768xf32>
    %7 = arith.addf %4, %6 : vector<64x768xf32>
    %c0_6 = arith.constant 0 : index
    %c0_7 = arith.constant 0 : index
    %8 = vector.load %arg16[%c0_6, %c0_7] : memref<64x768xf32, #tpu.memory_space<vmem>>, vector<64x768xf32>
    tpu.vector_store %arg16[%c0_6, %c0_7], %7 {strides = array<i32>} : memref<64x768xf32, #tpu.memory_space<vmem>>, vector<64x768xf32>,
    %cst_8 = arith.constant 0.000000e+00 : f32
    %9 = vector.broadcast %cst_8 : f32 to vector<5x8x128xf32>
    %c0_9 = arith.constant 0 : index
    %c0_10 = arith.constant 0 : index
    %c0_11 = arith.constant 0 : index
    %10 = vector.load %arg17[%c0_9, %c0_10, %c0_11] : memref<13x8x128xf32, #tpu.memory_space<vmem>>, vector<5x8x128xf32>
    tpu.vector_store %arg17[%c0_9, %c0_10, %c0_11], %9 {strides = array<i32>} : memref<13x8x128xf32, #tpu.memory_space<vmem>>, vector<5x8x128xf32>,
    %cst_12 = arith.constant 0.000000e+00 : f32
    %11 = vector.broadcast %cst_12 : f32 to vector<8x128xf32>
    %cst_13 = arith.constant 0.000000e+00 : f32
    %12 = vector.broadcast %cst_13 : f32 to vector<8x128xf32>
    %c0_i32 = arith.constant 0 : i32
    %c8_i32 = arith.constant 8 : i32
    %13 = arith.muli %c0_i32, %c8_i32 : i32
    %14 = tpu.assume_multiple %13, 8 : i32
    %15 = arith.index_cast %14 : i32 to index
    %c0_14 = arith.constant 0 : index
    %16 = vector.load %arg16[%15, %c0_14] : memref<64x768xf32, #tpu.memory_space<vmem>>, vector<8x768xf32>
    %17 = arith.truncf %11 : vector<8x128xf32> to vector<8x128xbf16>
    %18 = vector.extract_strided_slice %16 {offsets = [0, 0], sizes = [8, 128], strides = [1, 1]} : vector<8x768xf32> to vector<8x128xf32>
    %c0_15 = arith.constant 0 : index
    %c0_16 = arith.constant 0 : index
    %19 = vector.load %arg1[%c0_15, %c0_16] : memref<128x128xbf16, #tpu.memory_space<vmem>>, vector<128x128xbf16>
    %cst_17 = arith.constant dense<0.000000e+00> : vector<8x128xf32>
    %20 = tpu.matmul %17, %19, %cst_17 {dimension_numbers = #tpu.dot_dimension_numbers<[1], [0], [0], [1], [0, 0, 1, 1], [], []>} : vector<8x128xbf16>, vector<128x128xbf16>, vector<8x128xf32> -> vector<8x128xf32>
    %21 = arith.addf %18, %20 : vector<8x128xf32>
    %22 = math.tanh %21 : vector<8x128xf32>
    %23 = arith.truncf %22 : vector<8x128xf32> to vector<8x128xbf16>
    %24 = tpu.concatenate %17, %23 in 1 : vector<8x128xbf16>, vector<8x128xbf16> -> vector<8x256xbf16>
    %25 = vector.extract_strided_slice %16 {offsets = [0, 128], sizes = [8, 640], strides = [1, 1]} : vector<8x768xf32> to vector<8x640xf32>
    %c0_18 = arith.constant 0 : index
    %c0_19 = arith.constant 0 : index
    %26 = vector.load %arg2[%c0_18, %c0_19] : memref<256x640xbf16, #tpu.memory_space<vmem>>, vector<256x640xbf16>
    %cst_20 = arith.constant dense<0.000000e+00> : vector<8x640xf32>
    %27 = tpu.matmul %24, %26, %cst_20 {dimension_numbers = #tpu.dot_dimension_numbers<[1], [0], [0], [1], [0, 0, 1, 1], [], []>} : vector<8x256xbf16>, vector<256x640xbf16>, vector<8x640xf32> -> vector<8x640xf32>
    %28 = arith.addf %25, %27 : vector<8x640xf32>
    %29 = vector.extract_strided_slice %28 {offsets = [0, 0], sizes = [8, 128], strides = [1, 1]} : vector<8x640xf32> to vector<8x128xf32>
    %30 = arith.negf %29 : vector<8x128xf32>
    %31 = math.exp %30 : vector<8x128xf32>
    %cst_21 = arith.constant 1.000000e+00 : f32
    %32 = vector.broadcast %cst_21 : f32 to vector<8x128xf32>
    %33 = arith.addf %32, %31 : vector<8x128xf32>
    %34 = arith.divf %32, %33 : vector<8x128xf32>
    %35 = vector.extract_strided_slice %28 {offsets = [0, 128], sizes = [8, 128], strides = [1, 1]} : vector<8x640xf32> to vector<8x128xf32>
    %36 = arith.negf %35 : vector<8x128xf32>
    %37 = math.exp %36 : vector<8x128xf32>
    %cst_22 = arith.constant 1.000000e+00 : f32
    %38 = vector.broadcast %cst_22 : f32 to vector<8x128xf32>
    %39 = arith.addf %38, %37 : vector<8x128xf32>
    %40 = arith.divf %38, %39 : vector<8x128xf32>
    %41 = vector.extract_strided_slice %28 {offsets = [0, 256], sizes = [8, 128], strides = [1, 1]} : vector<8x640xf32> to vector<8x128xf32>
    %42 = arith.negf %41 : vector<8x128xf32>
    %43 = math.exp %42 : vector<8x128xf32>
    %cst_23 = arith.constant 1.000000e+00 : f32
    %44 = vector.broadcast %cst_23 : f32 to vector<8x128xf32>
    %45 = arith.addf %44, %43 : vector<8x128xf32>
    %46 = arith.divf %44, %45 : vector<8x128xf32>
    %47 = vector.extract_strided_slice %28 {offsets = [0, 384], sizes = [8, 128], strides = [1, 1]} : vector<8x640xf32> to vector<8x128xf32>
    %48 = math.tanh %47 : vector<8x128xf32>
    %49 = vector.extract_strided_slice %28 {offsets = [0, 512], sizes = [8, 128], strides = [1, 1]} : vector<8x640xf32> to vector<8x128xf32>
    %50 = arith.negf %49 : vector<8x128xf32>
    %51 = math.exp %50 : vector<8x128xf32>
    %cst_24 = arith.constant 1.000000e+00 : f32
    %52 = vector.broadcast %cst_24 : f32 to vector<8x128xf32>
    %53 = arith.addf %52, %51 : vector<8x128xf32>
    %54 = arith.divf %52, %53 : vector<8x128xf32>
    %55 = arith.mulf %34, %12 : vector<8x128xf32>
    %56 = arith.mulf %40, %48 : vector<8x128xf32>
    %57 = arith.addf %55, %56 : vector<8x128xf32>
    %58 = arith.mulf %46, %22 : vector<8x128xf32>
    %59 = arith.addf %57, %58 : vector<8x128xf32>
    %60 = math.tanh %59 : vector<8x128xf32>
    %61 = arith.mulf %54, %60 : vector<8x128xf32>
    %c5_i32 = arith.constant 5 : i32
    %62 = arith.addi %c5_i32, %c0_i32 : i32
    %63 = arith.index_cast %62 : i32 to index
    %c0_25 = arith.constant 0 : index
    %c0_26 = arith.constant 0 : index
    %64 = vector.load %arg17[%63, %c0_25, %c0_26] : memref<13x8x128xf32, #tpu.memory_space<vmem>>, vector<1x8x128xf32>
    %65 = vector.shape_cast %64 : vector<1x8x128xf32> to vector<8x128xf32>
    %66 = vector.shape_cast %61 : vector<8x128xf32> to vector<1x8x128xf32>
    tpu.vector_store %arg17[%63, %c0_25, %c0_26], %66 {strides = array<i32>} : memref<13x8x128xf32, #tpu.memory_space<vmem>>, vector<1x8x128xf32>,
    %c1_i32 = arith.constant 1 : i32
    %c8_i32_27 = arith.constant 8 : i32
    %67 = arith.muli %c1_i32, %c8_i32_27 : i32
    %68 = tpu.assume_multiple %67, 8 : i32
    %69 = arith.index_cast %68 : i32 to index
    %c0_28 = arith.constant 0 : index
    %70 = vector.load %arg16[%69, %c0_28] : memref<64x768xf32, #tpu.memory_space<vmem>>, vector<8x768xf32>
    %71 = arith.truncf %61 : vector<8x128xf32> to vector<8x128xbf16>
    %72 = vector.extract_strided_slice %70 {offsets = [0, 0], sizes = [8, 128], strides = [1, 1]} : vector<8x768xf32> to vector<8x128xf32>
    %c0_29 = arith.constant 0 : index
    %c0_30 = arith.constant 0 : index
    %73 = vector.load %arg1[%c0_29, %c0_30] : memref<128x128xbf16, #tpu.memory_space<vmem>>, vector<128x128xbf16>
    %cst_31 = arith.constant dense<0.000000e+00> : vector<8x128xf32>
    %74 = tpu.matmul %71, %73, %cst_31 {dimension_numbers = #tpu.dot_dimension_numbers<[1], [0], [0], [1], [0, 0, 1, 1], [], []>} : vector<8x128xbf16>, vector<128x128xbf16>, vector<8x128xf32> -> vector<8x128xf32>
    %75 = arith.addf %72, %74 : vector<8x128xf32>
    %76 = math.tanh %75 : vector<8x128xf32>
    %77 = arith.truncf %76 : vector<8x128xf32> to vector<8x128xbf16>
    %78 = tpu.concatenate %71, %77 in 1 : vector<8x128xbf16>, vector<8x128xbf16> -> vector<8x256xbf16>
    %79 = vector.extract_strided_slice %70 {offsets = [0, 128], sizes = [8, 640], strides = [1, 1]} : vector<8x768xf32> to vector<8x640xf32>
    %c0_32 = arith.constant 0 : index
    %c0_33 = arith.constant 0 : index
    %80 = vector.load %arg2[%c0_32, %c0_33] : memref<256x640xbf16, #tpu.memory_space<vmem>>, vector<256x640xbf16>
    %cst_34 = arith.constant dense<0.000000e+00> : vector<8x640xf32>
    %81 = tpu.matmul %78, %80, %cst_34 {dimension_numbers = #tpu.dot_dimension_numbers<[1], [0], [0], [1], [0, 0, 1, 1], [], []>} : vector<8x256xbf16>, vector<256x640xbf16>, vector<8x640xf32> -> vector<8x640xf32>
    %82 = arith.addf %79, %81 : vector<8x640xf32>
    %83 = vector.extract_strided_slice %82 {offsets = [0, 0], sizes = [8, 128], strides = [1, 1]} : vector<8x640xf32> to vector<8x128xf32>
    %84 = arith.negf %83 : vector<8x128xf32>
    %85 = math.exp %84 : vector<8x128xf32>
    %cst_35 = arith.constant 1.000000e+00 : f32
    %86 = vector.broadcast %cst_35 : f32 to vector<8x128xf32>
    %87 = arith.addf %86, %85 : vector<8x128xf32>
    %88 = arith.divf %86, %87 : vector<8x128xf32>
    %89 = vector.extract_strided_slice %82 {offsets = [0, 128], sizes = [8, 128], strides = [1, 1]} : vector<8x640xf32> to vector<8x128xf32>
    %90 = arith.negf %89 : vector<8x128xf32>
    %91 = math.exp %90 : vector<8x128xf32>
    %cst_36 = arith.constant 1.000000e+00 : f32
    %92 = vector.broadcast %cst_36 : f32 to vector<8x128xf32>
    %93 = arith.addf %92, %91 : vector<8x128xf32>
    %94 = arith.divf %92, %93 : vector<8x128xf32>
    %95 = vector.extract_strided_slice %82 {offsets = [0, 256], sizes = [8, 128], strides = [1, 1]} : vector<8x640xf32> to vector<8x128xf32>
    %96 = arith.negf %95 : vector<8x128xf32>
    %97 = math.exp %96 : vector<8x128xf32>
    %cst_37 = arith.constant 1.000000e+00 : f32
    %98 = vector.broadcast %cst_37 : f32 to vector<8x128xf32>
    %99 = arith.addf %98, %97 : vector<8x128xf32>
    %100 = arith.divf %98, %99 : vector<8x128xf32>
    %101 = vector.extract_strided_slice %82 {offsets = [0, 384], sizes = [8, 128], strides = [1, 1]} : vector<8x640xf32> to vector<8x128xf32>
    %102 = math.tanh %101 : vector<8x128xf32>
    %103 = vector.extract_strided_slice %82 {offsets = [0, 512], sizes = [8, 128], strides = [1, 1]} : vector<8x640xf32> to vector<8x128xf32>
    %104 = arith.negf %103 : vector<8x128xf32>
    %105 = math.exp %104 : vector<8x128xf32>
    %cst_38 = arith.constant 1.000000e+00 : f32
    %106 = vector.broadcast %cst_38 : f32 to vector<8x128xf32>
    %107 = arith.addf %106, %105 : vector<8x128xf32>
    %108 = arith.divf %106, %107 : vector<8x128xf32>
    %109 = arith.mulf %88, %59 : vector<8x128xf32>
    %110 = arith.mulf %94, %102 : vector<8x128xf32>
    %111 = arith.addf %109, %110 : vector<8x128xf32>
    %112 = arith.mulf %100, %76 : vector<8x128xf32>
    %113 = arith.addf %111, %112 : vector<8x128xf32>
    %114 = math.tanh %113 : vector<8x128xf32>
    %115 = arith.mulf %108, %114 : vector<8x128xf32>
    %c5_i32_39 = arith.constant 5 : i32
    %116 = arith.addi %c5_i32_39, %c1_i32 : i32
    %117 = arith.index_cast %116 : i32 to index
    %c0_40 = arith.constant 0 : index
    %c0_41 = arith.constant 0 : index
    %118 = vector.load %arg17[%117, %c0_40, %c0_41] : memref<13x8x128xf32, #tpu.memory_space<vmem>>, vector<1x8x128xf32>
    %119 = vector.shape_cast %118 : vector<1x8x128xf32> to vector<8x128xf32>
    %120 = vector.shape_cast %115 : vector<8x128xf32> to vector<1x8x128xf32>
    tpu.vector_store %arg17[%117, %c0_40, %c0_41], %120 {strides = array<i32>} : memref<13x8x128xf32, #tpu.memory_space<vmem>>, vector<1x8x128xf32>,
    %c2_i32 = arith.constant 2 : i32
    %c8_i32_42 = arith.constant 8 : i32
    %121 = arith.muli %c2_i32, %c8_i32_42 : i32
    %122 = tpu.assume_multiple %121, 8 : i32
    %123 = arith.index_cast %122 : i32 to index
    %c0_43 = arith.constant 0 : index
    %124 = vector.load %arg16[%123, %c0_43] : memref<64x768xf32, #tpu.memory_space<vmem>>, vector<8x768xf32>
    %125 = arith.truncf %115 : vector<8x128xf32> to vector<8x128xbf16>
    %126 = vector.extract_strided_slice %124 {offsets = [0, 0], sizes = [8, 128], strides = [1, 1]} : vector<8x768xf32> to vector<8x128xf32>
    %c0_44 = arith.constant 0 : index
    %c0_45 = arith.constant 0 : index
    %127 = vector.load %arg1[%c0_44, %c0_45] : memref<128x128xbf16, #tpu.memory_space<vmem>>, vector<128x128xbf16>
    %cst_46 = arith.constant dense<0.000000e+00> : vector<8x128xf32>
    %128 = tpu.matmul %125, %127, %cst_46 {dimension_numbers = #tpu.dot_dimension_numbers<[1], [0], [0], [1], [0, 0, 1, 1], [], []>} : vector<8x128xbf16>, vector<128x128xbf16>, vector<8x128xf32> -> vector<8x128xf32>
    %129 = arith.addf %126, %128 : vector<8x128xf32>
    %130 = math.tanh %129 : vector<8x128xf32>
    %131 = arith.truncf %130 : vector<8x128xf32> to vector<8x128xbf16>
    %132 = tpu.concatenate %125, %131 in 1 : vector<8x128xbf16>, vector<8x128xbf16> -> vector<8x256xbf16>
    %133 = vector.extract_strided_slice %124 {offsets = [0, 128], sizes = [8, 640], strides = [1, 1]} : vector<8x768xf32> to vector<8x640xf32>
    %c0_47 = arith.constant 0 : index
    %c0_48 = arith.constant 0 : index
    %134 = vector.load %arg2[%c0_47, %c0_48] : memref<256x640xbf16, #tpu.memory_space<vmem>>, vector<256x640xbf16>
    %cst_49 = arith.constant dense<0.000000e+00> : vector<8x640xf32>
    %135 = tpu.matmul %132, %134, %cst_49 {dimension_numbers = #tpu.dot_dimension_numbers<[1], [0], [0], [1], [0, 0, 1, 1], [], []>} : vector<8x256xbf16>, vector<256x640xbf16>, vector<8x640xf32> -> vector<8x640xf32>
    %136 = arith.addf %133, %135 : vector<8x640xf32>
    %137 = vector.extract_strided_slice %136 {offsets = [0, 0], sizes = [8, 128], strides = [1, 1]} : vector<8x640xf32> to vector<8x128xf32>
    %138 = arith.negf %137 : vector<8x128xf32>
    %139 = math.exp %138 : vector<8x128xf32>
    %cst_50 = arith.constant 1.000000e+00 : f32
    %140 = vector.broadcast %cst_50 : f32 to vector<8x128xf32>
    %141 = arith.addf %140, %139 : vector<8x128xf32>
    %142 = arith.divf %140, %141 : vector<8x128xf32>
    %143 = vector.extract_strided_slice %136 {offsets = [0, 128], sizes = [8, 128], strides = [1, 1]} : vector<8x640xf32> to vector<8x128xf32>
    %144 = arith.negf %143 : vector<8x128xf32>
    %145 = math.exp %144 : vector<8x128xf32>
    %cst_51 = arith.constant 1.000000e+00 : f32
    %146 = vector.broadcast %cst_51 : f32 to vector<8x128xf32>
    %147 = arith.addf %146, %145 : vector<8x128xf32>
    %148 = arith.divf %146, %147 : vector<8x128xf32>
    %149 = vector.extract_strided_slice %136 {offsets = [0, 256], sizes = [8, 128], strides = [1, 1]} : vector<8x640xf32> to vector<8x128xf32>
    %150 = arith.negf %149 : vector<8x128xf32>
    %151 = math.exp %150 : vector<8x128xf32>
    %cst_52 = arith.constant 1.000000e+00 : f32
    %152 = vector.broadcast %cst_52 : f32 to vector<8x128xf32>
    %153 = arith.addf %152, %151 : vector<8x128xf32>
    %154 = arith.divf %152, %153 : vector<8x128xf32>
    %155 = vector.extract_strided_slice %136 {offsets = [0, 384], sizes = [8, 128], strides = [1, 1]} : vector<8x640xf32> to vector<8x128xf32>
    %156 = math.tanh %155 : vector<8x128xf32>
    %157 = vector.extract_strided_slice %136 {offsets = [0, 512], sizes = [8, 128], strides = [1, 1]} : vector<8x640xf32> to vector<8x128xf32>
    %158 = arith.negf %157 : vector<8x128xf32>
    %159 = math.exp %158 : vector<8x128xf32>
    %cst_53 = arith.constant 1.000000e+00 : f32
    %160 = vector.broadcast %cst_53 : f32 to vector<8x128xf32>
    %161 = arith.addf %160, %159 : vector<8x128xf32>
    %162 = arith.divf %160, %161 : vector<8x128xf32>
    %163 = arith.mulf %142, %113 : vector<8x128xf32>
    %164 = arith.mulf %148, %156 : vector<8x128xf32>
    %165 = arith.addf %163, %164 : vector<8x128xf32>
    %166 = arith.mulf %154, %130 : vector<8x128xf32>
    %167 = arith.addf %165, %166 : vector<8x128xf32>
    %168 = math.tanh %167 : vector<8x128xf32>
    %169 = arith.mulf %162, %168 : vector<8x128xf32>
    %c5_i32_54 = arith.constant 5 : i32
    %170 = arith.addi %c5_i32_54, %c2_i32 : i32
    %171 = arith.index_cast %170 : i32 to index
    %c0_55 = arith.constant 0 : index
    %c0_56 = arith.constant 0 : index
    %172 = vector.load %arg17[%171, %c0_55, %c0_56] : memref<13x8x128xf32, #tpu.memory_space<vmem>>, vector<1x8x128xf32>
    %173 = vector.shape_cast %172 : vector<1x8x128xf32> to vector<8x128xf32>
    %174 = vector.shape_cast %169 : vector<8x128xf32> to vector<1x8x128xf32>
    tpu.vector_store %arg17[%171, %c0_55, %c0_56], %174 {strides = array<i32>} : memref<13x8x128xf32, #tpu.memory_space<vmem>>, vector<1x8x128xf32>,
    %c3_i32 = arith.constant 3 : i32
    %c8_i32_57 = arith.constant 8 : i32
    %175 = arith.muli %c3_i32, %c8_i32_57 : i32
    %176 = tpu.assume_multiple %175, 8 : i32
    %177 = arith.index_cast %176 : i32 to index
    %c0_58 = arith.constant 0 : index
    %178 = vector.load %arg16[%177, %c0_58] : memref<64x768xf32, #tpu.memory_space<vmem>>, vector<8x768xf32>
    %179 = arith.truncf %169 : vector<8x128xf32> to vector<8x128xbf16>
    %180 = vector.extract_strided_slice %178 {offsets = [0, 0], sizes = [8, 128], strides = [1, 1]} : vector<8x768xf32> to vector<8x128xf32>
    %c0_59 = arith.constant 0 : index
    %c0_60 = arith.constant 0 : index
    %181 = vector.load %arg1[%c0_59, %c0_60] : memref<128x128xbf16, #tpu.memory_space<vmem>>, vector<128x128xbf16>
    %cst_61 = arith.constant dense<0.000000e+00> : vector<8x128xf32>
    %182 = tpu.matmul %179, %181, %cst_61 {dimension_numbers = #tpu.dot_dimension_numbers<[1], [0], [0], [1], [0, 0, 1, 1], [], []>} : vector<8x128xbf16>, vector<128x128xbf16>, vector<8x128xf32> -> vector<8x128xf32>
    %183 = arith.addf %180, %182 : vector<8x128xf32>
    %184 = math.tanh %183 : vector<8x128xf32>
    %185 = arith.truncf %184 : vector<8x128xf32> to vector<8x128xbf16>
    %186 = tpu.concatenate %179, %185 in 1 : vector<8x128xbf16>, vector<8x128xbf16> -> vector<8x256xbf16>
    %187 = vector.extract_strided_slice %178 {offsets = [0, 128], sizes = [8, 640], strides = [1, 1]} : vector<8x768xf32> to vector<8x640xf32>
    %c0_62 = arith.constant 0 : index
    %c0_63 = arith.constant 0 : index
    %188 = vector.load %arg2[%c0_62, %c0_63] : memref<256x640xbf16, #tpu.memory_space<vmem>>, vector<256x640xbf16>
    %cst_64 = arith.constant dense<0.000000e+00> : vector<8x640xf32>
    %189 = tpu.matmul %186, %188, %cst_64 {dimension_numbers = #tpu.dot_dimension_numbers<[1], [0], [0], [1], [0, 0, 1, 1], [], []>} : vector<8x256xbf16>, vector<256x640xbf16>, vector<8x640xf32> -> vector<8x640xf32>
    %190 = arith.addf %187, %189 : vector<8x640xf32>
    %191 = vector.extract_strided_slice %190 {offsets = [0, 0], sizes = [8, 128], strides = [1, 1]} : vector<8x640xf32> to vector<8x128xf32>
    %192 = arith.negf %191 : vector<8x128xf32>
    %193 = math.exp %192 : vector<8x128xf32>
    %cst_65 = arith.constant 1.000000e+00 : f32
    %194 = vector.broadcast %cst_65 : f32 to vector<8x128xf32>
    %195 = arith.addf %194, %193 : vector<8x128xf32>
    %196 = arith.divf %194, %195 : vector<8x128xf32>
    %197 = vector.extract_strided_slice %190 {offsets = [0, 128], sizes = [8, 128], strides = [1, 1]} : vector<8x640xf32> to vector<8x128xf32>
    %198 = arith.negf %197 : vector<8x128xf32>
    %199 = math.exp %198 : vector<8x128xf32>
    %cst_66 = arith.constant 1.000000e+00 : f32
    %200 = vector.broadcast %cst_66 : f32 to vector<8x128xf32>
    %201 = arith.addf %200, %199 : vector<8x128xf32>
    %202 = arith.divf %200, %201 : vector<8x128xf32>
    %203 = vector.extract_strided_slice %190 {offsets = [0, 256], sizes = [8, 128], strides = [1, 1]} : vector<8x640xf32> to vector<8x128xf32>
    %204 = arith.negf %203 : vector<8x128xf32>
    %205 = math.exp %204 : vector<8x128xf32>
    %cst_67 = arith.constant 1.000000e+00 : f32
    %206 = vector.broadcast %cst_67 : f32 to vector<8x128xf32>
    %207 = arith.addf %206, %205 : vector<8x128xf32>
    %208 = arith.divf %206, %207 : vector<8x128xf32>
    %209 = vector.extract_strided_slice %190 {offsets = [0, 384], sizes = [8, 128], strides = [1, 1]} : vector<8x640xf32> to vector<8x128xf32>
    %210 = math.tanh %209 : vector<8x128xf32>
    %211 = vector.extract_strided_slice %190 {offsets = [0, 512], sizes = [8, 128], strides = [1, 1]} : vector<8x640xf32> to vector<8x128xf32>
    %212 = arith.negf %211 : vector<8x128xf32>
    %213 = math.exp %212 : vector<8x128xf32>
    %cst_68 = arith.constant 1.000000e+00 : f32
    %214 = vector.broadcast %cst_68 : f32 to vector<8x128xf32>
    %215 = arith.addf %214, %213 : vector<8x128xf32>
    %216 = arith.divf %214, %215 : vector<8x128xf32>
    %217 = arith.mulf %196, %167 : vector<8x128xf32>
    %218 = arith.mulf %202, %210 : vector<8x128xf32>
    %219 = arith.addf %217, %218 : vector<8x128xf32>
    %220 = arith.mulf %208, %184 : vector<8x128xf32>
    %221 = arith.addf %219, %220 : vector<8x128xf32>
    %222 = math.tanh %221 : vector<8x128xf32>
    %223 = arith.mulf %216, %222 : vector<8x128xf32>
    %c5_i32_69 = arith.constant 5 : i32
    %224 = arith.addi %c5_i32_69, %c3_i32 : i32
    %225 = arith.index_cast %224 : i32 to index
    %c0_70 = arith.constant 0 : index
    %c0_71 = arith.constant 0 : index
    %226 = vector.load %arg17[%225, %c0_70, %c0_71] : memref<13x8x128xf32, #tpu.memory_space<vmem>>, vector<1x8x128xf32>
    %227 = vector.shape_cast %226 : vector<1x8x128xf32> to vector<8x128xf32>
    %228 = vector.shape_cast %223 : vector<8x128xf32> to vector<1x8x128xf32>
    tpu.vector_store %arg17[%225, %c0_70, %c0_71], %228 {strides = array<i32>} : memref<13x8x128xf32, #tpu.memory_space<vmem>>, vector<1x8x128xf32>,
    %c4_i32 = arith.constant 4 : i32
    %c8_i32_72 = arith.constant 8 : i32
    %229 = arith.muli %c4_i32, %c8_i32_72 : i32
    %230 = tpu.assume_multiple %229, 8 : i32
    %231 = arith.index_cast %230 : i32 to index
    %c0_73 = arith.constant 0 : index
    %232 = vector.load %arg16[%231, %c0_73] : memref<64x768xf32, #tpu.memory_space<vmem>>, vector<8x768xf32>
    %233 = arith.truncf %223 : vector<8x128xf32> to vector<8x128xbf16>
    %234 = vector.extract_strided_slice %232 {offsets = [0, 0], sizes = [8, 128], strides = [1, 1]} : vector<8x768xf32> to vector<8x128xf32>
    %c0_74 = arith.constant 0 : index
    %c0_75 = arith.constant 0 : index
    %235 = vector.load %arg1[%c0_74, %c0_75] : memref<128x128xbf16, #tpu.memory_space<vmem>>, vector<128x128xbf16>
    %cst_76 = arith.constant dense<0.000000e+00> : vector<8x128xf32>
    %236 = tpu.matmul %233, %235, %cst_76 {dimension_numbers = #tpu.dot_dimension_numbers<[1], [0], [0], [1], [0, 0, 1, 1], [], []>} : vector<8x128xbf16>, vector<128x128xbf16>, vector<8x128xf32> -> vector<8x128xf32>
    %237 = arith.addf %234, %236 : vector<8x128xf32>
    %238 = math.tanh %237 : vector<8x128xf32>
    %239 = arith.truncf %238 : vector<8x128xf32> to vector<8x128xbf16>
    %240 = tpu.concatenate %233, %239 in 1 : vector<8x128xbf16>, vector<8x128xbf16> -> vector<8x256xbf16>
    %241 = vector.extract_strided_slice %232 {offsets = [0, 128], sizes = [8, 640], strides = [1, 1]} : vector<8x768xf32> to vector<8x640xf32>
    %c0_77 = arith.constant 0 : index
    %c0_78 = arith.constant 0 : index
    %242 = vector.load %arg2[%c0_77, %c0_78] : memref<256x640xbf16, #tpu.memory_space<vmem>>, vector<256x640xbf16>
    %cst_79 = arith.constant dense<0.000000e+00> : vector<8x640xf32>
    %243 = tpu.matmul %240, %242, %cst_79 {dimension_numbers = #tpu.dot_dimension_numbers<[1], [0], [0], [1], [0, 0, 1, 1], [], []>} : vector<8x256xbf16>, vector<256x640xbf16>, vector<8x640xf32> -> vector<8x640xf32>
    %244 = arith.addf %241, %243 : vector<8x640xf32>
    %245 = vector.extract_strided_slice %244 {offsets = [0, 0], sizes = [8, 128], strides = [1, 1]} : vector<8x640xf32> to vector<8x128xf32>
    %246 = arith.negf %245 : vector<8x128xf32>
    %247 = math.exp %246 : vector<8x128xf32>
    %cst_80 = arith.constant 1.000000e+00 : f32
    %248 = vector.broadcast %cst_80 : f32 to vector<8x128xf32>
    %249 = arith.addf %248, %247 : vector<8x128xf32>
    %250 = arith.divf %248, %249 : vector<8x128xf32>
    %251 = vector.extract_strided_slice %244 {offsets = [0, 128], sizes = [8, 128], strides = [1, 1]} : vector<8x640xf32> to vector<8x128xf32>
    %252 = arith.negf %251 : vector<8x128xf32>
    %253 = math.exp %252 : vector<8x128xf32>
    %cst_81 = arith.constant 1.000000e+00 : f32
    %254 = vector.broadcast %cst_81 : f32 to vector<8x128xf32>
    %255 = arith.addf %254, %253 : vector<8x128xf32>
    %256 = arith.divf %254, %255 : vector<8x128xf32>
    %257 = vector.extract_strided_slice %244 {offsets = [0, 256], sizes = [8, 128], strides = [1, 1]} : vector<8x640xf32> to vector<8x128xf32>
    %258 = arith.negf %257 : vector<8x128xf32>
    %259 = math.exp %258 : vector<8x128xf32>
    %cst_82 = arith.constant 1.000000e+00 : f32
    %260 = vector.broadcast %cst_82 : f32 to vector<8x128xf32>
    %261 = arith.addf %260, %259 : vector<8x128xf32>
    %262 = arith.divf %260, %261 : vector<8x128xf32>
    %263 = vector.extract_strided_slice %244 {offsets = [0, 384], sizes = [8, 128], strides = [1, 1]} : vector<8x640xf32> to vector<8x128xf32>
    %264 = math.tanh %263 : vector<8x128xf32>
    %265 = vector.extract_strided_slice %244 {offsets = [0, 512], sizes = [8, 128], strides = [1, 1]} : vector<8x640xf32> to vector<8x128xf32>
    %266 = arith.negf %265 : vector<8x128xf32>
    %267 = math.exp %266 : vector<8x128xf32>
    %cst_83 = arith.constant 1.000000e+00 : f32
    %268 = vector.broadcast %cst_83 : f32 to vector<8x128xf32>
    %269 = arith.addf %268, %267 : vector<8x128xf32>
    %270 = arith.divf %268, %269 : vector<8x128xf32>
    %271 = arith.mulf %250, %221 : vector<8x128xf32>
    %272 = arith.mulf %256, %264 : vector<8x128xf32>
    %273 = arith.addf %271, %272 : vector<8x128xf32>
    %274 = arith.mulf %262, %238 : vector<8x128xf32>
    %275 = arith.addf %273, %274 : vector<8x128xf32>
    %276 = math.tanh %275 : vector<8x128xf32>
    %277 = arith.mulf %270, %276 : vector<8x128xf32>
    %c5_i32_84 = arith.constant 5 : i32
    %278 = arith.addi %c5_i32_84, %c4_i32 : i32
    %279 = arith.index_cast %278 : i32 to index
    %c0_85 = arith.constant 0 : index
    %c0_86 = arith.constant 0 : index
    %280 = vector.load %arg17[%279, %c0_85, %c0_86] : memref<13x8x128xf32, #tpu.memory_space<vmem>>, vector<1x8x128xf32>
    %281 = vector.shape_cast %280 : vector<1x8x128xf32> to vector<8x128xf32>
    %282 = vector.shape_cast %277 : vector<8x128xf32> to vector<1x8x128xf32>
    tpu.vector_store %arg17[%279, %c0_85, %c0_86], %282 {strides = array<i32>} : memref<13x8x128xf32, #tpu.memory_space<vmem>>, vector<1x8x128xf32>,
    %c5_i32_87 = arith.constant 5 : i32
    %c8_i32_88 = arith.constant 8 : i32
    %283 = arith.muli %c5_i32_87, %c8_i32_88 : i32
    %284 = tpu.assume_multiple %283, 8 : i32
    %285 = arith.index_cast %284 : i32 to index
    %c0_89 = arith.constant 0 : index
    %286 = vector.load %arg16[%285, %c0_89] : memref<64x768xf32, #tpu.memory_space<vmem>>, vector<8x768xf32>
    %287 = arith.truncf %277 : vector<8x128xf32> to vector<8x128xbf16>
    %288 = vector.extract_strided_slice %286 {offsets = [0, 0], sizes = [8, 128], strides = [1, 1]} : vector<8x768xf32> to vector<8x128xf32>
    %c0_90 = arith.constant 0 : index
    %c0_91 = arith.constant 0 : index
    %289 = vector.load %arg1[%c0_90, %c0_91] : memref<128x128xbf16, #tpu.memory_space<vmem>>, vector<128x128xbf16>
    %cst_92 = arith.constant dense<0.000000e+00> : vector<8x128xf32>
    %290 = tpu.matmul %287, %289, %cst_92 {dimension_numbers = #tpu.dot_dimension_numbers<[1], [0], [0], [1], [0, 0, 1, 1], [], []>} : vector<8x128xbf16>, vector<128x128xbf16>, vector<8x128xf32> -> vector<8x128xf32>
    %291 = arith.addf %288, %290 : vector<8x128xf32>
    %292 = math.tanh %291 : vector<8x128xf32>
    %293 = arith.truncf %292 : vector<8x128xf32> to vector<8x128xbf16>
    %294 = tpu.concatenate %287, %293 in 1 : vector<8x128xbf16>, vector<8x128xbf16> -> vector<8x256xbf16>
    %295 = vector.extract_strided_slice %286 {offsets = [0, 128], sizes = [8, 640], strides = [1, 1]} : vector<8x768xf32> to vector<8x640xf32>
    %c0_93 = arith.constant 0 : index
    %c0_94 = arith.constant 0 : index
    %296 = vector.load %arg2[%c0_93, %c0_94] : memref<256x640xbf16, #tpu.memory_space<vmem>>, vector<256x640xbf16>
    %cst_95 = arith.constant dense<0.000000e+00> : vector<8x640xf32>
    %297 = tpu.matmul %294, %296, %cst_95 {dimension_numbers = #tpu.dot_dimension_numbers<[1], [0], [0], [1], [0, 0, 1, 1], [], []>} : vector<8x256xbf16>, vector<256x640xbf16>, vector<8x640xf32> -> vector<8x640xf32>
    %298 = arith.addf %295, %297 : vector<8x640xf32>
    %299 = vector.extract_strided_slice %298 {offsets = [0, 0], sizes = [8, 128], strides = [1, 1]} : vector<8x640xf32> to vector<8x128xf32>
    %300 = arith.negf %299 : vector<8x128xf32>
    %301 = math.exp %300 : vector<8x128xf32>
    %cst_96 = arith.constant 1.000000e+00 : f32
    %302 = vector.broadcast %cst_96 : f32 to vector<8x128xf32>
    %303 = arith.addf %302, %301 : vector<8x128xf32>
    %304 = arith.divf %302, %303 : vector<8x128xf32>
    %305 = vector.extract_strided_slice %298 {offsets = [0, 128], sizes = [8, 128], strides = [1, 1]} : vector<8x640xf32> to vector<8x128xf32>
    %306 = arith.negf %305 : vector<8x128xf32>
    %307 = math.exp %306 : vector<8x128xf32>
    %cst_97 = arith.constant 1.000000e+00 : f32
    %308 = vector.broadcast %cst_97 : f32 to vector<8x128xf32>
    %309 = arith.addf %308, %307 : vector<8x128xf32>
    %310 = arith.divf %308, %309 : vector<8x128xf32>
    %311 = vector.extract_strided_slice %298 {offsets = [0, 256], sizes = [8, 128], strides = [1, 1]} : vector<8x640xf32> to vector<8x128xf32>
    %312 = arith.negf %311 : vector<8x128xf32>
    %313 = math.exp %312 : vector<8x128xf32>
    %cst_98 = arith.constant 1.000000e+00 : f32
    %314 = vector.broadcast %cst_98 : f32 to vector<8x128xf32>
    %315 = arith.addf %314, %313 : vector<8x128xf32>
    %316 = arith.divf %314, %315 : vector<8x128xf32>
    %317 = vector.extract_strided_slice %298 {offsets = [0, 384], sizes = [8, 128], strides = [1, 1]} : vector<8x640xf32> to vector<8x128xf32>
    %318 = math.tanh %317 : vector<8x128xf32>
    %319 = vector.extract_strided_slice %298 {offsets = [0, 512], sizes = [8, 128], strides = [1, 1]} : vector<8x640xf32> to vector<8x128xf32>
    %320 = arith.negf %319 : vector<8x128xf32>
    %321 = math.exp %320 : vector<8x128xf32>
    %cst_99 = arith.constant 1.000000e+00 : f32
    %322 = vector.broadcast %cst_99 : f32 to vector<8x128xf32>
    %323 = arith.addf %322, %321 : vector<8x128xf32>
    %324 = arith.divf %322, %323 : vector<8x128xf32>
    %325 = arith.mulf %304, %275 : vector<8x128xf32>
    %326 = arith.mulf %310, %318 : vector<8x128xf32>
    %327 = arith.addf %325, %326 : vector<8x128xf32>
    %328 = arith.mulf %316, %292 : vector<8x128xf32>
    %329 = arith.addf %327, %328 : vector<8x128xf32>
    %330 = math.tanh %329 : vector<8x128xf32>
    %331 = arith.mulf %324, %330 : vector<8x128xf32>
    %c5_i32_100 = arith.constant 5 : i32
    %332 = arith.addi %c5_i32_100, %c5_i32_87 : i32
    %333 = arith.index_cast %332 : i32 to index
    %c0_101 = arith.constant 0 : index
    %c0_102 = arith.constant 0 : index
    %334 = vector.load %arg17[%333, %c0_101, %c0_102] : memref<13x8x128xf32, #tpu.memory_space<vmem>>, vector<1x8x128xf32>
    %335 = vector.shape_cast %334 : vector<1x8x128xf32> to vector<8x128xf32>
    %336 = vector.shape_cast %331 : vector<8x128xf32> to vector<1x8x128xf32>
    tpu.vector_store %arg17[%333, %c0_101, %c0_102], %336 {strides = array<i32>} : memref<13x8x128xf32, #tpu.memory_space<vmem>>, vector<1x8x128xf32>,
    %c6_i32 = arith.constant 6 : i32
    %c8_i32_103 = arith.constant 8 : i32
    %337 = arith.muli %c6_i32, %c8_i32_103 : i32
    %338 = tpu.assume_multiple %337, 8 : i32
    %339 = arith.index_cast %338 : i32 to index
    %c0_104 = arith.constant 0 : index
    %340 = vector.load %arg16[%339, %c0_104] : memref<64x768xf32, #tpu.memory_space<vmem>>, vector<8x768xf32>
    %341 = arith.truncf %331 : vector<8x128xf32> to vector<8x128xbf16>
    %342 = vector.extract_strided_slice %340 {offsets = [0, 0], sizes = [8, 128], strides = [1, 1]} : vector<8x768xf32> to vector<8x128xf32>
    %c0_105 = arith.constant 0 : index
    %c0_106 = arith.constant 0 : index
    %343 = vector.load %arg1[%c0_105, %c0_106] : memref<128x128xbf16, #tpu.memory_space<vmem>>, vector<128x128xbf16>
    %cst_107 = arith.constant dense<0.000000e+00> : vector<8x128xf32>
    %344 = tpu.matmul %341, %343, %cst_107 {dimension_numbers = #tpu.dot_dimension_numbers<[1], [0], [0], [1], [0, 0, 1, 1], [], []>} : vector<8x128xbf16>, vector<128x128xbf16>, vector<8x128xf32> -> vector<8x128xf32>
    %345 = arith.addf %342, %344 : vector<8x128xf32>
    %346 = math.tanh %345 : vector<8x128xf32>
    %347 = arith.truncf %346 : vector<8x128xf32> to vector<8x128xbf16>
    %348 = tpu.concatenate %341, %347 in 1 : vector<8x128xbf16>, vector<8x128xbf16> -> vector<8x256xbf16>
    %349 = vector.extract_strided_slice %340 {offsets = [0, 128], sizes = [8, 640], strides = [1, 1]} : vector<8x768xf32> to vector<8x640xf32>
    %c0_108 = arith.constant 0 : index
    %c0_109 = arith.constant 0 : index
    %350 = vector.load %arg2[%c0_108, %c0_109] : memref<256x640xbf16, #tpu.memory_space<vmem>>, vector<256x640xbf16>
    %cst_110 = arith.constant dense<0.000000e+00> : vector<8x640xf32>
    %351 = tpu.matmul %348, %350, %cst_110 {dimension_numbers = #tpu.dot_dimension_numbers<[1], [0], [0], [1], [0, 0, 1, 1], [], []>} : vector<8x256xbf16>, vector<256x640xbf16>, vector<8x640xf32> -> vector<8x640xf32>
    %352 = arith.addf %349, %351 : vector<8x640xf32>
    %353 = vector.extract_strided_slice %352 {offsets = [0, 0], sizes = [8, 128], strides = [1, 1]} : vector<8x640xf32> to vector<8x128xf32>
    %354 = arith.negf %353 : vector<8x128xf32>
    %355 = math.exp %354 : vector<8x128xf32>
    %cst_111 = arith.constant 1.000000e+00 : f32
    %356 = vector.broadcast %cst_111 : f32 to vector<8x128xf32>
    %357 = arith.addf %356, %355 : vector<8x128xf32>
    %358 = arith.divf %356, %357 : vector<8x128xf32>
    %359 = vector.extract_strided_slice %352 {offsets = [0, 128], sizes = [8, 128], strides = [1, 1]} : vector<8x640xf32> to vector<8x128xf32>
    %360 = arith.negf %359 : vector<8x128xf32>
    %361 = math.exp %360 : vector<8x128xf32>
    %cst_112 = arith.constant 1.000000e+00 : f32
    %362 = vector.broadcast %cst_112 : f32 to vector<8x128xf32>
    %363 = arith.addf %362, %361 : vector<8x128xf32>
    %364 = arith.divf %362, %363 : vector<8x128xf32>
    %365 = vector.extract_strided_slice %352 {offsets = [0, 256], sizes = [8, 128], strides = [1, 1]} : vector<8x640xf32> to vector<8x128xf32>
    %366 = arith.negf %365 : vector<8x128xf32>
    %367 = math.exp %366 : vector<8x128xf32>
    %cst_113 = arith.constant 1.000000e+00 : f32
    %368 = vector.broadcast %cst_113 : f32 to vector<8x128xf32>
    %369 = arith.addf %368, %367 : vector<8x128xf32>
    %370 = arith.divf %368, %369 : vector<8x128xf32>
    %371 = vector.extract_strided_slice %352 {offsets = [0, 384], sizes = [8, 128], strides = [1, 1]} : vector<8x640xf32> to vector<8x128xf32>
    %372 = math.tanh %371 : vector<8x128xf32>
    %373 = vector.extract_strided_slice %352 {offsets = [0, 512], sizes = [8, 128], strides = [1, 1]} : vector<8x640xf32> to vector<8x128xf32>
    %374 = arith.negf %373 : vector<8x128xf32>
    %375 = math.exp %374 : vector<8x128xf32>
    %cst_114 = arith.constant 1.000000e+00 : f32
    %376 = vector.broadcast %cst_114 : f32 to vector<8x128xf32>
    %377 = arith.addf %376, %375 : vector<8x128xf32>
    %378 = arith.divf %376, %377 : vector<8x128xf32>
    %379 = arith.mulf %358, %329 : vector<8x128xf32>
    %380 = arith.mulf %364, %372 : vector<8x128xf32>
    %381 = arith.addf %379, %380 : vector<8x128xf32>
    %382 = arith.mulf %370, %346 : vector<8x128xf32>
    %383 = arith.addf %381, %382 : vector<8x128xf32>
    %384 = math.tanh %383 : vector<8x128xf32>
    %385 = arith.mulf %378, %384 : vector<8x128xf32>
    %c5_i32_115 = arith.constant 5 : i32
    %386 = arith.addi %c5_i32_115, %c6_i32 : i32
    %387 = arith.index_cast %386 : i32 to index
    %c0_116 = arith.constant 0 : index
    %c0_117 = arith.constant 0 : index
    %388 = vector.load %arg17[%387, %c0_116, %c0_117] : memref<13x8x128xf32, #tpu.memory_space<vmem>>, vector<1x8x128xf32>
    %389 = vector.shape_cast %388 : vector<1x8x128xf32> to vector<8x128xf32>
    %390 = vector.shape_cast %385 : vector<8x128xf32> to vector<1x8x128xf32>
    tpu.vector_store %arg17[%387, %c0_116, %c0_117], %390 {strides = array<i32>} : memref<13x8x128xf32, #tpu.memory_space<vmem>>, vector<1x8x128xf32>,
    %c7_i32 = arith.constant 7 : i32
    %c8_i32_118 = arith.constant 8 : i32
    %391 = arith.muli %c7_i32, %c8_i32_118 : i32
    %392 = tpu.assume_multiple %391, 8 : i32
    %393 = arith.index_cast %392 : i32 to index
    %c0_119 = arith.constant 0 : index
    %394 = vector.load %arg16[%393, %c0_119] : memref<64x768xf32, #tpu.memory_space<vmem>>, vector<8x768xf32>
    %395 = arith.truncf %385 : vector<8x128xf32> to vector<8x128xbf16>
    %396 = vector.extract_strided_slice %394 {offsets = [0, 0], sizes = [8, 128], strides = [1, 1]} : vector<8x768xf32> to vector<8x128xf32>
    %c0_120 = arith.constant 0 : index
    %c0_121 = arith.constant 0 : index
    %397 = vector.load %arg1[%c0_120, %c0_121] : memref<128x128xbf16, #tpu.memory_space<vmem>>, vector<128x128xbf16>
    %cst_122 = arith.constant dense<0.000000e+00> : vector<8x128xf32>
    %398 = tpu.matmul %395, %397, %cst_122 {dimension_numbers = #tpu.dot_dimension_numbers<[1], [0], [0], [1], [0, 0, 1, 1], [], []>} : vector<8x128xbf16>, vector<128x128xbf16>, vector<8x128xf32> -> vector<8x128xf32>
    %399 = arith.addf %396, %398 : vector<8x128xf32>
    %400 = math.tanh %399 : vector<8x128xf32>
    %401 = arith.truncf %400 : vector<8x128xf32> to vector<8x128xbf16>
    %402 = tpu.concatenate %395, %401 in 1 : vector<8x128xbf16>, vector<8x128xbf16> -> vector<8x256xbf16>
    %403 = vector.extract_strided_slice %394 {offsets = [0, 128], sizes = [8, 640], strides = [1, 1]} : vector<8x768xf32> to vector<8x640xf32>
    %c0_123 = arith.constant 0 : index
    %c0_124 = arith.constant 0 : index
    %404 = vector.load %arg2[%c0_123, %c0_124] : memref<256x640xbf16, #tpu.memory_space<vmem>>, vector<256x640xbf16>
    %cst_125 = arith.constant dense<0.000000e+00> : vector<8x640xf32>
    %405 = tpu.matmul %402, %404, %cst_125 {dimension_numbers = #tpu.dot_dimension_numbers<[1], [0], [0], [1], [0, 0, 1, 1], [], []>} : vector<8x256xbf16>, vector<256x640xbf16>, vector<8x640xf32> -> vector<8x640xf32>
    %406 = arith.addf %403, %405 : vector<8x640xf32>
    %407 = vector.extract_strided_slice %406 {offsets = [0, 0], sizes = [8, 128], strides = [1, 1]} : vector<8x640xf32> to vector<8x128xf32>
    %408 = arith.negf %407 : vector<8x128xf32>
    %409 = math.exp %408 : vector<8x128xf32>
    %cst_126 = arith.constant 1.000000e+00 : f32
    %410 = vector.broadcast %cst_126 : f32 to vector<8x128xf32>
    %411 = arith.addf %410, %409 : vector<8x128xf32>
    %412 = arith.divf %410, %411 : vector<8x128xf32>
    %413 = vector.extract_strided_slice %406 {offsets = [0, 128], sizes = [8, 128], strides = [1, 1]} : vector<8x640xf32> to vector<8x128xf32>
    %414 = arith.negf %413 : vector<8x128xf32>
    %415 = math.exp %414 : vector<8x128xf32>
    %cst_127 = arith.constant 1.000000e+00 : f32
    %416 = vector.broadcast %cst_127 : f32 to vector<8x128xf32>
    %417 = arith.addf %416, %415 : vector<8x128xf32>
    %418 = arith.divf %416, %417 : vector<8x128xf32>
    %419 = vector.extract_strided_slice %406 {offsets = [0, 256], sizes = [8, 128], strides = [1, 1]} : vector<8x640xf32> to vector<8x128xf32>
    %420 = arith.negf %419 : vector<8x128xf32>
    %421 = math.exp %420 : vector<8x128xf32>
    %cst_128 = arith.constant 1.000000e+00 : f32
    %422 = vector.broadcast %cst_128 : f32 to vector<8x128xf32>
    %423 = arith.addf %422, %421 : vector<8x128xf32>
    %424 = arith.divf %422, %423 : vector<8x128xf32>
    %425 = vector.extract_strided_slice %406 {offsets = [0, 384], sizes = [8, 128], strides = [1, 1]} : vector<8x640xf32> to vector<8x128xf32>
    %426 = math.tanh %425 : vector<8x128xf32>
    %427 = vector.extract_strided_slice %406 {offsets = [0, 512], sizes = [8, 128], strides = [1, 1]} : vector<8x640xf32> to vector<8x128xf32>
    %428 = arith.negf %427 : vector<8x128xf32>
    %429 = math.exp %428 : vector<8x128xf32>
    %cst_129 = arith.constant 1.000000e+00 : f32
    %430 = vector.broadcast %cst_129 : f32 to vector<8x128xf32>
    %431 = arith.addf %430, %429 : vector<8x128xf32>
    %432 = arith.divf %430, %431 : vector<8x128xf32>
    %433 = arith.mulf %412, %383 : vector<8x128xf32>
    %434 = arith.mulf %418, %426 : vector<8x128xf32>
    %435 = arith.addf %433, %434 : vector<8x128xf32>
    %436 = arith.mulf %424, %400 : vector<8x128xf32>
    %437 = arith.addf %435, %436 : vector<8x128xf32>
    %438 = math.tanh %437 : vector<8x128xf32>
    %439 = arith.mulf %432, %438 : vector<8x128xf32>
    %c5_i32_130 = arith.constant 5 : i32
    %440 = arith.addi %c5_i32_130, %c7_i32 : i32
    %441 = arith.index_cast %440 : i32 to index
    %c0_131 = arith.constant 0 : index
    %c0_132 = arith.constant 0 : index
    %442 = vector.load %arg17[%441, %c0_131, %c0_132] : memref<13x8x128xf32, #tpu.memory_space<vmem>>, vector<1x8x128xf32>
    %443 = vector.shape_cast %442 : vector<1x8x128xf32> to vector<8x128xf32>
    %444 = vector.shape_cast %439 : vector<8x128xf32> to vector<1x8x128xf32>
    tpu.vector_store %arg17[%441, %c0_131, %c0_132], %444 {strides = array<i32>} : memref<13x8x128xf32, #tpu.memory_space<vmem>>, vector<1x8x128xf32>,
    %c8_i32_133 = arith.constant 8 : i32
    %c8 = arith.constant 8 : index
    %c0_134 = arith.constant 0 : index
    %c0_135 = arith.constant 0 : index
    %445 = vector.load %arg17[%c8, %c0_134, %c0_135] : memref<13x8x128xf32, #tpu.memory_space<vmem>>, vector<5x8x128xf32>
    %446 = tpu.concatenate %439, %437 in 1 : vector<8x128xf32>, vector<8x128xf32> -> vector<8x256xf32>
    %447 = arith.truncf %446 : vector<8x256xf32> to vector<8x256xbf16>
    %c0_136 = arith.constant 0 : index
    %c0_137 = arith.constant 0 : index
    %448 = vector.load %arg5[%c0_136, %c0_137] : memref<256x128xbf16, #tpu.memory_space<vmem>>, vector<256x128xbf16>
    %cst_138 = arith.constant dense<0.000000e+00> : vector<8x128xf32>
    %449 = tpu.matmul %447, %448, %cst_138 {dimension_numbers = #tpu.dot_dimension_numbers<[1], [0], [0], [1], [0, 0, 1, 1], [], []>} : vector<8x256xbf16>, vector<256x128xbf16>, vector<8x128xf32> -> vector<8x128xf32>
    %450 = vector.shape_cast %445 : vector<5x8x128xf32> to vector<40x128xf32>
    %451 = arith.truncf %450 : vector<40x128xf32> to vector<40x128xbf16>
    %c0_139 = arith.constant 0 : index
    %c0_140 = arith.constant 0 : index
    %452 = vector.load %arg6[%c0_139, %c0_140] : memref<128x128xbf16, #tpu.memory_space<vmem>>, vector<128x128xbf16>
    %cst_141 = arith.constant dense<0.000000e+00> : vector<40x128xf32>
    %453 = tpu.matmul %451, %452, %cst_141 {dimension_numbers = #tpu.dot_dimension_numbers<[1], [0], [0], [1], [0, 0, 1, 1], [], []>} : vector<40x128xbf16>, vector<128x128xbf16>, vector<40x128xf32> -> vector<40x128xf32>
    %454 = vector.shape_cast %453 : vector<40x128xf32> to vector<5x8x128xf32>
    %455 = vector.shape_cast %449 : vector<8x128xf32> to vector<1x8x128xf32>
    %456 = vector.broadcast %455 : vector<1x8x128xf32> to vector<5x8x128xf32>
    %457 = arith.addf %456, %454 : vector<5x8x128xf32>
    %c0_142 = arith.constant 0 : index
    %c0_143 = arith.constant 0 : index
    %458 = vector.load %arg7[%c0_142, %c0_143] : memref<1x128xf32, #tpu.memory_space<vmem>>, vector<1x128xf32>
    %459 = vector.shape_cast %458 : vector<1x128xf32> to vector<1x1x128xf32>
    %460 = vector.broadcast %459 : vector<1x1x128xf32> to vector<5x8x128xf32>
    %461 = arith.addf %457, %460 : vector<5x8x128xf32>
    %462 = math.tanh %461 : vector<5x8x128xf32>
    %c0_144 = arith.constant 0 : index
    %c0_145 = arith.constant 0 : index
    %463 = vector.load %arg8[%c0_144, %c0_145] : memref<1x128xf32, #tpu.memory_space<vmem>>, vector<1x128xf32>
    %464 = vector.shape_cast %463 : vector<1x128xf32> to vector<1x1x128xf32>
    %465 = vector.broadcast %464 : vector<1x1x128xf32> to vector<5x8x128xf32>
    %466 = arith.mulf %462, %465 : vector<5x8x128xf32>
    %cst_146 = arith.constant dense<0.000000e+00> : vector<5x8xf32>
    %467 = vector.multi_reduction <add>, %466, %cst_146 [2] : vector<5x8x128xf32> to vector<5x8xf32>
    %468 = vector.shape_cast %467 : vector<5x8xf32> to vector<5x8x1xf32>
    %cst_147 = arith.constant dense<0xFF800000> : vector<8x1xf32>
    %469 = vector.multi_reduction <maximumf>, %468, %cst_147 [0] : vector<5x8x1xf32> to vector<8x1xf32>
    %470 = vector.shape_cast %469 : vector<8x1xf32> to vector<1x8x1xf32>
    %471 = vector.broadcast %470 : vector<1x8x1xf32> to vector<5x8x1xf32>
    %472 = arith.subf %468, %471 : vector<5x8x1xf32>
    %473 = math.exp %472 : vector<5x8x1xf32>
    %cst_148 = arith.constant dense<0.000000e+00> : vector<8x1xf32>
    %474 = vector.multi_reduction <add>, %473, %cst_148 [0] : vector<5x8x1xf32> to vector<8x1xf32>
    %475 = vector.shape_cast %474 : vector<8x1xf32> to vector<1x8x1xf32>
    %476 = tpu.reciprocal %475 {approx = true} : vector<1x8x1xf32> -> vector<1x8x1xf32>
    %477 = vector.broadcast %476 : vector<1x8x1xf32> to vector<5x8x1xf32>
    %478 = arith.mulf %473, %477 : vector<5x8x1xf32>
    %479 = vector.broadcast %478 : vector<5x8x1xf32> to vector<5x8x128xf32>
    %480 = arith.mulf %479, %445 : vector<5x8x128xf32>
    %cst_149 = arith.constant dense<0.000000e+00> : vector<8x128xf32>
    %481 = vector.multi_reduction <add>, %480, %cst_149 [0] : vector<5x8x128xf32> to vector<8x128xf32>
    %c7 = arith.constant 7 : index
    %c0_150 = arith.constant 0 : index
    %c0_151 = arith.constant 0 : index
    %482 = vector.load %arg0[%c7, %c0_150, %c0_151] : memref<8x8x9xf32, #tpu.memory_space<vmem>>, vector<1x8x9xf32>
    %483 = vector.shape_cast %482 : vector<1x8x9xf32> to vector<8x9xf32>
    %484 = arith.truncf %483 : vector<8x9xf32> to vector<8x9xbf16>
    %485 = arith.truncf %439 : vector<8x128xf32> to vector<8x128xbf16>
    %c0_152 = arith.constant 0 : index
    %c0_153 = arith.constant 0 : index
    %486 = vector.load %arg9[%c0_152, %c0_153] : memref<128x128xbf16, #tpu.memory_space<vmem>>, vector<128x128xbf16>
    %cst_154 = arith.constant dense<0.000000e+00> : vector<8x128xf32>
    %487 = tpu.matmul %485, %486, %cst_154 {dimension_numbers = #tpu.dot_dimension_numbers<[1], [0], [0], [1], [0, 0, 1, 1], [], []>} : vector<8x128xbf16>, vector<128x128xbf16>, vector<8x128xf32> -> vector<8x128xf32>
    %488 = arith.truncf %481 : vector<8x128xf32> to vector<8x128xbf16>
    %c0_155 = arith.constant 0 : index
    %c0_156 = arith.constant 0 : index
    %489 = vector.load %arg10[%c0_155, %c0_156] : memref<128x128xbf16, #tpu.memory_space<vmem>>, vector<128x128xbf16>
    %cst_157 = arith.constant dense<0.000000e+00> : vector<8x128xf32>
    %490 = tpu.matmul %488, %489, %cst_157 {dimension_numbers = #tpu.dot_dimension_numbers<[1], [0], [0], [1], [0, 0, 1, 1], [], []>} : vector<8x128xbf16>, vector<128x128xbf16>, vector<8x128xf32> -> vector<8x128xf32>
    %491 = arith.addf %487, %490 : vector<8x128xf32>
    %c0_158 = arith.constant 0 : index
    %c0_159 = arith.constant 0 : index
    %492 = vector.load %arg11[%c0_158, %c0_159] : memref<9x128xbf16, #tpu.memory_space<vmem>>, vector<9x128xbf16>
    %cst_160 = arith.constant dense<0.000000e+00> : vector<8x128xf32>
    %493 = tpu.matmul %484, %492, %cst_160 {dimension_numbers = #tpu.dot_dimension_numbers<[1], [0], [0], [1], [0, 0, 1, 1], [], []>} : vector<8x9xbf16>, vector<9x128xbf16>, vector<8x128xf32> -> vector<8x128xf32>
    %494 = arith.addf %491, %493 : vector<8x128xf32>
    %c0_161 = arith.constant 0 : index
    %c0_162 = arith.constant 0 : index
    %495 = vector.load %arg12[%c0_161, %c0_162] : memref<1x128xf32, #tpu.memory_space<vmem>>, vector<1x128xf32>
    %496 = vector.broadcast %495 : vector<1x128xf32> to vector<8x128xf32>
    %497 = arith.addf %494, %496 : vector<8x128xf32>
    %498 = math.tanh %497 : vector<8x128xf32>
    %c0_163 = arith.constant 0 : index
    %c0_164 = arith.constant 0 : index
    %499 = vector.load %arg13[%c0_163, %c0_164] : memref<1x128xf32, #tpu.memory_space<vmem>>, vector<1x128xf32>
    %500 = vector.broadcast %499 : vector<1x128xf32> to vector<8x128xf32>
    %501 = arith.mulf %498, %500 : vector<8x128xf32>
    %cst_165 = arith.constant dense<0.000000e+00> : vector<8xf32>
    %502 = vector.multi_reduction <add>, %501, %cst_165 [1] : vector<8x128xf32> to vector<8xf32>
    %503 = vector.shape_cast %502 : vector<8xf32> to vector<8x1xf32>
    %c0_166 = arith.constant 0 : index
    %c0_167 = arith.constant 0 : index
    %504 = vector.load %arg14[%c0_166, %c0_167] : memref<1x1xf32, #tpu.memory_space<vmem>>, vector<1x1xf32>
    %505 = vector.broadcast %504 : vector<1x1xf32> to vector<8x1xf32>
    %506 = arith.addf %503, %505 : vector<8x1xf32>
    %507 = arith.negf %506 : vector<8x1xf32>
    %508 = math.exp %507 : vector<8x1xf32>
    %cst_168 = arith.constant 1.000000e+00 : f32
    %509 = vector.broadcast %cst_168 : f32 to vector<8x1xf32>
    %510 = arith.addf %509, %508 : vector<8x1xf32>
    %511 = arith.divf %509, %510 : vector<8x1xf32>
    %c0_169 = arith.constant 0 : index
    %c0_170 = arith.constant 0 : index
    %512 = vector.load %arg15[%c0_169, %c0_170] : memref<8x1xf32, #tpu.memory_space<vmem>>, vector<8x1xf32>
    tpu.vector_store %arg15[%c0_169, %c0_170], %511 {strides = array<i32>} : memref<8x1xf32, #tpu.memory_space<vmem>>, vector<8x1xf32>,
    return
  }
}

</mosaic_0001>

<llo_original>
// kernel: tpu_custom_call.1
$region0: #{tpu_custom_call.1}
  #allocation0 [shape = 'u32[]', space=smem, size = 0x4, offset = 0x4, fixed_abs, tag = 'smem constant byte address 0x4 - core index']
  #allocation1 [shape = 'u32[144,128]{1,0:T(1,128)}', space=vmem, size = 0x12000, scoped, tag = 'internal scratch']
  #allocation2 [shape = 'f32[64,768]{1,0:T(8,128)}', space=vmem, size = 0x30000, scoped, tag = 'scratch operand']
  #allocation3 [shape = 'f32[13,8,128]{2,1,0:T(8,128)}', space=vmem, size = 0xd000, scoped, tag = 'scratch operand']
  #allocation4 [shape = 'f32[1,1]{1,0:T(1,128)S(1)}', space=vmem, size = 0x200, scoped, tag = 'scoped memory for tpu_custom_call.1']
  %s0 = inlined_call_operand.hbm [shape: f32[8,8,9], index: 0, kind: input, shape index: {}]
  %s1 = inlined_call_operand.hbm [shape: bf16[128,128], index: 1, kind: input, shape index: {}]
  %s2 = inlined_call_operand.hbm [shape: bf16[256,640], index: 2, kind: input, shape index: {}]
  %s3 = inlined_call_operand.hbm [shape: bf16[9,768], index: 3, kind: input, shape index: {}]
  %s4 = inlined_call_operand.vmem [shape: f32[1,768], index: 4, kind: input, shape index: {}]
  %s5 = inlined_call_operand.hbm [shape: bf16[256,128], index: 5, kind: input, shape index: {}]
  %s6 = inlined_call_operand.hbm [shape: bf16[128,128], index: 6, kind: input, shape index: {}]
  %s7 = inlined_call_operand.vmem [shape: f32[1,128], index: 7, kind: input, shape index: {}]
  %s8 = inlined_call_operand.vmem [shape: f32[1,128], index: 8, kind: input, shape index: {}]
  %s9 = inlined_call_operand.hbm [shape: bf16[128,128], index: 9, kind: input, shape index: {}]
  %s10 = inlined_call_operand.hbm [shape: bf16[128,128], index: 10, kind: input, shape index: {}]
  %s11 = inlined_call_operand.vmem [shape: bf16[9,128], index: 11, kind: input, shape index: {}]
  %s12 = inlined_call_operand.vmem [shape: f32[1,128], index: 12, kind: input, shape index: {}]
  %s13 = inlined_call_operand.vmem [shape: f32[1,128], index: 13, kind: input, shape index: {}]
  %s14 = inlined_call_operand.<no memory space> [shape: f32[1,1], index: 14, kind: input, shape index: {}]
  %s15 = inlined_call_operand.vmem [shape: f32[8,1], index: 15, kind: output, shape index: {}]
  %s16 = sld [smem:[#allocation0]]
  $region102: #{tpu_custom_call.1} parent=0
    _
  %s18 = ssub.s32 1, %s16
  %s19 = scalar_select 0, %s18, %s16
  %v20 = vstv %s14
  %21 = vst [vmem:[#allocation4] sm:$0x1] %v20
  $region1: #{tpu_custom_call.1} parent=0
    #allocation5 [shape = 'u8[32768]{0}', space=vmem, size = 0x8000, scoped, tag = 'input window, operand 0, single buffered']
    #allocation6 [shape = 's32[1]{0}', space=sflag, size = 0x4, scoped, tag = 'scoped memory for tpu_custom_call.1']
    #allocation7 [shape = 'u8[32768]{0}', space=vmem, size = 0x8000, scoped, tag = 'input window, operand 1, single buffered']
    #allocation8 [shape = 's32[1]{0}', space=sflag, size = 0x4, scoped, tag = 'scoped memory for tpu_custom_call.1']
    #allocation9 [shape = 'u8[327680]{0}', space=vmem, size = 0x50000, scoped, tag = 'input window, operand 2, single buffered']
    #allocation10 [shape = 'u8[24576]{0}', space=vmem, size = 0x6000, scoped, tag = 'input window, operand 3, single buffered']
    #allocation11 [shape = 's32[1]{0}', space=sflag, size = 0x4, scoped, tag = 'scoped memory for tpu_custom_call.1']
    #allocation12 [shape = 'u8[65536]{0}', space=vmem, size = 0x10000, scoped, tag = 'input window, operand 5, single buffered']
    #allocation13 [shape = 'u8[32768]{0}', space=vmem, size = 0x8000, scoped, tag = 'input window, operand 6, single buffered']
    #allocation14 [shape = 's32[1]{0}', space=sflag, size = 0x4, scoped, tag = 'scoped memory for tpu_custom_call.1']
    #allocation15 [shape = 'u8[32768]{0}', space=vmem, size = 0x8000, scoped, tag = 'input window, operand 9, single buffered']
    #allocation16 [shape = 'u8[32768]{0}', space=vmem, size = 0x8000, scoped, tag = 'input window, operand 10, single buffered']
    #allocation17 [shape = 's32[1]{0}', space=sflag, size = 0x4, scoped, tag = 'scoped memory for tpu_custom_call.1']
    %22 = vsyncpa [#allocation6], 0
    %23 = vsyncpa [#allocation8], 0
    %24 = vsyncpa [#allocation11], 0
    %25 = vsyncpa [#allocation14], 0
    %26 = vsyncpa [#allocation17], 0
    // Predicated region
    $region2: #{tpu_custom_call.1} parent=1 // pred_check
      _
    $region3: #{tpu_custom_call.1} parent=1 // pred_check_branch
      %28 = sbr.rel (0) target = $region5
    $region4: #{tpu_custom_call.1} parent=1 // pred_region
      %s30 = ssub.s32 1024, 1024
      %31 = vsyncadd [#allocation6], %s30
      %s32 = sshll.u32 [#allocation5], 4
      %s33 = int_to_ptr.vmem [resolvable:$true] %s32
      %38 = dma.hbm_to_vmem [thread:$0]  %s0, 1024, %s33, [#allocation6], 128, 128, 8
    $region5: #{tpu_custom_call.1} parent=1 // pred_fallthru
      _
    // Predicated region
    $region6: #{tpu_custom_call.1} parent=1 // pred_check
      _
    $region7: #{tpu_custom_call.1} parent=1 // pred_check_branch
      %40 = sbr.rel (0) target = $region9
    $region8: #{tpu_custom_call.1} parent=1 // pred_region
      %s42 = ssub.s32 1024, 1024
      %43 = vsyncadd [#allocation8], %s42
      %s44 = sshll.u32 [#allocation7], 4
      %s45 = int_to_ptr.vmem [resolvable:$true] %s44
      %50 = dma.hbm_to_vmem [thread:$0]  %s1, 1024, %s45, [#allocation8], 64, 64, 4
    $region9: #{tpu_custom_call.1} parent=1 // pred_fallthru
      _
    // Predicated region
    $region10: #{tpu_custom_call.1} parent=1 // pred_check
      _
    $region11: #{tpu_custom_call.1} parent=1 // pred_check_branch
      %52 = sbr.rel (0) target = $region13
    $region12: #{tpu_custom_call.1} parent=1 // pred_region
      %s54 = ssub.s32 10240, 10240
      %55 = vsyncadd [#allocation8], %s54
      %s56 = sshll.u32 [#allocation9], 4
      %s57 = int_to_ptr.vmem [resolvable:$true] %s56
      %62 = dma.hbm_to_vmem [thread:$0]  %s2, 10240, %s57, [#allocation8], 320, 320, 20
    $region13: #{tpu_custom_call.1} parent=1 // pred_fallthru
      _
    // Predicated region
    $region14: #{tpu_custom_call.1} parent=1 // pred_check
      _
    $region15: #{tpu_custom_call.1} parent=1 // pred_check_branch
      %64 = sbr.rel (0) target = $region17
    $region16: #{tpu_custom_call.1} parent=1 // pred_region
      %s66 = ssub.s32 768, 768
      %67 = vsyncadd [#allocation11], %s66
      %s68 = sshll.u32 [#allocation10], 4
      %s69 = int_to_ptr.vmem [resolvable:$true] %s68
      %74 = dma.hbm_to_vmem [thread:$0]  %s3, 768, %s69, [#allocation11], 384, 384, 24
    $region17: #{tpu_custom_call.1} parent=1 // pred_fallthru
      _
    // Predicated region
    $region18: #{tpu_custom_call.1} parent=1 // pred_check
      _
    $region19: #{tpu_custom_call.1} parent=1 // pred_check_branch
      %76 = sbr.rel (0) target = $region21
    $region20: #{tpu_custom_call.1} parent=1 // pred_region
      _
    $region21: #{tpu_custom_call.1} parent=1 // pred_fallthru
      _
    // Predicated region
    $region22: #{tpu_custom_call.1} parent=1 // pred_check
      _
    $region23: #{tpu_custom_call.1} parent=1 // pred_check_branch
      %78 = sbr.rel (0) target = $region25
    $region24: #{tpu_custom_call.1} parent=1 // pred_region
      %s80 = ssub.s32 2048, 2048
      %81 = vsyncadd [#allocation11], %s80
      %s82 = sshll.u32 [#allocation12], 4
      %s83 = int_to_ptr.vmem [resolvable:$true] %s82
      %88 = dma.hbm_to_vmem [thread:$0]  %s5, 2048, %s83, [#allocation11], 64, 64, 4
    $region25: #{tpu_custom_call.1} parent=1 // pred_fallthru
      _
    // Predicated region
    $region26: #{tpu_custom_call.1} parent=1 // pred_check
      _
    $region27: #{tpu_custom_call.1} parent=1 // pred_check_branch
      %90 = sbr.rel (0) target = $region29
    $region28: #{tpu_custom_call.1} parent=1 // pred_region
      %s92 = ssub.s32 1024, 1024
      %93 = vsyncadd [#allocation14], %s92
      %s94 = sshll.u32 [#allocation13], 4
      %s95 = int_to_ptr.vmem [resolvable:$true] %s94
      %100 = dma.hbm_to_vmem [thread:$0]  %s6, 1024, %s95, [#allocation14], 64, 64, 4
    $region29: #{tpu_custom_call.1} parent=1 // pred_fallthru
      _
    // Predicated region
    $region30: #{tpu_custom_call.1} parent=1 // pred_check
      _
    $region31: #{tpu_custom_call.1} parent=1 // pred_check_branch
      %102 = sbr.rel (0) target = $region33
    $region32: #{tpu_custom_call.1} parent=1 // pred_region
      _
    $region33: #{tpu_custom_call.1} parent=1 // pred_fallthru
      _
    // Predicated region
    $region34: #{tpu_custom_call.1} parent=1 // pred_check
      _
    $region35: #{tpu_custom_call.1} parent=1 // pred_check_branch
      %104 = sbr.rel (0) target = $region37
    $region36: #{tpu_custom_call.1} parent=1 // pred_region
      _
    $region37: #{tpu_custom_call.1} parent=1 // pred_fallthru
      _
    // Predicated region
    $region38: #{tpu_custom_call.1} parent=1 // pred_check
      _
    $region39: #{tpu_custom_call.1} parent=1 // pred_check_branch
      %106 = sbr.rel (0) target = $region41
    $region40: #{tpu_custom_call.1} parent=1 // pred_region
      %s108 = ssub.s32 1024, 1024
      %109 = vsyncadd [#allocation14], %s108
      %s110 = sshll.u32 [#allocation15], 4
      %s111 = int_to_ptr.vmem [resolvable:$true] %s110
      %116 = dma.hbm_to_vmem [thread:$0]  %s9, 1024, %s111, [#allocation14], 64, 64, 4
    $region41: #{tpu_custom_call.1} parent=1 // pred_fallthru
      _
    // Predicated region
    $region42: #{tpu_custom_call.1} parent=1 // pred_check
      _
    $region43: #{tpu_custom_call.1} parent=1 // pred_check_branch
      %118 = sbr.rel (0) target = $region45
    $region44: #{tpu_custom_call.1} parent=1 // pred_region
      %s120 = ssub.s32 1024, 1024
      %121 = vsyncadd [#allocation17], %s120
      %s122 = sshll.u32 [#allocation16], 4
      %s123 = int_to_ptr.vmem [resolvable:$true] %s122
      %128 = dma.hbm_to_vmem [thread:$0]  %s10, 1024, %s123, [#allocation17], 64, 64, 4
    $region45: #{tpu_custom_call.1} parent=1 // pred_fallthru
      _
    // Predicated region
    $region46: #{tpu_custom_call.1} parent=1 // pred_check
      _
    $region47: #{tpu_custom_call.1} parent=1 // pred_check_branch
      %130 = sbr.rel (0) target = $region49
    $region48: #{tpu_custom_call.1} parent=1 // pred_region
      _
    $region49: #{tpu_custom_call.1} parent=1 // pred_fallthru
      _
    // Predicated region
    $region50: #{tpu_custom_call.1} parent=1 // pred_check
      _
    $region51: #{tpu_custom_call.1} parent=1 // pred_check_branch
      %132 = sbr.rel (0) target = $region53
    $region52: #{tpu_custom_call.1} parent=1 // pred_region
      _
    $region53: #{tpu_custom_call.1} parent=1 // pred_fallthru
      _
    // Predicated region
    $region54: #{tpu_custom_call.1} parent=1 // pred_check
      _
    $region55: #{tpu_custom_call.1} parent=1 // pred_check_branch
      %134 = sbr.rel (0) target = $region57
    $region56: #{tpu_custom_call.1} parent=1 // pred_region
      _
    $region57: #{tpu_custom_call.1} parent=1 // pred_fallthru
      _
    // Predicated region
    $region58: #{tpu_custom_call.1} parent=1 // pred_check
      _
    $region59: #{tpu_custom_call.1} parent=1 // pred_check_branch
      %136 = sbr.rel (0) target = $region61
    $region60: #{tpu_custom_call.1} parent=1 // pred_region
      _
    $region61: #{tpu_custom_call.1} parent=1 // pred_fallthru
      _
    // Predicated region
    $region62: #{tpu_custom_call.1} parent=1 // pred_check
      _
    $region63: #{tpu_custom_call.1} parent=1 // pred_check_branch
      %138 = sbr.rel (0) target = $region65
    $region64: #{tpu_custom_call.1} parent=1 // pred_region
      %139 = dma.done [#allocation6], 1024
    $region65: #{tpu_custom_call.1} parent=1 // pred_fallthru
      _
    // Predicated region
    $region66: #{tpu_custom_call.1} parent=1 // pred_check
      _
    $region67: #{tpu_custom_call.1} parent=1 // pred_check_branch
      %141 = sbr.rel (0) target = $region69
    $region68: #{tpu_custom_call.1} parent=1 // pred_region
      %142 = dma.done [#allocation8], 1024
    $region69: #{tpu_custom_call.1} parent=1 // pred_fallthru
      _
    // Predicated region
    $region70: #{tpu_custom_call.1} parent=1 // pred_check
      _
    $region71: #{tpu_custom_call.1} parent=1 // pred_check_branch
      %144 = sbr.rel (0) target = $region73
    $region72: #{tpu_custom_call.1} parent=1 // pred_region
      %145 = dma.done [#allocation8], 10240
    $region73: #{tpu_custom_call.1} parent=1 // pred_fallthru
      _
    // Predicated region
    $region74: #{tpu_custom_call.1} parent=1 // pred_check
      _
    $region75: #{tpu_custom_call.1} parent=1 // pred_check_branch
      %147 = sbr.rel (0) target = $region77
    $region76: #{tpu_custom_call.1} parent=1 // pred_region
      %148 = dma.done [#allocation11], 768
    $region77: #{tpu_custom_call.1} parent=1 // pred_fallthru
      _
    // Predicated region
    $region78: #{tpu_custom_call.1} parent=1 // pred_check
      _
    $region79: #{tpu_custom_call.1} parent=1 // pred_check_branch
      %150 = sbr.rel (0) target = $region81
    $region80: #{tpu_custom_call.1} parent=1 // pred_region
      %151 = dma.done [#allocation11], 2048
    $region81: #{tpu_custom_call.1} parent=1 // pred_fallthru
      _
    // Predicated region
    $region82: #{tpu_custom_call.1} parent=1 // pred_check
      _
    $region83: #{tpu_custom_call.1} parent=1 // pred_check_branch
      %153 = sbr.rel (0) target = $region85
    $region84: #{tpu_custom_call.1} parent=1 // pred_region
      %154 = dma.done [#allocation14], 1024
    $region85: #{tpu_custom_call.1} parent=1 // pred_fallthru
      _
    // Predicated region
    $region86: #{tpu_custom_call.1} parent=1 // pred_check
      _
    $region87: #{tpu_custom_call.1} parent=1 // pred_check_branch
      %156 = sbr.rel (0) target = $region89
    $region88: #{tpu_custom_call.1} parent=1 // pred_region
      %157 = dma.done [#allocation14], 1024
    $region89: #{tpu_custom_call.1} parent=1 // pred_fallthru
      _
    // Predicated region
    $region90: #{tpu_custom_call.1} parent=1 // pred_check
      _
    $region91: #{tpu_custom_call.1} parent=1 // pred_check_branch
      %159 = sbr.rel (0) target = $region93
    $region92: #{tpu_custom_call.1} parent=1 // pred_region
      %160 = dma.done [#allocation17], 1024
    $region93: #{tpu_custom_call.1} parent=1 // pred_fallthru
      _
    %v162 = vld [vmem:[#allocation5] sm:$0xff]
    %v163 = vld [vmem:[#allocation5 + $0x8] sm:$0xff]
    %v164 = vld [vmem:[#allocation5 + $0x10] sm:$0xff]
    %v165 = vld [vmem:[#allocation5 + $0x18] sm:$0xff]
    %v166 = vld [vmem:[#allocation5 + $0x20] sm:$0xff]
    %v167 = vld [vmem:[#allocation5 + $0x28] sm:$0xff]
    %v168 = vld [vmem:[#allocation5 + $0x30] sm:$0xff]
    %v169 = vld [vmem:[#allocation5 + $0x38] sm:$0xff]
    %v170 = vpack.c.bf16 %v163, %v162
    %v171 = vpack.c.bf16 %v165, %v164
    %v172 = vpack.c.bf16 %v167, %v166
    %v173 = vpack.c.bf16 %v169, %v168
    %v174 = vld [vmem:[#allocation10] sm:$0xff]
    %v175 = vld [vmem:[#allocation10 + $0x8] sm:$0xff]
    %v176 = vld [vmem:[#allocation10 + $0x10] sm:$0xff]
    %v177 = vld [vmem:[#allocation10 + $0x18] sm:$0x11]
    %v178 = vld [vmem:[#allocation10 + $0x20] sm:$0x11]
    %v179 = vld [vmem:[#allocation10 + $0x28] sm:$0x11]
    %v180 = vld [vmem:[%s4] sm:$0x3f]
    %v182 = vlaneseq
    %v183 = vshrl.u32 %v182, 7
    %v184 = vsub.s32 0, %v183
    %v185 = vrot.slane %v180, %v184
    %v186 = vlaneseq
    %v187 = vshrl.u32 %v186, 7
    %v188 = vsub.s32 1, %v187
    %v189 = vrot.slane %v180, %v188
    %v190 = vlaneseq
    %v191 = vshrl.u32 %v190, 7
    %v192 = vsub.s32 2, %v191
    %v193 = vrot.slane %v180, %v192
    %v194 = vlaneseq
    %v195 = vshrl.u32 %v194, 7
    %v196 = vsub.s32 3, %v195
    %v197 = vrot.slane %v180, %v196
    %v198 = vlaneseq
    %v199 = vshrl.u32 %v198, 7
    %v200 = vsub.s32 4, %v199
    %v201 = vrot.slane %v180, %v200
    %v202 = vlaneseq
    %v203 = vshrl.u32 %v202, 7
    %v204 = vsub.s32 5, %v203
    %v205 = vrot.slane %v180, %v204
    %v218 = vunpack.c.l.b16 %v174
    %v219 = vunpack.c.h.b16 %v174
    %v220 = vunpack.c.l.b16 %v175
    %v221 = vunpack.c.h.b16 %v175
    %v222 = vunpack.c.l.b16 %v176
    %v223 = vunpack.c.h.b16 %v176
    %v224 = vunpack.c.l.b16 %v177
    %v225 = vunpack.c.h.b16 %v177
    %v226 = vunpack.c.l.b16 %v178
    %v227 = vunpack.c.h.b16 %v178
    %v228 = vunpack.c.l.b16 %v179
    %v229 = vunpack.c.h.b16 %v179
    %v230 = vpack.c.b16 %v224, %v218
    %v231 = vpack.c.b16 %v225, %v219
    %v232 = vpack.c.b16 %v226, %v220
    %v233 = vpack.c.b16 %v227, %v221
    %v234 = vpack.c.b16 %v228, %v222
    %v235 = vpack.c.b16 %v229, %v223
    %vm236 = vcmask 72704
    %v238 = vsel %vm236, %v170, 0
    %v241 = vsel %vm236, %v171, 0
    %v244 = vsel %vm236, %v172, 0
    %v247 = vsel %vm236, %v173, 0
    %vm249 = vcmask 1043456
    %vm250 = vcmask 1044480
    %v251 = vsel %vm249, 4294967295, 65535
    %v252 = vsel %vm250, %v251, 0
    %v254 = vand.u32 %v230, %v252
    %v257 = vand.u32 %v231, %v252
    %v260 = vand.u32 %v232, %v252
    %v263 = vand.u32 %v233, %v252
    %v266 = vand.u32 %v234, %v252
    %v269 = vand.u32 %v235, %v252
    %271 = vmatprep.subr.bf16.mxu0 0
    %272 = vmatpush1.bf16.msra.mxu0 0
    %273 = vmatprep.subr.bf16.mxu0 0
    %274 = vmatpush1.bf16.msra.mxu0 0
    %275 = vmatprep.subr.bf16.mxu0 0
    %276 = vmatpush1.bf16.msra.mxu0 0
    %277 = vmatprep.subr.bf16.mxu0 0
    %278 = vmatpush1.bf16.msra.mxu0 0
    %279 = vmatprep.subr.bf16.mxu0 0
    %280 = vmatpush1.bf16.msra.mxu0 0
    %281 = vmatprep.subr.bf16.mxu0 0
    %282 = vmatpush1.bf16.msra.mxu0 0
    %283 = vmatprep.subr.bf16.mxu0 0
    %284 = vmatpush1.bf16.msra.mxu0 0
    %285 = vmatprep.subr.bf16.mxu0 %v257
    %286 = vmatpush1.bf16.msra.mxu0 %v254
    %287 = vmatprep.subr.bf16.mxu0 0
    %288 = vmatpush2.bf16.msra.mxu0 0
    %289 = vmatprep.subr.bf16.mxu0 0
    %290 = vmatpush2.bf16.msra.mxu0 0
    %291 = vmatprep.subr.bf16.mxu0 0
    %292 = vmatpush2.bf16.msra.mxu0 0
    %293 = vmatprep.subr.bf16.mxu0 0
    %294 = vmatpush2.bf16.msra.mxu0 0
    %295 = vmatprep.subr.bf16.mxu0 0
    %296 = vmatpush2.bf16.msra.mxu0 0
    %297 = vmatprep.subr.bf16.mxu0 0
    %298 = vmatpush2.bf16.msra.mxu0 0
    %299 = vmatprep.subr.bf16.mxu0 0
    %300 = vmatpush2.bf16.msra.mxu0 0
    %301 = vmatprep.subr.bf16.mxu0 0
    %302 = vmatpush2.bf16.msra.mxu0 0
    %303 = vmatprep.mubr.bf16.mxu0 0
    %304 = vmatmul.mubr.bf16.gmra.mxu0 %v238
    %v305 = vpop.f32.mrf.mxu0
    %v306 = vadd.f32 %v185, %v305
    %v307 = vpop.f32.mrf.mxu0
    %v308 = vadd.f32 %v189, %v307
    %v309 = vpop.f32.mrf.mxu0
    %v310 = vadd.f32 %v185, %v309
    %v311 = vpop.f32.mrf.mxu0
    %v312 = vadd.f32 %v189, %v311
    %313 = vmatprep.mubr.bf16.mxu0 0
    %314 = vmatmul.mubr.bf16.gmra.mxu0 %v241
    %v315 = vpop.f32.mrf.mxu0
    %v316 = vadd.f32 %v185, %v315
    %v317 = vpop.f32.mrf.mxu0
    %v318 = vadd.f32 %v189, %v317
    %v319 = vpop.f32.mrf.mxu0
    %v320 = vadd.f32 %v185, %v319
    %v321 = vpop.f32.mrf.mxu0
    %v322 = vadd.f32 %v189, %v321
    %323 = vmatprep.mubr.bf16.mxu0 0
    %324 = vmatmul.mubr.bf16.gmra.mxu0 %v244
    %v325 = vpop.f32.mrf.mxu0
    %v326 = vadd.f32 %v185, %v325
    %v327 = vpop.f32.mrf.mxu0
    %v328 = vadd.f32 %v189, %v327
    %v329 = vpop.f32.mrf.mxu0
    %v330 = vadd.f32 %v185, %v329
    %v331 = vpop.f32.mrf.mxu0
    %v332 = vadd.f32 %v189, %v331
    %333 = vmatprep.mubr.bf16.mxu0 0
    %334 = vmatmul.mubr.bf16.gmra.mxu0 %v247
    %v335 = vpop.f32.mrf.mxu0
    %v336 = vadd.f32 %v185, %v335
    %v337 = vpop.f32.mrf.mxu0
    %v338 = vadd.f32 %v189, %v337
    %v339 = vpop.f32.mrf.mxu0
    %v340 = vadd.f32 %v185, %v339
    %v341 = vpop.f32.mrf.mxu0
    %v342 = vadd.f32 %v189, %v341
    %343 = vdwg.mxu0
    %344 = vmatprep.subr.bf16.mxu0 0
    %345 = vmatpush1.bf16.msra.mxu0 0
    %346 = vmatprep.subr.bf16.mxu0 0
    %347 = vmatpush1.bf16.msra.mxu0 0
    %348 = vmatprep.subr.bf16.mxu0 0
    %349 = vmatpush1.bf16.msra.mxu0 0
    %350 = vmatprep.subr.bf16.mxu0 0
    %351 = vmatpush1.bf16.msra.mxu0 0
    %352 = vmatprep.subr.bf16.mxu0 0
    %353 = vmatpush1.bf16.msra.mxu0 0
    %354 = vmatprep.subr.bf16.mxu0 0
    %355 = vmatpush1.bf16.msra.mxu0 0
    %356 = vmatprep.subr.bf16.mxu0 0
    %357 = vmatpush1.bf16.msra.mxu0 0
    %358 = vmatprep.subr.bf16.mxu0 %v263
    %359 = vmatpush1.bf16.msra.mxu0 %v260
    %360 = vmatprep.subr.bf16.mxu0 0
    %361 = vmatpush2.bf16.msra.mxu0 0
    %362 = vmatprep.subr.bf16.mxu0 0
    %363 = vmatpush2.bf16.msra.mxu0 0
    %364 = vmatprep.subr.bf16.mxu0 0
    %365 = vmatpush2.bf16.msra.mxu0 0
    %366 = vmatprep.subr.bf16.mxu0 0
    %367 = vmatpush2.bf16.msra.mxu0 0
    %368 = vmatprep.subr.bf16.mxu0 0
    %369 = vmatpush2.bf16.msra.mxu0 0
    %370 = vmatprep.subr.bf16.mxu0 0
    %371 = vmatpush2.bf16.msra.mxu0 0
    %372 = vmatprep.subr.bf16.mxu0 0
    %373 = vmatpush2.bf16.msra.mxu0 0
    %374 = vmatprep.subr.bf16.mxu0 0
    %375 = vmatpush2.bf16.msra.mxu0 0
    %376 = vmatprep.mubr.bf16.mxu0 0
    %377 = vmatmul.mubr.bf16.gmra.mxu0 %v238
    %v378 = vpop.f32.mrf.mxu0
    %v379 = vadd.f32 %v193, %v378
    %v380 = vpop.f32.mrf.mxu0
    %v381 = vadd.f32 %v197, %v380
    %v382 = vpop.f32.mrf.mxu0
    %v383 = vadd.f32 %v193, %v382
    %v384 = vpop.f32.mrf.mxu0
    %v385 = vadd.f32 %v197, %v384
    %386 = vmatprep.mubr.bf16.mxu0 0
    %387 = vmatmul.mubr.bf16.gmra.mxu0 %v241
    %v388 = vpop.f32.mrf.mxu0
    %v389 = vadd.f32 %v193, %v388
    %v390 = vpop.f32.mrf.mxu0
    %v391 = vadd.f32 %v197, %v390
    %v392 = vpop.f32.mrf.mxu0
    %v393 = vadd.f32 %v193, %v392
    %v394 = vpop.f32.mrf.mxu0
    %v395 = vadd.f32 %v197, %v394
    %396 = vmatprep.mubr.bf16.mxu0 0
    %397 = vmatmul.mubr.bf16.gmra.mxu0 %v244
    %v398 = vpop.f32.mrf.mxu0
    %v399 = vadd.f32 %v193, %v398
    %v400 = vpop.f32.mrf.mxu0
    %v401 = vadd.f32 %v197, %v400
    %v402 = vpop.f32.mrf.mxu0
    %v403 = vadd.f32 %v193, %v402
    %v404 = vpop.f32.mrf.mxu0
    %v405 = vadd.f32 %v197, %v404
    %406 = vmatprep.mubr.bf16.mxu0 0
    %407 = vmatmul.mubr.bf16.gmra.mxu0 %v247
    %v408 = vpop.f32.mrf.mxu0
    %v409 = vadd.f32 %v193, %v408
    %v410 = vpop.f32.mrf.mxu0
    %v411 = vadd.f32 %v197, %v410
    %v412 = vpop.f32.mrf.mxu0
    %v413 = vadd.f32 %v193, %v412
    %v414 = vpop.f32.mrf.mxu0
    %v415 = vadd.f32 %v197, %v414
    %416 = vdwg.mxu0
    %417 = vmatprep.subr.bf16.mxu0 0
    %418 = vmatpush1.bf16.msra.mxu0 0
    %419 = vmatprep.subr.bf16.mxu0 0
    %420 = vmatpush1.bf16.msra.mxu0 0
    %421 = vmatprep.subr.bf16.mxu0 0
    %422 = vmatpush1.bf16.msra.mxu0 0
    %423 = vmatprep.subr.bf16.mxu0 0
    %424 = vmatpush1.bf16.msra.mxu0 0
    %425 = vmatprep.subr.bf16.mxu0 0
    %426 = vmatpush1.bf16.msra.mxu0 0
    %427 = vmatprep.subr.bf16.mxu0 0
    %428 = vmatpush1.bf16.msra.mxu0 0
    %429 = vmatprep.subr.bf16.mxu0 0
    %430 = vmatpush1.bf16.msra.mxu0 0
    %431 = vmatprep.subr.bf16.mxu0 %v269
    %432 = vmatpush1.bf16.msra.mxu0 %v266
    %433 = vmatprep.subr.bf16.mxu0 0
    %434 = vmatpush2.bf16.msra.mxu0 0
    %435 = vmatprep.subr.bf16.mxu0 0
    %436 = vmatpush2.bf16.msra.mxu0 0
    %437 = vmatprep.subr.bf16.mxu0 0
    %438 = vmatpush2.bf16.msra.mxu0 0
    %439 = vmatprep.subr.bf16.mxu0 0
    %440 = vmatpush2.bf16.msra.mxu0 0
    %441 = vmatprep.subr.bf16.mxu0 0
    %442 = vmatpush2.bf16.msra.mxu0 0
    %443 = vmatprep.subr.bf16.mxu0 0
    %444 = vmatpush2.bf16.msra.mxu0 0
    %445 = vmatprep.subr.bf16.mxu0 0
    %446 = vmatpush2.bf16.msra.mxu0 0
    %447 = vmatprep.subr.bf16.mxu0 0
    %448 = vmatpush2.bf16.msra.mxu0 0
    %449 = vmatprep.mubr.bf16.mxu0 0
    %450 = vmatmul.mubr.bf16.gmra.mxu0 %v238
    %v451 = vpop.f32.mrf.mxu0
    %v452 = vadd.f32 %v201, %v451
    %v453 = vpop.f32.mrf.mxu0
    %v454 = vadd.f32 %v205, %v453
    %v455 = vpop.f32.mrf.mxu0
    %v456 = vadd.f32 %v201, %v455
    %v457 = vpop.f32.mrf.mxu0
    %v458 = vadd.f32 %v205, %v457
    %459 = vmatprep.mubr.bf16.mxu0 0
    %460 = vmatmul.mubr.bf16.gmra.mxu0 %v241
    %v461 = vpop.f32.mrf.mxu0
    %v462 = vadd.f32 %v201, %v461
    %v463 = vpop.f32.mrf.mxu0
    %v464 = vadd.f32 %v205, %v463
    %v465 = vpop.f32.mrf.mxu0
    %v466 = vadd.f32 %v201, %v465
    %v467 = vpop.f32.mrf.mxu0
    %v468 = vadd.f32 %v205, %v467
    %469 = vmatprep.mubr.bf16.mxu0 0
    %470 = vmatmul.mubr.bf16.gmra.mxu0 %v244
    %v471 = vpop.f32.mrf.mxu0
    %v472 = vadd.f32 %v201, %v471
    %v473 = vpop.f32.mrf.mxu0
    %v474 = vadd.f32 %v205, %v473
    %v475 = vpop.f32.mrf.mxu0
    %v476 = vadd.f32 %v201, %v475
    %v477 = vpop.f32.mrf.mxu0
    %v478 = vadd.f32 %v205, %v477
    %479 = vmatprep.mubr.bf16.mxu0 0
    %480 = vmatmul.mubr.bf16.gmra.mxu0 %v247
    %v481 = vpop.f32.mrf.mxu0
    %v482 = vadd.f32 %v201, %v481
    %v483 = vpop.f32.mrf.mxu0
    %v484 = vadd.f32 %v205, %v483
    %v485 = vpop.f32.mrf.mxu0
    %v486 = vadd.f32 %v201, %v485
    %v487 = vpop.f32.mrf.mxu0
    %v488 = vadd.f32 %v205, %v487
    %489 = vdwg.mxu0
    %490 = vst [vmem:[#allocation2] sm:$0xff] %v306
    %491 = vst [vmem:[#allocation2 + $0x8] sm:$0xff] %v308
    %492 = vst [vmem:[#allocation2 + $0x10] sm:$0xff] %v379
    %493 = vst [vmem:[#allocation2 + $0x18] sm:$0xff] %v381
    %494 = vst [vmem:[#allocation2 + $0x20] sm:$0xff] %v452
    %495 = vst [vmem:[#allocation2 + $0x28] sm:$0xff] %v454
    %496 = vst [vmem:[#allocation2 + $0x30] sm:$0xff] %v310
    %497 = vst [vmem:[#allocation2 + $0x38] sm:$0xff] %v312
    %498 = vst [vmem:[#allocation2 + $0x40] sm:$0xff] %v383
    %499 = vst [vmem:[#allocation2 + $0x48] sm:$0xff] %v385
    %500 = vst [vmem:[#allocation2 + $0x50] sm:$0xff] %v456
    %501 = vst [vmem:[#allocation2 + $0x58] sm:$0xff] %v458
    %502 = vst [vmem:[#allocation2 + $0x60] sm:$0xff] %v316
    %503 = vst [vmem:[#allocation2 + $0x68] sm:$0xff] %v318
    %504 = vst [vmem:[#allocation2 + $0x70] sm:$0xff] %v389
    %505 = vst [vmem:[#allocation2 + $0x78] sm:$0xff] %v391
    %506 = vst [vmem:[#allocation2 + $0x80] sm:$0xff] %v462
    %507 = vst [vmem:[#allocation2 + $0x88] sm:$0xff] %v464
    %508 = vst [vmem:[#allocation2 + $0x90] sm:$0xff] %v320
    %509 = vst [vmem:[#allocation2 + $0x98] sm:$0xff] %v322
    %510 = vst [vmem:[#allocation2 + $0xa0] sm:$0xff] %v393
    %511 = vst [vmem:[#allocation2 + $0xa8] sm:$0xff] %v395
    %512 = vst [vmem:[#allocation2 + $0xb0] sm:$0xff] %v466
    %513 = vst [vmem:[#allocation2 + $0xb8] sm:$0xff] %v468
    %514 = vst [vmem:[#allocation2 + $0xc0] sm:$0xff] %v326
    %515 = vst [vmem:[#allocation2 + $0xc8] sm:$0xff] %v328
    %516 = vst [vmem:[#allocation2 + $0xd0] sm:$0xff] %v399
    %517 = vst [vmem:[#allocation2 + $0xd8] sm:$0xff] %v401
    %518 = vst [vmem:[#allocation2 + $0xe0] sm:$0xff] %v472
    %519 = vst [vmem:[#allocation2 + $0xe8] sm:$0xff] %v474
    %520 = vst [vmem:[#allocation2 + $0xf0] sm:$0xff] %v330
    %521 = vst [vmem:[#allocation2 + $0xf8] sm:$0xff] %v332
    %522 = vst [vmem:[#allocation2 + $0x100] sm:$0xff] %v403
    %523 = vst [vmem:[#allocation2 + $0x108] sm:$0xff] %v405
    %524 = vst [vmem:[#allocation2 + $0x110] sm:$0xff] %v476
    %525 = vst [vmem:[#allocation2 + $0x118] sm:$0xff] %v478
    %526 = vst [vmem:[#allocation2 + $0x120] sm:$0xff] %v336
    %527 = vst [vmem:[#allocation2 + $0x128] sm:$0xff] %v338
    %528 = vst [vmem:[#allocation2 + $0x130] sm:$0xff] %v409
    %529 = vst [vmem:[#allocation2 + $0x138] sm:$0xff] %v411
    %530 = vst [vmem:[#allocation2 + $0x140] sm:$0xff] %v482
    %531 = vst [vmem:[#allocation2 + $0x148] sm:$0xff] %v484
    %532 = vst [vmem:[#allocation2 + $0x150] sm:$0xff] %v340
    %533 = vst [vmem:[#allocation2 + $0x158] sm:$0xff] %v342
    %534 = vst [vmem:[#allocation2 + $0x160] sm:$0xff] %v413
    %535 = vst [vmem:[#allocation2 + $0x168] sm:$0xff] %v415
    %536 = vst [vmem:[#allocation2 + $0x170] sm:$0xff] %v486
    %537 = vst [vmem:[#allocation2 + $0x178] sm:$0xff] %v488
    %538 = vst [vmem:[#allocation3] sm:$0xff] 0.0
    %539 = vst [vmem:[#allocation3 + $0x8] sm:$0xff] 0.0
    %540 = vst [vmem:[#allocation3 + $0x10] sm:$0xff] 0.0
    %541 = vst [vmem:[#allocation3 + $0x18] sm:$0xff] 0.0
    %542 = vst [vmem:[#allocation3 + $0x20] sm:$0xff] 0.0
    %s543 = smul.u32 0, 6
    %s544 = smul.addr %s543, 8
    %s545 = scalar_lea.vmem [#allocation2], %s544
    %v546 = vld [vmem:[%s545] sm:$0xff]
    %v547 = vld [vmem:[%s545 + $0x8] sm:$0xff]
    %v548 = vld [vmem:[%s545 + $0x10] sm:$0xff]
    %v549 = vld [vmem:[%s545 + $0x18] sm:$0xff]
    %v550 = vld [vmem:[%s545 + $0x20] sm:$0xff]
    %v551 = vld [vmem:[%s545 + $0x28] sm:$0xff]
    %v552 = vld [vmem:[#allocation7] sm:$0xf]
    %v553 = vld [vmem:[#allocation7 + $0x4] sm:$0xf]
    %v554 = vld [vmem:[#allocation7 + $0x8] sm:$0xf]
    %v555 = vld [vmem:[#allocation7 + $0xc] sm:$0xf]
    %v556 = vld [vmem:[#allocation7 + $0x10] sm:$0xf]
    %v557 = vld [vmem:[#allocation7 + $0x14] sm:$0xf]
    %v558 = vld [vmem:[#allocation7 + $0x18] sm:$0xf]
    %v559 = vld [vmem:[#allocation7 + $0x1c] sm:$0xf]
    %v560 = vld [vmem:[#allocation7 + $0x20] sm:$0xf]
    %v561 = vld [vmem:[#allocation7 + $0x24] sm:$0xf]
    %v562 = vld [vmem:[#allocation7 + $0x28] sm:$0xf]
    %v563 = vld [vmem:[#allocation7 + $0x2c] sm:$0xf]
    %v564 = vld [vmem:[#allocation7 + $0x30] sm:$0xf]
    %v565 = vld [vmem:[#allocation7 + $0x34] sm:$0xf]
    %v566 = vld [vmem:[#allocation7 + $0x38] sm:$0xf]
    %v567 = vld [vmem:[#allocation7 + $0x3c] sm:$0xf]
    %v584 = vunpack.c.l.b16 %v552
    %v585 = vunpack.c.l.b16 %v553
    %v586 = vunpack.c.l.b16 %v554
    %v587 = vunpack.c.l.b16 %v555
    %v588 = vunpack.c.l.b16 %v556
    %v589 = vunpack.c.l.b16 %v557
    %v590 = vunpack.c.l.b16 %v558
    %v591 = vunpack.c.l.b16 %v559
    %v592 = vunpack.c.l.b16 %v560
    %v593 = vunpack.c.l.b16 %v561
    %v594 = vunpack.c.l.b16 %v562
    %v595 = vunpack.c.l.b16 %v563
    %v596 = vunpack.c.l.b16 %v564
    %v597 = vunpack.c.l.b16 %v565
    %v598 = vunpack.c.l.b16 %v566
    %v599 = vunpack.c.l.b16 %v567
    %v600 = vpack.c.b16 %v585, %v584
    %v601 = vpack.c.b16 %v587, %v586
    %v602 = vpack.c.b16 %v589, %v588
    %v603 = vpack.c.b16 %v591, %v590
    %v604 = vpack.c.b16 %v593, %v592
    %v605 = vpack.c.b16 %v595, %v594
    %v606 = vpack.c.b16 %v597, %v596
    %v607 = vpack.c.b16 %v599, %v598
    %616 = vmatprep.subr.bf16.mxu0 0
    %617 = vmatpush1.bf16.msra.mxu0 %v607
    %618 = vmatprep.subr.bf16.mxu0 0
    %619 = vmatpush1.bf16.msra.mxu0 %v606
    %620 = vmatprep.subr.bf16.mxu0 0
    %621 = vmatpush1.bf16.msra.mxu0 %v605
    %622 = vmatprep.subr.bf16.mxu0 0
    %623 = vmatpush1.bf16.msra.mxu0 %v604
    %624 = vmatprep.subr.bf16.mxu0 0
    %625 = vmatpush1.bf16.msra.mxu0 %v603
    %626 = vmatprep.subr.bf16.mxu0 0
    %627 = vmatpush1.bf16.msra.mxu0 %v602
    %628 = vmatprep.subr.bf16.mxu0 0
    %629 = vmatpush1.bf16.msra.mxu0 %v601
    %630 = vmatprep.subr.bf16.mxu0 0
    %631 = vmatpush1.bf16.msra.mxu0 %v600
    %632 = vmatprep.subr.bf16.mxu0 0
    %633 = vmatpush2.bf16.msra.mxu0 0
    %634 = vmatprep.subr.bf16.mxu0 0
    %635 = vmatpush2.bf16.msra.mxu0 0
    %636 = vmatprep.subr.bf16.mxu0 0
    %637 = vmatpush2.bf16.msra.mxu0 0
    %638 = vmatprep.subr.bf16.mxu0 0
    %639 = vmatpush2.bf16.msra.mxu0 0
    %640 = vmatprep.subr.bf16.mxu0 0
    %641 = vmatpush2.bf16.msra.mxu0 0
    %642 = vmatprep.subr.bf16.mxu0 0
    %643 = vmatpush2.bf16.msra.mxu0 0
    %644 = vmatprep.subr.bf16.mxu0 0
    %645 = vmatpush2.bf16.msra.mxu0 0
    %646 = vmatprep.subr.bf16.mxu0 0
    %647 = vmatpush2.bf16.msra.mxu0 0
    %648 = vmatprep.mubr.bf16.mxu0 0
    %649 = vmatmul.mubr.bf16.gmra.mxu0 0
    %v650 = vpop.f32.mrf.mxu0
    %v651 = vadd.f32 0.0, %v650
    %v652 = vpop.f32.mrf.mxu0
    %v653 = vpop.f32.mrf.mxu0
    %v654 = vpop.f32.mrf.mxu0
    %655 = vdwg.mxu0
    %v656 = vadd.f32 %v546, %v651
    %v657 = vtanh.pop %v656
    %v658 = vpack.c.bf16 %v657, %v657
    %v659 = vld [vmem:[#allocation9] sm:$0xff]
    %v660 = vld [vmem:[#allocation9 + $0x8] sm:$0xff]
    %v661 = vld [vmem:[#allocation9 + $0x10] sm:$0xf]
    %v662 = vld [vmem:[#allocation9 + $0x14] sm:$0xff]
    %v663 = vld [vmem:[#allocation9 + $0x1c] sm:$0xff]
    %v664 = vld [vmem:[#allocation9 + $0x24] sm:$0xf]
    %v665 = vld [vmem:[#allocation9 + $0x28] sm:$0xff]
    %v666 = vld [vmem:[#allocation9 + $0x30] sm:$0xff]
    %v667 = vld [vmem:[#allocation9 + $0x38] sm:$0xf]
    %v668 = vld [vmem:[#allocation9 + $0x3c] sm:$0xff]
    %v669 = vld [vmem:[#allocation9 + $0x44] sm:$0xff]
    %v670 = vld [vmem:[#allocation9 + $0x4c] sm:$0xf]
    %v671 = vld [vmem:[#allocation9 + $0x50] sm:$0xff]
    %v672 = vld [vmem:[#allocation9 + $0x58] sm:$0xff]
    %v673 = vld [vmem:[#allocation9 + $0x60] sm:$0xf]
    %v674 = vld [vmem:[#allocation9 + $0x64] sm:$0xff]
    %v675 = vld [vmem:[#allocation9 + $0x6c] sm:$0xff]
    %v676 = vld [vmem:[#allocation9 + $0x74] sm:$0xf]
    %v677 = vld [vmem:[#allocation9 + $0x78] sm:$0xff]
    %v678 = vld [vmem:[#allocation9 + $0x80] sm:$0xff]
    %v679 = vld [vmem:[#allocation9 + $0x88] sm:$0xf]
    %v680 = vld [vmem:[#allocation9 + $0x8c] sm:$0xff]
    %v681 = vld [vmem:[#allocation9 + $0x94] sm:$0xff]
    %v682 = vld [vmem:[#allocation9 + $0x9c] sm:$0xf]
    %v683 = vld [vmem:[#allocation9 + $0xa0] sm:$0xff]
    %v684 = vld [vmem:[#allocation9 + $0xa8] sm:$0xff]
    %v685 = vld [vmem:[#allocation9 + $0xb0] sm:$0xf]
    %v686 = vld [vmem:[#allocation9 + $0xb4] sm:$0xff]
    %v687 = vld [vmem:[#allocation9 + $0xbc] sm:$0xff]
    %v688 = vld [vmem:[#allocation9 + $0xc4] sm:$0xf]
    %v689 = vld [vmem:[#allocation9 + $0xc8] sm:$0xff]
    %v690 = vld [vmem:[#allocation9 + $0xd0] sm:$0xff]
    %v691 = vld [vmem:[#allocation9 + $0xd8] sm:$0xf]
    %v692 = vld [vmem:[#allocation9 + $0xdc] sm:$0xff]
    %v693 = vld [vmem:[#allocation9 + $0xe4] sm:$0xff]
    %v694 = vld [vmem:[#allocation9 + $0xec] sm:$0xf]
    %v695 = vld [vmem:[#allocation9 + $0xf0] sm:$0xff]
    %v696 = vld [vmem:[#allocation9 + $0xf8] sm:$0xff]
    %v697 = vld [vmem:[#allocation9 + $0x100] sm:$0xf]
    %v698 = vld [vmem:[#allocation9 + $0x104] sm:$0xff]
    %v699 = vld [vmem:[#allocation9 + $0x10c] sm:$0xff]
    %v700 = vld [vmem:[#allocation9 + $0x114] sm:$0xf]
    %v701 = vld [vmem:[#allocation9 + $0x118] sm:$0xff]
    %v702 = vld [vmem:[#allocation9 + $0x120] sm:$0xff]
    %v703 = vld [vmem:[#allocation9 + $0x128] sm:$0xf]
    %v704 = vld [vmem:[#allocation9 + $0x12c] sm:$0xff]
    %v705 = vld [vmem:[#allocation9 + $0x134] sm:$0xff]
    %v706 = vld [vmem:[#allocation9 + $0x13c] sm:$0xf]
    %v707 = vld [vmem:[#allocation9 + $0x140] sm:$0xff]
    %v708 = vld [vmem:[#allocation9 + $0x148] sm:$0xff]
    %v709 = vld [vmem:[#allocation9 + $0x150] sm:$0xf]
    %v710 = vld [vmem:[#allocation9 + $0x154] sm:$0xff]
    %v711 = vld [vmem:[#allocation9 + $0x15c] sm:$0xff]
    %v712 = vld [vmem:[#allocation9 + $0x164] sm:$0xf]
    %v713 = vld [vmem:[#allocation9 + $0x168] sm:$0xff]
    %v714 = vld [vmem:[#allocation9 + $0x170] sm:$0xff]
    %v715 = vld [vmem:[#allocation9 + $0x178] sm:$0xf]
    %v716 = vld [vmem:[#allocation9 + $0x17c] sm:$0xff]
    %v717 = vld [vmem:[#allocation9 + $0x184] sm:$0xff]
    %v718 = vld [vmem:[#allocation9 + $0x18c] sm:$0xf]
    %v719 = vld [vmem:[#allocation9 + $0x190] sm:$0xff]
    %v720 = vld [vmem:[#allocation9 + $0x198] sm:$0xff]
    %v721 = vld [vmem:[#allocation9 + $0x1a0] sm:$0xf]
    %v722 = vld [vmem:[#allocation9 + $0x1a4] sm:$0xff]
    %v723 = vld [vmem:[#allocation9 + $0x1ac] sm:$0xff]
    %v724 = vld [vmem:[#allocation9 + $0x1b4] sm:$0xf]
    %v725 = vld [vmem:[#allocation9 + $0x1b8] sm:$0xff]
    %v726 = vld [vmem:[#allocation9 + $0x1c0] sm:$0xff]
    %v727 = vld [vmem:[#allocation9 + $0x1c8] sm:$0xf]
    %v728 = vld [vmem:[#allocation9 + $0x1cc] sm:$0xff]
    %v729 = vld [vmem:[#allocation9 + $0x1d4] sm:$0xff]
    %v730 = vld [vmem:[#allocation9 + $0x1dc] sm:$0xf]
    %v731 = vld [vmem:[#allocation9 + $0x1e0] sm:$0xff]
    %v732 = vld [vmem:[#allocation9 + $0x1e8] sm:$0xff]
    %v733 = vld [vmem:[#allocation9 + $0x1f0] sm:$0xf]
    %v734 = vld [vmem:[#allocation9 + $0x1f4] sm:$0xff]
    %v735 = vld [vmem:[#allocation9 + $0x1fc] sm:$0xff]
    %v736 = vld [vmem:[#allocation9 + $0x204] sm:$0xf]
    %v737 = vld [vmem:[#allocation9 + $0x208] sm:$0xff]
    %v738 = vld [vmem:[#allocation9 + $0x210] sm:$0xff]
    %v739 = vld [vmem:[#allocation9 + $0x218] sm:$0xf]
    %v740 = vld [vmem:[#allocation9 + $0x21c] sm:$0xff]
    %v741 = vld [vmem:[#allocation9 + $0x224] sm:$0xff]
    %v742 = vld [vmem:[#allocation9 + $0x22c] sm:$0xf]
    %v743 = vld [vmem:[#allocation9 + $0x230] sm:$0xff]
    %v744 = vld [vmem:[#allocation9 + $0x238] sm:$0xff]
    %v745 = vld [vmem:[#allocation9 + $0x240] sm:$0xf]
    %v746 = vld [vmem:[#allocation9 + $0x244] sm:$0xff]
    %v747 = vld [vmem:[#allocation9 + $0x24c] sm:$0xff]
    %v748 = vld [vmem:[#allocation9 + $0x254] sm:$0xf]
    %v749 = vld [vmem:[#allocation9 + $0x258] sm:$0xff]
    %v750 = vld [vmem:[#allocation9 + $0x260] sm:$0xff]
    %v751 = vld [vmem:[#allocation9 + $0x268] sm:$0xf]
    %v752 = vld [vmem:[#allocation9 + $0x26c] sm:$0xff]
    %v753 = vld [vmem:[#allocation9 + $0x274] sm:$0xff]
    %v754 = vld [vmem:[#allocation9 + $0x27c] sm:$0xf]
    %v851 = vunpack.c.l.b16 %v659
    %v852 = vunpack.c.h.b16 %v659
    %v853 = vunpack.c.l.b16 %v660
    %v854 = vunpack.c.h.b16 %v660
    %v855 = vunpack.c.l.b16 %v661
    %v856 = vunpack.c.l.b16 %v662
    %v857 = vunpack.c.h.b16 %v662
    %v858 = vunpack.c.l.b16 %v663
    %v859 = vunpack.c.h.b16 %v663
    %v860 = vunpack.c.l.b16 %v664
    %v861 = vunpack.c.l.b16 %v665
    %v862 = vunpack.c.h.b16 %v665
    %v863 = vunpack.c.l.b16 %v666
    %v864 = vunpack.c.h.b16 %v666
    %v865 = vunpack.c.l.b16 %v667
    %v866 = vunpack.c.l.b16 %v668
    %v867 = vunpack.c.h.b16 %v668
    %v868 = vunpack.c.l.b16 %v669
    %v869 = vunpack.c.h.b16 %v669
    %v870 = vunpack.c.l.b16 %v670
    %v871 = vunpack.c.l.b16 %v671
    %v872 = vunpack.c.h.b16 %v671
    %v873 = vunpack.c.l.b16 %v672
    %v874 = vunpack.c.h.b16 %v672
    %v875 = vunpack.c.l.b16 %v673
    %v876 = vunpack.c.l.b16 %v674
    %v877 = vunpack.c.h.b16 %v674
    %v878 = vunpack.c.l.b16 %v675
    %v879 = vunpack.c.h.b16 %v675
    %v880 = vunpack.c.l.b16 %v676
    %v881 = vunpack.c.l.b16 %v677
    %v882 = vunpack.c.h.b16 %v677
    %v883 = vunpack.c.l.b16 %v678
    %v884 = vunpack.c.h.b16 %v678
    %v885 = vunpack.c.l.b16 %v679
    %v886 = vunpack.c.l.b16 %v680
    %v887 = vunpack.c.h.b16 %v680
    %v888 = vunpack.c.l.b16 %v681
    %v889 = vunpack.c.h.b16 %v681
    %v890 = vunpack.c.l.b16 %v682
    %v891 = vunpack.c.l.b16 %v683
    %v892 = vunpack.c.h.b16 %v683
    %v893 = vunpack.c.l.b16 %v684
    %v894 = vunpack.c.h.b16 %v684
    %v895 = vunpack.c.l.b16 %v685
    %v896 = vunpack.c.l.b16 %v686
    %v897 = vunpack.c.h.b16 %v686
    %v898 = vunpack.c.l.b16 %v687
    %v899 = vunpack.c.h.b16 %v687
    %v900 = vunpack.c.l.b16 %v688
    %v901 = vunpack.c.l.b16 %v689
    %v902 = vunpack.c.h.b16 %v689
    %v903 = vunpack.c.l.b16 %v690
    %v904 = vunpack.c.h.b16 %v690
    %v905 = vunpack.c.l.b16 %v691
    %v906 = vunpack.c.l.b16 %v692
    %v907 = vunpack.c.h.b16 %v692
    %v908 = vunpack.c.l.b16 %v693
    %v909 = vunpack.c.h.b16 %v693
    %v910 = vunpack.c.l.b16 %v694
    %v911 = vunpack.c.l.b16 %v695
    %v912 = vunpack.c.h.b16 %v695
    %v913 = vunpack.c.l.b16 %v696
    %v914 = vunpack.c.h.b16 %v696
    %v915 = vunpack.c.l.b16 %v697
    %v916 = vunpack.c.l.b16 %v698
    %v917 = vunpack.c.h.b16 %v698
    %v918 = vunpack.c.l.b16 %v699
    %v919 = vunpack.c.h.b16 %v699
    %v920 = vunpack.c.l.b16 %v700
    %v921 = vunpack.c.l.b16 %v701
    %v922 = vunpack.c.h.b16 %v701
    %v923 = vunpack.c.l.b16 %v702
    %v924 = vunpack.c.h.b16 %v702
    %v925 = vunpack.c.l.b16 %v703
    %v926 = vunpack.c.l.b16 %v704
    %v927 = vunpack.c.h.b16 %v704
    %v928 = vunpack.c.l.b16 %v705
    %v929 = vunpack.c.h.b16 %v705
    %v930 = vunpack.c.l.b16 %v706
    %v931 = vunpack.c.l.b16 %v707
    %v932 = vunpack.c.h.b16 %v707
    %v933 = vunpack.c.l.b16 %v708
    %v934 = vunpack.c.h.b16 %v708
    %v935 = vunpack.c.l.b16 %v709
    %v936 = vunpack.c.l.b16 %v710
    %v937 = vunpack.c.h.b16 %v710
    %v938 = vunpack.c.l.b16 %v711
    %v939 = vunpack.c.h.b16 %v711
    %v940 = vunpack.c.l.b16 %v712
    %v941 = vunpack.c.l.b16 %v713
    %v942 = vunpack.c.h.b16 %v713
    %v943 = vunpack.c.l.b16 %v714
    %v944 = vunpack.c.h.b16 %v714
    %v945 = vunpack.c.l.b16 %v715
    %v946 = vunpack.c.l.b16 %v716
    %v947 = vunpack.c.h.b16 %v716
    %v948 = vunpack.c.l.b16 %v717
    %v949 = vunpack.c.h.b16 %v717
    %v950 = vunpack.c.l.b16 %v718
    %v951 = vunpack.c.l.b16 %v719
    %v952 = vunpack.c.h.b16 %v719
    %v953 = vunpack.c.l.b16 %v720
    %v954 = vunpack.c.h.b16 %v720
    %v955 = vunpack.c.l.b16 %v721
    %v956 = vunpack.c.l.b16 %v722
    %v957 = vunpack.c.h.b16 %v722
    %v958 = vunpack.c.l.b16 %v723
    %v959 = vunpack.c.h.b16 %v723
    %v960 = vunpack.c.l.b16 %v724
    %v961 = vunpack.c.l.b16 %v725
    %v962 = vunpack.c.h.b16 %v725
    %v963 = vunpack.c.l.b16 %v726
    %v964 = vunpack.c.h.b16 %v726
    %v965 = vunpack.c.l.b16 %v727
    %v966 = vunpack.c.l.b16 %v728
    %v967 = vunpack.c.h.b16 %v728
    %v968 = vunpack.c.l.b16 %v729
    %v969 = vunpack.c.h.b16 %v729
    %v970 = vunpack.c.l.b16 %v730
    %v971 = vunpack.c.l.b16 %v731
    %v972 = vunpack.c.h.b16 %v731
    %v973 = vunpack.c.l.b16 %v732
    %v974 = vunpack.c.h.b16 %v732
    %v975 = vunpack.c.l.b16 %v733
    %v976 = vunpack.c.l.b16 %v734
    %v977 = vunpack.c.h.b16 %v734
    %v978 = vunpack.c.l.b16 %v735
    %v979 = vunpack.c.h.b16 %v735
    %v980 = vunpack.c.l.b16 %v736
    %v981 = vunpack.c.l.b16 %v737
    %v982 = vunpack.c.h.b16 %v737
    %v983 = vunpack.c.l.b16 %v738
    %v984 = vunpack.c.h.b16 %v738
    %v985 = vunpack.c.l.b16 %v739
    %v986 = vunpack.c.l.b16 %v740
    %v987 = vunpack.c.h.b16 %v740
    %v988 = vunpack.c.l.b16 %v741
    %v989 = vunpack.c.h.b16 %v741
    %v990 = vunpack.c.l.b16 %v742
    %v991 = vunpack.c.l.b16 %v743
    %v992 = vunpack.c.h.b16 %v743
    %v993 = vunpack.c.l.b16 %v744
    %v994 = vunpack.c.h.b16 %v744
    %v995 = vunpack.c.l.b16 %v745
    %v996 = vunpack.c.l.b16 %v746
    %v997 = vunpack.c.h.b16 %v746
    %v998 = vunpack.c.l.b16 %v747
    %v999 = vunpack.c.h.b16 %v747
    %v1000 = vunpack.c.l.b16 %v748
    %v1001 = vunpack.c.l.b16 %v749
    %v1002 = vunpack.c.h.b16 %v749
    %v1003 = vunpack.c.l.b16 %v750
    %v1004 = vunpack.c.h.b16 %v750
    %v1005 = vunpack.c.l.b16 %v751
    %v1006 = vunpack.c.l.b16 %v752
    %v1007 = vunpack.c.h.b16 %v752
    %v1008 = vunpack.c.l.b16 %v753
    %v1009 = vunpack.c.h.b16 %v753
    %v1010 = vunpack.c.l.b16 %v754
    %v1011 = vpack.c.b16 %v856, %v851
    %v1012 = vpack.c.b16 %v857, %v852
    %v1013 = vpack.c.b16 %v858, %v853
    %v1014 = vpack.c.b16 %v859, %v854
    %v1015 = vpack.c.b16 %v860, %v855
    %v1016 = vpack.c.b16 %v866, %v861
    %v1017 = vpack.c.b16 %v867, %v862
    %v1018 = vpack.c.b16 %v868, %v863
    %v1019 = vpack.c.b16 %v869, %v864
    %v1020 = vpack.c.b16 %v870, %v865
    %v1021 = vpack.c.b16 %v876, %v871
    %v1022 = vpack.c.b16 %v877, %v872
    %v1023 = vpack.c.b16 %v878, %v873
    %v1024 = vpack.c.b16 %v879, %v874
    %v1025 = vpack.c.b16 %v880, %v875
    %v1026 = vpack.c.b16 %v886, %v881
    %v1027 = vpack.c.b16 %v887, %v882
    %v1028 = vpack.c.b16 %v888, %v883
    %v1029 = vpack.c.b16 %v889, %v884
    %v1030 = vpack.c.b16 %v890, %v885
    %v1031 = vpack.c.b16 %v896, %v891
    %v1032 = vpack.c.b16 %v897, %v892
    %v1033 = vpack.c.b16 %v898, %v893
    %v1034 = vpack.c.b16 %v899, %v894
    %v1035 = vpack.c.b16 %v900, %v895
    %v1036 = vpack.c.b16 %v906, %v901
    %v1037 = vpack.c.b16 %v907, %v902
    %v1038 = vpack.c.b16 %v908, %v903
    %v1039 = vpack.c.b16 %v909, %v904
    %v1040 = vpack.c.b16 %v910, %v905
    %v1041 = vpack.c.b16 %v916, %v911
    %v1042 = vpack.c.b16 %v917, %v912
    %v1043 = vpack.c.b16 %v918, %v913
    %v1044 = vpack.c.b16 %v919, %v914
    %v1045 = vpack.c.b16 %v920, %v915
    %v1046 = vpack.c.b16 %v926, %v921
    %v1047 = vpack.c.b16 %v927, %v922
    %v1048 = vpack.c.b16 %v928, %v923
    %v1049 = vpack.c.b16 %v929, %v924
    %v1050 = vpack.c.b16 %v930, %v925
    %v1051 = vpack.c.b16 %v936, %v931
    %v1052 = vpack.c.b16 %v937, %v932
    %v1053 = vpack.c.b16 %v938, %v933
    %v1054 = vpack.c.b16 %v939, %v934
    %v1055 = vpack.c.b16 %v940, %v935
    %v1056 = vpack.c.b16 %v946, %v941
    %v1057 = vpack.c.b16 %v947, %v942
    %v1058 = vpack.c.b16 %v948, %v943
    %v1059 = vpack.c.b16 %v949, %v944
    %v1060 = vpack.c.b16 %v950, %v945
    %v1061 = vpack.c.b16 %v956, %v951
    %v1062 = vpack.c.b16 %v957, %v952
    %v1063 = vpack.c.b16 %v958, %v953
    %v1064 = vpack.c.b16 %v959, %v954
    %v1065 = vpack.c.b16 %v960, %v955
    %v1066 = vpack.c.b16 %v966, %v961
    %v1067 = vpack.c.b16 %v967, %v962
    %v1068 = vpack.c.b16 %v968, %v963
    %v1069 = vpack.c.b16 %v969, %v964
    %v1070 = vpack.c.b16 %v970, %v965
    %v1071 = vpack.c.b16 %v976, %v971
    %v1072 = vpack.c.b16 %v977, %v972
    %v1073 = vpack.c.b16 %v978, %v973
    %v1074 = vpack.c.b16 %v979, %v974
    %v1075 = vpack.c.b16 %v980, %v975
    %v1076 = vpack.c.b16 %v986, %v981
    %v1077 = vpack.c.b16 %v987, %v982
    %v1078 = vpack.c.b16 %v988, %v983
    %v1079 = vpack.c.b16 %v989, %v984
    %v1080 = vpack.c.b16 %v990, %v985
    %v1081 = vpack.c.b16 %v996, %v991
    %v1082 = vpack.c.b16 %v997, %v992
    %v1083 = vpack.c.b16 %v998, %v993
    %v1084 = vpack.c.b16 %v999, %v994
    %v1085 = vpack.c.b16 %v1000, %v995
    %v1086 = vpack.c.b16 %v1006, %v1001
    %v1087 = vpack.c.b16 %v1007, %v1002
    %v1088 = vpack.c.b16 %v1008, %v1003
    %v1089 = vpack.c.b16 %v1009, %v1004
    %v1090 = vpack.c.b16 %v1010, %v1005
    %1171 = vmatprep.subr.bf16.mxu0 %v1047
    %1172 = vmatpush1.bf16.msra.mxu0 %v1046
    %1173 = vmatprep.subr.bf16.mxu0 %v1042
    %1174 = vmatpush1.bf16.msra.mxu0 %v1041
    %1175 = vmatprep.subr.bf16.mxu0 %v1037
    %1176 = vmatpush1.bf16.msra.mxu0 %v1036
    %1177 = vmatprep.subr.bf16.mxu0 %v1032
    %1178 = vmatpush1.bf16.msra.mxu0 %v1031
    %1179 = vmatprep.subr.bf16.mxu0 %v1027
    %1180 = vmatpush1.bf16.msra.mxu0 %v1026
    %1181 = vmatprep.subr.bf16.mxu0 %v1022
    %1182 = vmatpush1.bf16.msra.mxu0 %v1021
    %1183 = vmatprep.subr.bf16.mxu0 %v1017
    %1184 = vmatpush1.bf16.msra.mxu0 %v1016
    %1185 = vmatprep.subr.bf16.mxu0 %v1012
    %1186 = vmatpush1.bf16.msra.mxu0 %v1011
    %1187 = vmatprep.subr.bf16.mxu0 %v1087
    %1188 = vmatpush2.bf16.msra.mxu0 %v1086
    %1189 = vmatprep.subr.bf16.mxu0 %v1082
    %1190 = vmatpush2.bf16.msra.mxu0 %v1081
    %1191 = vmatprep.subr.bf16.mxu0 %v1077
    %1192 = vmatpush2.bf16.msra.mxu0 %v1076
    %1193 = vmatprep.subr.bf16.mxu0 %v1072
    %1194 = vmatpush2.bf16.msra.mxu0 %v1071
    %1195 = vmatprep.subr.bf16.mxu0 %v1067
    %1196 = vmatpush2.bf16.msra.mxu0 %v1066
    %1197 = vmatprep.subr.bf16.mxu0 %v1062
    %1198 = vmatpush2.bf16.msra.mxu0 %v1061
    %1199 = vmatprep.subr.bf16.mxu0 %v1057
    %1200 = vmatpush2.bf16.msra.mxu0 %v1056
    %1201 = vmatprep.subr.bf16.mxu0 %v1052
    %1202 = vmatpush2.bf16.msra.mxu0 %v1051
    %1203 = vmatprep.mubr.bf16.mxu0 %v658
    %1204 = vmatmul.mubr.bf16.gmra.mxu0 0
    %v1205 = vpop.f32.mrf.mxu0
    %v1206 = vadd.f32 0.0, %v1205
    %v1207 = vpop.f32.mrf.mxu0
    %v1208 = vadd.f32 0.0, %v1207
    %v1209 = vpop.f32.mrf.mxu0
    %v1210 = vpop.f32.mrf.mxu0
    %1211 = vdwg.mxu0
    %1212 = vmatprep.subr.bf16.mxu0 %v1049
    %1213 = vmatpush1.bf16.msra.mxu0 %v1048
    %1214 = vmatprep.subr.bf16.mxu0 %v1044
    %1215 = vmatpush1.bf16.msra.mxu0 %v1043
    %1216 = vmatprep.subr.bf16.mxu0 %v1039
    %1217 = vmatpush1.bf16.msra.mxu0 %v1038
    %1218 = vmatprep.subr.bf16.mxu0 %v1034
    %1219 = vmatpush1.bf16.msra.mxu0 %v1033
    %1220 = vmatprep.subr.bf16.mxu0 %v1029
    %1221 = vmatpush1.bf16.msra.mxu0 %v1028
    %1222 = vmatprep.subr.bf16.mxu0 %v1024
    %1223 = vmatpush1.bf16.msra.mxu0 %v1023
    %1224 = vmatprep.subr.bf16.mxu0 %v1019
    %1225 = vmatpush1.bf16.msra.mxu0 %v1018
    %1226 = vmatprep.subr.bf16.mxu0 %v1014
    %1227 = vmatpush1.bf16.msra.mxu0 %v1013
    %1228 = vmatprep.subr.bf16.mxu0 %v1089
    %1229 = vmatpush2.bf16.msra.mxu0 %v1088
    %1230 = vmatprep.subr.bf16.mxu0 %v1084
    %1231 = vmatpush2.bf16.msra.mxu0 %v1083
    %1232 = vmatprep.subr.bf16.mxu0 %v1079
    %1233 = vmatpush2.bf16.msra.mxu0 %v1078
    %1234 = vmatprep.subr.bf16.mxu0 %v1074
    %1235 = vmatpush2.bf16.msra.mxu0 %v1073
    %1236 = vmatprep.subr.bf16.mxu0 %v1069
    %1237 = vmatpush2.bf16.msra.mxu0 %v1068
    %1238 = vmatprep.subr.bf16.mxu0 %v1064
    %1239 = vmatpush2.bf16.msra.mxu0 %v1063
    %1240 = vmatprep.subr.bf16.mxu0 %v1059
    %1241 = vmatpush2.bf16.msra.mxu0 %v1058
    %1242 = vmatprep.subr.bf16.mxu0 %v1054
    %1243 = vmatpush2.bf16.msra.mxu0 %v1053
    %1244 = vmatprep.mubr.bf16.mxu0 %v658
    %1245 = vmatmul.mubr.bf16.gmra.mxu0 0
    %v1246 = vpop.f32.mrf.mxu0
    %v1247 = vadd.f32 0.0, %v1246
    %v1248 = vpop.f32.mrf.mxu0
    %v1249 = vadd.f32 0.0, %v1248
    %v1250 = vpop.f32.mrf.mxu0
    %v1251 = vpop.f32.mrf.mxu0
    %1252 = vdwg.mxu0
    %1253 = vmatprep.subr.bf16.mxu0 0
    %1254 = vmatpush1.bf16.msra.mxu0 %v1050
    %1255 = vmatprep.subr.bf16.mxu0 0
    %1256 = vmatpush1.bf16.msra.mxu0 %v1045
    %1257 = vmatprep.subr.bf16.mxu0 0
    %1258 = vmatpush1.bf16.msra.mxu0 %v1040
    %1259 = vmatprep.subr.bf16.mxu0 0
    %1260 = vmatpush1.bf16.msra.mxu0 %v1035
    %1261 = vmatprep.subr.bf16.mxu0 0
    %1262 = vmatpush1.bf16.msra.mxu0 %v1030
    %1263 = vmatprep.subr.bf16.mxu0 0
    %1264 = vmatpush1.bf16.msra.mxu0 %v1025
    %1265 = vmatprep.subr.bf16.mxu0 0
    %1266 = vmatpush1.bf16.msra.mxu0 %v1020
    %1267 = vmatprep.subr.bf16.mxu0 0
    %1268 = vmatpush1.bf16.msra.mxu0 %v1015
    %1269 = vmatprep.subr.bf16.mxu0 0
    %1270 = vmatpush2.bf16.msra.mxu0 %v1090
    %1271 = vmatprep.subr.bf16.mxu0 0
    %1272 = vmatpush2.bf16.msra.mxu0 %v1085
    %1273 = vmatprep.subr.bf16.mxu0 0
    %1274 = vmatpush2.bf16.msra.mxu0 %v1080
    %1275 = vmatprep.subr.bf16.mxu0 0
    %1276 = vmatpush2.bf16.msra.mxu0 %v1075
    %1277 = vmatprep.subr.bf16.mxu0 0
    %1278 = vmatpush2.bf16.msra.mxu0 %v1070
    %1279 = vmatprep.subr.bf16.mxu0 0
    %1280 = vmatpush2.bf16.msra.mxu0 %v1065
    %1281 = vmatprep.subr.bf16.mxu0 0
    %1282 = vmatpush2.bf16.msra.mxu0 %v1060
    %1283 = vmatprep.subr.bf16.mxu0 0
    %1284 = vmatpush2.bf16.msra.mxu0 %v1055
    %1285 = vmatprep.mubr.bf16.mxu0 %v658
    %1286 = vmatmul.mubr.bf16.gmra.mxu0 0
    %v1287 = vpop.f32.mrf.mxu0
    %v1288 = vadd.f32 0.0, %v1287
    %v1289 = vpop.f32.mrf.mxu0
    %v1290 = vpop.f32.mrf.mxu0
    %v1291 = vpop.f32.mrf.mxu0
    %1292 = vdwg.mxu0
    %v1293 = vadd.f32 %v547, %v1206
    %v1294 = vadd.f32 %v548, %v1208
    %v1295 = vadd.f32 %v549, %v1247
    %v1296 = vadd.f32 %v550, %v1249
    %v1297 = vadd.f32 %v551, %v1288
    %v1298 = vxor.u32 %v1293, 2147483648
    %v1299 = vmul.f32 %v1298, 1.442695
    %v1300 = vpow.pop %v1299
    %v1301 = vadd.f32 %v1300, 1.0
    %v1302 = vrcp.pop %v1301
    %v1303 = vmul.f32 1.0, %v1302
    %v1304 = vxor.u32 %v1294, 2147483648
    %v1305 = vmul.f32 %v1304, 1.442695
    %v1306 = vpow.pop %v1305
    %v1307 = vadd.f32 %v1306, 1.0
    %v1308 = vrcp.pop %v1307
    %v1309 = vmul.f32 1.0, %v1308
    %v1310 = vxor.u32 %v1295, 2147483648
    %v1311 = vmul.f32 %v1310, 1.442695
    %v1312 = vpow.pop %v1311
    %v1313 = vadd.f32 %v1312, 1.0
    %v1314 = vrcp.pop %v1313
    %v1315 = vmul.f32 1.0, %v1314
    %v1316 = vtanh.pop %v1296
    %v1317 = vxor.u32 %v1297, 2147483648
    %v1318 = vmul.f32 %v1317, 1.442695
    %v1319 = vpow.pop %v1318
    %v1320 = vadd.f32 %v1319, 1.0
    %v1321 = vrcp.pop %v1320
    %v1322 = vmul.f32 1.0, %v1321
    %v1323 = vmul.f32 %v1303, 0.0
    %v1324 = vmul.f32 %v1309, %v1316
    %v1325 = vadd.f32 %v1323, %v1324
    %v1326 = vmul.f32 %v1315, %v657
    %v1327 = vadd.f32 %v1325, %v1326
    %v1328 = vtanh.pop %v1327
    %v1329 = vmul.f32 %v1322, %v1328
    %s1330 = scalar_lea.vmem [#allocation3], 40
    %1331 = vst [vmem:[%s1330] sm:$0xff] %v1329
    %s1332 = smul.u32 1, 6
    %s1333 = smul.addr %s1332, 8
    %s1334 = scalar_lea.vmem [#allocation2], %s1333
    %v1335 = vld [vmem:[%s1334] sm:$0xff]
    %v1336 = vld [vmem:[%s1334 + $0x8] sm:$0xff]
    %v1337 = vld [vmem:[%s1334 + $0x10] sm:$0xff]
    %v1338 = vld [vmem:[%s1334 + $0x18] sm:$0xff]
    %v1339 = vld [vmem:[%s1334 + $0x20] sm:$0xff]
    %v1340 = vld [vmem:[%s1334 + $0x28] sm:$0xff]
    %v1341 = vpack.c.bf16 %v1329, %v1329
    %v1342 = vld [vmem:[#allocation7] sm:$0xf]
    %v1343 = vld [vmem:[#allocation7 + $0x4] sm:$0xf]
    %v1344 = vld [vmem:[#allocation7 + $0x8] sm:$0xf]
    %v1345 = vld [vmem:[#allocation7 + $0xc] sm:$0xf]
    %v1346 = vld [vmem:[#allocation7 + $0x10] sm:$0xf]
    %v1347 = vld [vmem:[#allocation7 + $0x14] sm:$0xf]
    %v1348 = vld [vmem:[#allocation7 + $0x18] sm:$0xf]
    %v1349 = vld [vmem:[#allocation7 + $0x1c] sm:$0xf]
    %v1350 = vld [vmem:[#allocation7 + $0x20] sm:$0xf]
    %v1351 = vld [vmem:[#allocation7 + $0x24] sm:$0xf]
    %v1352 = vld [vmem:[#allocation7 + $0x28] sm:$0xf]
    %v1353 = vld [vmem:[#allocation7 + $0x2c] sm:$0xf]
    %v1354 = vld [vmem:[#allocation7 + $0x30] sm:$0xf]
    %v1355 = vld [vmem:[#allocation7 + $0x34] sm:$0xf]
    %v1356 = vld [vmem:[#allocation7 + $0x38] sm:$0xf]
    %v1357 = vld [vmem:[#allocation7 + $0x3c] sm:$0xf]
    %v1374 = vunpack.c.l.b16 %v1342
    %v1375 = vunpack.c.l.b16 %v1343
    %v1376 = vunpack.c.l.b16 %v1344
    %v1377 = vunpack.c.l.b16 %v1345
    %v1378 = vunpack.c.l.b16 %v1346
    %v1379 = vunpack.c.l.b16 %v1347
    %v1380 = vunpack.c.l.b16 %v1348
    %v1381 = vunpack.c.l.b16 %v1349
    %v1382 = vunpack.c.l.b16 %v1350
    %v1383 = vunpack.c.l.b16 %v1351
    %v1384 = vunpack.c.l.b16 %v1352
    %v1385 = vunpack.c.l.b16 %v1353
    %v1386 = vunpack.c.l.b16 %v1354
    %v1387 = vunpack.c.l.b16 %v1355
    %v1388 = vunpack.c.l.b16 %v1356
    %v1389 = vunpack.c.l.b16 %v1357
    %v1390 = vpack.c.b16 %v1375, %v1374
    %v1391 = vpack.c.b16 %v1377, %v1376
    %v1392 = vpack.c.b16 %v1379, %v1378
    %v1393 = vpack.c.b16 %v1381, %v1380
    %v1394 = vpack.c.b16 %v1383, %v1382
    %v1395 = vpack.c.b16 %v1385, %v1384
    %v1396 = vpack.c.b16 %v1387, %v1386
    %v1397 = vpack.c.b16 %v1389, %v1388
    %1406 = vmatprep.subr.bf16.mxu0 0
    %1407 = vmatpush1.bf16.msra.mxu0 %v1397
    %1408 = vmatprep.subr.bf16.mxu0 0
    %1409 = vmatpush1.bf16.msra.mxu0 %v1396
    %1410 = vmatprep.subr.bf16.mxu0 0
    %1411 = vmatpush1.bf16.msra.mxu0 %v1395
    %1412 = vmatprep.subr.bf16.mxu0 0
    %1413 = vmatpush1.bf16.msra.mxu0 %v1394
    %1414 = vmatprep.subr.bf16.mxu0 0
    %1415 = vmatpush1.bf16.msra.mxu0 %v1393
    %1416 = vmatprep.subr.bf16.mxu0 0
    %1417 = vmatpush1.bf16.msra.mxu0 %v1392
    %1418 = vmatprep.subr.bf16.mxu0 0
    %1419 = vmatpush1.bf16.msra.mxu0 %v1391
    %1420 = vmatprep.subr.bf16.mxu0 0
    %1421 = vmatpush1.bf16.msra.mxu0 %v1390
    %1422 = vmatprep.subr.bf16.mxu0 0
    %1423 = vmatpush2.bf16.msra.mxu0 0
    %1424 = vmatprep.subr.bf16.mxu0 0
    %1425 = vmatpush2.bf16.msra.mxu0 0
    %1426 = vmatprep.subr.bf16.mxu0 0
    %1427 = vmatpush2.bf16.msra.mxu0 0
    %1428 = vmatprep.subr.bf16.mxu0 0
    %1429 = vmatpush2.bf16.msra.mxu0 0
    %1430 = vmatprep.subr.bf16.mxu0 0
    %1431 = vmatpush2.bf16.msra.mxu0 0
    %1432 = vmatprep.subr.bf16.mxu0 0
    %1433 = vmatpush2.bf16.msra.mxu0 0
    %1434 = vmatprep.subr.bf16.mxu0 0
    %1435 = vmatpush2.bf16.msra.mxu0 0
    %1436 = vmatprep.subr.bf16.mxu0 0
    %1437 = vmatpush2.bf16.msra.mxu0 0
    %1438 = vmatprep.mubr.bf16.mxu0 0
    %1439 = vmatmul.mubr.bf16.gmra.mxu0 %v1341
    %v1440 = vpop.f32.mrf.mxu0
    %v1441 = vadd.f32 0.0, %v1440
    %v1442 = vpop.f32.mrf.mxu0
    %v1443 = vpop.f32.mrf.mxu0
    %v1444 = vpop.f32.mrf.mxu0
    %1445 = vdwg.mxu0
    %v1446 = vadd.f32 %v1335, %v1441
    %v1447 = vtanh.pop %v1446
    %v1448 = vpack.c.bf16 %v1447, %v1447
    %v1449 = vld [vmem:[#allocation9] sm:$0xff]
    %v1450 = vld [vmem:[#allocation9 + $0x8] sm:$0xff]
    %v1451 = vld [vmem:[#allocation9 + $0x10] sm:$0xf]
    %v1452 = vld [vmem:[#allocation9 + $0x14] sm:$0xff]
    %v1453 = vld [vmem:[#allocation9 + $0x1c] sm:$0xff]
    %v1454 = vld [vmem:[#allocation9 + $0x24] sm:$0xf]
    %v1455 = vld [vmem:[#allocation9 + $0x28] sm:$0xff]
    %v1456 = vld [vmem:[#allocation9 + $0x30] sm:$0xff]
    %v1457 = vld [vmem:[#allocation9 + $0x38] sm:$0xf]
    %v1458 = vld [vmem:[#allocation9 + $0x3c] sm:$0xff]
    %v1459 = vld [vmem:[#allocation9 + $0x44] sm:$0xff]
    %v1460 = vld [vmem:[#allocation9 + $0x4c] sm:$0xf]
    %v1461 = vld [vmem:[#allocation9 + $0x50] sm:$0xff]
    %v1462 = vld [vmem:[#allocation9 + $0x58] sm:$0xff]
    %v1463 = vld [vmem:[#allocation9 + $0x60] sm:$0xf]
    %v1464 = vld [vmem:[#allocation9 + $0x64] sm:$0xff]
    %v1465 = vld [vmem:[#allocation9 + $0x6c] sm:$0xff]
    %v1466 = vld [vmem:[#allocation9 + $0x74] sm:$0xf]
    %v1467 = vld [vmem:[#allocation9 + $0x78] sm:$0xff]
    %v1468 = vld [vmem:[#allocation9 + $0x80] sm:$0xff]
    %v1469 = vld [vmem:[#allocation9 + $0x88] sm:$0xf]
    %v1470 = vld [vmem:[#allocation9 + $0x8c] sm:$0xff]
    %v1471 = vld [vmem:[#allocation9 + $0x94] sm:$0xff]
    %v1472 = vld [vmem:[#allocation9 + $0x9c] sm:$0xf]
    %v1473 = vld [vmem:[#allocation9 + $0xa0] sm:$0xff]
    %v1474 = vld [vmem:[#allocation9 + $0xa8] sm:$0xff]
    %v1475 = vld [vmem:[#allocation9 + $0xb0] sm:$0xf]
    %v1476 = vld [vmem:[#allocation9 + $0xb4] sm:$0xff]
    %v1477 = vld [vmem:[#allocation9 + $0xbc] sm:$0xff]
    %v1478 = vld [vmem:[#allocation9 + $0xc4] sm:$0xf]
    %v1479 = vld [vmem:[#allocation9 + $0xc8] sm:$0xff]
    %v1480 = vld [vmem:[#allocation9 + $0xd0] sm:$0xff]
    %v1481 = vld [vmem:[#allocation9 + $0xd8] sm:$0xf]
    %v1482 = vld [vmem:[#allocation9 + $0xdc] sm:$0xff]
    %v1483 = vld [vmem:[#allocation9 + $0xe4] sm:$0xff]
    %v1484 = vld [vmem:[#allocation9 + $0xec] sm:$0xf]
    %v1485 = vld [vmem:[#allocation9 + $0xf0] sm:$0xff]
    %v1486 = vld [vmem:[#allocation9 + $0xf8] sm:$0xff]
    %v1487 = vld [vmem:[#allocation9 + $0x100] sm:$0xf]
    %v1488 = vld [vmem:[#allocation9 + $0x104] sm:$0xff]
    %v1489 = vld [vmem:[#allocation9 + $0x10c] sm:$0xff]
    %v1490 = vld [vmem:[#allocation9 + $0x114] sm:$0xf]
    %v1491 = vld [vmem:[#allocation9 + $0x118] sm:$0xff]
    %v1492 = vld [vmem:[#allocation9 + $0x120] sm:$0xff]
    %v1493 = vld [vmem:[#allocation9 + $0x128] sm:$0xf]
    %v1494 = vld [vmem:[#allocation9 + $0x12c] sm:$0xff]
    %v1495 = vld [vmem:[#allocation9 + $0x134] sm:$0xff]
    %v1496 = vld [vmem:[#allocation9 + $0x13c] sm:$0xf]
    %v1497 = vld [vmem:[#allocation9 + $0x140] sm:$0xff]
    %v1498 = vld [vmem:[#allocation9 + $0x148] sm:$0xff]
    %v1499 = vld [vmem:[#allocation9 + $0x150] sm:$0xf]
    %v1500 = vld [vmem:[#allocation9 + $0x154] sm:$0xff]
    %v1501 = vld [vmem:[#allocation9 + $0x15c] sm:$0xff]
    %v1502 = vld [vmem:[#allocation9 + $0x164] sm:$0xf]
    %v1503 = vld [vmem:[#allocation9 + $0x168] sm:$0xff]
    %v1504 = vld [vmem:[#allocation9 + $0x170] sm:$0xff]
    %v1505 = vld [vmem:[#allocation9 + $0x178] sm:$0xf]
    %v1506 = vld [vmem:[#allocation9 + $0x17c] sm:$0xff]
    %v1507 = vld [vmem:[#allocation9 + $0x184] sm:$0xff]
    %v1508 = vld [vmem:[#allocation9 + $0x18c] sm:$0xf]
    %v1509 = vld [vmem:[#allocation9 + $0x190] sm:$0xff]
    %v1510 = vld [vmem:[#allocation9 + $0x198] sm:$0xff]
    %v1511 = vld [vmem:[#allocation9 + $0x1a0] sm:$0xf]
    %v1512 = vld [vmem:[#allocation9 + $0x1a4] sm:$0xff]
    %v1513 = vld [vmem:[#allocation9 + $0x1ac] sm:$0xff]
    %v1514 = vld [vmem:[#allocation9 + $0x1b4] sm:$0xf]
    %v1515 = vld [vmem:[#allocation9 + $0x1b8] sm:$0xff]
    %v1516 = vld [vmem:[#allocation9 + $0x1c0] sm:$0xff]
    %v1517 = vld [vmem:[#allocation9 + $0x1c8] sm:$0xf]
    %v1518 = vld [vmem:[#allocation9 + $0x1cc] sm:$0xff]
    %v1519 = vld [vmem:[#allocation9 + $0x1d4] sm:$0xff]
    %v1520 = vld [vmem:[#allocation9 + $0x1dc] sm:$0xf]
    %v1521 = vld [vmem:[#allocation9 + $0x1e0] sm:$0xff]
    %v1522 = vld [vmem:[#allocation9 + $0x1e8] sm:$0xff]
    %v1523 = vld [vmem:[#allocation9 + $0x1f0] sm:$0xf]
    %v1524 = vld [vmem:[#allocation9 + $0x1f4] sm:$0xff]
    %v1525 = vld [vmem:[#allocation9 + $0x1fc] sm:$0xff]
    %v1526 = vld [vmem:[#allocation9 + $0x204] sm:$0xf]
    %v1527 = vld [vmem:[#allocation9 + $0x208] sm:$0xff]
    %v1528 = vld [vmem:[#allocation9 + $0x210] sm:$0xff]
    %v1529 = vld [vmem:[#allocation9 + $0x218] sm:$0xf]
    %v1530 = vld [vmem:[#allocation9 + $0x21c] sm:$0xff]
    %v1531 = vld [vmem:[#allocation9 + $0x224] sm:$0xff]
    %v1532 = vld [vmem:[#allocation9 + $0x22c] sm:$0xf]
    %v1533 = vld [vmem:[#allocation9 + $0x230] sm:$0xff]
    %v1534 = vld [vmem:[#allocation9 + $0x238] sm:$0xff]
    %v1535 = vld [vmem:[#allocation9 + $0x240] sm:$0xf]
    %v1536 = vld [vmem:[#allocation9 + $0x244] sm:$0xff]
    %v1537 = vld [vmem:[#allocation9 + $0x24c] sm:$0xff]
    %v1538 = vld [vmem:[#allocation9 + $0x254] sm:$0xf]
    %v1539 = vld [vmem:[#allocation9 + $0x258] sm:$0xff]
    %v1540 = vld [vmem:[#allocation9 + $0x260] sm:$0xff]
    %v1541 = vld [vmem:[#allocation9 + $0x268] sm:$0xf]
    %v1542 = vld [vmem:[#allocation9 + $0x26c] sm:$0xff]
    %v1543 = vld [vmem:[#allocation9 + $0x274] sm:$0xff]
    %v1544 = vld [vmem:[#allocation9 + $0x27c] sm:$0xf]
    %v1641 = vunpack.c.l.b16 %v1449
    %v1642 = vunpack.c.h.b16 %v1449
    %v1643 = vunpack.c.l.b16 %v1450
    %v1644 = vunpack.c.h.b16 %v1450
    %v1645 = vunpack.c.l.b16 %v1451
    %v1646 = vunpack.c.l.b16 %v1452
    %v1647 = vunpack.c.h.b16 %v1452
    %v1648 = vunpack.c.l.b16 %v1453
    %v1649 = vunpack.c.h.b16 %v1453
    %v1650 = vunpack.c.l.b16 %v1454
    %v1651 = vunpack.c.l.b16 %v1455
    %v1652 = vunpack.c.h.b16 %v1455
    %v1653 = vunpack.c.l.b16 %v1456
    %v1654 = vunpack.c.h.b16 %v1456
    %v1655 = vunpack.c.l.b16 %v1457
    %v1656 = vunpack.c.l.b16 %v1458
    %v1657 = vunpack.c.h.b16 %v1458
    %v1658 = vunpack.c.l.b16 %v1459
    %v1659 = vunpack.c.h.b16 %v1459
    %v1660 = vunpack.c.l.b16 %v1460
    %v1661 = vunpack.c.l.b16 %v1461
    %v1662 = vunpack.c.h.b16 %v1461
    %v1663 = vunpack.c.l.b16 %v1462
    %v1664 = vunpack.c.h.b16 %v1462
    %v1665 = vunpack.c.l.b16 %v1463
    %v1666 = vunpack.c.l.b16 %v1464
    %v1667 = vunpack.c.h.b16 %v1464
    %v1668 = vunpack.c.l.b16 %v1465
    %v1669 = vunpack.c.h.b16 %v1465
    %v1670 = vunpack.c.l.b16 %v1466
    %v1671 = vunpack.c.l.b16 %v1467
    %v1672 = vunpack.c.h.b16 %v1467
    %v1673 = vunpack.c.l.b16 %v1468
    %v1674 = vunpack.c.h.b16 %v1468
    %v1675 = vunpack.c.l.b16 %v1469
    %v1676 = vunpack.c.l.b16 %v1470
    %v1677 = vunpack.c.h.b16 %v1470
    %v1678 = vunpack.c.l.b16 %v1471
    %v1679 = vunpack.c.h.b16 %v1471
    %v1680 = vunpack.c.l.b16 %v1472
    %v1681 = vunpack.c.l.b16 %v1473
    %v1682 = vunpack.c.h.b16 %v1473
    %v1683 = vunpack.c.l.b16 %v1474
    %v1684 = vunpack.c.h.b16 %v1474
    %v1685 = vunpack.c.l.b16 %v1475
    %v1686 = vunpack.c.l.b16 %v1476
    %v1687 = vunpack.c.h.b16 %v1476
    %v1688 = vunpack.c.l.b16 %v1477
    %v1689 = vunpack.c.h.b16 %v1477
    %v1690 = vunpack.c.l.b16 %v1478
    %v1691 = vunpack.c.l.b16 %v1479
    %v1692 = vunpack.c.h.b16 %v1479
    %v1693 = vunpack.c.l.b16 %v1480
    %v1694 = vunpack.c.h.b16 %v1480
    %v1695 = vunpack.c.l.b16 %v1481
    %v1696 = vunpack.c.l.b16 %v1482
    %v1697 = vunpack.c.h.b16 %v1482
    %v1698 = vunpack.c.l.b16 %v1483
    %v1699 = vunpack.c.h.b16 %v1483
    %v1700 = vunpack.c.l.b16 %v1484
    %v1701 = vunpack.c.l.b16 %v1485
    %v1702 = vunpack.c.h.b16 %v1485
    %v1703 = vunpack.c.l.b16 %v1486
    %v1704 = vunpack.c.h.b16 %v1486
    %v1705 = vunpack.c.l.b16 %v1487
    %v1706 = vunpack.c.l.b16 %v1488
    %v1707 = vunpack.c.h.b16 %v1488
    %v1708 = vunpack.c.l.b16 %v1489
    %v1709 = vunpack.c.h.b16 %v1489
    %v1710 = vunpack.c.l.b16 %v1490
    %v1711 = vunpack.c.l.b16 %v1491
    %v1712 = vunpack.c.h.b16 %v1491
    %v1713 = vunpack.c.l.b16 %v1492
    %v1714 = vunpack.c.h.b16 %v1492
    %v1715 = vunpack.c.l.b16 %v1493
    %v1716 = vunpack.c.l.b16 %v1494
    %v1717 = vunpack.c.h.b16 %v1494
    %v1718 = vunpack.c.l.b16 %v1495
    %v1719 = vunpack.c.h.b16 %v1495
    %v1720 = vunpack.c.l.b16 %v1496
    %v1721 = vunpack.c.l.b16 %v1497
    %v1722 = vunpack.c.h.b16 %v1497
    %v1723 = vunpack.c.l.b16 %v1498
    %v1724 = vunpack.c.h.b16 %v1498
    %v1725 = vunpack.c.l.b16 %v1499
    %v1726 = vunpack.c.l.b16 %v1500
    %v1727 = vunpack.c.h.b16 %v1500
    %v1728 = vunpack.c.l.b16 %v1501
    %v1729 = vunpack.c.h.b16 %v1501
    %v1730 = vunpack.c.l.b16 %v1502
    %v1731 = vunpack.c.l.b16 %v1503
    %v1732 = vunpack.c.h.b16 %v1503
    %v1733 = vunpack.c.l.b16 %v1504
    %v1734 = vunpack.c.h.b16 %v1504
    %v1735 = vunpack.c.l.b16 %v1505
    %v1736 = vunpack.c.l.b16 %v1506
    %v1737 = vunpack.c.h.b16 %v1506
    %v1738 = vunpack.c.l.b16 %v1507
    %v1739 = vunpack.c.h.b16 %v1507
    %v1740 = vunpack.c.l.b16 %v1508
    %v1741 = vunpack.c.l.b16 %v1509
    %v1742 = vunpack.c.h.b16 %v1509
    %v1743 = vunpack.c.l.b16 %v1510
    %v1744 = vunpack.c.h.b16 %v1510
    %v1745 = vunpack.c.l.b16 %v1511
    %v1746 = vunpack.c.l.b16 %v1512
    %v1747 = vunpack.c.h.b16 %v1512
    %v1748 = vunpack.c.l.b16 %v1513
    %v1749 = vunpack.c.h.b16 %v1513
    %v1750 = vunpack.c.l.b16 %v1514
    %v1751 = vunpack.c.l.b16 %v1515
    %v1752 = vunpack.c.h.b16 %v1515
    %v1753 = vunpack.c.l.b16 %v1516
    %v1754 = vunpack.c.h.b16 %v1516
    %v1755 = vunpack.c.l.b16 %v1517
    %v1756 = vunpack.c.l.b16 %v1518
    %v1757 = vunpack.c.h.b16 %v1518
    %v1758 = vunpack.c.l.b16 %v1519
    %v1759 = vunpack.c.h.b16 %v1519
    %v1760 = vunpack.c.l.b16 %v1520
    %v1761 = vunpack.c.l.b16 %v1521
    %v1762 = vunpack.c.h.b16 %v1521
    %v1763 = vunpack.c.l.b16 %v1522
    %v1764 = vunpack.c.h.b16 %v1522
    %v1765 = vunpack.c.l.b16 %v1523
    %v1766 = vunpack.c.l.b16 %v1524
    %v1767 = vunpack.c.h.b16 %v1524
    %v1768 = vunpack.c.l.b16 %v1525
    %v1769 = vunpack.c.h.b16 %v1525
    %v1770 = vunpack.c.l.b16 %v1526
    %v1771 = vunpack.c.l.b16 %v1527
    %v1772 = vunpack.c.h.b16 %v1527
    %v1773 = vunpack.c.l.b16 %v1528
    %v1774 = vunpack.c.h.b16 %v1528
    %v1775 = vunpack.c.l.b16 %v1529
    %v1776 = vunpack.c.l.b16 %v1530
    %v1777 = vunpack.c.h.b16 %v1530
    %v1778 = vunpack.c.l.b16 %v1531
    %v1779 = vunpack.c.h.b16 %v1531
    %v1780 = vunpack.c.l.b16 %v1532
    %v1781 = vunpack.c.l.b16 %v1533
    %v1782 = vunpack.c.h.b16 %v1533
    %v1783 = vunpack.c.l.b16 %v1534
    %v1784 = vunpack.c.h.b16 %v1534
    %v1785 = vunpack.c.l.b16 %v1535
    %v1786 = vunpack.c.l.b16 %v1536
    %v1787 = vunpack.c.h.b16 %v1536
    %v1788 = vunpack.c.l.b16 %v1537
    %v1789 = vunpack.c.h.b16 %v1537
    %v1790 = vunpack.c.l.b16 %v1538
    %v1791 = vunpack.c.l.b16 %v1539
    %v1792 = vunpack.c.h.b16 %v1539
    %v1793 = vunpack.c.l.b16 %v1540
    %v1794 = vunpack.c.h.b16 %v1540
    %v1795 = vunpack.c.l.b16 %v1541
    %v1796 = vunpack.c.l.b16 %v1542
    %v1797 = vunpack.c.h.b16 %v1542
    %v1798 = vunpack.c.l.b16 %v1543
    %v1799 = vunpack.c.h.b16 %v1543
    %v1800 = vunpack.c.l.b16 %v1544
    %v1801 = vpack.c.b16 %v1646, %v1641
    %v1802 = vpack.c.b16 %v1647, %v1642
    %v1803 = vpack.c.b16 %v1648, %v1643
    %v1804 = vpack.c.b16 %v1649, %v1644
    %v1805 = vpack.c.b16 %v1650, %v1645
    %v1806 = vpack.c.b16 %v1656, %v1651
    %v1807 = vpack.c.b16 %v1657, %v1652
    %v1808 = vpack.c.b16 %v1658, %v1653
    %v1809 = vpack.c.b16 %v1659, %v1654
    %v1810 = vpack.c.b16 %v1660, %v1655
    %v1811 = vpack.c.b16 %v1666, %v1661
    %v1812 = vpack.c.b16 %v1667, %v1662
    %v1813 = vpack.c.b16 %v1668, %v1663
    %v1814 = vpack.c.b16 %v1669, %v1664
    %v1815 = vpack.c.b16 %v1670, %v1665
    %v1816 = vpack.c.b16 %v1676, %v1671
    %v1817 = vpack.c.b16 %v1677, %v1672
    %v1818 = vpack.c.b16 %v1678, %v1673
    %v1819 = vpack.c.b16 %v1679, %v1674
    %v1820 = vpack.c.b16 %v1680, %v1675
    %v1821 = vpack.c.b16 %v1686, %v1681
    %v1822 = vpack.c.b16 %v1687, %v1682
    %v1823 = vpack.c.b16 %v1688, %v1683
    %v1824 = vpack.c.b16 %v1689, %v1684
    %v1825 = vpack.c.b16 %v1690, %v1685
    %v1826 = vpack.c.b16 %v1696, %v1691
    %v1827 = vpack.c.b16 %v1697, %v1692
    %v1828 = vpack.c.b16 %v1698, %v1693
    %v1829 = vpack.c.b16 %v1699, %v1694
    %v1830 = vpack.c.b16 %v1700, %v1695
    %v1831 = vpack.c.b16 %v1706, %v1701
    %v1832 = vpack.c.b16 %v1707, %v1702
    %v1833 = vpack.c.b16 %v1708, %v1703
    %v1834 = vpack.c.b16 %v1709, %v1704
    %v1835 = vpack.c.b16 %v1710, %v1705
    %v1836 = vpack.c.b16 %v1716, %v1711
    %v1837 = vpack.c.b16 %v1717, %v1712
    %v1838 = vpack.c.b16 %v1718, %v1713
    %v1839 = vpack.c.b16 %v1719, %v1714
    %v1840 = vpack.c.b16 %v1720, %v1715
    %v1841 = vpack.c.b16 %v1726, %v1721
    %v1842 = vpack.c.b16 %v1727, %v1722
    %v1843 = vpack.c.b16 %v1728, %v1723
    %v1844 = vpack.c.b16 %v1729, %v1724
    %v1845 = vpack.c.b16 %v1730, %v1725
    %v1846 = vpack.c.b16 %v1736, %v1731
    %v1847 = vpack.c.b16 %v1737, %v1732
    %v1848 = vpack.c.b16 %v1738, %v1733
    %v1849 = vpack.c.b16 %v1739, %v1734
    %v1850 = vpack.c.b16 %v1740, %v1735
    %v1851 = vpack.c.b16 %v1746, %v1741
    %v1852 = vpack.c.b16 %v1747, %v1742
    %v1853 = vpack.c.b16 %v1748, %v1743
    %v1854 = vpack.c.b16 %v1749, %v1744
    %v1855 = vpack.c.b16 %v1750, %v1745
    %v1856 = vpack.c.b16 %v1756, %v1751
    %v1857 = vpack.c.b16 %v1757, %v1752
    %v1858 = vpack.c.b16 %v1758, %v1753
    %v1859 = vpack.c.b16 %v1759, %v1754
    %v1860 = vpack.c.b16 %v1760, %v1755
    %v1861 = vpack.c.b16 %v1766, %v1761
    %v1862 = vpack.c.b16 %v1767, %v1762
    %v1863 = vpack.c.b16 %v1768, %v1763
    %v1864 = vpack.c.b16 %v1769, %v1764
    %v1865 = vpack.c.b16 %v1770, %v1765
    %v1866 = vpack.c.b16 %v1776, %v1771
    %v1867 = vpack.c.b16 %v1777, %v1772
    %v1868 = vpack.c.b16 %v1778, %v1773
    %v1869 = vpack.c.b16 %v1779, %v1774
    %v1870 = vpack.c.b16 %v1780, %v1775
    %v1871 = vpack.c.b16 %v1786, %v1781
    %v1872 = vpack.c.b16 %v1787, %v1782
    %v1873 = vpack.c.b16 %v1788, %v1783
    %v1874 = vpack.c.b16 %v1789, %v1784
    %v1875 = vpack.c.b16 %v1790, %v1785
    %v1876 = vpack.c.b16 %v1796, %v1791
    %v1877 = vpack.c.b16 %v1797, %v1792
    %v1878 = vpack.c.b16 %v1798, %v1793
    %v1879 = vpack.c.b16 %v1799, %v1794
    %v1880 = vpack.c.b16 %v1800, %v1795
    %1961 = vmatprep.subr.bf16.mxu0 %v1837
    %1962 = vmatpush1.bf16.msra.mxu0 %v1836
    %1963 = vmatprep.subr.bf16.mxu0 %v1832
    %1964 = vmatpush1.bf16.msra.mxu0 %v1831
    %1965 = vmatprep.subr.bf16.mxu0 %v1827
    %1966 = vmatpush1.bf16.msra.mxu0 %v1826
    %1967 = vmatprep.subr.bf16.mxu0 %v1822
    %1968 = vmatpush1.bf16.msra.mxu0 %v1821
    %1969 = vmatprep.subr.bf16.mxu0 %v1817
    %1970 = vmatpush1.bf16.msra.mxu0 %v1816
    %1971 = vmatprep.subr.bf16.mxu0 %v1812
    %1972 = vmatpush1.bf16.msra.mxu0 %v1811
    %1973 = vmatprep.subr.bf16.mxu0 %v1807
    %1974 = vmatpush1.bf16.msra.mxu0 %v1806
    %1975 = vmatprep.subr.bf16.mxu0 %v1802
    %1976 = vmatpush1.bf16.msra.mxu0 %v1801
    %1977 = vmatprep.subr.bf16.mxu0 %v1877
    %1978 = vmatpush2.bf16.msra.mxu0 %v1876
    %1979 = vmatprep.subr.bf16.mxu0 %v1872
    %1980 = vmatpush2.bf16.msra.mxu0 %v1871
    %1981 = vmatprep.subr.bf16.mxu0 %v1867
    %1982 = vmatpush2.bf16.msra.mxu0 %v1866
    %1983 = vmatprep.subr.bf16.mxu0 %v1862
    %1984 = vmatpush2.bf16.msra.mxu0 %v1861
    %1985 = vmatprep.subr.bf16.mxu0 %v1857
    %1986 = vmatpush2.bf16.msra.mxu0 %v1856
    %1987 = vmatprep.subr.bf16.mxu0 %v1852
    %1988 = vmatpush2.bf16.msra.mxu0 %v1851
    %1989 = vmatprep.subr.bf16.mxu0 %v1847
    %1990 = vmatpush2.bf16.msra.mxu0 %v1846
    %1991 = vmatprep.subr.bf16.mxu0 %v1842
    %1992 = vmatpush2.bf16.msra.mxu0 %v1841
    %1993 = vmatprep.mubr.bf16.mxu0 %v1448
    %1994 = vmatmul.mubr.bf16.gmra.mxu0 %v1341
    %v1995 = vpop.f32.mrf.mxu0
    %v1996 = vadd.f32 0.0, %v1995
    %v1997 = vpop.f32.mrf.mxu0
    %v1998 = vadd.f32 0.0, %v1997
    %v1999 = vpop.f32.mrf.mxu0
    %v2000 = vpop.f32.mrf.mxu0
    %2001 = vdwg.mxu0
    %2002 = vmatprep.subr.bf16.mxu0 %v1839
    %2003 = vmatpush1.bf16.msra.mxu0 %v1838
    %2004 = vmatprep.subr.bf16.mxu0 %v1834
    %2005 = vmatpush1.bf16.msra.mxu0 %v1833
    %2006 = vmatprep.subr.bf16.mxu0 %v1829
    %2007 = vmatpush1.bf16.msra.mxu0 %v1828
    %2008 = vmatprep.subr.bf16.mxu0 %v1824
    %2009 = vmatpush1.bf16.msra.mxu0 %v1823
    %2010 = vmatprep.subr.bf16.mxu0 %v1819
    %2011 = vmatpush1.bf16.msra.mxu0 %v1818
    %2012 = vmatprep.subr.bf16.mxu0 %v1814
    %2013 = vmatpush1.bf16.msra.mxu0 %v1813
    %2014 = vmatprep.subr.bf16.mxu0 %v1809
    %2015 = vmatpush1.bf16.msra.mxu0 %v1808
    %2016 = vmatprep.subr.bf16.mxu0 %v1804
    %2017 = vmatpush1.bf16.msra.mxu0 %v1803
    %2018 = vmatprep.subr.bf16.mxu0 %v1879
    %2019 = vmatpush2.bf16.msra.mxu0 %v1878
    %2020 = vmatprep.subr.bf16.mxu0 %v1874
    %2021 = vmatpush2.bf16.msra.mxu0 %v1873
    %2022 = vmatprep.subr.bf16.mxu0 %v1869
    %2023 = vmatpush2.bf16.msra.mxu0 %v1868
    %2024 = vmatprep.subr.bf16.mxu0 %v1864
    %2025 = vmatpush2.bf16.msra.mxu0 %v1863
    %2026 = vmatprep.subr.bf16.mxu0 %v1859
    %2027 = vmatpush2.bf16.msra.mxu0 %v1858
    %2028 = vmatprep.subr.bf16.mxu0 %v1854
    %2029 = vmatpush2.bf16.msra.mxu0 %v1853
    %2030 = vmatprep.subr.bf16.mxu0 %v1849
    %2031 = vmatpush2.bf16.msra.mxu0 %v1848
    %2032 = vmatprep.subr.bf16.mxu0 %v1844
    %2033 = vmatpush2.bf16.msra.mxu0 %v1843
    %2034 = vmatprep.mubr.bf16.mxu0 %v1448
    %2035 = vmatmul.mubr.bf16.gmra.mxu0 %v1341
    %v2036 = vpop.f32.mrf.mxu0
    %v2037 = vadd.f32 0.0, %v2036
    %v2038 = vpop.f32.mrf.mxu0
    %v2039 = vadd.f32 0.0, %v2038
    %v2040 = vpop.f32.mrf.mxu0
    %v2041 = vpop.f32.mrf.mxu0
    %2042 = vdwg.mxu0
    %2043 = vmatprep.subr.bf16.mxu0 0
    %2044 = vmatpush1.bf16.msra.mxu0 %v1840
    %2045 = vmatprep.subr.bf16.mxu0 0
    %2046 = vmatpush1.bf16.msra.mxu0 %v1835
    %2047 = vmatprep.subr.bf16.mxu0 0
    %2048 = vmatpush1.bf16.msra.mxu0 %v1830
    %2049 = vmatprep.subr.bf16.mxu0 0
    %2050 = vmatpush1.bf16.msra.mxu0 %v1825
    %2051 = vmatprep.subr.bf16.mxu0 0
    %2052 = vmatpush1.bf16.msra.mxu0 %v1820
    %2053 = vmatprep.subr.bf16.mxu0 0
    %2054 = vmatpush1.bf16.msra.mxu0 %v1815
    %2055 = vmatprep.subr.bf16.mxu0 0
    %2056 = vmatpush1.bf16.msra.mxu0 %v1810
    %2057 = vmatprep.subr.bf16.mxu0 0
    %2058 = vmatpush1.bf16.msra.mxu0 %v1805
    %2059 = vmatprep.subr.bf16.mxu0 0
    %2060 = vmatpush2.bf16.msra.mxu0 %v1880
    %2061 = vmatprep.subr.bf16.mxu0 0
    %2062 = vmatpush2.bf16.msra.mxu0 %v1875
    %2063 = vmatprep.subr.bf16.mxu0 0
    %2064 = vmatpush2.bf16.msra.mxu0 %v1870
    %2065 = vmatprep.subr.bf16.mxu0 0
    %2066 = vmatpush2.bf16.msra.mxu0 %v1865
    %2067 = vmatprep.subr.bf16.mxu0 0
    %2068 = vmatpush2.bf16.msra.mxu0 %v1860
    %2069 = vmatprep.subr.bf16.mxu0 0
    %2070 = vmatpush2.bf16.msra.mxu0 %v1855
    %2071 = vmatprep.subr.bf16.mxu0 0
    %2072 = vmatpush2.bf16.msra.mxu0 %v1850
    %2073 = vmatprep.subr.bf16.mxu0 0
    %2074 = vmatpush2.bf16.msra.mxu0 %v1845
    %2075 = vmatprep.mubr.bf16.mxu0 %v1448
    %2076 = vmatmul.mubr.bf16.gmra.mxu0 %v1341
    %v2077 = vpop.f32.mrf.mxu0
    %v2078 = vadd.f32 0.0, %v2077
    %v2079 = vpop.f32.mrf.mxu0
    %v2080 = vpop.f32.mrf.mxu0
    %v2081 = vpop.f32.mrf.mxu0
    %2082 = vdwg.mxu0
    %v2083 = vadd.f32 %v1336, %v1996
    %v2084 = vadd.f32 %v1337, %v1998
    %v2085 = vadd.f32 %v1338, %v2037
    %v2086 = vadd.f32 %v1339, %v2039
    %v2087 = vadd.f32 %v1340, %v2078
    %v2088 = vxor.u32 %v2083, 2147483648
    %v2089 = vmul.f32 %v2088, 1.442695
    %v2090 = vpow.pop %v2089
    %v2091 = vadd.f32 %v2090, 1.0
    %v2092 = vrcp.pop %v2091
    %v2093 = vmul.f32 1.0, %v2092
    %v2094 = vxor.u32 %v2084, 2147483648
    %v2095 = vmul.f32 %v2094, 1.442695
    %v2096 = vpow.pop %v2095
    %v2097 = vadd.f32 %v2096, 1.0
    %v2098 = vrcp.pop %v2097
    %v2099 = vmul.f32 1.0, %v2098
    %v2100 = vxor.u32 %v2085, 2147483648
    %v2101 = vmul.f32 %v2100, 1.442695
    %v2102 = vpow.pop %v2101
    %v2103 = vadd.f32 %v2102, 1.0
    %v2104 = vrcp.pop %v2103
    %v2105 = vmul.f32 1.0, %v2104
    %v2106 = vtanh.pop %v2086
    %v2107 = vxor.u32 %v2087, 2147483648
    %v2108 = vmul.f32 %v2107, 1.442695
    %v2109 = vpow.pop %v2108
    %v2110 = vadd.f32 %v2109, 1.0
    %v2111 = vrcp.pop %v2110
    %v2112 = vmul.f32 1.0, %v2111
    %v2113 = vmul.f32 %v2093, %v1327
    %v2114 = vmul.f32 %v2099, %v2106
    %v2115 = vadd.f32 %v2113, %v2114
    %v2116 = vmul.f32 %v2105, %v1447
    %v2117 = vadd.f32 %v2115, %v2116
    %v2118 = vtanh.pop %v2117
    %v2119 = vmul.f32 %v2112, %v2118
    %s2120 = scalar_lea.vmem [#allocation3], 48
    %2121 = vst [vmem:[%s2120] sm:$0xff] %v2119
    %s2122 = smul.u32 2, 6
    %s2123 = smul.addr %s2122, 8
    %s2124 = scalar_lea.vmem [#allocation2], %s2123
    %v2125 = vld [vmem:[%s2124] sm:$0xff]
    %v2126 = vld [vmem:[%s2124 + $0x8] sm:$0xff]
    %v2127 = vld [vmem:[%s2124 + $0x10] sm:$0xff]
    %v2128 = vld [vmem:[%s2124 + $0x18] sm:$0xff]
    %v2129 = vld [vmem:[%s2124 + $0x20] sm:$0xff]
    %v2130 = vld [vmem:[%s2124 + $0x28] sm:$0xff]
    %v2131 = vpack.c.bf16 %v2119, %v2119
    %v2132 = vld [vmem:[#allocation7] sm:$0xf]
    %v2133 = vld [vmem:[#allocation7 + $0x4] sm:$0xf]
    %v2134 = vld [vmem:[#allocation7 + $0x8] sm:$0xf]
    %v2135 = vld [vmem:[#allocation7 + $0xc] sm:$0xf]
    %v2136 = vld [vmem:[#allocation7 + $0x10] sm:$0xf]
    %v2137 = vld [vmem:[#allocation7 + $0x14] sm:$0xf]
    %v2138 = vld [vmem:[#allocation7 + $0x18] sm:$0xf]
    %v2139 = vld [vmem:[#allocation7 + $0x1c] sm:$0xf]
    %v2140 = vld [vmem:[#allocation7 + $0x20] sm:$0xf]
    %v2141 = vld [vmem:[#allocation7 + $0x24] sm:$0xf]
    %v2142 = vld [vmem:[#allocation7 + $0x28] sm:$0xf]
    %v2143 = vld [vmem:[#allocation7 + $0x2c] sm:$0xf]
    %v2144 = vld [vmem:[#allocation7 + $0x30] sm:$0xf]
    %v2145 = vld [vmem:[#allocation7 + $0x34] sm:$0xf]
    %v2146 = vld [vmem:[#allocation7 + $0x38] sm:$0xf]
    %v2147 = vld [vmem:[#allocation7 + $0x3c] sm:$0xf]
    %v2164 = vunpack.c.l.b16 %v2132
    %v2165 = vunpack.c.l.b16 %v2133
    %v2166 = vunpack.c.l.b16 %v2134
    %v2167 = vunpack.c.l.b16 %v2135
    %v2168 = vunpack.c.l.b16 %v2136
    %v2169 = vunpack.c.l.b16 %v2137
    %v2170 = vunpack.c.l.b16 %v2138
    %v2171 = vunpack.c.l.b16 %v2139
    %v2172 = vunpack.c.l.b16 %v2140
    %v2173 = vunpack.c.l.b16 %v2141
    %v2174 = vunpack.c.l.b16 %v2142
    %v2175 = vunpack.c.l.b16 %v2143
    %v2176 = vunpack.c.l.b16 %v2144
    %v2177 = vunpack.c.l.b16 %v2145
    %v2178 = vunpack.c.l.b16 %v2146
    %v2179 = vunpack.c.l.b16 %v2147
    %v2180 = vpack.c.b16 %v2165, %v2164
    %v2181 = vpack.c.b16 %v2167, %v2166
    %v2182 = vpack.c.b16 %v2169, %v2168
    %v2183 = vpack.c.b16 %v2171, %v2170
    %v2184 = vpack.c.b16 %v2173, %v2172
    %v2185 = vpack.c.b16 %v2175, %v2174
    %v2186 = vpack.c.b16 %v2177, %v2176
    %v2187 = vpack.c.b16 %v2179, %v2178
    %2196 = vmatprep.subr.bf16.mxu0 0
    %2197 = vmatpush1.bf16.msra.mxu0 %v2187
    %2198 = vmatprep.subr.bf16.mxu0 0
    %2199 = vmatpush1.bf16.msra.mxu0 %v2186
    %2200 = vmatprep.subr.bf16.mxu0 0
    %2201 = vmatpush1.bf16.msra.mxu0 %v2185
    %2202 = vmatprep.subr.bf16.mxu0 0
    %2203 = vmatpush1.bf16.msra.mxu0 %v2184
    %2204 = vmatprep.subr.bf16.mxu0 0
    %2205 = vmatpush1.bf16.msra.mxu0 %v2183
    %2206 = vmatprep.subr.bf16.mxu0 0
    %2207 = vmatpush1.bf16.msra.mxu0 %v2182
    %2208 = vmatprep.subr.bf16.mxu0 0
    %2209 = vmatpush1.bf16.msra.mxu0 %v2181
    %2210 = vmatprep.subr.bf16.mxu0 0
    %2211 = vmatpush1.bf16.msra.mxu0 %v2180
    %2212 = vmatprep.subr.bf16.mxu0 0
    %2213 = vmatpush2.bf16.msra.mxu0 0
    %2214 = vmatprep.subr.bf16.mxu0 0
    %2215 = vmatpush2.bf16.msra.mxu0 0
    %2216 = vmatprep.subr.bf16.mxu0 0
    %2217 = vmatpush2.bf16.msra.mxu0 0
    %2218 = vmatprep.subr.bf16.mxu0 0
    %2219 = vmatpush2.bf16.msra.mxu0 0
    %2220 = vmatprep.subr.bf16.mxu0 0
    %2221 = vmatpush2.bf16.msra.mxu0 0
    %2222 = vmatprep.subr.bf16.mxu0 0
    %2223 = vmatpush2.bf16.msra.mxu0 0
    %2224 = vmatprep.subr.bf16.mxu0 0
    %2225 = vmatpush2.bf16.msra.mxu0 0
    %2226 = vmatprep.subr.bf16.mxu0 0
    %2227 = vmatpush2.bf16.msra.mxu0 0
    %2228 = vmatprep.mubr.bf16.mxu0 0
    %2229 = vmatmul.mubr.bf16.gmra.mxu0 %v2131
    %v2230 = vpop.f32.mrf.mxu0
    %v2231 = vadd.f32 0.0, %v2230
    %v2232 = vpop.f32.mrf.mxu0
    %v2233 = vpop.f32.mrf.mxu0
    %v2234 = vpop.f32.mrf.mxu0
    %2235 = vdwg.mxu0
    %v2236 = vadd.f32 %v2125, %v2231
    %v2237 = vtanh.pop %v2236
    %v2238 = vpack.c.bf16 %v2237, %v2237
    %v2239 = vld [vmem:[#allocation9] sm:$0xff]
    %v2240 = vld [vmem:[#allocation9 + $0x8] sm:$0xff]
    %v2241 = vld [vmem:[#allocation9 + $0x10] sm:$0xf]
    %v2242 = vld [vmem:[#allocation9 + $0x14] sm:$0xff]
    %v2243 = vld [vmem:[#allocation9 + $0x1c] sm:$0xff]
    %v2244 = vld [vmem:[#allocation9 + $0x24] sm:$0xf]
    %v2245 = vld [vmem:[#allocation9 + $0x28] sm:$0xff]
    %v2246 = vld [vmem:[#allocation9 + $0x30] sm:$0xff]
    %v2247 = vld [vmem:[#allocation9 + $0x38] sm:$0xf]
    %v2248 = vld [vmem:[#allocation9 + $0x3c] sm:$0xff]
    %v2249 = vld [vmem:[#allocation9 + $0x44] sm:$0xff]
    %v2250 = vld [vmem:[#allocation9 + $0x4c] sm:$0xf]
    %v2251 = vld [vmem:[#allocation9 + $0x50] sm:$0xff]
    %v2252 = vld [vmem:[#allocation9 + $0x58] sm:$0xff]
    %v2253 = vld [vmem:[#allocation9 + $0x60] sm:$0xf]
    %v2254 = vld [vmem:[#allocation9 + $0x64] sm:$0xff]
    %v2255 = vld [vmem:[#allocation9 + $0x6c] sm:$0xff]
    %v2256 = vld [vmem:[#allocation9 + $0x74] sm:$0xf]
    %v2257 = vld [vmem:[#allocation9 + $0x78] sm:$0xff]
    %v2258 = vld [vmem:[#allocation9 + $0x80] sm:$0xff]
    %v2259 = vld [vmem:[#allocation9 + $0x88] sm:$0xf]
    %v2260 = vld [vmem:[#allocation9 + $0x8c] sm:$0xff]
    %v2261 = vld [vmem:[#allocation9 + $0x94] sm:$0xff]
    %v2262 = vld [vmem:[#allocation9 + $0x9c] sm:$0xf]
    %v2263 = vld [vmem:[#allocation9 + $0xa0] sm:$0xff]
    %v2264 = vld [vmem:[#allocation9 + $0xa8] sm:$0xff]
    %v2265 = vld [vmem:[#allocation9 + $0xb0] sm:$0xf]
    %v2266 = vld [vmem:[#allocation9 + $0xb4] sm:$0xff]
    %v2267 = vld [vmem:[#allocation9 + $0xbc] sm:$0xff]
    %v2268 = vld [vmem:[#allocation9 + $0xc4] sm:$0xf]
    %v2269 = vld [vmem:[#allocation9 + $0xc8] sm:$0xff]
    %v2270 = vld [vmem:[#allocation9 + $0xd0] sm:$0xff]
    %v2271 = vld [vmem:[#allocation9 + $0xd8] sm:$0xf]
    %v2272 = vld [vmem:[#allocation9 + $0xdc] sm:$0xff]
    %v2273 = vld [vmem:[#allocation9 + $0xe4] sm:$0xff]
    %v2274 = vld [vmem:[#allocation9 + $0xec] sm:$0xf]
    %v2275 = vld [vmem:[#allocation9 + $0xf0] sm:$0xff]
    %v2276 = vld [vmem:[#allocation9 + $0xf8] sm:$0xff]
    %v2277 = vld [vmem:[#allocation9 + $0x100] sm:$0xf]
    %v2278 = vld [vmem:[#allocation9 + $0x104] sm:$0xff]
    %v2279 = vld [vmem:[#allocation9 + $0x10c] sm:$0xff]
    %v2280 = vld [vmem:[#allocation9 + $0x114] sm:$0xf]
    %v2281 = vld [vmem:[#allocation9 + $0x118] sm:$0xff]
    %v2282 = vld [vmem:[#allocation9 + $0x120] sm:$0xff]
    %v2283 = vld [vmem:[#allocation9 + $0x128] sm:$0xf]
    %v2284 = vld [vmem:[#allocation9 + $0x12c] sm:$0xff]
    %v2285 = vld [vmem:[#allocation9 + $0x134] sm:$0xff]
    %v2286 = vld [vmem:[#allocation9 + $0x13c] sm:$0xf]
    %v2287 = vld [vmem:[#allocation9 + $0x140] sm:$0xff]
    %v2288 = vld [vmem:[#allocation9 + $0x148] sm:$0xff]
    %v2289 = vld [vmem:[#allocation9 + $0x150] sm:$0xf]
    %v2290 = vld [vmem:[#allocation9 + $0x154] sm:$0xff]
    %v2291 = vld [vmem:[#allocation9 + $0x15c] sm:$0xff]
    %v2292 = vld [vmem:[#allocation9 + $0x164] sm:$0xf]
    %v2293 = vld [vmem:[#allocation9 + $0x168] sm:$0xff]
    %v2294 = vld [vmem:[#allocation9 + $0x170] sm:$0xff]
    %v2295 = vld [vmem:[#allocation9 + $0x178] sm:$0xf]
    %v2296 = vld [vmem:[#allocation9 + $0x17c] sm:$0xff]
    %v2297 = vld [vmem:[#allocation9 + $0x184] sm:$0xff]
    %v2298 = vld [vmem:[#allocation9 + $0x18c] sm:$0xf]
    %v2299 = vld [vmem:[#allocation9 + $0x190] sm:$0xff]
    %v2300 = vld [vmem:[#allocation9 + $0x198] sm:$0xff]
    %v2301 = vld [vmem:[#allocation9 + $0x1a0] sm:$0xf]
    %v2302 = vld [vmem:[#allocation9 + $0x1a4] sm:$0xff]
    %v2303 = vld [vmem:[#allocation9 + $0x1ac] sm:$0xff]
    %v2304 = vld [vmem:[#allocation9 + $0x1b4] sm:$0xf]
    %v2305 = vld [vmem:[#allocation9 + $0x1b8] sm:$0xff]
    %v2306 = vld [vmem:[#allocation9 + $0x1c0] sm:$0xff]
    %v2307 = vld [vmem:[#allocation9 + $0x1c8] sm:$0xf]
    %v2308 = vld [vmem:[#allocation9 + $0x1cc] sm:$0xff]
    %v2309 = vld [vmem:[#allocation9 + $0x1d4] sm:$0xff]
    %v2310 = vld [vmem:[#allocation9 + $0x1dc] sm:$0xf]
    %v2311 = vld [vmem:[#allocation9 + $0x1e0] sm:$0xff]
    %v2312 = vld [vmem:[#allocation9 + $0x1e8] sm:$0xff]
    %v2313 = vld [vmem:[#allocation9 + $0x1f0] sm:$0xf]
    %v2314 = vld [vmem:[#allocation9 + $0x1f4] sm:$0xff]
    %v2315 = vld [vmem:[#allocation9 + $0x1fc] sm:$0xff]
    %v2316 = vld [vmem:[#allocation9 + $0x204] sm:$0xf]
    %v2317 = vld [vmem:[#allocation9 + $0x208] sm:$0xff]
    %v2318 = vld [vmem:[#allocation9 + $0x210] sm:$0xff]
    %v2319 = vld [vmem:[#allocation9 + $0x218] sm:$0xf]
    %v2320 = vld [vmem:[#allocation9 + $0x21c] sm:$0xff]
    %v2321 = vld [vmem:[#allocation9 + $0x224] sm:$0xff]
    %v2322 = vld [vmem:[#allocation9 + $0x22c] sm:$0xf]
    %v2323 = vld [vmem:[#allocation9 + $0x230] sm:$0xff]
    %v2324 = vld [vmem:[#allocation9 + $0x238] sm:$0xff]
    %v2325 = vld [vmem:[#allocation9 + $0x240] sm:$0xf]
    %v2326 = vld [vmem:[#allocation9 + $0x244] sm:$0xff]
    %v2327 = vld [vmem:[#allocation9 + $0x24c] sm:$0xff]
    %v2328 = vld [vmem:[#allocation9 + $0x254] sm:$0xf]
    %v2329 = vld [vmem:[#allocation9 + $0x258] sm:$0xff]
    %v2330 = vld [vmem:[#allocation9 + $0x260] sm:$0xff]
    %v2331 = vld [vmem:[#allocation9 + $0x268] sm:$0xf]
    %v2332 = vld [vmem:[#allocation9 + $0x26c] sm:$0xff]
    %v2333 = vld [vmem:[#allocation9 + $0x274] sm:$0xff]
    %v2334 = vld [vmem:[#allocation9 + $0x27c] sm:$0xf]
    %v2431 = vunpack.c.l.b16 %v2239
    %v2432 = vunpack.c.h.b16 %v2239
    %v2433 = vunpack.c.l.b16 %v2240
    %v2434 = vunpack.c.h.b16 %v2240
    %v2435 = vunpack.c.l.b16 %v2241
    %v2436 = vunpack.c.l.b16 %v2242
    %v2437 = vunpack.c.h.b16 %v2242
    %v2438 = vunpack.c.l.b16 %v2243
    %v2439 = vunpack.c.h.b16 %v2243
    %v2440 = vunpack.c.l.b16 %v2244
    %v2441 = vunpack.c.l.b16 %v2245
    %v2442 = vunpack.c.h.b16 %v2245
    %v2443 = vunpack.c.l.b16 %v2246
    %v2444 = vunpack.c.h.b16 %v2246
    %v2445 = vunpack.c.l.b16 %v2247
    %v2446 = vunpack.c.l.b16 %v2248
    %v2447 = vunpack.c.h.b16 %v2248
    %v2448 = vunpack.c.l.b16 %v2249
    %v2449 = vunpack.c.h.b16 %v2249
    %v2450 = vunpack.c.l.b16 %v2250
    %v2451 = vunpack.c.l.b16 %v2251
    %v2452 = vunpack.c.h.b16 %v2251
    %v2453 = vunpack.c.l.b16 %v2252
    %v2454 = vunpack.c.h.b16 %v2252
    %v2455 = vunpack.c.l.b16 %v2253
    %v2456 = vunpack.c.l.b16 %v2254
    %v2457 = vunpack.c.h.b16 %v2254
    %v2458 = vunpack.c.l.b16 %v2255
    %v2459 = vunpack.c.h.b16 %v2255
    %v2460 = vunpack.c.l.b16 %v2256
    %v2461 = vunpack.c.l.b16 %v2257
    %v2462 = vunpack.c.h.b16 %v2257
    %v2463 = vunpack.c.l.b16 %v2258
    %v2464 = vunpack.c.h.b16 %v2258
    %v2465 = vunpack.c.l.b16 %v2259
    %v2466 = vunpack.c.l.b16 %v2260
    %v2467 = vunpack.c.h.b16 %v2260
    %v2468 = vunpack.c.l.b16 %v2261
    %v2469 = vunpack.c.h.b16 %v2261
    %v2470 = vunpack.c.l.b16 %v2262
    %v2471 = vunpack.c.l.b16 %v2263
    %v2472 = vunpack.c.h.b16 %v2263
    %v2473 = vunpack.c.l.b16 %v2264
    %v2474 = vunpack.c.h.b16 %v2264
    %v2475 = vunpack.c.l.b16 %v2265
    %v2476 = vunpack.c.l.b16 %v2266
    %v2477 = vunpack.c.h.b16 %v2266
    %v2478 = vunpack.c.l.b16 %v2267
    %v2479 = vunpack.c.h.b16 %v2267
    %v2480 = vunpack.c.l.b16 %v2268
    %v2481 = vunpack.c.l.b16 %v2269
    %v2482 = vunpack.c.h.b16 %v2269
    %v2483 = vunpack.c.l.b16 %v2270
    %v2484 = vunpack.c.h.b16 %v2270
    %v2485 = vunpack.c.l.b16 %v2271
    %v2486 = vunpack.c.l.b16 %v2272
    %v2487 = vunpack.c.h.b16 %v2272
    %v2488 = vunpack.c.l.b16 %v2273
    %v2489 = vunpack.c.h.b16 %v2273
    %v2490 = vunpack.c.l.b16 %v2274
    %v2491 = vunpack.c.l.b16 %v2275
    %v2492 = vunpack.c.h.b16 %v2275
    %v2493 = vunpack.c.l.b16 %v2276
    %v2494 = vunpack.c.h.b16 %v2276
    %v2495 = vunpack.c.l.b16 %v2277
    %v2496 = vunpack.c.l.b16 %v2278
    %v2497 = vunpack.c.h.b16 %v2278
    %v2498 = vunpack.c.l.b16 %v2279
    %v2499 = vunpack.c.h.b16 %v2279
    %v2500 = vunpack.c.l.b16 %v2280
    %v2501 = vunpack.c.l.b16 %v2281
    %v2502 = vunpack.c.h.b16 %v2281
    %v2503 = vunpack.c.l.b16 %v2282
    %v2504 = vunpack.c.h.b16 %v2282
    %v2505 = vunpack.c.l.b16 %v2283
    %v2506 = vunpack.c.l.b16 %v2284
    %v2507 = vunpack.c.h.b16 %v2284
    %v2508 = vunpack.c.l.b16 %v2285
    %v2509 = vunpack.c.h.b16 %v2285
    %v2510 = vunpack.c.l.b16 %v2286
    %v2511 = vunpack.c.l.b16 %v2287
    %v2512 = vunpack.c.h.b16 %v2287
    %v2513 = vunpack.c.l.b16 %v2288
    %v2514 = vunpack.c.h.b16 %v2288
    %v2515 = vunpack.c.l.b16 %v2289
    %v2516 = vunpack.c.l.b16 %v2290
    %v2517 = vunpack.c.h.b16 %v2290
    %v2518 = vunpack.c.l.b16 %v2291
    %v2519 = vunpack.c.h.b16 %v2291
    %v2520 = vunpack.c.l.b16 %v2292
    %v2521 = vunpack.c.l.b16 %v2293
    %v2522 = vunpack.c.h.b16 %v2293
    %v2523 = vunpack.c.l.b16 %v2294
    %v2524 = vunpack.c.h.b16 %v2294
    %v2525 = vunpack.c.l.b16 %v2295
    %v2526 = vunpack.c.l.b16 %v2296
    %v2527 = vunpack.c.h.b16 %v2296
    %v2528 = vunpack.c.l.b16 %v2297
    %v2529 = vunpack.c.h.b16 %v2297
    %v2530 = vunpack.c.l.b16 %v2298
    %v2531 = vunpack.c.l.b16 %v2299
    %v2532 = vunpack.c.h.b16 %v2299
    %v2533 = vunpack.c.l.b16 %v2300
    %v2534 = vunpack.c.h.b16 %v2300
    %v2535 = vunpack.c.l.b16 %v2301
    %v2536 = vunpack.c.l.b16 %v2302
    %v2537 = vunpack.c.h.b16 %v2302
    %v2538 = vunpack.c.l.b16 %v2303
    %v2539 = vunpack.c.h.b16 %v2303
    %v2540 = vunpack.c.l.b16 %v2304
    %v2541 = vunpack.c.l.b16 %v2305
    %v2542 = vunpack.c.h.b16 %v2305
    %v2543 = vunpack.c.l.b16 %v2306
    %v2544 = vunpack.c.h.b16 %v2306
    %v2545 = vunpack.c.l.b16 %v2307
    %v2546 = vunpack.c.l.b16 %v2308
    %v2547 = vunpack.c.h.b16 %v2308
    %v2548 = vunpack.c.l.b16 %v2309
    %v2549 = vunpack.c.h.b16 %v2309
    %v2550 = vunpack.c.l.b16 %v2310
    %v2551 = vunpack.c.l.b16 %v2311
    %v2552 = vunpack.c.h.b16 %v2311
    %v2553 = vunpack.c.l.b16 %v2312
    %v2554 = vunpack.c.h.b16 %v2312
    %v2555 = vunpack.c.l.b16 %v2313
    %v2556 = vunpack.c.l.b16 %v2314
    %v2557 = vunpack.c.h.b16 %v2314
    %v2558 = vunpack.c.l.b16 %v2315
    %v2559 = vunpack.c.h.b16 %v2315
    %v2560 = vunpack.c.l.b16 %v2316
    %v2561 = vunpack.c.l.b16 %v2317
    %v2562 = vunpack.c.h.b16 %v2317
    %v2563 = vunpack.c.l.b16 %v2318
    %v2564 = vunpack.c.h.b16 %v2318
    %v2565 = vunpack.c.l.b16 %v2319
    %v2566 = vunpack.c.l.b16 %v2320
    %v2567 = vunpack.c.h.b16 %v2320
    %v2568 = vunpack.c.l.b16 %v2321
    %v2569 = vunpack.c.h.b16 %v2321
    %v2570 = vunpack.c.l.b16 %v2322
    %v2571 = vunpack.c.l.b16 %v2323
    %v2572 = vunpack.c.h.b16 %v2323
    %v2573 = vunpack.c.l.b16 %v2324
    %v2574 = vunpack.c.h.b16 %v2324
    %v2575 = vunpack.c.l.b16 %v2325
    %v2576 = vunpack.c.l.b16 %v2326
    %v2577 = vunpack.c.h.b16 %v2326
    %v2578 = vunpack.c.l.b16 %v2327
    %v2579 = vunpack.c.h.b16 %v2327
    %v2580 = vunpack.c.l.b16 %v2328
    %v2581 = vunpack.c.l.b16 %v2329
    %v2582 = vunpack.c.h.b16 %v2329
    %v2583 = vunpack.c.l.b16 %v2330
    %v2584 = vunpack.c.h.b16 %v2330
    %v2585 = vunpack.c.l.b16 %v2331
    %v2586 = vunpack.c.l.b16 %v2332
    %v2587 = vunpack.c.h.b16 %v2332
    %v2588 = vunpack.c.l.b16 %v2333
    %v2589 = vunpack.c.h.b16 %v2333
    %v2590 = vunpack.c.l.b16 %v2334
    %v2591 = vpack.c.b16 %v2436, %v2431
    %v2592 = vpack.c.b16 %v2437, %v2432
    %v2593 = vpack.c.b16 %v2438, %v2433
    %v2594 = vpack.c.b16 %v2439, %v2434
    %v2595 = vpack.c.b16 %v2440, %v2435
    %v2596 = vpack.c.b16 %v2446, %v2441
    %v2597 = vpack.c.b16 %v2447, %v2442
    %v2598 = vpack.c.b16 %v2448, %v2443
    %v2599 = vpack.c.b16 %v2449, %v2444
    %v2600 = vpack.c.b16 %v2450, %v2445
    %v2601 = vpack.c.b16 %v2456, %v2451
    %v2602 = vpack.c.b16 %v2457, %v2452
    %v2603 = vpack.c.b16 %v2458, %v2453
    %v2604 = vpack.c.b16 %v2459, %v2454
    %v2605 = vpack.c.b16 %v2460, %v2455
    %v2606 = vpack.c.b16 %v2466, %v2461
    %v2607 = vpack.c.b16 %v2467, %v2462
    %v2608 = vpack.c.b16 %v2468, %v2463
    %v2609 = vpack.c.b16 %v2469, %v2464
    %v2610 = vpack.c.b16 %v2470, %v2465
    %v2611 = vpack.c.b16 %v2476, %v2471
    %v2612 = vpack.c.b16 %v2477, %v2472
    %v2613 = vpack.c.b16 %v2478, %v2473
    %v2614 = vpack.c.b16 %v2479, %v2474
    %v2615 = vpack.c.b16 %v2480, %v2475
    %v2616 = vpack.c.b16 %v2486, %v2481
    %v2617 = vpack.c.b16 %v2487, %v2482
    %v2618 = vpack.c.b16 %v2488, %v2483
    %v2619 = vpack.c.b16 %v2489, %v2484
    %v2620 = vpack.c.b16 %v2490, %v2485
    %v2621 = vpack.c.b16 %v2496, %v2491
    %v2622 = vpack.c.b16 %v2497, %v2492
    %v2623 = vpack.c.b16 %v2498, %v2493
    %v2624 = vpack.c.b16 %v2499, %v2494
    %v2625 = vpack.c.b16 %v2500, %v2495
    %v2626 = vpack.c.b16 %v2506, %v2501
    %v2627 = vpack.c.b16 %v2507, %v2502
    %v2628 = vpack.c.b16 %v2508, %v2503
    %v2629 = vpack.c.b16 %v2509, %v2504
    %v2630 = vpack.c.b16 %v2510, %v2505
    %v2631 = vpack.c.b16 %v2516, %v2511
    %v2632 = vpack.c.b16 %v2517, %v2512
    %v2633 = vpack.c.b16 %v2518, %v2513
    %v2634 = vpack.c.b16 %v2519, %v2514
    %v2635 = vpack.c.b16 %v2520, %v2515
    %v2636 = vpack.c.b16 %v2526, %v2521
    %v2637 = vpack.c.b16 %v2527, %v2522
    %v2638 = vpack.c.b16 %v2528, %v2523
    %v2639 = vpack.c.b16 %v2529, %v2524
    %v2640 = vpack.c.b16 %v2530, %v2525
    %v2641 = vpack.c.b16 %v2536, %v2531
    %v2642 = vpack.c.b16 %v2537, %v2532
    %v2643 = vpack.c.b16 %v2538, %v2533
    %v2644 = vpack.c.b16 %v2539, %v2534
    %v2645 = vpack.c.b16 %v2540, %v2535
    %v2646 = vpack.c.b16 %v2546, %v2541
    %v2647 = vpack.c.b16 %v2547, %v2542
    %v2648 = vpack.c.b16 %v2548, %v2543
    %v2649 = vpack.c.b16 %v2549, %v2544
    %v2650 = vpack.c.b16 %v2550, %v2545
    %v2651 = vpack.c.b16 %v2556, %v2551
    %v2652 = vpack.c.b16 %v2557, %v2552
    %v2653 = vpack.c.b16 %v2558, %v2553
    %v2654 = vpack.c.b16 %v2559, %v2554
    %v2655 = vpack.c.b16 %v2560, %v2555
    %v2656 = vpack.c.b16 %v2566, %v2561
    %v2657 = vpack.c.b16 %v2567, %v2562
    %v2658 = vpack.c.b16 %v2568, %v2563
    %v2659 = vpack.c.b16 %v2569, %v2564
    %v2660 = vpack.c.b16 %v2570, %v2565
    %v2661 = vpack.c.b16 %v2576, %v2571
    %v2662 = vpack.c.b16 %v2577, %v2572
    %v2663 = vpack.c.b16 %v2578, %v2573
    %v2664 = vpack.c.b16 %v2579, %v2574
    %v2665 = vpack.c.b16 %v2580, %v2575
    %v2666 = vpack.c.b16 %v2586, %v2581
    %v2667 = vpack.c.b16 %v2587, %v2582
    %v2668 = vpack.c.b16 %v2588, %v2583
    %v2669 = vpack.c.b16 %v2589, %v2584
    %v2670 = vpack.c.b16 %v2590, %v2585
    %2751 = vmatprep.subr.bf16.mxu0 %v2627
    %2752 = vmatpush1.bf16.msra.mxu0 %v2626
    %2753 = vmatprep.subr.bf16.mxu0 %v2622
    %2754 = vmatpush1.bf16.msra.mxu0 %v2621
    %2755 = vmatprep.subr.bf16.mxu0 %v2617
    %2756 = vmatpush1.bf16.msra.mxu0 %v2616
    %2757 = vmatprep.subr.bf16.mxu0 %v2612
    %2758 = vmatpush1.bf16.msra.mxu0 %v2611
    %2759 = vmatprep.subr.bf16.mxu0 %v2607
    %2760 = vmatpush1.bf16.msra.mxu0 %v2606
    %2761 = vmatprep.subr.bf16.mxu0 %v2602
    %2762 = vmatpush1.bf16.msra.mxu0 %v2601
    %2763 = vmatprep.subr.bf16.mxu0 %v2597
    %2764 = vmatpush1.bf16.msra.mxu0 %v2596
    %2765 = vmatprep.subr.bf16.mxu0 %v2592
    %2766 = vmatpush1.bf16.msra.mxu0 %v2591
    %2767 = vmatprep.subr.bf16.mxu0 %v2667
    %2768 = vmatpush2.bf16.msra.mxu0 %v2666
    %2769 = vmatprep.subr.bf16.mxu0 %v2662
    %2770 = vmatpush2.bf16.msra.mxu0 %v2661
    %2771 = vmatprep.subr.bf16.mxu0 %v2657
    %2772 = vmatpush2.bf16.msra.mxu0 %v2656
    %2773 = vmatprep.subr.bf16.mxu0 %v2652
    %2774 = vmatpush2.bf16.msra.mxu0 %v2651
    %2775 = vmatprep.subr.bf16.mxu0 %v2647
    %2776 = vmatpush2.bf16.msra.mxu0 %v2646
    %2777 = vmatprep.subr.bf16.mxu0 %v2642
    %2778 = vmatpush2.bf16.msra.mxu0 %v2641
    %2779 = vmatprep.subr.bf16.mxu0 %v2637
    %2780 = vmatpush2.bf16.msra.mxu0 %v2636
    %2781 = vmatprep.subr.bf16.mxu0 %v2632
    %2782 = vmatpush2.bf16.msra.mxu0 %v2631
    %2783 = vmatprep.mubr.bf16.mxu0 %v2238
    %2784 = vmatmul.mubr.bf16.gmra.mxu0 %v2131
    %v2785 = vpop.f32.mrf.mxu0
    %v2786 = vadd.f32 0.0, %v2785
    %v2787 = vpop.f32.mrf.mxu0
    %v2788 = vadd.f32 0.0, %v2787
    %v2789 = vpop.f32.mrf.mxu0
    %v2790 = vpop.f32.mrf.mxu0
    %2791 = vdwg.mxu0
    %2792 = vmatprep.subr.bf16.mxu0 %v2629
    %2793 = vmatpush1.bf16.msra.mxu0 %v2628
    %2794 = vmatprep.subr.bf16.mxu0 %v2624
    %2795 = vmatpush1.bf16.msra.mxu0 %v2623
    %2796 = vmatprep.subr.bf16.mxu0 %v2619
    %2797 = vmatpush1.bf16.msra.mxu0 %v2618
    %2798 = vmatprep.subr.bf16.mxu0 %v2614
    %2799 = vmatpush1.bf16.msra.mxu0 %v2613
    %2800 = vmatprep.subr.bf16.mxu0 %v2609
    %2801 = vmatpush1.bf16.msra.mxu0 %v2608
    %2802 = vmatprep.subr.bf16.mxu0 %v2604
    %2803 = vmatpush1.bf16.msra.mxu0 %v2603
    %2804 = vmatprep.subr.bf16.mxu0 %v2599
    %2805 = vmatpush1.bf16.msra.mxu0 %v2598
    %2806 = vmatprep.subr.bf16.mxu0 %v2594
    %2807 = vmatpush1.bf16.msra.mxu0 %v2593
    %2808 = vmatprep.subr.bf16.mxu0 %v2669
    %2809 = vmatpush2.bf16.msra.mxu0 %v2668
    %2810 = vmatprep.subr.bf16.mxu0 %v2664
    %2811 = vmatpush2.bf16.msra.mxu0 %v2663
    %2812 = vmatprep.subr.bf16.mxu0 %v2659
    %2813 = vmatpush2.bf16.msra.mxu0 %v2658
    %2814 = vmatprep.subr.bf16.mxu0 %v2654
    %2815 = vmatpush2.bf16.msra.mxu0 %v2653
    %2816 = vmatprep.subr.bf16.mxu0 %v2649
    %2817 = vmatpush2.bf16.msra.mxu0 %v2648
    %2818 = vmatprep.subr.bf16.mxu0 %v2644
    %2819 = vmatpush2.bf16.msra.mxu0 %v2643
    %2820 = vmatprep.subr.bf16.mxu0 %v2639
    %2821 = vmatpush2.bf16.msra.mxu0 %v2638
    %2822 = vmatprep.subr.bf16.mxu0 %v2634
    %2823 = vmatpush2.bf16.msra.mxu0 %v2633
    %2824 = vmatprep.mubr.bf16.mxu0 %v2238
    %2825 = vmatmul.mubr.bf16.gmra.mxu0 %v2131
    %v2826 = vpop.f32.mrf.mxu0
    %v2827 = vadd.f32 0.0, %v2826
    %v2828 = vpop.f32.mrf.mxu0
    %v2829 = vadd.f32 0.0, %v2828
    %v2830 = vpop.f32.mrf.mxu0
    %v2831 = vpop.f32.mrf.mxu0
    %2832 = vdwg.mxu0
    %2833 = vmatprep.subr.bf16.mxu0 0
    %2834 = vmatpush1.bf16.msra.mxu0 %v2630
    %2835 = vmatprep.subr.bf16.mxu0 0
    %2836 = vmatpush1.bf16.msra.mxu0 %v2625
    %2837 = vmatprep.subr.bf16.mxu0 0
    %2838 = vmatpush1.bf16.msra.mxu0 %v2620
    %2839 = vmatprep.subr.bf16.mxu0 0
    %2840 = vmatpush1.bf16.msra.mxu0 %v2615
    %2841 = vmatprep.subr.bf16.mxu0 0
    %2842 = vmatpush1.bf16.msra.mxu0 %v2610
    %2843 = vmatprep.subr.bf16.mxu0 0
    %2844 = vmatpush1.bf16.msra.mxu0 %v2605
    %2845 = vmatprep.subr.bf16.mxu0 0
    %2846 = vmatpush1.bf16.msra.mxu0 %v2600
    %2847 = vmatprep.subr.bf16.mxu0 0
    %2848 = vmatpush1.bf16.msra.mxu0 %v2595
    %2849 = vmatprep.subr.bf16.mxu0 0
    %2850 = vmatpush2.bf16.msra.mxu0 %v2670
    %2851 = vmatprep.subr.bf16.mxu0 0
    %2852 = vmatpush2.bf16.msra.mxu0 %v2665
    %2853 = vmatprep.subr.bf16.mxu0 0
    %2854 = vmatpush2.bf16.msra.mxu0 %v2660
    %2855 = vmatprep.subr.bf16.mxu0 0
    %2856 = vmatpush2.bf16.msra.mxu0 %v2655
    %2857 = vmatprep.subr.bf16.mxu0 0
    %2858 = vmatpush2.bf16.msra.mxu0 %v2650
    %2859 = vmatprep.subr.bf16.mxu0 0
    %2860 = vmatpush2.bf16.msra.mxu0 %v2645
    %2861 = vmatprep.subr.bf16.mxu0 0
    %2862 = vmatpush2.bf16.msra.mxu0 %v2640
    %2863 = vmatprep.subr.bf16.mxu0 0
    %2864 = vmatpush2.bf16.msra.mxu0 %v2635
    %2865 = vmatprep.mubr.bf16.mxu0 %v2238
    %2866 = vmatmul.mubr.bf16.gmra.mxu0 %v2131
    %v2867 = vpop.f32.mrf.mxu0
    %v2868 = vadd.f32 0.0, %v2867
    %v2869 = vpop.f32.mrf.mxu0
    %v2870 = vpop.f32.mrf.mxu0
    %v2871 = vpop.f32.mrf.mxu0
    %2872 = vdwg.mxu0
    %v2873 = vadd.f32 %v2126, %v2786
    %v2874 = vadd.f32 %v2127, %v2788
    %v2875 = vadd.f32 %v2128, %v2827
    %v2876 = vadd.f32 %v2129, %v2829
    %v2877 = vadd.f32 %v2130, %v2868
    %v2878 = vxor.u32 %v2873, 2147483648
    %v2879 = vmul.f32 %v2878, 1.442695
    %v2880 = vpow.pop %v2879
    %v2881 = vadd.f32 %v2880, 1.0
    %v2882 = vrcp.pop %v2881
    %v2883 = vmul.f32 1.0, %v2882
    %v2884 = vxor.u32 %v2874, 2147483648
    %v2885 = vmul.f32 %v2884, 1.442695
    %v2886 = vpow.pop %v2885
    %v2887 = vadd.f32 %v2886, 1.0
    %v2888 = vrcp.pop %v2887
    %v2889 = vmul.f32 1.0, %v2888
    %v2890 = vxor.u32 %v2875, 2147483648
    %v2891 = vmul.f32 %v2890, 1.442695
    %v2892 = vpow.pop %v2891
    %v2893 = vadd.f32 %v2892, 1.0
    %v2894 = vrcp.pop %v2893
    %v2895 = vmul.f32 1.0, %v2894
    %v2896 = vtanh.pop %v2876
    %v2897 = vxor.u32 %v2877, 2147483648
    %v2898 = vmul.f32 %v2897, 1.442695
    %v2899 = vpow.pop %v2898
    %v2900 = vadd.f32 %v2899, 1.0
    %v2901 = vrcp.pop %v2900
    %v2902 = vmul.f32 1.0, %v2901
    %v2903 = vmul.f32 %v2883, %v2117
    %v2904 = vmul.f32 %v2889, %v2896
    %v2905 = vadd.f32 %v2903, %v2904
    %v2906 = vmul.f32 %v2895, %v2237
    %v2907 = vadd.f32 %v2905, %v2906
    %v2908 = vtanh.pop %v2907
    %v2909 = vmul.f32 %v2902, %v2908
    %s2910 = scalar_lea.vmem [#allocation3], 56
    %2911 = vst [vmem:[%s2910] sm:$0xff] %v2909
    %s2912 = smul.u32 3, 6
    %s2913 = smul.addr %s2912, 8
    %s2914 = scalar_lea.vmem [#allocation2], %s2913
    %v2915 = vld [vmem:[%s2914] sm:$0xff]
    %v2916 = vld [vmem:[%s2914 + $0x8] sm:$0xff]
    %v2917 = vld [vmem:[%s2914 + $0x10] sm:$0xff]
    %v2918 = vld [vmem:[%s2914 + $0x18] sm:$0xff]
    %v2919 = vld [vmem:[%s2914 + $0x20] sm:$0xff]
    %v2920 = vld [vmem:[%s2914 + $0x28] sm:$0xff]
    %v2921 = vpack.c.bf16 %v2909, %v2909
    %v2922 = vld [vmem:[#allocation7] sm:$0xf]
    %v2923 = vld [vmem:[#allocation7 + $0x4] sm:$0xf]
    %v2924 = vld [vmem:[#allocation7 + $0x8] sm:$0xf]
    %v2925 = vld [vmem:[#allocation7 + $0xc] sm:$0xf]
    %v2926 = vld [vmem:[#allocation7 + $0x10] sm:$0xf]
    %v2927 = vld [vmem:[#allocation7 + $0x14] sm:$0xf]
    %v2928 = vld [vmem:[#allocation7 + $0x18] sm:$0xf]
    %v2929 = vld [vmem:[#allocation7 + $0x1c] sm:$0xf]
    %v2930 = vld [vmem:[#allocation7 + $0x20] sm:$0xf]
    %v2931 = vld [vmem:[#allocation7 + $0x24] sm:$0xf]
    %v2932 = vld [vmem:[#allocation7 + $0x28] sm:$0xf]
    %v2933 = vld [vmem:[#allocation7 + $0x2c] sm:$0xf]
    %v2934 = vld [vmem:[#allocation7 + $0x30] sm:$0xf]
    %v2935 = vld [vmem:[#allocation7 + $0x34] sm:$0xf]
    %v2936 = vld [vmem:[#allocation7 + $0x38] sm:$0xf]
    %v2937 = vld [vmem:[#allocation7 + $0x3c] sm:$0xf]
    %v2954 = vunpack.c.l.b16 %v2922
    %v2955 = vunpack.c.l.b16 %v2923
    %v2956 = vunpack.c.l.b16 %v2924
    %v2957 = vunpack.c.l.b16 %v2925
    %v2958 = vunpack.c.l.b16 %v2926
    %v2959 = vunpack.c.l.b16 %v2927
    %v2960 = vunpack.c.l.b16 %v2928
    %v2961 = vunpack.c.l.b16 %v2929
    %v2962 = vunpack.c.l.b16 %v2930
    %v2963 = vunpack.c.l.b16 %v2931
    %v2964 = vunpack.c.l.b16 %v2932
    %v2965 = vunpack.c.l.b16 %v2933
    %v2966 = vunpack.c.l.b16 %v2934
    %v2967 = vunpack.c.l.b16 %v2935
    %v2968 = vunpack.c.l.b16 %v2936
    %v2969 = vunpack.c.l.b16 %v2937
    %v2970 = vpack.c.b16 %v2955, %v2954
    %v2971 = vpack.c.b16 %v2957, %v2956
    %v2972 = vpack.c.b16 %v2959, %v2958
    %v2973 = vpack.c.b16 %v2961, %v2960
    %v2974 = vpack.c.b16 %v2963, %v2962
    %v2975 = vpack.c.b16 %v2965, %v2964
    %v2976 = vpack.c.b16 %v2967, %v2966
    %v2977 = vpack.c.b16 %v2969, %v2968
    %2986 = vmatprep.subr.bf16.mxu0 0
    %2987 = vmatpush1.bf16.msra.mxu0 %v2977
    %2988 = vmatprep.subr.bf16.mxu0 0
    %2989 = vmatpush1.bf16.msra.mxu0 %v2976
    %2990 = vmatprep.subr.bf16.mxu0 0
    %2991 = vmatpush1.bf16.msra.mxu0 %v2975
    %2992 = vmatprep.subr.bf16.mxu0 0
    %2993 = vmatpush1.bf16.msra.mxu0 %v2974
    %2994 = vmatprep.subr.bf16.mxu0 0
    %2995 = vmatpush1.bf16.msra.mxu0 %v2973
    %2996 = vmatprep.subr.bf16.mxu0 0
    %2997 = vmatpush1.bf16.msra.mxu0 %v2972
    %2998 = vmatprep.subr.bf16.mxu0 0
    %2999 = vmatpush1.bf16.msra.mxu0 %v2971
    %3000 = vmatprep.subr.bf16.mxu0 0
    %3001 = vmatpush1.bf16.msra.mxu0 %v2970
    %3002 = vmatprep.subr.bf16.mxu0 0
    %3003 = vmatpush2.bf16.msra.mxu0 0
    %3004 = vmatprep.subr.bf16.mxu0 0
    %3005 = vmatpush2.bf16.msra.mxu0 0
    %3006 = vmatprep.subr.bf16.mxu0 0
    %3007 = vmatpush2.bf16.msra.mxu0 0
    %3008 = vmatprep.subr.bf16.mxu0 0
    %3009 = vmatpush2.bf16.msra.mxu0 0
    %3010 = vmatprep.subr.bf16.mxu0 0
    %3011 = vmatpush2.bf16.msra.mxu0 0
    %3012 = vmatprep.subr.bf16.mxu0 0
    %3013 = vmatpush2.bf16.msra.mxu0 0
    %3014 = vmatprep.subr.bf16.mxu0 0
    %3015 = vmatpush2.bf16.msra.mxu0 0
    %3016 = vmatprep.subr.bf16.mxu0 0
    %3017 = vmatpush2.bf16.msra.mxu0 0
    %3018 = vmatprep.mubr.bf16.mxu0 0
    %3019 = vmatmul.mubr.bf16.gmra.mxu0 %v2921
    %v3020 = vpop.f32.mrf.mxu0
    %v3021 = vadd.f32 0.0, %v3020
    %v3022 = vpop.f32.mrf.mxu0
    %v3023 = vpop.f32.mrf.mxu0
    %v3024 = vpop.f32.mrf.mxu0
    %3025 = vdwg.mxu0
    %v3026 = vadd.f32 %v2915, %v3021
    %v3027 = vtanh.pop %v3026
    %v3028 = vpack.c.bf16 %v3027, %v3027
    %v3029 = vld [vmem:[#allocation9] sm:$0xff]
    %v3030 = vld [vmem:[#allocation9 + $0x8] sm:$0xff]
    %v3031 = vld [vmem:[#allocation9 + $0x10] sm:$0xf]
    %v3032 = vld [vmem:[#allocation9 + $0x14] sm:$0xff]
    %v3033 = vld [vmem:[#allocation9 + $0x1c] sm:$0xff]
    %v3034 = vld [vmem:[#allocation9 + $0x24] sm:$0xf]
    %v3035 = vld [vmem:[#allocation9 + $0x28] sm:$0xff]
    %v3036 = vld [vmem:[#allocation9 + $0x30] sm:$0xff]
    %v3037 = vld [vmem:[#allocation9 + $0x38] sm:$0xf]
    %v3038 = vld [vmem:[#allocation9 + $0x3c] sm:$0xff]
    %v3039 = vld [vmem:[#allocation9 + $0x44] sm:$0xff]
    %v3040 = vld [vmem:[#allocation9 + $0x4c] sm:$0xf]
    %v3041 = vld [vmem:[#allocation9 + $0x50] sm:$0xff]
    %v3042 = vld [vmem:[#allocation9 + $0x58] sm:$0xff]
    %v3043 = vld [vmem:[#allocation9 + $0x60] sm:$0xf]
    %v3044 = vld [vmem:[#allocation9 + $0x64] sm:$0xff]
    %v3045 = vld [vmem:[#allocation9 + $0x6c] sm:$0xff]
    %v3046 = vld [vmem:[#allocation9 + $0x74] sm:$0xf]
    %v3047 = vld [vmem:[#allocation9 + $0x78] sm:$0xff]
    %v3048 = vld [vmem:[#allocation9 + $0x80] sm:$0xff]
    %v3049 = vld [vmem:[#allocation9 + $0x88] sm:$0xf]
    %v3050 = vld [vmem:[#allocation9 + $0x8c] sm:$0xff]
    %v3051 = vld [vmem:[#allocation9 + $0x94] sm:$0xff]
    %v3052 = vld [vmem:[#allocation9 + $0x9c] sm:$0xf]
    %v3053 = vld [vmem:[#allocation9 + $0xa0] sm:$0xff]
    %v3054 = vld [vmem:[#allocation9 + $0xa8] sm:$0xff]
    %v3055 = vld [vmem:[#allocation9 + $0xb0] sm:$0xf]
    %v3056 = vld [vmem:[#allocation9 + $0xb4] sm:$0xff]
    %v3057 = vld [vmem:[#allocation9 + $0xbc] sm:$0xff]
    %v3058 = vld [vmem:[#allocation9 + $0xc4] sm:$0xf]
    %v3059 = vld [vmem:[#allocation9 + $0xc8] sm:$0xff]
    %v3060 = vld [vmem:[#allocation9 + $0xd0] sm:$0xff]
    %v3061 = vld [vmem:[#allocation9 + $0xd8] sm:$0xf]
    %v3062 = vld [vmem:[#allocation9 + $0xdc] sm:$0xff]
    %v3063 = vld [vmem:[#allocation9 + $0xe4] sm:$0xff]
    %v3064 = vld [vmem:[#allocation9 + $0xec] sm:$0xf]
    %v3065 = vld [vmem:[#allocation9 + $0xf0] sm:$0xff]
    %v3066 = vld [vmem:[#allocation9 + $0xf8] sm:$0xff]
    %v3067 = vld [vmem:[#allocation9 + $0x100] sm:$0xf]
    %v3068 = vld [vmem:[#allocation9 + $0x104] sm:$0xff]
    %v3069 = vld [vmem:[#allocation9 + $0x10c] sm:$0xff]
    %v3070 = vld [vmem:[#allocation9 + $0x114] sm:$0xf]
    %v3071 = vld [vmem:[#allocation9 + $0x118] sm:$0xff]
    %v3072 = vld [vmem:[#allocation9 + $0x120] sm:$0xff]
    %v3073 = vld [vmem:[#allocation9 + $0x128] sm:$0xf]
    %v3074 = vld [vmem:[#allocation9 + $0x12c] sm:$0xff]
    %v3075 = vld [vmem:[#allocation9 + $0x134] sm:$0xff]
    %v3076 = vld [vmem:[#allocation9 + $0x13c] sm:$0xf]
    %v3077 = vld [vmem:[#allocation9 + $0x140] sm:$0xff]
    %v3078 = vld [vmem:[#allocation9 + $0x148] sm:$0xff]
    %v3079 = vld [vmem:[#allocation9 + $0x150] sm:$0xf]
    %v3080 = vld [vmem:[#allocation9 + $0x154] sm:$0xff]
    %v3081 = vld [vmem:[#allocation9 + $0x15c] sm:$0xff]
    %v3082 = vld [vmem:[#allocation9 + $0x164] sm:$0xf]
    %v3083 = vld [vmem:[#allocation9 + $0x168] sm:$0xff]
    %v3084 = vld [vmem:[#allocation9 + $0x170] sm:$0xff]
    %v3085 = vld [vmem:[#allocation9 + $0x178] sm:$0xf]
    %v3086 = vld [vmem:[#allocation9 + $0x17c] sm:$0xff]
    %v3087 = vld [vmem:[#allocation9 + $0x184] sm:$0xff]
    %v3088 = vld [vmem:[#allocation9 + $0x18c] sm:$0xf]
    %v3089 = vld [vmem:[#allocation9 + $0x190] sm:$0xff]
    %v3090 = vld [vmem:[#allocation9 + $0x198] sm:$0xff]
    %v3091 = vld [vmem:[#allocation9 + $0x1a0] sm:$0xf]
    %v3092 = vld [vmem:[#allocation9 + $0x1a4] sm:$0xff]
    %v3093 = vld [vmem:[#allocation9 + $0x1ac] sm:$0xff]
    %v3094 = vld [vmem:[#allocation9 + $0x1b4] sm:$0xf]
    %v3095 = vld [vmem:[#allocation9 + $0x1b8] sm:$0xff]
    %v3096 = vld [vmem:[#allocation9 + $0x1c0] sm:$0xff]
    %v3097 = vld [vmem:[#allocation9 + $0x1c8] sm:$0xf]
    %v3098 = vld [vmem:[#allocation9 + $0x1cc] sm:$0xff]
    %v3099 = vld [vmem:[#allocation9 + $0x1d4] sm:$0xff]
    %v3100 = vld [vmem:[#allocation9 + $0x1dc] sm:$0xf]
    %v3101 = vld [vmem:[#allocation9 + $0x1e0] sm:$0xff]
    %v3102 = vld [vmem:[#allocation9 + $0x1e8] sm:$0xff]
    %v3103 = vld [vmem:[#allocation9 + $0x1f0] sm:$0xf]
    %v3104 = vld [vmem:[#allocation9 + $0x1f4] sm:$0xff]
    %v3105 = vld [vmem:[#allocation9 + $0x1fc] sm:$0xff]
    %v3106 = vld [vmem:[#allocation9 + $0x204] sm:$0xf]
    %v3107 = vld [vmem:[#allocation9 + $0x208] sm:$0xff]
    %v3108 = vld [vmem:[#allocation9 + $0x210] sm:$0xff]
    %v3109 = vld [vmem:[#allocation9 + $0x218] sm:$0xf]
    %v3110 = vld [vmem:[#allocation9 + $0x21c] sm:$0xff]
    %v3111 = vld [vmem:[#allocation9 + $0x224] sm:$0xff]
    %v3112 = vld [vmem:[#allocation9 + $0x22c] sm:$0xf]
    %v3113 = vld [vmem:[#allocation9 + $0x230] sm:$0xff]
    %v3114 = vld [vmem:[#allocation9 + $0x238] sm:$0xff]
    %v3115 = vld [vmem:[#allocation9 + $0x240] sm:$0xf]
    %v3116 = vld [vmem:[#allocation9 + $0x244] sm:$0xff]
    %v3117 = vld [vmem:[#allocation9 + $0x24c] sm:$0xff]
    %v3118 = vld [vmem:[#allocation9 + $0x254] sm:$0xf]
    %v3119 = vld [vmem:[#allocation9 + $0x258] sm:$0xff]
    %v3120 = vld [vmem:[#allocation9 + $0x260] sm:$0xff]
    %v3121 = vld [vmem:[#allocation9 + $0x268] sm:$0xf]
    %v3122 = vld [vmem:[#allocation9 + $0x26c] sm:$0xff]
    %v3123 = vld [vmem:[#allocation9 + $0x274] sm:$0xff]
    %v3124 = vld [vmem:[#allocation9 + $0x27c] sm:$0xf]
    %v3221 = vunpack.c.l.b16 %v3029
    %v3222 = vunpack.c.h.b16 %v3029
    %v3223 = vunpack.c.l.b16 %v3030
    %v3224 = vunpack.c.h.b16 %v3030
    %v3225 = vunpack.c.l.b16 %v3031
    %v3226 = vunpack.c.l.b16 %v3032
    %v3227 = vunpack.c.h.b16 %v3032
    %v3228 = vunpack.c.l.b16 %v3033
    %v3229 = vunpack.c.h.b16 %v3033
    %v3230 = vunpack.c.l.b16 %v3034
    %v3231 = vunpack.c.l.b16 %v3035
    %v3232 = vunpack.c.h.b16 %v3035
    %v3233 = vunpack.c.l.b16 %v3036
    %v3234 = vunpack.c.h.b16 %v3036
    %v3235 = vunpack.c.l.b16 %v3037
    %v3236 = vunpack.c.l.b16 %v3038
    %v3237 = vunpack.c.h.b16 %v3038
    %v3238 = vunpack.c.l.b16 %v3039
    %v3239 = vunpack.c.h.b16 %v3039
    %v3240 = vunpack.c.l.b16 %v3040
    %v3241 = vunpack.c.l.b16 %v3041
    %v3242 = vunpack.c.h.b16 %v3041
    %v3243 = vunpack.c.l.b16 %v3042
    %v3244 = vunpack.c.h.b16 %v3042
    %v3245 = vunpack.c.l.b16 %v3043
    %v3246 = vunpack.c.l.b16 %v3044
    %v3247 = vunpack.c.h.b16 %v3044
    %v3248 = vunpack.c.l.b16 %v3045
    %v3249 = vunpack.c.h.b16 %v3045
    %v3250 = vunpack.c.l.b16 %v3046
    %v3251 = vunpack.c.l.b16 %v3047
    %v3252 = vunpack.c.h.b16 %v3047
    %v3253 = vunpack.c.l.b16 %v3048
    %v3254 = vunpack.c.h.b16 %v3048
    %v3255 = vunpack.c.l.b16 %v3049
    %v3256 = vunpack.c.l.b16 %v3050
    %v3257 = vunpack.c.h.b16 %v3050
    %v3258 = vunpack.c.l.b16 %v3051
    %v3259 = vunpack.c.h.b16 %v3051
    %v3260 = vunpack.c.l.b16 %v3052
    %v3261 = vunpack.c.l.b16 %v3053
    %v3262 = vunpack.c.h.b16 %v3053
    %v3263 = vunpack.c.l.b16 %v3054
    %v3264 = vunpack.c.h.b16 %v3054
    %v3265 = vunpack.c.l.b16 %v3055
    %v3266 = vunpack.c.l.b16 %v3056
    %v3267 = vunpack.c.h.b16 %v3056
    %v3268 = vunpack.c.l.b16 %v3057
    %v3269 = vunpack.c.h.b16 %v3057
    %v3270 = vunpack.c.l.b16 %v3058
    %v3271 = vunpack.c.l.b16 %v3059
    %v3272 = vunpack.c.h.b16 %v3059
    %v3273 = vunpack.c.l.b16 %v3060
    %v3274 = vunpack.c.h.b16 %v3060
    %v3275 = vunpack.c.l.b16 %v3061
    %v3276 = vunpack.c.l.b16 %v3062
    %v3277 = vunpack.c.h.b16 %v3062
    %v3278 = vunpack.c.l.b16 %v3063
    %v3279 = vunpack.c.h.b16 %v3063
    %v3280 = vunpack.c.l.b16 %v3064
    %v3281 = vunpack.c.l.b16 %v3065
    %v3282 = vunpack.c.h.b16 %v3065
    %v3283 = vunpack.c.l.b16 %v3066
    %v3284 = vunpack.c.h.b16 %v3066
    %v3285 = vunpack.c.l.b16 %v3067
    %v3286 = vunpack.c.l.b16 %v3068
    %v3287 = vunpack.c.h.b16 %v3068
    %v3288 = vunpack.c.l.b16 %v3069
    %v3289 = vunpack.c.h.b16 %v3069
    %v3290 = vunpack.c.l.b16 %v3070
    %v3291 = vunpack.c.l.b16 %v3071
    %v3292 = vunpack.c.h.b16 %v3071
    %v3293 = vunpack.c.l.b16 %v3072
    %v3294 = vunpack.c.h.b16 %v3072
    %v3295 = vunpack.c.l.b16 %v3073
    %v3296 = vunpack.c.l.b16 %v3074
    %v3297 = vunpack.c.h.b16 %v3074
    %v3298 = vunpack.c.l.b16 %v3075
    %v3299 = vunpack.c.h.b16 %v3075
    %v3300 = vunpack.c.l.b16 %v3076
    %v3301 = vunpack.c.l.b16 %v3077
    %v3302 = vunpack.c.h.b16 %v3077
    %v3303 = vunpack.c.l.b16 %v3078
    %v3304 = vunpack.c.h.b16 %v3078
    %v3305 = vunpack.c.l.b16 %v3079
    %v3306 = vunpack.c.l.b16 %v3080
    %v3307 = vunpack.c.h.b16 %v3080
    %v3308 = vunpack.c.l.b16 %v3081
    %v3309 = vunpack.c.h.b16 %v3081
    %v3310 = vunpack.c.l.b16 %v3082
    %v3311 = vunpack.c.l.b16 %v3083
    %v3312 = vunpack.c.h.b16 %v3083
    %v3313 = vunpack.c.l.b16 %v3084
    %v3314 = vunpack.c.h.b16 %v3084
    %v3315 = vunpack.c.l.b16 %v3085
    %v3316 = vunpack.c.l.b16 %v3086
    %v3317 = vunpack.c.h.b16 %v3086
    %v3318 = vunpack.c.l.b16 %v3087
    %v3319 = vunpack.c.h.b16 %v3087
    %v3320 = vunpack.c.l.b16 %v3088
    %v3321 = vunpack.c.l.b16 %v3089
    %v3322 = vunpack.c.h.b16 %v3089
    %v3323 = vunpack.c.l.b16 %v3090
    %v3324 = vunpack.c.h.b16 %v3090
    %v3325 = vunpack.c.l.b16 %v3091
    %v3326 = vunpack.c.l.b16 %v3092
    %v3327 = vunpack.c.h.b16 %v3092
    %v3328 = vunpack.c.l.b16 %v3093
    %v3329 = vunpack.c.h.b16 %v3093
    %v3330 = vunpack.c.l.b16 %v3094
    %v3331 = vunpack.c.l.b16 %v3095
    %v3332 = vunpack.c.h.b16 %v3095
    %v3333 = vunpack.c.l.b16 %v3096
    %v3334 = vunpack.c.h.b16 %v3096
    %v3335 = vunpack.c.l.b16 %v3097
    %v3336 = vunpack.c.l.b16 %v3098
    %v3337 = vunpack.c.h.b16 %v3098
    %v3338 = vunpack.c.l.b16 %v3099
    %v3339 = vunpack.c.h.b16 %v3099
    %v3340 = vunpack.c.l.b16 %v3100
    %v3341 = vunpack.c.l.b16 %v3101
    %v3342 = vunpack.c.h.b16 %v3101
    %v3343 = vunpack.c.l.b16 %v3102
    %v3344 = vunpack.c.h.b16 %v3102
    %v3345 = vunpack.c.l.b16 %v3103
    %v3346 = vunpack.c.l.b16 %v3104
    %v3347 = vunpack.c.h.b16 %v3104
    %v3348 = vunpack.c.l.b16 %v3105
    %v3349 = vunpack.c.h.b16 %v3105
    %v3350 = vunpack.c.l.b16 %v3106
    %v3351 = vunpack.c.l.b16 %v3107
    %v3352 = vunpack.c.h.b16 %v3107
    %v3353 = vunpack.c.l.b16 %v3108
    %v3354 = vunpack.c.h.b16 %v3108
    %v3355 = vunpack.c.l.b16 %v3109
    %v3356 = vunpack.c.l.b16 %v3110
    %v3357 = vunpack.c.h.b16 %v3110
    %v3358 = vunpack.c.l.b16 %v3111
    %v3359 = vunpack.c.h.b16 %v3111
    %v3360 = vunpack.c.l.b16 %v3112
    %v3361 = vunpack.c.l.b16 %v3113
    %v3362 = vunpack.c.h.b16 %v3113
    %v3363 = vunpack.c.l.b16 %v3114
    %v3364 = vunpack.c.h.b16 %v3114
    %v3365 = vunpack.c.l.b16 %v3115
    %v3366 = vunpack.c.l.b16 %v3116
    %v3367 = vunpack.c.h.b16 %v3116
    %v3368 = vunpack.c.l.b16 %v3117
    %v3369 = vunpack.c.h.b16 %v3117
    %v3370 = vunpack.c.l.b16 %v3118
    %v3371 = vunpack.c.l.b16 %v3119
    %v3372 = vunpack.c.h.b16 %v3119
    %v3373 = vunpack.c.l.b16 %v3120
    %v3374 = vunpack.c.h.b16 %v3120
    %v3375 = vunpack.c.l.b16 %v3121
    %v3376 = vunpack.c.l.b16 %v3122
    %v3377 = vunpack.c.h.b16 %v3122
    %v3378 = vunpack.c.l.b16 %v3123
    %v3379 = vunpack.c.h.b16 %v3123
    %v3380 = vunpack.c.l.b16 %v3124
    %v3381 = vpack.c.b16 %v3226, %v3221
    %v3382 = vpack.c.b16 %v3227, %v3222
    %v3383 = vpack.c.b16 %v3228, %v3223
    %v3384 = vpack.c.b16 %v3229, %v3224
    %v3385 = vpack.c.b16 %v3230, %v3225
    %v3386 = vpack.c.b16 %v3236, %v3231
    %v3387 = vpack.c.b16 %v3237, %v3232
    %v3388 = vpack.c.b16 %v3238, %v3233
    %v3389 = vpack.c.b16 %v3239, %v3234
    %v3390 = vpack.c.b16 %v3240, %v3235
    %v3391 = vpack.c.b16 %v3246, %v3241
    %v3392 = vpack.c.b16 %v3247, %v3242
    %v3393 = vpack.c.b16 %v3248, %v3243
    %v3394 = vpack.c.b16 %v3249, %v3244
    %v3395 = vpack.c.b16 %v3250, %v3245
    %v3396 = vpack.c.b16 %v3256, %v3251
    %v3397 = vpack.c.b16 %v3257, %v3252
    %v3398 = vpack.c.b16 %v3258, %v3253
    %v3399 = vpack.c.b16 %v3259, %v3254
    %v3400 = vpack.c.b16 %v3260, %v3255
    %v3401 = vpack.c.b16 %v3266, %v3261
    %v3402 = vpack.c.b16 %v3267, %v3262
    %v3403 = vpack.c.b16 %v3268, %v3263
    %v3404 = vpack.c.b16 %v3269, %v3264
    %v3405 = vpack.c.b16 %v3270, %v3265
    %v3406 = vpack.c.b16 %v3276, %v3271
    %v3407 = vpack.c.b16 %v3277, %v3272
    %v3408 = vpack.c.b16 %v3278, %v3273
    %v3409 = vpack.c.b16 %v3279, %v3274
    %v3410 = vpack.c.b16 %v3280, %v3275
    %v3411 = vpack.c.b16 %v3286, %v3281
    %v3412 = vpack.c.b16 %v3287, %v3282
    %v3413 = vpack.c.b16 %v3288, %v3283
    %v3414 = vpack.c.b16 %v3289, %v3284
    %v3415 = vpack.c.b16 %v3290, %v3285
    %v3416 = vpack.c.b16 %v3296, %v3291
    %v3417 = vpack.c.b16 %v3297, %v3292
    %v3418 = vpack.c.b16 %v3298, %v3293
    %v3419 = vpack.c.b16 %v3299, %v3294
    %v3420 = vpack.c.b16 %v3300, %v3295
    %v3421 = vpack.c.b16 %v3306, %v3301
    %v3422 = vpack.c.b16 %v3307, %v3302
    %v3423 = vpack.c.b16 %v3308, %v3303
    %v3424 = vpack.c.b16 %v3309, %v3304
    %v3425 = vpack.c.b16 %v3310, %v3305
    %v3426 = vpack.c.b16 %v3316, %v3311
    %v3427 = vpack.c.b16 %v3317, %v3312
    %v3428 = vpack.c.b16 %v3318, %v3313
    %v3429 = vpack.c.b16 %v3319, %v3314
    %v3430 = vpack.c.b16 %v3320, %v3315
    %v3431 = vpack.c.b16 %v3326, %v3321
    %v3432 = vpack.c.b16 %v3327, %v3322
    %v3433 = vpack.c.b16 %v3328, %v3323
    %v3434 = vpack.c.b16 %v3329, %v3324
    %v3435 = vpack.c.b16 %v3330, %v3325
    %v3436 = vpack.c.b16 %v3336, %v3331
    %v3437 = vpack.c.b16 %v3337, %v3332
    %v3438 = vpack.c.b16 %v3338, %v3333
    %v3439 = vpack.c.b16 %v3339, %v3334
    %v3440 = vpack.c.b16 %v3340, %v3335
    %v3441 = vpack.c.b16 %v3346, %v3341
    %v3442 = vpack.c.b16 %v3347, %v3342
    %v3443 = vpack.c.b16 %v3348, %v3343
    %v3444 = vpack.c.b16 %v3349, %v3344
    %v3445 = vpack.c.b16 %v3350, %v3345
    %v3446 = vpack.c.b16 %v3356, %v3351
    %v3447 = vpack.c.b16 %v3357, %v3352
    %v3448 = vpack.c.b16 %v3358, %v3353
    %v3449 = vpack.c.b16 %v3359, %v3354
    %v3450 = vpack.c.b16 %v3360, %v3355
    %v3451 = vpack.c.b16 %v3366, %v3361
    %v3452 = vpack.c.b16 %v3367, %v3362
    %v3453 = vpack.c.b16 %v3368, %v3363
    %v3454 = vpack.c.b16 %v3369, %v3364
    %v3455 = vpack.c.b16 %v3370, %v3365
    %v3456 = vpack.c.b16 %v3376, %v3371
    %v3457 = vpack.c.b16 %v3377, %v3372
    %v3458 = vpack.c.b16 %v3378, %v3373
    %v3459 = vpack.c.b16 %v3379, %v3374
    %v3460 = vpack.c.b16 %v3380, %v3375
    %3541 = vmatprep.subr.bf16.mxu0 %v3417
    %3542 = vmatpush1.bf16.msra.mxu0 %v3416
    %3543 = vmatprep.subr.bf16.mxu0 %v3412
    %3544 = vmatpush1.bf16.msra.mxu0 %v3411
    %3545 = vmatprep.subr.bf16.mxu0 %v3407
    %3546 = vmatpush1.bf16.msra.mxu0 %v3406
    %3547 = vmatprep.subr.bf16.mxu0 %v3402
    %3548 = vmatpush1.bf16.msra.mxu0 %v3401
    %3549 = vmatprep.subr.bf16.mxu0 %v3397
    %3550 = vmatpush1.bf16.msra.mxu0 %v3396
    %3551 = vmatprep.subr.bf16.mxu0 %v3392
    %3552 = vmatpush1.bf16.msra.mxu0 %v3391
    %3553 = vmatprep.subr.bf16.mxu0 %v3387
    %3554 = vmatpush1.bf16.msra.mxu0 %v3386
    %3555 = vmatprep.subr.bf16.mxu0 %v3382
    %3556 = vmatpush1.bf16.msra.mxu0 %v3381
    %3557 = vmatprep.subr.bf16.mxu0 %v3457
    %3558 = vmatpush2.bf16.msra.mxu0 %v3456
    %3559 = vmatprep.subr.bf16.mxu0 %v3452
    %3560 = vmatpush2.bf16.msra.mxu0 %v3451
    %3561 = vmatprep.subr.bf16.mxu0 %v3447
    %3562 = vmatpush2.bf16.msra.mxu0 %v3446
    %3563 = vmatprep.subr.bf16.mxu0 %v3442
    %3564 = vmatpush2.bf16.msra.mxu0 %v3441
    %3565 = vmatprep.subr.bf16.mxu0 %v3437
    %3566 = vmatpush2.bf16.msra.mxu0 %v3436
    %3567 = vmatprep.subr.bf16.mxu0 %v3432
    %3568 = vmatpush2.bf16.msra.mxu0 %v3431
    %3569 = vmatprep.subr.bf16.mxu0 %v3427
    %3570 = vmatpush2.bf16.msra.mxu0 %v3426
    %3571 = vmatprep.subr.bf16.mxu0 %v3422
    %3572 = vmatpush2.bf16.msra.mxu0 %v3421
    %3573 = vmatprep.mubr.bf16.mxu0 %v3028
    %3574 = vmatmul.mubr.bf16.gmra.mxu0 %v2921
    %v3575 = vpop.f32.mrf.mxu0
    %v3576 = vadd.f32 0.0, %v3575
    %v3577 = vpop.f32.mrf.mxu0
    %v3578 = vadd.f32 0.0, %v3577
    %v3579 = vpop.f32.mrf.mxu0
    %v3580 = vpop.f32.mrf.mxu0
    %3581 = vdwg.mxu0
    %3582 = vmatprep.subr.bf16.mxu0 %v3419
    %3583 = vmatpush1.bf16.msra.mxu0 %v3418
    %3584 = vmatprep.subr.bf16.mxu0 %v3414
    %3585 = vmatpush1.bf16.msra.mxu0 %v3413
    %3586 = vmatprep.subr.bf16.mxu0 %v3409
    %3587 = vmatpush1.bf16.msra.mxu0 %v3408
    %3588 = vmatprep.subr.bf16.mxu0 %v3404
    %3589 = vmatpush1.bf16.msra.mxu0 %v3403
    %3590 = vmatprep.subr.bf16.mxu0 %v3399
    %3591 = vmatpush1.bf16.msra.mxu0 %v3398
    %3592 = vmatprep.subr.bf16.mxu0 %v3394
    %3593 = vmatpush1.bf16.msra.mxu0 %v3393
    %3594 = vmatprep.subr.bf16.mxu0 %v3389
    %3595 = vmatpush1.bf16.msra.mxu0 %v3388
    %3596 = vmatprep.subr.bf16.mxu0 %v3384
    %3597 = vmatpush1.bf16.msra.mxu0 %v3383
    %3598 = vmatprep.subr.bf16.mxu0 %v3459
    %3599 = vmatpush2.bf16.msra.mxu0 %v3458
    %3600 = vmatprep.subr.bf16.mxu0 %v3454
    %3601 = vmatpush2.bf16.msra.mxu0 %v3453
    %3602 = vmatprep.subr.bf16.mxu0 %v3449
    %3603 = vmatpush2.bf16.msra.mxu0 %v3448
    %3604 = vmatprep.subr.bf16.mxu0 %v3444
    %3605 = vmatpush2.bf16.msra.mxu0 %v3443
    %3606 = vmatprep.subr.bf16.mxu0 %v3439
    %3607 = vmatpush2.bf16.msra.mxu0 %v3438
    %3608 = vmatprep.subr.bf16.mxu0 %v3434
    %3609 = vmatpush2.bf16.msra.mxu0 %v3433
    %3610 = vmatprep.subr.bf16.mxu0 %v3429
    %3611 = vmatpush2.bf16.msra.mxu0 %v3428
    %3612 = vmatprep.subr.bf16.mxu0 %v3424
    %3613 = vmatpush2.bf16.msra.mxu0 %v3423
    %3614 = vmatprep.mubr.bf16.mxu0 %v3028
    %3615 = vmatmul.mubr.bf16.gmra.mxu0 %v2921
    %v3616 = vpop.f32.mrf.mxu0
    %v3617 = vadd.f32 0.0, %v3616
    %v3618 = vpop.f32.mrf.mxu0
    %v3619 = vadd.f32 0.0, %v3618
    %v3620 = vpop.f32.mrf.mxu0
    %v3621 = vpop.f32.mrf.mxu0
    %3622 = vdwg.mxu0
    %3623 = vmatprep.subr.bf16.mxu0 0
    %3624 = vmatpush1.bf16.msra.mxu0 %v3420
    %3625 = vmatprep.subr.bf16.mxu0 0
    %3626 = vmatpush1.bf16.msra.mxu0 %v3415
    %3627 = vmatprep.subr.bf16.mxu0 0
    %3628 = vmatpush1.bf16.msra.mxu0 %v3410
    %3629 = vmatprep.subr.bf16.mxu0 0
    %3630 = vmatpush1.bf16.msra.mxu0 %v3405
    %3631 = vmatprep.subr.bf16.mxu0 0
    %3632 = vmatpush1.bf16.msra.mxu0 %v3400
    %3633 = vmatprep.subr.bf16.mxu0 0
    %3634 = vmatpush1.bf16.msra.mxu0 %v3395
    %3635 = vmatprep.subr.bf16.mxu0 0
    %3636 = vmatpush1.bf16.msra.mxu0 %v3390
    %3637 = vmatprep.subr.bf16.mxu0 0
    %3638 = vmatpush1.bf16.msra.mxu0 %v3385
    %3639 = vmatprep.subr.bf16.mxu0 0
    %3640 = vmatpush2.bf16.msra.mxu0 %v3460
    %3641 = vmatprep.subr.bf16.mxu0 0
    %3642 = vmatpush2.bf16.msra.mxu0 %v3455
    %3643 = vmatprep.subr.bf16.mxu0 0
    %3644 = vmatpush2.bf16.msra.mxu0 %v3450
    %3645 = vmatprep.subr.bf16.mxu0 0
    %3646 = vmatpush2.bf16.msra.mxu0 %v3445
    %3647 = vmatprep.subr.bf16.mxu0 0
    %3648 = vmatpush2.bf16.msra.mxu0 %v3440
    %3649 = vmatprep.subr.bf16.mxu0 0
    %3650 = vmatpush2.bf16.msra.mxu0 %v3435
    %3651 = vmatprep.subr.bf16.mxu0 0
    %3652 = vmatpush2.bf16.msra.mxu0 %v3430
    %3653 = vmatprep.subr.bf16.mxu0 0
    %3654 = vmatpush2.bf16.msra.mxu0 %v3425
    %3655 = vmatprep.mubr.bf16.mxu0 %v3028
    %3656 = vmatmul.mubr.bf16.gmra.mxu0 %v2921
    %v3657 = vpop.f32.mrf.mxu0
    %v3658 = vadd.f32 0.0, %v3657
    %v3659 = vpop.f32.mrf.mxu0
    %v3660 = vpop.f32.mrf.mxu0
    %v3661 = vpop.f32.mrf.mxu0
    %3662 = vdwg.mxu0
    %v3663 = vadd.f32 %v2916, %v3576
    %v3664 = vadd.f32 %v2917, %v3578
    %v3665 = vadd.f32 %v2918, %v3617
    %v3666 = vadd.f32 %v2919, %v3619
    %v3667 = vadd.f32 %v2920, %v3658
    %v3668 = vxor.u32 %v3663, 2147483648
    %v3669 = vmul.f32 %v3668, 1.442695
    %v3670 = vpow.pop %v3669
    %v3671 = vadd.f32 %v3670, 1.0
    %v3672 = vrcp.pop %v3671
    %v3673 = vmul.f32 1.0, %v3672
    %v3674 = vxor.u32 %v3664, 2147483648
    %v3675 = vmul.f32 %v3674, 1.442695
    %v3676 = vpow.pop %v3675
    %v3677 = vadd.f32 %v3676, 1.0
    %v3678 = vrcp.pop %v3677
    %v3679 = vmul.f32 1.0, %v3678
    %v3680 = vxor.u32 %v3665, 2147483648
    %v3681 = vmul.f32 %v3680, 1.442695
    %v3682 = vpow.pop %v3681
    %v3683 = vadd.f32 %v3682, 1.0
    %v3684 = vrcp.pop %v3683
    %v3685 = vmul.f32 1.0, %v3684
    %v3686 = vtanh.pop %v3666
    %v3687 = vxor.u32 %v3667, 2147483648
    %v3688 = vmul.f32 %v3687, 1.442695
    %v3689 = vpow.pop %v3688
    %v3690 = vadd.f32 %v3689, 1.0
    %v3691 = vrcp.pop %v3690
    %v3692 = vmul.f32 1.0, %v3691
    %v3693 = vmul.f32 %v3673, %v2907
    %v3694 = vmul.f32 %v3679, %v3686
    %v3695 = vadd.f32 %v3693, %v3694
    %v3696 = vmul.f32 %v3685, %v3027
    %v3697 = vadd.f32 %v3695, %v3696
    %v3698 = vtanh.pop %v3697
    %v3699 = vmul.f32 %v3692, %v3698
    %s3700 = scalar_lea.vmem [#allocation3], 64
    %3701 = vst [vmem:[%s3700] sm:$0xff] %v3699
    %s3702 = smul.u32 4, 6
    %s3703 = smul.addr %s3702, 8
    %s3704 = scalar_lea.vmem [#allocation2], %s3703
    %v3705 = vld [vmem:[%s3704] sm:$0xff]
    %v3706 = vld [vmem:[%s3704 + $0x8] sm:$0xff]
    %v3707 = vld [vmem:[%s3704 + $0x10] sm:$0xff]
    %v3708 = vld [vmem:[%s3704 + $0x18] sm:$0xff]
    %v3709 = vld [vmem:[%s3704 + $0x20] sm:$0xff]
    %v3710 = vld [vmem:[%s3704 + $0x28] sm:$0xff]
    %v3711 = vpack.c.bf16 %v3699, %v3699
    %v3712 = vld [vmem:[#allocation7] sm:$0xf]
    %v3713 = vld [vmem:[#allocation7 + $0x4] sm:$0xf]
    %v3714 = vld [vmem:[#allocation7 + $0x8] sm:$0xf]
    %v3715 = vld [vmem:[#allocation7 + $0xc] sm:$0xf]
    %v3716 = vld [vmem:[#allocation7 + $0x10] sm:$0xf]
    %v3717 = vld [vmem:[#allocation7 + $0x14] sm:$0xf]
    %v3718 = vld [vmem:[#allocation7 + $0x18] sm:$0xf]
    %v3719 = vld [vmem:[#allocation7 + $0x1c] sm:$0xf]
    %v3720 = vld [vmem:[#allocation7 + $0x20] sm:$0xf]
    %v3721 = vld [vmem:[#allocation7 + $0x24] sm:$0xf]
    %v3722 = vld [vmem:[#allocation7 + $0x28] sm:$0xf]
    %v3723 = vld [vmem:[#allocation7 + $0x2c] sm:$0xf]
    %v3724 = vld [vmem:[#allocation7 + $0x30] sm:$0xf]
    %v3725 = vld [vmem:[#allocation7 + $0x34] sm:$0xf]
    %v3726 = vld [vmem:[#allocation7 + $0x38] sm:$0xf]
    %v3727 = vld [vmem:[#allocation7 + $0x3c] sm:$0xf]
    %v3744 = vunpack.c.l.b16 %v3712
    %v3745 = vunpack.c.l.b16 %v3713
    %v3746 = vunpack.c.l.b16 %v3714
    %v3747 = vunpack.c.l.b16 %v3715
    %v3748 = vunpack.c.l.b16 %v3716
    %v3749 = vunpack.c.l.b16 %v3717
    %v3750 = vunpack.c.l.b16 %v3718
    %v3751 = vunpack.c.l.b16 %v3719
    %v3752 = vunpack.c.l.b16 %v3720
    %v3753 = vunpack.c.l.b16 %v3721
    %v3754 = vunpack.c.l.b16 %v3722
    %v3755 = vunpack.c.l.b16 %v3723
    %v3756 = vunpack.c.l.b16 %v3724
    %v3757 = vunpack.c.l.b16 %v3725
    %v3758 = vunpack.c.l.b16 %v3726
    %v3759 = vunpack.c.l.b16 %v3727
    %v3760 = vpack.c.b16 %v3745, %v3744
    %v3761 = vpack.c.b16 %v3747, %v3746
    %v3762 = vpack.c.b16 %v3749, %v3748
    %v3763 = vpack.c.b16 %v3751, %v3750
    %v3764 = vpack.c.b16 %v3753, %v3752
    %v3765 = vpack.c.b16 %v3755, %v3754
    %v3766 = vpack.c.b16 %v3757, %v3756
    %v3767 = vpack.c.b16 %v3759, %v3758
    %3776 = vmatprep.subr.bf16.mxu0 0
    %3777 = vmatpush1.bf16.msra.mxu0 %v3767
    %3778 = vmatprep.subr.bf16.mxu0 0
    %3779 = vmatpush1.bf16.msra.mxu0 %v3766
    %3780 = vmatprep.subr.bf16.mxu0 0
    %3781 = vmatpush1.bf16.msra.mxu0 %v3765
    %3782 = vmatprep.subr.bf16.mxu0 0
    %3783 = vmatpush1.bf16.msra.mxu0 %v3764
    %3784 = vmatprep.subr.bf16.mxu0 0
    %3785 = vmatpush1.bf16.msra.mxu0 %v3763
    %3786 = vmatprep.subr.bf16.mxu0 0
    %3787 = vmatpush1.bf16.msra.mxu0 %v3762
    %3788 = vmatprep.subr.bf16.mxu0 0
    %3789 = vmatpush1.bf16.msra.mxu0 %v3761
    %3790 = vmatprep.subr.bf16.mxu0 0
    %3791 = vmatpush1.bf16.msra.mxu0 %v3760
    %3792 = vmatprep.subr.bf16.mxu0 0
    %3793 = vmatpush2.bf16.msra.mxu0 0
    %3794 = vmatprep.subr.bf16.mxu0 0
    %3795 = vmatpush2.bf16.msra.mxu0 0
    %3796 = vmatprep.subr.bf16.mxu0 0
    %3797 = vmatpush2.bf16.msra.mxu0 0
    %3798 = vmatprep.subr.bf16.mxu0 0
    %3799 = vmatpush2.bf16.msra.mxu0 0
    %3800 = vmatprep.subr.bf16.mxu0 0
    %3801 = vmatpush2.bf16.msra.mxu0 0
    %3802 = vmatprep.subr.bf16.mxu0 0
    %3803 = vmatpush2.bf16.msra.mxu0 0
    %3804 = vmatprep.subr.bf16.mxu0 0
    %3805 = vmatpush2.bf16.msra.mxu0 0
    %3806 = vmatprep.subr.bf16.mxu0 0
    %3807 = vmatpush2.bf16.msra.mxu0 0
    %3808 = vmatprep.mubr.bf16.mxu0 0
    %3809 = vmatmul.mubr.bf16.gmra.mxu0 %v3711
    %v3810 = vpop.f32.mrf.mxu0
    %v3811 = vadd.f32 0.0, %v3810
    %v3812 = vpop.f32.mrf.mxu0
    %v3813 = vpop.f32.mrf.mxu0
    %v3814 = vpop.f32.mrf.mxu0
    %3815 = vdwg.mxu0
    %v3816 = vadd.f32 %v3705, %v3811
    %v3817 = vtanh.pop %v3816
    %v3818 = vpack.c.bf16 %v3817, %v3817
    %v3819 = vld [vmem:[#allocation9] sm:$0xff]
    %v3820 = vld [vmem:[#allocation9 + $0x8] sm:$0xff]
    %v3821 = vld [vmem:[#allocation9 + $0x10] sm:$0xf]
    %v3822 = vld [vmem:[#allocation9 + $0x14] sm:$0xff]
    %v3823 = vld [vmem:[#allocation9 + $0x1c] sm:$0xff]
    %v3824 = vld [vmem:[#allocation9 + $0x24] sm:$0xf]
    %v3825 = vld [vmem:[#allocation9 + $0x28] sm:$0xff]
    %v3826 = vld [vmem:[#allocation9 + $0x30] sm:$0xff]
    %v3827 = vld [vmem:[#allocation9 + $0x38] sm:$0xf]
    %v3828 = vld [vmem:[#allocation9 + $0x3c] sm:$0xff]
    %v3829 = vld [vmem:[#allocation9 + $0x44] sm:$0xff]
    %v3830 = vld [vmem:[#allocation9 + $0x4c] sm:$0xf]
    %v3831 = vld [vmem:[#allocation9 + $0x50] sm:$0xff]
    %v3832 = vld [vmem:[#allocation9 + $0x58] sm:$0xff]
    %v3833 = vld [vmem:[#allocation9 + $0x60] sm:$0xf]
    %v3834 = vld [vmem:[#allocation9 + $0x64] sm:$0xff]
    %v3835 = vld [vmem:[#allocation9 + $0x6c] sm:$0xff]
    %v3836 = vld [vmem:[#allocation9 + $0x74] sm:$0xf]
    %v3837 = vld [vmem:[#allocation9 + $0x78] sm:$0xff]
    %v3838 = vld [vmem:[#allocation9 + $0x80] sm:$0xff]
    %v3839 = vld [vmem:[#allocation9 + $0x88] sm:$0xf]
    %v3840 = vld [vmem:[#allocation9 + $0x8c] sm:$0xff]
    %v3841 = vld [vmem:[#allocation9 + $0x94] sm:$0xff]
    %v3842 = vld [vmem:[#allocation9 + $0x9c] sm:$0xf]
    %v3843 = vld [vmem:[#allocation9 + $0xa0] sm:$0xff]
    %v3844 = vld [vmem:[#allocation9 + $0xa8] sm:$0xff]
    %v3845 = vld [vmem:[#allocation9 + $0xb0] sm:$0xf]
    %v3846 = vld [vmem:[#allocation9 + $0xb4] sm:$0xff]
    %v3847 = vld [vmem:[#allocation9 + $0xbc] sm:$0xff]
    %v3848 = vld [vmem:[#allocation9 + $0xc4] sm:$0xf]
    %v3849 = vld [vmem:[#allocation9 + $0xc8] sm:$0xff]
    %v3850 = vld [vmem:[#allocation9 + $0xd0] sm:$0xff]
    %v3851 = vld [vmem:[#allocation9 + $0xd8] sm:$0xf]
    %v3852 = vld [vmem:[#allocation9 + $0xdc] sm:$0xff]
    %v3853 = vld [vmem:[#allocation9 + $0xe4] sm:$0xff]
    %v3854 = vld [vmem:[#allocation9 + $0xec] sm:$0xf]
    %v3855 = vld [vmem:[#allocation9 + $0xf0] sm:$0xff]
    %v3856 = vld [vmem:[#allocation9 + $0xf8] sm:$0xff]
    %v3857 = vld [vmem:[#allocation9 + $0x100] sm:$0xf]
    %v3858 = vld [vmem:[#allocation9 + $0x104] sm:$0xff]
    %v3859 = vld [vmem:[#allocation9 + $0x10c] sm:$0xff]
    %v3860 = vld [vmem:[#allocation9 + $0x114] sm:$0xf]
    %v3861 = vld [vmem:[#allocation9 + $0x118] sm:$0xff]
    %v3862 = vld [vmem:[#allocation9 + $0x120] sm:$0xff]
    %v3863 = vld [vmem:[#allocation9 + $0x128] sm:$0xf]
    %v3864 = vld [vmem:[#allocation9 + $0x12c] sm:$0xff]
    %v3865 = vld [vmem:[#allocation9 + $0x134] sm:$0xff]
    %v3866 = vld [vmem:[#allocation9 + $0x13c] sm:$0xf]
    %v3867 = vld [vmem:[#allocation9 + $0x140] sm:$0xff]
    %v3868 = vld [vmem:[#allocation9 + $0x148] sm:$0xff]
    %v3869 = vld [vmem:[#allocation9 + $0x150] sm:$0xf]
    %v3870 = vld [vmem:[#allocation9 + $0x154] sm:$0xff]
    %v3871 = vld [vmem:[#allocation9 + $0x15c] sm:$0xff]
    %v3872 = vld [vmem:[#allocation9 + $0x164] sm:$0xf]
    %v3873 = vld [vmem:[#allocation9 + $0x168] sm:$0xff]
    %v3874 = vld [vmem:[#allocation9 + $0x170] sm:$0xff]
    %v3875 = vld [vmem:[#allocation9 + $0x178] sm:$0xf]
    %v3876 = vld [vmem:[#allocation9 + $0x17c] sm:$0xff]
    %v3877 = vld [vmem:[#allocation9 + $0x184] sm:$0xff]
    %v3878 = vld [vmem:[#allocation9 + $0x18c] sm:$0xf]
    %v3879 = vld [vmem:[#allocation9 + $0x190] sm:$0xff]
    %v3880 = vld [vmem:[#allocation9 + $0x198] sm:$0xff]
    %v3881 = vld [vmem:[#allocation9 + $0x1a0] sm:$0xf]
    %v3882 = vld [vmem:[#allocation9 + $0x1a4] sm:$0xff]
    %v3883 = vld [vmem:[#allocation9 + $0x1ac] sm:$0xff]
    %v3884 = vld [vmem:[#allocation9 + $0x1b4] sm:$0xf]
    %v3885 = vld [vmem:[#allocation9 + $0x1b8] sm:$0xff]
    %v3886 = vld [vmem:[#allocation9 + $0x1c0] sm:$0xff]
    %v3887 = vld [vmem:[#allocation9 + $0x1c8] sm:$0xf]
    %v3888 = vld [vmem:[#allocation9 + $0x1cc] sm:$0xff]
    %v3889 = vld [vmem:[#allocation9 + $0x1d4] sm:$0xff]
    %v3890 = vld [vmem:[#allocation9 + $0x1dc] sm:$0xf]
    %v3891 = vld [vmem:[#allocation9 + $0x1e0] sm:$0xff]
    %v3892 = vld [vmem:[#allocation9 + $0x1e8] sm:$0xff]
    %v3893 = vld [vmem:[#allocation9 + $0x1f0] sm:$0xf]
    %v3894 = vld [vmem:[#allocation9 + $0x1f4] sm:$0xff]
    %v3895 = vld [vmem:[#allocation9 + $0x1fc] sm:$0xff]
    %v3896 = vld [vmem:[#allocation9 + $0x204] sm:$0xf]
    %v3897 = vld [vmem:[#allocation9 + $0x208] sm:$0xff]
    %v3898 = vld [vmem:[#allocation9 + $0x210] sm:$0xff]
    %v3899 = vld [vmem:[#allocation9 + $0x218] sm:$0xf]
    %v3900 = vld [vmem:[#allocation9 + $0x21c] sm:$0xff]
    %v3901 = vld [vmem:[#allocation9 + $0x224] sm:$0xff]
    %v3902 = vld [vmem:[#allocation9 + $0x22c] sm:$0xf]
    %v3903 = vld [vmem:[#allocation9 + $0x230] sm:$0xff]
    %v3904 = vld [vmem:[#allocation9 + $0x238] sm:$0xff]
    %v3905 = vld [vmem:[#allocation9 + $0x240] sm:$0xf]
    %v3906 = vld [vmem:[#allocation9 + $0x244] sm:$0xff]
    %v3907 = vld [vmem:[#allocation9 + $0x24c] sm:$0xff]
    %v3908 = vld [vmem:[#allocation9 + $0x254] sm:$0xf]
    %v3909 = vld [vmem:[#allocation9 + $0x258] sm:$0xff]
    %v3910 = vld [vmem:[#allocation9 + $0x260] sm:$0xff]
    %v3911 = vld [vmem:[#allocation9 + $0x268] sm:$0xf]
    %v3912 = vld [vmem:[#allocation9 + $0x26c] sm:$0xff]
    %v3913 = vld [vmem:[#allocation9 + $0x274] sm:$0xff]
    %v3914 = vld [vmem:[#allocation9 + $0x27c] sm:$0xf]
    %v4011 = vunpack.c.l.b16 %v3819
    %v4012 = vunpack.c.h.b16 %v3819
    %v4013 = vunpack.c.l.b16 %v3820
    %v4014 = vunpack.c.h.b16 %v3820
    %v4015 = vunpack.c.l.b16 %v3821
    %v4016 = vunpack.c.l.b16 %v3822
    %v4017 = vunpack.c.h.b16 %v3822
    %v4018 = vunpack.c.l.b16 %v3823
    %v4019 = vunpack.c.h.b16 %v3823
    %v4020 = vunpack.c.l.b16 %v3824
    %v4021 = vunpack.c.l.b16 %v3825
    %v4022 = vunpack.c.h.b16 %v3825
    %v4023 = vunpack.c.l.b16 %v3826
    %v4024 = vunpack.c.h.b16 %v3826
    %v4025 = vunpack.c.l.b16 %v3827
    %v4026 = vunpack.c.l.b16 %v3828
    %v4027 = vunpack.c.h.b16 %v3828
    %v4028 = vunpack.c.l.b16 %v3829
    %v4029 = vunpack.c.h.b16 %v3829
    %v4030 = vunpack.c.l.b16 %v3830
    %v4031 = vunpack.c.l.b16 %v3831
    %v4032 = vunpack.c.h.b16 %v3831
    %v4033 = vunpack.c.l.b16 %v3832
    %v4034 = vunpack.c.h.b16 %v3832
    %v4035 = vunpack.c.l.b16 %v3833
    %v4036 = vunpack.c.l.b16 %v3834
    %v4037 = vunpack.c.h.b16 %v3834
    %v4038 = vunpack.c.l.b16 %v3835
    %v4039 = vunpack.c.h.b16 %v3835
    %v4040 = vunpack.c.l.b16 %v3836
    %v4041 = vunpack.c.l.b16 %v3837
    %v4042 = vunpack.c.h.b16 %v3837
    %v4043 = vunpack.c.l.b16 %v3838
    %v4044 = vunpack.c.h.b16 %v3838
    %v4045 = vunpack.c.l.b16 %v3839
    %v4046 = vunpack.c.l.b16 %v3840
    %v4047 = vunpack.c.h.b16 %v3840
    %v4048 = vunpack.c.l.b16 %v3841
    %v4049 = vunpack.c.h.b16 %v3841
    %v4050 = vunpack.c.l.b16 %v3842
    %v4051 = vunpack.c.l.b16 %v3843
    %v4052 = vunpack.c.h.b16 %v3843
    %v4053 = vunpack.c.l.b16 %v3844
    %v4054 = vunpack.c.h.b16 %v3844
    %v4055 = vunpack.c.l.b16 %v3845
    %v4056 = vunpack.c.l.b16 %v3846
    %v4057 = vunpack.c.h.b16 %v3846
    %v4058 = vunpack.c.l.b16 %v3847
    %v4059 = vunpack.c.h.b16 %v3847
    %v4060 = vunpack.c.l.b16 %v3848
    %v4061 = vunpack.c.l.b16 %v3849
    %v4062 = vunpack.c.h.b16 %v3849
    %v4063 = vunpack.c.l.b16 %v3850
    %v4064 = vunpack.c.h.b16 %v3850
    %v4065 = vunpack.c.l.b16 %v3851
    %v4066 = vunpack.c.l.b16 %v3852
    %v4067 = vunpack.c.h.b16 %v3852
    %v4068 = vunpack.c.l.b16 %v3853
    %v4069 = vunpack.c.h.b16 %v3853
    %v4070 = vunpack.c.l.b16 %v3854
    %v4071 = vunpack.c.l.b16 %v3855
    %v4072 = vunpack.c.h.b16 %v3855
    %v4073 = vunpack.c.l.b16 %v3856
    %v4074 = vunpack.c.h.b16 %v3856
    %v4075 = vunpack.c.l.b16 %v3857
    %v4076 = vunpack.c.l.b16 %v3858
    %v4077 = vunpack.c.h.b16 %v3858
    %v4078 = vunpack.c.l.b16 %v3859
    %v4079 = vunpack.c.h.b16 %v3859
    %v4080 = vunpack.c.l.b16 %v3860
    %v4081 = vunpack.c.l.b16 %v3861
    %v4082 = vunpack.c.h.b16 %v3861
    %v4083 = vunpack.c.l.b16 %v3862
    %v4084 = vunpack.c.h.b16 %v3862
    %v4085 = vunpack.c.l.b16 %v3863
    %v4086 = vunpack.c.l.b16 %v3864
    %v4087 = vunpack.c.h.b16 %v3864
    %v4088 = vunpack.c.l.b16 %v3865
    %v4089 = vunpack.c.h.b16 %v3865
    %v4090 = vunpack.c.l.b16 %v3866
    %v4091 = vunpack.c.l.b16 %v3867
    %v4092 = vunpack.c.h.b16 %v3867
    %v4093 = vunpack.c.l.b16 %v3868
    %v4094 = vunpack.c.h.b16 %v3868
    %v4095 = vunpack.c.l.b16 %v3869
    %v4096 = vunpack.c.l.b16 %v3870
    %v4097 = vunpack.c.h.b16 %v3870
    %v4098 = vunpack.c.l.b16 %v3871
    %v4099 = vunpack.c.h.b16 %v3871
    %v4100 = vunpack.c.l.b16 %v3872
    %v4101 = vunpack.c.l.b16 %v3873
    %v4102 = vunpack.c.h.b16 %v3873
    %v4103 = vunpack.c.l.b16 %v3874
    %v4104 = vunpack.c.h.b16 %v3874
    %v4105 = vunpack.c.l.b16 %v3875
    %v4106 = vunpack.c.l.b16 %v3876
    %v4107 = vunpack.c.h.b16 %v3876
    %v4108 = vunpack.c.l.b16 %v3877
    %v4109 = vunpack.c.h.b16 %v3877
    %v4110 = vunpack.c.l.b16 %v3878
    %v4111 = vunpack.c.l.b16 %v3879
    %v4112 = vunpack.c.h.b16 %v3879
    %v4113 = vunpack.c.l.b16 %v3880
    %v4114 = vunpack.c.h.b16 %v3880
    %v4115 = vunpack.c.l.b16 %v3881
    %v4116 = vunpack.c.l.b16 %v3882
    %v4117 = vunpack.c.h.b16 %v3882
    %v4118 = vunpack.c.l.b16 %v3883
    %v4119 = vunpack.c.h.b16 %v3883
    %v4120 = vunpack.c.l.b16 %v3884
    %v4121 = vunpack.c.l.b16 %v3885
    %v4122 = vunpack.c.h.b16 %v3885
    %v4123 = vunpack.c.l.b16 %v3886
    %v4124 = vunpack.c.h.b16 %v3886
    %v4125 = vunpack.c.l.b16 %v3887
    %v4126 = vunpack.c.l.b16 %v3888
    %v4127 = vunpack.c.h.b16 %v3888
    %v4128 = vunpack.c.l.b16 %v3889
    %v4129 = vunpack.c.h.b16 %v3889
    %v4130 = vunpack.c.l.b16 %v3890
    %v4131 = vunpack.c.l.b16 %v3891
    %v4132 = vunpack.c.h.b16 %v3891
    %v4133 = vunpack.c.l.b16 %v3892
    %v4134 = vunpack.c.h.b16 %v3892
    %v4135 = vunpack.c.l.b16 %v3893
    %v4136 = vunpack.c.l.b16 %v3894
    %v4137 = vunpack.c.h.b16 %v3894
    %v4138 = vunpack.c.l.b16 %v3895
    %v4139 = vunpack.c.h.b16 %v3895
    %v4140 = vunpack.c.l.b16 %v3896
    %v4141 = vunpack.c.l.b16 %v3897
    %v4142 = vunpack.c.h.b16 %v3897
    %v4143 = vunpack.c.l.b16 %v3898
    %v4144 = vunpack.c.h.b16 %v3898
    %v4145 = vunpack.c.l.b16 %v3899
    %v4146 = vunpack.c.l.b16 %v3900
    %v4147 = vunpack.c.h.b16 %v3900
    %v4148 = vunpack.c.l.b16 %v3901
    %v4149 = vunpack.c.h.b16 %v3901
    %v4150 = vunpack.c.l.b16 %v3902
    %v4151 = vunpack.c.l.b16 %v3903
    %v4152 = vunpack.c.h.b16 %v3903
    %v4153 = vunpack.c.l.b16 %v3904
    %v4154 = vunpack.c.h.b16 %v3904
    %v4155 = vunpack.c.l.b16 %v3905
    %v4156 = vunpack.c.l.b16 %v3906
    %v4157 = vunpack.c.h.b16 %v3906
    %v4158 = vunpack.c.l.b16 %v3907
    %v4159 = vunpack.c.h.b16 %v3907
    %v4160 = vunpack.c.l.b16 %v3908
    %v4161 = vunpack.c.l.b16 %v3909
    %v4162 = vunpack.c.h.b16 %v3909
    %v4163 = vunpack.c.l.b16 %v3910
    %v4164 = vunpack.c.h.b16 %v3910
    %v4165 = vunpack.c.l.b16 %v3911
    %v4166 = vunpack.c.l.b16 %v3912
    %v4167 = vunpack.c.h.b16 %v3912
    %v4168 = vunpack.c.l.b16 %v3913
    %v4169 = vunpack.c.h.b16 %v3913
    %v4170 = vunpack.c.l.b16 %v3914
    %v4171 = vpack.c.b16 %v4016, %v4011
    %v4172 = vpack.c.b16 %v4017, %v4012
    %v4173 = vpack.c.b16 %v4018, %v4013
    %v4174 = vpack.c.b16 %v4019, %v4014
    %v4175 = vpack.c.b16 %v4020, %v4015
    %v4176 = vpack.c.b16 %v4026, %v4021
    %v4177 = vpack.c.b16 %v4027, %v4022
    %v4178 = vpack.c.b16 %v4028, %v4023
    %v4179 = vpack.c.b16 %v4029, %v4024
    %v4180 = vpack.c.b16 %v4030, %v4025
    %v4181 = vpack.c.b16 %v4036, %v4031
    %v4182 = vpack.c.b16 %v4037, %v4032
    %v4183 = vpack.c.b16 %v4038, %v4033
    %v4184 = vpack.c.b16 %v4039, %v4034
    %v4185 = vpack.c.b16 %v4040, %v4035
    %v4186 = vpack.c.b16 %v4046, %v4041
    %v4187 = vpack.c.b16 %v4047, %v4042
    %v4188 = vpack.c.b16 %v4048, %v4043
    %v4189 = vpack.c.b16 %v4049, %v4044
    %v4190 = vpack.c.b16 %v4050, %v4045
    %v4191 = vpack.c.b16 %v4056, %v4051
    %v4192 = vpack.c.b16 %v4057, %v4052
    %v4193 = vpack.c.b16 %v4058, %v4053
    %v4194 = vpack.c.b16 %v4059, %v4054
    %v4195 = vpack.c.b16 %v4060, %v4055
    %v4196 = vpack.c.b16 %v4066, %v4061
    %v4197 = vpack.c.b16 %v4067, %v4062
    %v4198 = vpack.c.b16 %v4068, %v4063
    %v4199 = vpack.c.b16 %v4069, %v4064
    %v4200 = vpack.c.b16 %v4070, %v4065
    %v4201 = vpack.c.b16 %v4076, %v4071
    %v4202 = vpack.c.b16 %v4077, %v4072
    %v4203 = vpack.c.b16 %v4078, %v4073
    %v4204 = vpack.c.b16 %v4079, %v4074
    %v4205 = vpack.c.b16 %v4080, %v4075
    %v4206 = vpack.c.b16 %v4086, %v4081
    %v4207 = vpack.c.b16 %v4087, %v4082
    %v4208 = vpack.c.b16 %v4088, %v4083
    %v4209 = vpack.c.b16 %v4089, %v4084
    %v4210 = vpack.c.b16 %v4090, %v4085
    %v4211 = vpack.c.b16 %v4096, %v4091
    %v4212 = vpack.c.b16 %v4097, %v4092
    %v4213 = vpack.c.b16 %v4098, %v4093
    %v4214 = vpack.c.b16 %v4099, %v4094
    %v4215 = vpack.c.b16 %v4100, %v4095
    %v4216 = vpack.c.b16 %v4106, %v4101
    %v4217 = vpack.c.b16 %v4107, %v4102
    %v4218 = vpack.c.b16 %v4108, %v4103
    %v4219 = vpack.c.b16 %v4109, %v4104
    %v4220 = vpack.c.b16 %v4110, %v4105
    %v4221 = vpack.c.b16 %v4116, %v4111
    %v4222 = vpack.c.b16 %v4117, %v4112
    %v4223 = vpack.c.b16 %v4118, %v4113
    %v4224 = vpack.c.b16 %v4119, %v4114
    %v4225 = vpack.c.b16 %v4120, %v4115
    %v4226 = vpack.c.b16 %v4126, %v4121
    %v4227 = vpack.c.b16 %v4127, %v4122
    %v4228 = vpack.c.b16 %v4128, %v4123
    %v4229 = vpack.c.b16 %v4129, %v4124
    %v4230 = vpack.c.b16 %v4130, %v4125
    %v4231 = vpack.c.b16 %v4136, %v4131
    %v4232 = vpack.c.b16 %v4137, %v4132
    %v4233 = vpack.c.b16 %v4138, %v4133
    %v4234 = vpack.c.b16 %v4139, %v4134
    %v4235 = vpack.c.b16 %v4140, %v4135
    %v4236 = vpack.c.b16 %v4146, %v4141
    %v4237 = vpack.c.b16 %v4147, %v4142
    %v4238 = vpack.c.b16 %v4148, %v4143
    %v4239 = vpack.c.b16 %v4149, %v4144
    %v4240 = vpack.c.b16 %v4150, %v4145
    %v4241 = vpack.c.b16 %v4156, %v4151
    %v4242 = vpack.c.b16 %v4157, %v4152
    %v4243 = vpack.c.b16 %v4158, %v4153
    %v4244 = vpack.c.b16 %v4159, %v4154
    %v4245 = vpack.c.b16 %v4160, %v4155
    %v4246 = vpack.c.b16 %v4166, %v4161
    %v4247 = vpack.c.b16 %v4167, %v4162
    %v4248 = vpack.c.b16 %v4168, %v4163
    %v4249 = vpack.c.b16 %v4169, %v4164
    %v4250 = vpack.c.b16 %v4170, %v4165
    %4331 = vmatprep.subr.bf16.mxu0 %v4207
    %4332 = vmatpush1.bf16.msra.mxu0 %v4206
    %4333 = vmatprep.subr.bf16.mxu0 %v4202
    %4334 = vmatpush1.bf16.msra.mxu0 %v4201
    %4335 = vmatprep.subr.bf16.mxu0 %v4197
    %4336 = vmatpush1.bf16.msra.mxu0 %v4196
    %4337 = vmatprep.subr.bf16.mxu0 %v4192
    %4338 = vmatpush1.bf16.msra.mxu0 %v4191
    %4339 = vmatprep.subr.bf16.mxu0 %v4187
    %4340 = vmatpush1.bf16.msra.mxu0 %v4186
    %4341 = vmatprep.subr.bf16.mxu0 %v4182
    %4342 = vmatpush1.bf16.msra.mxu0 %v4181
    %4343 = vmatprep.subr.bf16.mxu0 %v4177
    %4344 = vmatpush1.bf16.msra.mxu0 %v4176
    %4345 = vmatprep.subr.bf16.mxu0 %v4172
    %4346 = vmatpush1.bf16.msra.mxu0 %v4171
    %4347 = vmatprep.subr.bf16.mxu0 %v4247
    %4348 = vmatpush2.bf16.msra.mxu0 %v4246
    %4349 = vmatprep.subr.bf16.mxu0 %v4242
    %4350 = vmatpush2.bf16.msra.mxu0 %v4241
    %4351 = vmatprep.subr.bf16.mxu0 %v4237
    %4352 = vmatpush2.bf16.msra.mxu0 %v4236
    %4353 = vmatprep.subr.bf16.mxu0 %v4232
    %4354 = vmatpush2.bf16.msra.mxu0 %v4231
    %4355 = vmatprep.subr.bf16.mxu0 %v4227
    %4356 = vmatpush2.bf16.msra.mxu0 %v4226
    %4357 = vmatprep.subr.bf16.mxu0 %v4222
    %4358 = vmatpush2.bf16.msra.mxu0 %v4221
    %4359 = vmatprep.subr.bf16.mxu0 %v4217
    %4360 = vmatpush2.bf16.msra.mxu0 %v4216
    %4361 = vmatprep.subr.bf16.mxu0 %v4212
    %4362 = vmatpush2.bf16.msra.mxu0 %v4211
    %4363 = vmatprep.mubr.bf16.mxu0 %v3818
    %4364 = vmatmul.mubr.bf16.gmra.mxu0 %v3711
    %v4365 = vpop.f32.mrf.mxu0
    %v4366 = vadd.f32 0.0, %v4365
    %v4367 = vpop.f32.mrf.mxu0
    %v4368 = vadd.f32 0.0, %v4367
    %v4369 = vpop.f32.mrf.mxu0
    %v4370 = vpop.f32.mrf.mxu0
    %4371 = vdwg.mxu0
    %4372 = vmatprep.subr.bf16.mxu0 %v4209
    %4373 = vmatpush1.bf16.msra.mxu0 %v4208
    %4374 = vmatprep.subr.bf16.mxu0 %v4204
    %4375 = vmatpush1.bf16.msra.mxu0 %v4203
    %4376 = vmatprep.subr.bf16.mxu0 %v4199
    %4377 = vmatpush1.bf16.msra.mxu0 %v4198
    %4378 = vmatprep.subr.bf16.mxu0 %v4194
    %4379 = vmatpush1.bf16.msra.mxu0 %v4193
    %4380 = vmatprep.subr.bf16.mxu0 %v4189
    %4381 = vmatpush1.bf16.msra.mxu0 %v4188
    %4382 = vmatprep.subr.bf16.mxu0 %v4184
    %4383 = vmatpush1.bf16.msra.mxu0 %v4183
    %4384 = vmatprep.subr.bf16.mxu0 %v4179
    %4385 = vmatpush1.bf16.msra.mxu0 %v4178
    %4386 = vmatprep.subr.bf16.mxu0 %v4174
    %4387 = vmatpush1.bf16.msra.mxu0 %v4173
    %4388 = vmatprep.subr.bf16.mxu0 %v4249
    %4389 = vmatpush2.bf16.msra.mxu0 %v4248
    %4390 = vmatprep.subr.bf16.mxu0 %v4244
    %4391 = vmatpush2.bf16.msra.mxu0 %v4243
    %4392 = vmatprep.subr.bf16.mxu0 %v4239
    %4393 = vmatpush2.bf16.msra.mxu0 %v4238
    %4394 = vmatprep.subr.bf16.mxu0 %v4234
    %4395 = vmatpush2.bf16.msra.mxu0 %v4233
    %4396 = vmatprep.subr.bf16.mxu0 %v4229
    %4397 = vmatpush2.bf16.msra.mxu0 %v4228
    %4398 = vmatprep.subr.bf16.mxu0 %v4224
    %4399 = vmatpush2.bf16.msra.mxu0 %v4223
    %4400 = vmatprep.subr.bf16.mxu0 %v4219
    %4401 = vmatpush2.bf16.msra.mxu0 %v4218
    %4402 = vmatprep.subr.bf16.mxu0 %v4214
    %4403 = vmatpush2.bf16.msra.mxu0 %v4213
    %4404 = vmatprep.mubr.bf16.mxu0 %v3818
    %4405 = vmatmul.mubr.bf16.gmra.mxu0 %v3711
    %v4406 = vpop.f32.mrf.mxu0
    %v4407 = vadd.f32 0.0, %v4406
    %v4408 = vpop.f32.mrf.mxu0
    %v4409 = vadd.f32 0.0, %v4408
    %v4410 = vpop.f32.mrf.mxu0
    %v4411 = vpop.f32.mrf.mxu0
    %4412 = vdwg.mxu0
    %4413 = vmatprep.subr.bf16.mxu0 0
    %4414 = vmatpush1.bf16.msra.mxu0 %v4210
    %4415 = vmatprep.subr.bf16.mxu0 0
    %4416 = vmatpush1.bf16.msra.mxu0 %v4205
    %4417 = vmatprep.subr.bf16.mxu0 0
    %4418 = vmatpush1.bf16.msra.mxu0 %v4200
    %4419 = vmatprep.subr.bf16.mxu0 0
    %4420 = vmatpush1.bf16.msra.mxu0 %v4195
    %4421 = vmatprep.subr.bf16.mxu0 0
    %4422 = vmatpush1.bf16.msra.mxu0 %v4190
    %4423 = vmatprep.subr.bf16.mxu0 0
    %4424 = vmatpush1.bf16.msra.mxu0 %v4185
    %4425 = vmatprep.subr.bf16.mxu0 0
    %4426 = vmatpush1.bf16.msra.mxu0 %v4180
    %4427 = vmatprep.subr.bf16.mxu0 0
    %4428 = vmatpush1.bf16.msra.mxu0 %v4175
    %4429 = vmatprep.subr.bf16.mxu0 0
    %4430 = vmatpush2.bf16.msra.mxu0 %v4250
    %4431 = vmatprep.subr.bf16.mxu0 0
    %4432 = vmatpush2.bf16.msra.mxu0 %v4245
    %4433 = vmatprep.subr.bf16.mxu0 0
    %4434 = vmatpush2.bf16.msra.mxu0 %v4240
    %4435 = vmatprep.subr.bf16.mxu0 0
    %4436 = vmatpush2.bf16.msra.mxu0 %v4235
    %4437 = vmatprep.subr.bf16.mxu0 0
    %4438 = vmatpush2.bf16.msra.mxu0 %v4230
    %4439 = vmatprep.subr.bf16.mxu0 0
    %4440 = vmatpush2.bf16.msra.mxu0 %v4225
    %4441 = vmatprep.subr.bf16.mxu0 0
    %4442 = vmatpush2.bf16.msra.mxu0 %v4220
    %4443 = vmatprep.subr.bf16.mxu0 0
    %4444 = vmatpush2.bf16.msra.mxu0 %v4215
    %4445 = vmatprep.mubr.bf16.mxu0 %v3818
    %4446 = vmatmul.mubr.bf16.gmra.mxu0 %v3711
    %v4447 = vpop.f32.mrf.mxu0
    %v4448 = vadd.f32 0.0, %v4447
    %v4449 = vpop.f32.mrf.mxu0
    %v4450 = vpop.f32.mrf.mxu0
    %v4451 = vpop.f32.mrf.mxu0
    %4452 = vdwg.mxu0
    %v4453 = vadd.f32 %v3706, %v4366
    %v4454 = vadd.f32 %v3707, %v4368
    %v4455 = vadd.f32 %v3708, %v4407
    %v4456 = vadd.f32 %v3709, %v4409
    %v4457 = vadd.f32 %v3710, %v4448
    %v4458 = vxor.u32 %v4453, 2147483648
    %v4459 = vmul.f32 %v4458, 1.442695
    %v4460 = vpow.pop %v4459
    %v4461 = vadd.f32 %v4460, 1.0
    %v4462 = vrcp.pop %v4461
    %v4463 = vmul.f32 1.0, %v4462
    %v4464 = vxor.u32 %v4454, 2147483648
    %v4465 = vmul.f32 %v4464, 1.442695
    %v4466 = vpow.pop %v4465
    %v4467 = vadd.f32 %v4466, 1.0
    %v4468 = vrcp.pop %v4467
    %v4469 = vmul.f32 1.0, %v4468
    %v4470 = vxor.u32 %v4455, 2147483648
    %v4471 = vmul.f32 %v4470, 1.442695
    %v4472 = vpow.pop %v4471
    %v4473 = vadd.f32 %v4472, 1.0
    %v4474 = vrcp.pop %v4473
    %v4475 = vmul.f32 1.0, %v4474
    %v4476 = vtanh.pop %v4456
    %v4477 = vxor.u32 %v4457, 2147483648
    %v4478 = vmul.f32 %v4477, 1.442695
    %v4479 = vpow.pop %v4478
    %v4480 = vadd.f32 %v4479, 1.0
    %v4481 = vrcp.pop %v4480
    %v4482 = vmul.f32 1.0, %v4481
    %v4483 = vmul.f32 %v4463, %v3697
    %v4484 = vmul.f32 %v4469, %v4476
    %v4485 = vadd.f32 %v4483, %v4484
    %v4486 = vmul.f32 %v4475, %v3817
    %v4487 = vadd.f32 %v4485, %v4486
    %v4488 = vtanh.pop %v4487
    %v4489 = vmul.f32 %v4482, %v4488
    %s4490 = scalar_lea.vmem [#allocation3], 72
    %4491 = vst [vmem:[%s4490] sm:$0xff] %v4489
    %s4492 = smul.u32 5, 6
    %s4493 = smul.addr %s4492, 8
    %s4494 = scalar_lea.vmem [#allocation2], %s4493
    %v4495 = vld [vmem:[%s4494] sm:$0xff]
    %v4496 = vld [vmem:[%s4494 + $0x8] sm:$0xff]
    %v4497 = vld [vmem:[%s4494 + $0x10] sm:$0xff]
    %v4498 = vld [vmem:[%s4494 + $0x18] sm:$0xff]
    %v4499 = vld [vmem:[%s4494 + $0x20] sm:$0xff]
    %v4500 = vld [vmem:[%s4494 + $0x28] sm:$0xff]
    %v4501 = vpack.c.bf16 %v4489, %v4489
    %v4502 = vld [vmem:[#allocation7] sm:$0xf]
    %v4503 = vld [vmem:[#allocation7 + $0x4] sm:$0xf]
    %v4504 = vld [vmem:[#allocation7 + $0x8] sm:$0xf]
    %v4505 = vld [vmem:[#allocation7 + $0xc] sm:$0xf]
    %v4506 = vld [vmem:[#allocation7 + $0x10] sm:$0xf]
    %v4507 = vld [vmem:[#allocation7 + $0x14] sm:$0xf]
    %v4508 = vld [vmem:[#allocation7 + $0x18] sm:$0xf]
    %v4509 = vld [vmem:[#allocation7 + $0x1c] sm:$0xf]
    %v4510 = vld [vmem:[#allocation7 + $0x20] sm:$0xf]
    %v4511 = vld [vmem:[#allocation7 + $0x24] sm:$0xf]
    %v4512 = vld [vmem:[#allocation7 + $0x28] sm:$0xf]
    %v4513 = vld [vmem:[#allocation7 + $0x2c] sm:$0xf]
    %v4514 = vld [vmem:[#allocation7 + $0x30] sm:$0xf]
    %v4515 = vld [vmem:[#allocation7 + $0x34] sm:$0xf]
    %v4516 = vld [vmem:[#allocation7 + $0x38] sm:$0xf]
    %v4517 = vld [vmem:[#allocation7 + $0x3c] sm:$0xf]
    %v4534 = vunpack.c.l.b16 %v4502
    %v4535 = vunpack.c.l.b16 %v4503
    %v4536 = vunpack.c.l.b16 %v4504
    %v4537 = vunpack.c.l.b16 %v4505
    %v4538 = vunpack.c.l.b16 %v4506
    %v4539 = vunpack.c.l.b16 %v4507
    %v4540 = vunpack.c.l.b16 %v4508
    %v4541 = vunpack.c.l.b16 %v4509
    %v4542 = vunpack.c.l.b16 %v4510
    %v4543 = vunpack.c.l.b16 %v4511
    %v4544 = vunpack.c.l.b16 %v4512
    %v4545 = vunpack.c.l.b16 %v4513
    %v4546 = vunpack.c.l.b16 %v4514
    %v4547 = vunpack.c.l.b16 %v4515
    %v4548 = vunpack.c.l.b16 %v4516
    %v4549 = vunpack.c.l.b16 %v4517
    %v4550 = vpack.c.b16 %v4535, %v4534
    %v4551 = vpack.c.b16 %v4537, %v4536
    %v4552 = vpack.c.b16 %v4539, %v4538
    %v4553 = vpack.c.b16 %v4541, %v4540
    %v4554 = vpack.c.b16 %v4543, %v4542
    %v4555 = vpack.c.b16 %v4545, %v4544
    %v4556 = vpack.c.b16 %v4547, %v4546
    %v4557 = vpack.c.b16 %v4549, %v4548
    %4566 = vmatprep.subr.bf16.mxu0 0
    %4567 = vmatpush1.bf16.msra.mxu0 %v4557
    %4568 = vmatprep.subr.bf16.mxu0 0
    %4569 = vmatpush1.bf16.msra.mxu0 %v4556
    %4570 = vmatprep.subr.bf16.mxu0 0
    %4571 = vmatpush1.bf16.msra.mxu0 %v4555
    %4572 = vmatprep.subr.bf16.mxu0 0
    %4573 = vmatpush1.bf16.msra.mxu0 %v4554
    %4574 = vmatprep.subr.bf16.mxu0 0
    %4575 = vmatpush1.bf16.msra.mxu0 %v4553
    %4576 = vmatprep.subr.bf16.mxu0 0
    %4577 = vmatpush1.bf16.msra.mxu0 %v4552
    %4578 = vmatprep.subr.bf16.mxu0 0
    %4579 = vmatpush1.bf16.msra.mxu0 %v4551
    %4580 = vmatprep.subr.bf16.mxu0 0
    %4581 = vmatpush1.bf16.msra.mxu0 %v4550
    %4582 = vmatprep.subr.bf16.mxu0 0
    %4583 = vmatpush2.bf16.msra.mxu0 0
    %4584 = vmatprep.subr.bf16.mxu0 0
    %4585 = vmatpush2.bf16.msra.mxu0 0
    %4586 = vmatprep.subr.bf16.mxu0 0
    %4587 = vmatpush2.bf16.msra.mxu0 0
    %4588 = vmatprep.subr.bf16.mxu0 0
    %4589 = vmatpush2.bf16.msra.mxu0 0
    %4590 = vmatprep.subr.bf16.mxu0 0
    %4591 = vmatpush2.bf16.msra.mxu0 0
    %4592 = vmatprep.subr.bf16.mxu0 0
    %4593 = vmatpush2.bf16.msra.mxu0 0
    %4594 = vmatprep.subr.bf16.mxu0 0
    %4595 = vmatpush2.bf16.msra.mxu0 0
    %4596 = vmatprep.subr.bf16.mxu0 0
    %4597 = vmatpush2.bf16.msra.mxu0 0
    %4598 = vmatprep.mubr.bf16.mxu0 0
    %4599 = vmatmul.mubr.bf16.gmra.mxu0 %v4501
    %v4600 = vpop.f32.mrf.mxu0
    %v4601 = vadd.f32 0.0, %v4600
    %v4602 = vpop.f32.mrf.mxu0
    %v4603 = vpop.f32.mrf.mxu0
    %v4604 = vpop.f32.mrf.mxu0
    %4605 = vdwg.mxu0
    %v4606 = vadd.f32 %v4495, %v4601
    %v4607 = vtanh.pop %v4606
    %v4608 = vpack.c.bf16 %v4607, %v4607
    %v4609 = vld [vmem:[#allocation9] sm:$0xff]
    %v4610 = vld [vmem:[#allocation9 + $0x8] sm:$0xff]
    %v4611 = vld [vmem:[#allocation9 + $0x10] sm:$0xf]
    %v4612 = vld [vmem:[#allocation9 + $0x14] sm:$0xff]
    %v4613 = vld [vmem:[#allocation9 + $0x1c] sm:$0xff]
    %v4614 = vld [vmem:[#allocation9 + $0x24] sm:$0xf]
    %v4615 = vld [vmem:[#allocation9 + $0x28] sm:$0xff]
    %v4616 = vld [vmem:[#allocation9 + $0x30] sm:$0xff]
    %v4617 = vld [vmem:[#allocation9 + $0x38] sm:$0xf]
    %v4618 = vld [vmem:[#allocation9 + $0x3c] sm:$0xff]
    %v4619 = vld [vmem:[#allocation9 + $0x44] sm:$0xff]
    %v4620 = vld [vmem:[#allocation9 + $0x4c] sm:$0xf]
    %v4621 = vld [vmem:[#allocation9 + $0x50] sm:$0xff]
    %v4622 = vld [vmem:[#allocation9 + $0x58] sm:$0xff]
    %v4623 = vld [vmem:[#allocation9 + $0x60] sm:$0xf]
    %v4624 = vld [vmem:[#allocation9 + $0x64] sm:$0xff]
    %v4625 = vld [vmem:[#allocation9 + $0x6c] sm:$0xff]
    %v4626 = vld [vmem:[#allocation9 + $0x74] sm:$0xf]
    %v4627 = vld [vmem:[#allocation9 + $0x78] sm:$0xff]
    %v4628 = vld [vmem:[#allocation9 + $0x80] sm:$0xff]
    %v4629 = vld [vmem:[#allocation9 + $0x88] sm:$0xf]
    %v4630 = vld [vmem:[#allocation9 + $0x8c] sm:$0xff]
    %v4631 = vld [vmem:[#allocation9 + $0x94] sm:$0xff]
    %v4632 = vld [vmem:[#allocation9 + $0x9c] sm:$0xf]
    %v4633 = vld [vmem:[#allocation9 + $0xa0] sm:$0xff]
    %v4634 = vld [vmem:[#allocation9 + $0xa8] sm:$0xff]
    %v4635 = vld [vmem:[#allocation9 + $0xb0] sm:$0xf]
    %v4636 = vld [vmem:[#allocation9 + $0xb4] sm:$0xff]
    %v4637 = vld [vmem:[#allocation9 + $0xbc] sm:$0xff]
    %v4638 = vld [vmem:[#allocation9 + $0xc4] sm:$0xf]
    %v4639 = vld [vmem:[#allocation9 + $0xc8] sm:$0xff]
    %v4640 = vld [vmem:[#allocation9 + $0xd0] sm:$0xff]
    %v4641 = vld [vmem:[#allocation9 + $0xd8] sm:$0xf]
    %v4642 = vld [vmem:[#allocation9 + $0xdc] sm:$0xff]
    %v4643 = vld [vmem:[#allocation9 + $0xe4] sm:$0xff]
    %v4644 = vld [vmem:[#allocation9 + $0xec] sm:$0xf]
    %v4645 = vld [vmem:[#allocation9 + $0xf0] sm:$0xff]
    %v4646 = vld [vmem:[#allocation9 + $0xf8] sm:$0xff]
    %v4647 = vld [vmem:[#allocation9 + $0x100] sm:$0xf]
    %v4648 = vld [vmem:[#allocation9 + $0x104] sm:$0xff]
    %v4649 = vld [vmem:[#allocation9 + $0x10c] sm:$0xff]
    %v4650 = vld [vmem:[#allocation9 + $0x114] sm:$0xf]
    %v4651 = vld [vmem:[#allocation9 + $0x118] sm:$0xff]
    %v4652 = vld [vmem:[#allocation9 + $0x120] sm:$0xff]
    %v4653 = vld [vmem:[#allocation9 + $0x128] sm:$0xf]
    %v4654 = vld [vmem:[#allocation9 + $0x12c] sm:$0xff]
    %v4655 = vld [vmem:[#allocation9 + $0x134] sm:$0xff]
    %v4656 = vld [vmem:[#allocation9 + $0x13c] sm:$0xf]
    %v4657 = vld [vmem:[#allocation9 + $0x140] sm:$0xff]
    %v4658 = vld [vmem:[#allocation9 + $0x148] sm:$0xff]
    %v4659 = vld [vmem:[#allocation9 + $0x150] sm:$0xf]
    %v4660 = vld [vmem:[#allocation9 + $0x154] sm:$0xff]
    %v4661 = vld [vmem:[#allocation9 + $0x15c] sm:$0xff]
    %v4662 = vld [vmem:[#allocation9 + $0x164] sm:$0xf]
    %v4663 = vld [vmem:[#allocation9 + $0x168] sm:$0xff]
    %v4664 = vld [vmem:[#allocation9 + $0x170] sm:$0xff]
    %v4665 = vld [vmem:[#allocation9 + $0x178] sm:$0xf]
    %v4666 = vld [vmem:[#allocation9 + $0x17c] sm:$0xff]
    %v4667 = vld [vmem:[#allocation9 + $0x184] sm:$0xff]
    %v4668 = vld [vmem:[#allocation9 + $0x18c] sm:$0xf]
    %v4669 = vld [vmem:[#allocation9 + $0x190] sm:$0xff]
    %v4670 = vld [vmem:[#allocation9 + $0x198] sm:$0xff]
    %v4671 = vld [vmem:[#allocation9 + $0x1a0] sm:$0xf]
    %v4672 = vld [vmem:[#allocation9 + $0x1a4] sm:$0xff]
    %v4673 = vld [vmem:[#allocation9 + $0x1ac] sm:$0xff]
    %v4674 = vld [vmem:[#allocation9 + $0x1b4] sm:$0xf]
    %v4675 = vld [vmem:[#allocation9 + $0x1b8] sm:$0xff]
    %v4676 = vld [vmem:[#allocation9 + $0x1c0] sm:$0xff]
    %v4677 = vld [vmem:[#allocation9 + $0x1c8] sm:$0xf]
    %v4678 = vld [vmem:[#allocation9 + $0x1cc] sm:$0xff]
    %v4679 = vld [vmem:[#allocation9 + $0x1d4] sm:$0xff]
    %v4680 = vld [vmem:[#allocation9 + $0x1dc] sm:$0xf]
    %v4681 = vld [vmem:[#allocation9 + $0x1e0] sm:$0xff]
    %v4682 = vld [vmem:[#allocation9 + $0x1e8] sm:$0xff]
    %v4683 = vld [vmem:[#allocation9 + $0x1f0] sm:$0xf]
    %v4684 = vld [vmem:[#allocation9 + $0x1f4] sm:$0xff]
    %v4685 = vld [vmem:[#allocation9 + $0x1fc] sm:$0xff]
    %v4686 = vld [vmem:[#allocation9 + $0x204] sm:$0xf]
    %v4687 = vld [vmem:[#allocation9 + $0x208] sm:$0xff]
    %v4688 = vld [vmem:[#allocation9 + $0x210] sm:$0xff]
    %v4689 = vld [vmem:[#allocation9 + $0x218] sm:$0xf]
    %v4690 = vld [vmem:[#allocation9 + $0x21c] sm:$0xff]
    %v4691 = vld [vmem:[#allocation9 + $0x224] sm:$0xff]
    %v4692 = vld [vmem:[#allocation9 + $0x22c] sm:$0xf]
    %v4693 = vld [vmem:[#allocation9 + $0x230] sm:$0xff]
    %v4694 = vld [vmem:[#allocation9 + $0x238] sm:$0xff]
    %v4695 = vld [vmem:[#allocation9 + $0x240] sm:$0xf]
    %v4696 = vld [vmem:[#allocation9 + $0x244] sm:$0xff]
    %v4697 = vld [vmem:[#allocation9 + $0x24c] sm:$0xff]
    %v4698 = vld [vmem:[#allocation9 + $0x254] sm:$0xf]
    %v4699 = vld [vmem:[#allocation9 + $0x258] sm:$0xff]
    %v4700 = vld [vmem:[#allocation9 + $0x260] sm:$0xff]
    %v4701 = vld [vmem:[#allocation9 + $0x268] sm:$0xf]
    %v4702 = vld [vmem:[#allocation9 + $0x26c] sm:$0xff]
    %v4703 = vld [vmem:[#allocation9 + $0x274] sm:$0xff]
    %v4704 = vld [vmem:[#allocation9 + $0x27c] sm:$0xf]
    %v4801 = vunpack.c.l.b16 %v4609
    %v4802 = vunpack.c.h.b16 %v4609
    %v4803 = vunpack.c.l.b16 %v4610
    %v4804 = vunpack.c.h.b16 %v4610
    %v4805 = vunpack.c.l.b16 %v4611
    %v4806 = vunpack.c.l.b16 %v4612
    %v4807 = vunpack.c.h.b16 %v4612
    %v4808 = vunpack.c.l.b16 %v4613
    %v4809 = vunpack.c.h.b16 %v4613
    %v4810 = vunpack.c.l.b16 %v4614
    %v4811 = vunpack.c.l.b16 %v4615
    %v4812 = vunpack.c.h.b16 %v4615
    %v4813 = vunpack.c.l.b16 %v4616
    %v4814 = vunpack.c.h.b16 %v4616
    %v4815 = vunpack.c.l.b16 %v4617
    %v4816 = vunpack.c.l.b16 %v4618
    %v4817 = vunpack.c.h.b16 %v4618
    %v4818 = vunpack.c.l.b16 %v4619
    %v4819 = vunpack.c.h.b16 %v4619
    %v4820 = vunpack.c.l.b16 %v4620
    %v4821 = vunpack.c.l.b16 %v4621
    %v4822 = vunpack.c.h.b16 %v4621
    %v4823 = vunpack.c.l.b16 %v4622
    %v4824 = vunpack.c.h.b16 %v4622
    %v4825 = vunpack.c.l.b16 %v4623
    %v4826 = vunpack.c.l.b16 %v4624
    %v4827 = vunpack.c.h.b16 %v4624
    %v4828 = vunpack.c.l.b16 %v4625
    %v4829 = vunpack.c.h.b16 %v4625
    %v4830 = vunpack.c.l.b16 %v4626
    %v4831 = vunpack.c.l.b16 %v4627
    %v4832 = vunpack.c.h.b16 %v4627
    %v4833 = vunpack.c.l.b16 %v4628
    %v4834 = vunpack.c.h.b16 %v4628
    %v4835 = vunpack.c.l.b16 %v4629
    %v4836 = vunpack.c.l.b16 %v4630
    %v4837 = vunpack.c.h.b16 %v4630
    %v4838 = vunpack.c.l.b16 %v4631
    %v4839 = vunpack.c.h.b16 %v4631
    %v4840 = vunpack.c.l.b16 %v4632
    %v4841 = vunpack.c.l.b16 %v4633
    %v4842 = vunpack.c.h.b16 %v4633
    %v4843 = vunpack.c.l.b16 %v4634
    %v4844 = vunpack.c.h.b16 %v4634
    %v4845 = vunpack.c.l.b16 %v4635
    %v4846 = vunpack.c.l.b16 %v4636
    %v4847 = vunpack.c.h.b16 %v4636
    %v4848 = vunpack.c.l.b16 %v4637
    %v4849 = vunpack.c.h.b16 %v4637
    %v4850 = vunpack.c.l.b16 %v4638
    %v4851 = vunpack.c.l.b16 %v4639
    %v4852 = vunpack.c.h.b16 %v4639
    %v4853 = vunpack.c.l.b16 %v4640
    %v4854 = vunpack.c.h.b16 %v4640
    %v4855 = vunpack.c.l.b16 %v4641
    %v4856 = vunpack.c.l.b16 %v4642
    %v4857 = vunpack.c.h.b16 %v4642
    %v4858 = vunpack.c.l.b16 %v4643
    %v4859 = vunpack.c.h.b16 %v4643
    %v4860 = vunpack.c.l.b16 %v4644
    %v4861 = vunpack.c.l.b16 %v4645
    %v4862 = vunpack.c.h.b16 %v4645
    %v4863 = vunpack.c.l.b16 %v4646
    %v4864 = vunpack.c.h.b16 %v4646
    %v4865 = vunpack.c.l.b16 %v4647
    %v4866 = vunpack.c.l.b16 %v4648
    %v4867 = vunpack.c.h.b16 %v4648
    %v4868 = vunpack.c.l.b16 %v4649
    %v4869 = vunpack.c.h.b16 %v4649
    %v4870 = vunpack.c.l.b16 %v4650
    %v4871 = vunpack.c.l.b16 %v4651
    %v4872 = vunpack.c.h.b16 %v4651
    %v4873 = vunpack.c.l.b16 %v4652
    %v4874 = vunpack.c.h.b16 %v4652
    %v4875 = vunpack.c.l.b16 %v4653
    %v4876 = vunpack.c.l.b16 %v4654
    %v4877 = vunpack.c.h.b16 %v4654
    %v4878 = vunpack.c.l.b16 %v4655
    %v4879 = vunpack.c.h.b16 %v4655
    %v4880 = vunpack.c.l.b16 %v4656
    %v4881 = vunpack.c.l.b16 %v4657
    %v4882 = vunpack.c.h.b16 %v4657
    %v4883 = vunpack.c.l.b16 %v4658
    %v4884 = vunpack.c.h.b16 %v4658
    %v4885 = vunpack.c.l.b16 %v4659
    %v4886 = vunpack.c.l.b16 %v4660
    %v4887 = vunpack.c.h.b16 %v4660
    %v4888 = vunpack.c.l.b16 %v4661
    %v4889 = vunpack.c.h.b16 %v4661
    %v4890 = vunpack.c.l.b16 %v4662
    %v4891 = vunpack.c.l.b16 %v4663
    %v4892 = vunpack.c.h.b16 %v4663
    %v4893 = vunpack.c.l.b16 %v4664
    %v4894 = vunpack.c.h.b16 %v4664
    %v4895 = vunpack.c.l.b16 %v4665
    %v4896 = vunpack.c.l.b16 %v4666
    %v4897 = vunpack.c.h.b16 %v4666
    %v4898 = vunpack.c.l.b16 %v4667
    %v4899 = vunpack.c.h.b16 %v4667
    %v4900 = vunpack.c.l.b16 %v4668
    %v4901 = vunpack.c.l.b16 %v4669
    %v4902 = vunpack.c.h.b16 %v4669
    %v4903 = vunpack.c.l.b16 %v4670
    %v4904 = vunpack.c.h.b16 %v4670
    %v4905 = vunpack.c.l.b16 %v4671
    %v4906 = vunpack.c.l.b16 %v4672
    %v4907 = vunpack.c.h.b16 %v4672
    %v4908 = vunpack.c.l.b16 %v4673
    %v4909 = vunpack.c.h.b16 %v4673
    %v4910 = vunpack.c.l.b16 %v4674
    %v4911 = vunpack.c.l.b16 %v4675
    %v4912 = vunpack.c.h.b16 %v4675
    %v4913 = vunpack.c.l.b16 %v4676
    %v4914 = vunpack.c.h.b16 %v4676
    %v4915 = vunpack.c.l.b16 %v4677
    %v4916 = vunpack.c.l.b16 %v4678
    %v4917 = vunpack.c.h.b16 %v4678
    %v4918 = vunpack.c.l.b16 %v4679
    %v4919 = vunpack.c.h.b16 %v4679
    %v4920 = vunpack.c.l.b16 %v4680
    %v4921 = vunpack.c.l.b16 %v4681
    %v4922 = vunpack.c.h.b16 %v4681
    %v4923 = vunpack.c.l.b16 %v4682
    %v4924 = vunpack.c.h.b16 %v4682
    %v4925 = vunpack.c.l.b16 %v4683
    %v4926 = vunpack.c.l.b16 %v4684
    %v4927 = vunpack.c.h.b16 %v4684
    %v4928 = vunpack.c.l.b16 %v4685
    %v4929 = vunpack.c.h.b16 %v4685
    %v4930 = vunpack.c.l.b16 %v4686
    %v4931 = vunpack.c.l.b16 %v4687
    %v4932 = vunpack.c.h.b16 %v4687
    %v4933 = vunpack.c.l.b16 %v4688
    %v4934 = vunpack.c.h.b16 %v4688
    %v4935 = vunpack.c.l.b16 %v4689
    %v4936 = vunpack.c.l.b16 %v4690
    %v4937 = vunpack.c.h.b16 %v4690
    %v4938 = vunpack.c.l.b16 %v4691
    %v4939 = vunpack.c.h.b16 %v4691
    %v4940 = vunpack.c.l.b16 %v4692
    %v4941 = vunpack.c.l.b16 %v4693
    %v4942 = vunpack.c.h.b16 %v4693
    %v4943 = vunpack.c.l.b16 %v4694
    %v4944 = vunpack.c.h.b16 %v4694
    %v4945 = vunpack.c.l.b16 %v4695
    %v4946 = vunpack.c.l.b16 %v4696
    %v4947 = vunpack.c.h.b16 %v4696
    %v4948 = vunpack.c.l.b16 %v4697
    %v4949 = vunpack.c.h.b16 %v4697
    %v4950 = vunpack.c.l.b16 %v4698
    %v4951 = vunpack.c.l.b16 %v4699
    %v4952 = vunpack.c.h.b16 %v4699
    %v4953 = vunpack.c.l.b16 %v4700
    %v4954 = vunpack.c.h.b16 %v4700
    %v4955 = vunpack.c.l.b16 %v4701
    %v4956 = vunpack.c.l.b16 %v4702
    %v4957 = vunpack.c.h.b16 %v4702
    %v4958 = vunpack.c.l.b16 %v4703
    %v4959 = vunpack.c.h.b16 %v4703
    %v4960 = vunpack.c.l.b16 %v4704
    %v4961 = vpack.c.b16 %v4806, %v4801
    %v4962 = vpack.c.b16 %v4807, %v4802
    %v4963 = vpack.c.b16 %v4808, %v4803
    %v4964 = vpack.c.b16 %v4809, %v4804
    %v4965 = vpack.c.b16 %v4810, %v4805
    %v4966 = vpack.c.b16 %v4816, %v4811
    %v4967 = vpack.c.b16 %v4817, %v4812
    %v4968 = vpack.c.b16 %v4818, %v4813
    %v4969 = vpack.c.b16 %v4819, %v4814
    %v4970 = vpack.c.b16 %v4820, %v4815
    %v4971 = vpack.c.b16 %v4826, %v4821
    %v4972 = vpack.c.b16 %v4827, %v4822
    %v4973 = vpack.c.b16 %v4828, %v4823
    %v4974 = vpack.c.b16 %v4829, %v4824
    %v4975 = vpack.c.b16 %v4830, %v4825
    %v4976 = vpack.c.b16 %v4836, %v4831
    %v4977 = vpack.c.b16 %v4837, %v4832
    %v4978 = vpack.c.b16 %v4838, %v4833
    %v4979 = vpack.c.b16 %v4839, %v4834
    %v4980 = vpack.c.b16 %v4840, %v4835
    %v4981 = vpack.c.b16 %v4846, %v4841
    %v4982 = vpack.c.b16 %v4847, %v4842
    %v4983 = vpack.c.b16 %v4848, %v4843
    %v4984 = vpack.c.b16 %v4849, %v4844
    %v4985 = vpack.c.b16 %v4850, %v4845
    %v4986 = vpack.c.b16 %v4856, %v4851
    %v4987 = vpack.c.b16 %v4857, %v4852
    %v4988 = vpack.c.b16 %v4858, %v4853
    %v4989 = vpack.c.b16 %v4859, %v4854
    %v4990 = vpack.c.b16 %v4860, %v4855
    %v4991 = vpack.c.b16 %v4866, %v4861
    %v4992 = vpack.c.b16 %v4867, %v4862
    %v4993 = vpack.c.b16 %v4868, %v4863
    %v4994 = vpack.c.b16 %v4869, %v4864
    %v4995 = vpack.c.b16 %v4870, %v4865
    %v4996 = vpack.c.b16 %v4876, %v4871
    %v4997 = vpack.c.b16 %v4877, %v4872
    %v4998 = vpack.c.b16 %v4878, %v4873
    %v4999 = vpack.c.b16 %v4879, %v4874
    %v5000 = vpack.c.b16 %v4880, %v4875
    %v5001 = vpack.c.b16 %v4886, %v4881
    %v5002 = vpack.c.b16 %v4887, %v4882
    %v5003 = vpack.c.b16 %v4888, %v4883
    %v5004 = vpack.c.b16 %v4889, %v4884
    %v5005 = vpack.c.b16 %v4890, %v4885
    %v5006 = vpack.c.b16 %v4896, %v4891
    %v5007 = vpack.c.b16 %v4897, %v4892
    %v5008 = vpack.c.b16 %v4898, %v4893
    %v5009 = vpack.c.b16 %v4899, %v4894
    %v5010 = vpack.c.b16 %v4900, %v4895
    %v5011 = vpack.c.b16 %v4906, %v4901
    %v5012 = vpack.c.b16 %v4907, %v4902
    %v5013 = vpack.c.b16 %v4908, %v4903
    %v5014 = vpack.c.b16 %v4909, %v4904
    %v5015 = vpack.c.b16 %v4910, %v4905
    %v5016 = vpack.c.b16 %v4916, %v4911
    %v5017 = vpack.c.b16 %v4917, %v4912
    %v5018 = vpack.c.b16 %v4918, %v4913
    %v5019 = vpack.c.b16 %v4919, %v4914
    %v5020 = vpack.c.b16 %v4920, %v4915
    %v5021 = vpack.c.b16 %v4926, %v4921
    %v5022 = vpack.c.b16 %v4927, %v4922
    %v5023 = vpack.c.b16 %v4928, %v4923
    %v5024 = vpack.c.b16 %v4929, %v4924
    %v5025 = vpack.c.b16 %v4930, %v4925
    %v5026 = vpack.c.b16 %v4936, %v4931
    %v5027 = vpack.c.b16 %v4937, %v4932
    %v5028 = vpack.c.b16 %v4938, %v4933
    %v5029 = vpack.c.b16 %v4939, %v4934
    %v5030 = vpack.c.b16 %v4940, %v4935
    %v5031 = vpack.c.b16 %v4946, %v4941
    %v5032 = vpack.c.b16 %v4947, %v4942
    %v5033 = vpack.c.b16 %v4948, %v4943
    %v5034 = vpack.c.b16 %v4949, %v4944
    %v5035 = vpack.c.b16 %v4950, %v4945
    %v5036 = vpack.c.b16 %v4956, %v4951
    %v5037 = vpack.c.b16 %v4957, %v4952
    %v5038 = vpack.c.b16 %v4958, %v4953
    %v5039 = vpack.c.b16 %v4959, %v4954
    %v5040 = vpack.c.b16 %v4960, %v4955
    %5121 = vmatprep.subr.bf16.mxu0 %v4997
    %5122 = vmatpush1.bf16.msra.mxu0 %v4996
    %5123 = vmatprep.subr.bf16.mxu0 %v4992
    %5124 = vmatpush1.bf16.msra.mxu0 %v4991
    %5125 = vmatprep.subr.bf16.mxu0 %v4987
    %5126 = vmatpush1.bf16.msra.mxu0 %v4986
    %5127 = vmatprep.subr.bf16.mxu0 %v4982
    %5128 = vmatpush1.bf16.msra.mxu0 %v4981
    %5129 = vmatprep.subr.bf16.mxu0 %v4977
    %5130 = vmatpush1.bf16.msra.mxu0 %v4976
    %5131 = vmatprep.subr.bf16.mxu0 %v4972
    %5132 = vmatpush1.bf16.msra.mxu0 %v4971
    %5133 = vmatprep.subr.bf16.mxu0 %v4967
    %5134 = vmatpush1.bf16.msra.mxu0 %v4966
    %5135 = vmatprep.subr.bf16.mxu0 %v4962
    %5136 = vmatpush1.bf16.msra.mxu0 %v4961
    %5137 = vmatprep.subr.bf16.mxu0 %v5037
    %5138 = vmatpush2.bf16.msra.mxu0 %v5036
    %5139 = vmatprep.subr.bf16.mxu0 %v5032
    %5140 = vmatpush2.bf16.msra.mxu0 %v5031
    %5141 = vmatprep.subr.bf16.mxu0 %v5027
    %5142 = vmatpush2.bf16.msra.mxu0 %v5026
    %5143 = vmatprep.subr.bf16.mxu0 %v5022
    %5144 = vmatpush2.bf16.msra.mxu0 %v5021
    %5145 = vmatprep.subr.bf16.mxu0 %v5017
    %5146 = vmatpush2.bf16.msra.mxu0 %v5016
    %5147 = vmatprep.subr.bf16.mxu0 %v5012
    %5148 = vmatpush2.bf16.msra.mxu0 %v5011
    %5149 = vmatprep.subr.bf16.mxu0 %v5007
    %5150 = vmatpush2.bf16.msra.mxu0 %v5006
    %5151 = vmatprep.subr.bf16.mxu0 %v5002
    %5152 = vmatpush2.bf16.msra.mxu0 %v5001
    %5153 = vmatprep.mubr.bf16.mxu0 %v4608
    %5154 = vmatmul.mubr.bf16.gmra.mxu0 %v4501
    %v5155 = vpop.f32.mrf.mxu0
    %v5156 = vadd.f32 0.0, %v5155
    %v5157 = vpop.f32.mrf.mxu0
    %v5158 = vadd.f32 0.0, %v5157
    %v5159 = vpop.f32.mrf.mxu0
    %v5160 = vpop.f32.mrf.mxu0
    %5161 = vdwg.mxu0
    %5162 = vmatprep.subr.bf16.mxu0 %v4999
    %5163 = vmatpush1.bf16.msra.mxu0 %v4998
    %5164 = vmatprep.subr.bf16.mxu0 %v4994
    %5165 = vmatpush1.bf16.msra.mxu0 %v4993
    %5166 = vmatprep.subr.bf16.mxu0 %v4989
    %5167 = vmatpush1.bf16.msra.mxu0 %v4988
    %5168 = vmatprep.subr.bf16.mxu0 %v4984
    %5169 = vmatpush1.bf16.msra.mxu0 %v4983
    %5170 = vmatprep.subr.bf16.mxu0 %v4979
    %5171 = vmatpush1.bf16.msra.mxu0 %v4978
    %5172 = vmatprep.subr.bf16.mxu0 %v4974
    %5173 = vmatpush1.bf16.msra.mxu0 %v4973
    %5174 = vmatprep.subr.bf16.mxu0 %v4969
    %5175 = vmatpush1.bf16.msra.mxu0 %v4968
    %5176 = vmatprep.subr.bf16.mxu0 %v4964
    %5177 = vmatpush1.bf16.msra.mxu0 %v4963
    %5178 = vmatprep.subr.bf16.mxu0 %v5039
    %5179 = vmatpush2.bf16.msra.mxu0 %v5038
    %5180 = vmatprep.subr.bf16.mxu0 %v5034
    %5181 = vmatpush2.bf16.msra.mxu0 %v5033
    %5182 = vmatprep.subr.bf16.mxu0 %v5029
    %5183 = vmatpush2.bf16.msra.mxu0 %v5028
    %5184 = vmatprep.subr.bf16.mxu0 %v5024
    %5185 = vmatpush2.bf16.msra.mxu0 %v5023
    %5186 = vmatprep.subr.bf16.mxu0 %v5019
    %5187 = vmatpush2.bf16.msra.mxu0 %v5018
    %5188 = vmatprep.subr.bf16.mxu0 %v5014
    %5189 = vmatpush2.bf16.msra.mxu0 %v5013
    %5190 = vmatprep.subr.bf16.mxu0 %v5009
    %5191 = vmatpush2.bf16.msra.mxu0 %v5008
    %5192 = vmatprep.subr.bf16.mxu0 %v5004
    %5193 = vmatpush2.bf16.msra.mxu0 %v5003
    %5194 = vmatprep.mubr.bf16.mxu0 %v4608
    %5195 = vmatmul.mubr.bf16.gmra.mxu0 %v4501
    %v5196 = vpop.f32.mrf.mxu0
    %v5197 = vadd.f32 0.0, %v5196
    %v5198 = vpop.f32.mrf.mxu0
    %v5199 = vadd.f32 0.0, %v5198
    %v5200 = vpop.f32.mrf.mxu0
    %v5201 = vpop.f32.mrf.mxu0
    %5202 = vdwg.mxu0
    %5203 = vmatprep.subr.bf16.mxu0 0
    %5204 = vmatpush1.bf16.msra.mxu0 %v5000
    %5205 = vmatprep.subr.bf16.mxu0 0
    %5206 = vmatpush1.bf16.msra.mxu0 %v4995
    %5207 = vmatprep.subr.bf16.mxu0 0
    %5208 = vmatpush1.bf16.msra.mxu0 %v4990
    %5209 = vmatprep.subr.bf16.mxu0 0
    %5210 = vmatpush1.bf16.msra.mxu0 %v4985
    %5211 = vmatprep.subr.bf16.mxu0 0
    %5212 = vmatpush1.bf16.msra.mxu0 %v4980
    %5213 = vmatprep.subr.bf16.mxu0 0
    %5214 = vmatpush1.bf16.msra.mxu0 %v4975
    %5215 = vmatprep.subr.bf16.mxu0 0
    %5216 = vmatpush1.bf16.msra.mxu0 %v4970
    %5217 = vmatprep.subr.bf16.mxu0 0
    %5218 = vmatpush1.bf16.msra.mxu0 %v4965
    %5219 = vmatprep.subr.bf16.mxu0 0
    %5220 = vmatpush2.bf16.msra.mxu0 %v5040
    %5221 = vmatprep.subr.bf16.mxu0 0
    %5222 = vmatpush2.bf16.msra.mxu0 %v5035
    %5223 = vmatprep.subr.bf16.mxu0 0
    %5224 = vmatpush2.bf16.msra.mxu0 %v5030
    %5225 = vmatprep.subr.bf16.mxu0 0
    %5226 = vmatpush2.bf16.msra.mxu0 %v5025
    %5227 = vmatprep.subr.bf16.mxu0 0
    %5228 = vmatpush2.bf16.msra.mxu0 %v5020
    %5229 = vmatprep.subr.bf16.mxu0 0
    %5230 = vmatpush2.bf16.msra.mxu0 %v5015
    %5231 = vmatprep.subr.bf16.mxu0 0
    %5232 = vmatpush2.bf16.msra.mxu0 %v5010
    %5233 = vmatprep.subr.bf16.mxu0 0
    %5234 = vmatpush2.bf16.msra.mxu0 %v5005
    %5235 = vmatprep.mubr.bf16.mxu0 %v4608
    %5236 = vmatmul.mubr.bf16.gmra.mxu0 %v4501
    %v5237 = vpop.f32.mrf.mxu0
    %v5238 = vadd.f32 0.0, %v5237
    %v5239 = vpop.f32.mrf.mxu0
    %v5240 = vpop.f32.mrf.mxu0
    %v5241 = vpop.f32.mrf.mxu0
    %5242 = vdwg.mxu0
    %v5243 = vadd.f32 %v4496, %v5156
    %v5244 = vadd.f32 %v4497, %v5158
    %v5245 = vadd.f32 %v4498, %v5197
    %v5246 = vadd.f32 %v4499, %v5199
    %v5247 = vadd.f32 %v4500, %v5238
    %v5248 = vxor.u32 %v5243, 2147483648
    %v5249 = vmul.f32 %v5248, 1.442695
    %v5250 = vpow.pop %v5249
    %v5251 = vadd.f32 %v5250, 1.0
    %v5252 = vrcp.pop %v5251
    %v5253 = vmul.f32 1.0, %v5252
    %v5254 = vxor.u32 %v5244, 2147483648
    %v5255 = vmul.f32 %v5254, 1.442695
    %v5256 = vpow.pop %v5255
    %v5257 = vadd.f32 %v5256, 1.0
    %v5258 = vrcp.pop %v5257
    %v5259 = vmul.f32 1.0, %v5258
    %v5260 = vxor.u32 %v5245, 2147483648
    %v5261 = vmul.f32 %v5260, 1.442695
    %v5262 = vpow.pop %v5261
    %v5263 = vadd.f32 %v5262, 1.0
    %v5264 = vrcp.pop %v5263
    %v5265 = vmul.f32 1.0, %v5264
    %v5266 = vtanh.pop %v5246
    %v5267 = vxor.u32 %v5247, 2147483648
    %v5268 = vmul.f32 %v5267, 1.442695
    %v5269 = vpow.pop %v5268
    %v5270 = vadd.f32 %v5269, 1.0
    %v5271 = vrcp.pop %v5270
    %v5272 = vmul.f32 1.0, %v5271
    %v5273 = vmul.f32 %v5253, %v4487
    %v5274 = vmul.f32 %v5259, %v5266
    %v5275 = vadd.f32 %v5273, %v5274
    %v5276 = vmul.f32 %v5265, %v4607
    %v5277 = vadd.f32 %v5275, %v5276
    %v5278 = vtanh.pop %v5277
    %v5279 = vmul.f32 %v5272, %v5278
    %s5280 = scalar_lea.vmem [#allocation3], 80
    %5281 = vst [vmem:[%s5280] sm:$0xff] %v5279
    %s5282 = smul.u32 6, 6
    %s5283 = smul.addr %s5282, 8
    %s5284 = scalar_lea.vmem [#allocation2], %s5283
    %v5285 = vld [vmem:[%s5284] sm:$0xff]
    %v5286 = vld [vmem:[%s5284 + $0x8] sm:$0xff]
    %v5287 = vld [vmem:[%s5284 + $0x10] sm:$0xff]
    %v5288 = vld [vmem:[%s5284 + $0x18] sm:$0xff]
    %v5289 = vld [vmem:[%s5284 + $0x20] sm:$0xff]
    %v5290 = vld [vmem:[%s5284 + $0x28] sm:$0xff]
    %v5291 = vpack.c.bf16 %v5279, %v5279
    %v5292 = vld [vmem:[#allocation7] sm:$0xf]
    %v5293 = vld [vmem:[#allocation7 + $0x4] sm:$0xf]
    %v5294 = vld [vmem:[#allocation7 + $0x8] sm:$0xf]
    %v5295 = vld [vmem:[#allocation7 + $0xc] sm:$0xf]
    %v5296 = vld [vmem:[#allocation7 + $0x10] sm:$0xf]
    %v5297 = vld [vmem:[#allocation7 + $0x14] sm:$0xf]
    %v5298 = vld [vmem:[#allocation7 + $0x18] sm:$0xf]
    %v5299 = vld [vmem:[#allocation7 + $0x1c] sm:$0xf]
    %v5300 = vld [vmem:[#allocation7 + $0x20] sm:$0xf]
    %v5301 = vld [vmem:[#allocation7 + $0x24] sm:$0xf]
    %v5302 = vld [vmem:[#allocation7 + $0x28] sm:$0xf]
    %v5303 = vld [vmem:[#allocation7 + $0x2c] sm:$0xf]
    %v5304 = vld [vmem:[#allocation7 + $0x30] sm:$0xf]
    %v5305 = vld [vmem:[#allocation7 + $0x34] sm:$0xf]
    %v5306 = vld [vmem:[#allocation7 + $0x38] sm:$0xf]
    %v5307 = vld [vmem:[#allocation7 + $0x3c] sm:$0xf]
    %v5324 = vunpack.c.l.b16 %v5292
    %v5325 = vunpack.c.l.b16 %v5293
    %v5326 = vunpack.c.l.b16 %v5294
    %v5327 = vunpack.c.l.b16 %v5295
    %v5328 = vunpack.c.l.b16 %v5296
    %v5329 = vunpack.c.l.b16 %v5297
    %v5330 = vunpack.c.l.b16 %v5298
    %v5331 = vunpack.c.l.b16 %v5299
    %v5332 = vunpack.c.l.b16 %v5300
    %v5333 = vunpack.c.l.b16 %v5301
    %v5334 = vunpack.c.l.b16 %v5302
    %v5335 = vunpack.c.l.b16 %v5303
    %v5336 = vunpack.c.l.b16 %v5304
    %v5337 = vunpack.c.l.b16 %v5305
    %v5338 = vunpack.c.l.b16 %v5306
    %v5339 = vunpack.c.l.b16 %v5307
    %v5340 = vpack.c.b16 %v5325, %v5324
    %v5341 = vpack.c.b16 %v5327, %v5326
    %v5342 = vpack.c.b16 %v5329, %v5328
    %v5343 = vpack.c.b16 %v5331, %v5330
    %v5344 = vpack.c.b16 %v5333, %v5332
    %v5345 = vpack.c.b16 %v5335, %v5334
    %v5346 = vpack.c.b16 %v5337, %v5336
    %v5347 = vpack.c.b16 %v5339, %v5338
    %5356 = vmatprep.subr.bf16.mxu0 0
    %5357 = vmatpush1.bf16.msra.mxu0 %v5347
    %5358 = vmatprep.subr.bf16.mxu0 0
    %5359 = vmatpush1.bf16.msra.mxu0 %v5346
    %5360 = vmatprep.subr.bf16.mxu0 0
    %5361 = vmatpush1.bf16.msra.mxu0 %v5345
    %5362 = vmatprep.subr.bf16.mxu0 0
    %5363 = vmatpush1.bf16.msra.mxu0 %v5344
    %5364 = vmatprep.subr.bf16.mxu0 0
    %5365 = vmatpush1.bf16.msra.mxu0 %v5343
    %5366 = vmatprep.subr.bf16.mxu0 0
    %5367 = vmatpush1.bf16.msra.mxu0 %v5342
    %5368 = vmatprep.subr.bf16.mxu0 0
    %5369 = vmatpush1.bf16.msra.mxu0 %v5341
    %5370 = vmatprep.subr.bf16.mxu0 0
    %5371 = vmatpush1.bf16.msra.mxu0 %v5340
    %5372 = vmatprep.subr.bf16.mxu0 0
    %5373 = vmatpush2.bf16.msra.mxu0 0
    %5374 = vmatprep.subr.bf16.mxu0 0
    %5375 = vmatpush2.bf16.msra.mxu0 0
    %5376 = vmatprep.subr.bf16.mxu0 0
    %5377 = vmatpush2.bf16.msra.mxu0 0
    %5378 = vmatprep.subr.bf16.mxu0 0
    %5379 = vmatpush2.bf16.msra.mxu0 0
    %5380 = vmatprep.subr.bf16.mxu0 0
    %5381 = vmatpush2.bf16.msra.mxu0 0
    %5382 = vmatprep.subr.bf16.mxu0 0
    %5383 = vmatpush2.bf16.msra.mxu0 0
    %5384 = vmatprep.subr.bf16.mxu0 0
    %5385 = vmatpush2.bf16.msra.mxu0 0
    %5386 = vmatprep.subr.bf16.mxu0 0
    %5387 = vmatpush2.bf16.msra.mxu0 0
    %5388 = vmatprep.mubr.bf16.mxu0 0
    %5389 = vmatmul.mubr.bf16.gmra.mxu0 %v5291
    %v5390 = vpop.f32.mrf.mxu0
    %v5391 = vadd.f32 0.0, %v5390
    %v5392 = vpop.f32.mrf.mxu0
    %v5393 = vpop.f32.mrf.mxu0
    %v5394 = vpop.f32.mrf.mxu0
    %5395 = vdwg.mxu0
    %v5396 = vadd.f32 %v5285, %v5391
    %v5397 = vtanh.pop %v5396
    %v5398 = vpack.c.bf16 %v5397, %v5397
    %v5399 = vld [vmem:[#allocation9] sm:$0xff]
    %v5400 = vld [vmem:[#allocation9 + $0x8] sm:$0xff]
    %v5401 = vld [vmem:[#allocation9 + $0x10] sm:$0xf]
    %v5402 = vld [vmem:[#allocation9 + $0x14] sm:$0xff]
    %v5403 = vld [vmem:[#allocation9 + $0x1c] sm:$0xff]
    %v5404 = vld [vmem:[#allocation9 + $0x24] sm:$0xf]
    %v5405 = vld [vmem:[#allocation9 + $0x28] sm:$0xff]
    %v5406 = vld [vmem:[#allocation9 + $0x30] sm:$0xff]
    %v5407 = vld [vmem:[#allocation9 + $0x38] sm:$0xf]
    %v5408 = vld [vmem:[#allocation9 + $0x3c] sm:$0xff]
    %v5409 = vld [vmem:[#allocation9 + $0x44] sm:$0xff]
    %v5410 = vld [vmem:[#allocation9 + $0x4c] sm:$0xf]
    %v5411 = vld [vmem:[#allocation9 + $0x50] sm:$0xff]
    %v5412 = vld [vmem:[#allocation9 + $0x58] sm:$0xff]
    %v5413 = vld [vmem:[#allocation9 + $0x60] sm:$0xf]
    %v5414 = vld [vmem:[#allocation9 + $0x64] sm:$0xff]
    %v5415 = vld [vmem:[#allocation9 + $0x6c] sm:$0xff]
    %v5416 = vld [vmem:[#allocation9 + $0x74] sm:$0xf]
    %v5417 = vld [vmem:[#allocation9 + $0x78] sm:$0xff]
    %v5418 = vld [vmem:[#allocation9 + $0x80] sm:$0xff]
    %v5419 = vld [vmem:[#allocation9 + $0x88] sm:$0xf]
    %v5420 = vld [vmem:[#allocation9 + $0x8c] sm:$0xff]
    %v5421 = vld [vmem:[#allocation9 + $0x94] sm:$0xff]
    %v5422 = vld [vmem:[#allocation9 + $0x9c] sm:$0xf]
    %v5423 = vld [vmem:[#allocation9 + $0xa0] sm:$0xff]
    %v5424 = vld [vmem:[#allocation9 + $0xa8] sm:$0xff]
    %v5425 = vld [vmem:[#allocation9 + $0xb0] sm:$0xf]
    %v5426 = vld [vmem:[#allocation9 + $0xb4] sm:$0xff]
    %v5427 = vld [vmem:[#allocation9 + $0xbc] sm:$0xff]
    %v5428 = vld [vmem:[#allocation9 + $0xc4] sm:$0xf]
    %v5429 = vld [vmem:[#allocation9 + $0xc8] sm:$0xff]
    %v5430 = vld [vmem:[#allocation9 + $0xd0] sm:$0xff]
    %v5431 = vld [vmem:[#allocation9 + $0xd8] sm:$0xf]
    %v5432 = vld [vmem:[#allocation9 + $0xdc] sm:$0xff]
    %v5433 = vld [vmem:[#allocation9 + $0xe4] sm:$0xff]
    %v5434 = vld [vmem:[#allocation9 + $0xec] sm:$0xf]
    %v5435 = vld [vmem:[#allocation9 + $0xf0] sm:$0xff]
    %v5436 = vld [vmem:[#allocation9 + $0xf8] sm:$0xff]
    %v5437 = vld [vmem:[#allocation9 + $0x100] sm:$0xf]
    %v5438 = vld [vmem:[#allocation9 + $0x104] sm:$0xff]
    %v5439 = vld [vmem:[#allocation9 + $0x10c] sm:$0xff]
    %v5440 = vld [vmem:[#allocation9 + $0x114] sm:$0xf]
    %v5441 = vld [vmem:[#allocation9 + $0x118] sm:$0xff]
    %v5442 = vld [vmem:[#allocation9 + $0x120] sm:$0xff]
    %v5443 = vld [vmem:[#allocation9 + $0x128] sm:$0xf]
    %v5444 = vld [vmem:[#allocation9 + $0x12c] sm:$0xff]
    %v5445 = vld [vmem:[#allocation9 + $0x134] sm:$0xff]
    %v5446 = vld [vmem:[#allocation9 + $0x13c] sm:$0xf]
    %v5447 = vld [vmem:[#allocation9 + $0x140] sm:$0xff]
    %v5448 = vld [vmem:[#allocation9 + $0x148] sm:$0xff]
    %v5449 = vld [vmem:[#allocation9 + $0x150] sm:$0xf]
    %v5450 = vld [vmem:[#allocation9 + $0x154] sm:$0xff]
    %v5451 = vld [vmem:[#allocation9 + $0x15c] sm:$0xff]
    %v5452 = vld [vmem:[#allocation9 + $0x164] sm:$0xf]
    %v5453 = vld [vmem:[#allocation9 + $0x168] sm:$0xff]
    %v5454 = vld [vmem:[#allocation9 + $0x170] sm:$0xff]
    %v5455 = vld [vmem:[#allocation9 + $0x178] sm:$0xf]
    %v5456 = vld [vmem:[#allocation9 + $0x17c] sm:$0xff]
    %v5457 = vld [vmem:[#allocation9 + $0x184] sm:$0xff]
    %v5458 = vld [vmem:[#allocation9 + $0x18c] sm:$0xf]
    %v5459 = vld [vmem:[#allocation9 + $0x190] sm:$0xff]
    %v5460 = vld [vmem:[#allocation9 + $0x198] sm:$0xff]
    %v5461 = vld [vmem:[#allocation9 + $0x1a0] sm:$0xf]
    %v5462 = vld [vmem:[#allocation9 + $0x1a4] sm:$0xff]
    %v5463 = vld [vmem:[#allocation9 + $0x1ac] sm:$0xff]
    %v5464 = vld [vmem:[#allocation9 + $0x1b4] sm:$0xf]
    %v5465 = vld [vmem:[#allocation9 + $0x1b8] sm:$0xff]
    %v5466 = vld [vmem:[#allocation9 + $0x1c0] sm:$0xff]
    %v5467 = vld [vmem:[#allocation9 + $0x1c8] sm:$0xf]
    %v5468 = vld [vmem:[#allocation9 + $0x1cc] sm:$0xff]
    %v5469 = vld [vmem:[#allocation9 + $0x1d4] sm:$0xff]
    %v5470 = vld [vmem:[#allocation9 + $0x1dc] sm:$0xf]
    %v5471 = vld [vmem:[#allocation9 + $0x1e0] sm:$0xff]
    %v5472 = vld [vmem:[#allocation9 + $0x1e8] sm:$0xff]
    %v5473 = vld [vmem:[#allocation9 + $0x1f0] sm:$0xf]
    %v5474 = vld [vmem:[#allocation9 + $0x1f4] sm:$0xff]
    %v5475 = vld [vmem:[#allocation9 + $0x1fc] sm:$0xff]
    %v5476 = vld [vmem:[#allocation9 + $0x204] sm:$0xf]
    %v5477 = vld [vmem:[#allocation9 + $0x208] sm:$0xff]
    %v5478 = vld [vmem:[#allocation9 + $0x210] sm:$0xff]
    %v5479 = vld [vmem:[#allocation9 + $0x218] sm:$0xf]
    %v5480 = vld [vmem:[#allocation9 + $0x21c] sm:$0xff]
    %v5481 = vld [vmem:[#allocation9 + $0x224] sm:$0xff]
    %v5482 = vld [vmem:[#allocation9 + $0x22c] sm:$0xf]
    %v5483 = vld [vmem:[#allocation9 + $0x230] sm:$0xff]
    %v5484 = vld [vmem:[#allocation9 + $0x238] sm:$0xff]
    %v5485 = vld [vmem:[#allocation9 + $0x240] sm:$0xf]
    %v5486 = vld [vmem:[#allocation9 + $0x244] sm:$0xff]
    %v5487 = vld [vmem:[#allocation9 + $0x24c] sm:$0xff]
    %v5488 = vld [vmem:[#allocation9 + $0x254] sm:$0xf]
    %v5489 = vld [vmem:[#allocation9 + $0x258] sm:$0xff]
    %v5490 = vld [vmem:[#allocation9 + $0x260] sm:$0xff]
    %v5491 = vld [vmem:[#allocation9 + $0x268] sm:$0xf]
    %v5492 = vld [vmem:[#allocation9 + $0x26c] sm:$0xff]
    %v5493 = vld [vmem:[#allocation9 + $0x274] sm:$0xff]
    %v5494 = vld [vmem:[#allocation9 + $0x27c] sm:$0xf]
    %v5591 = vunpack.c.l.b16 %v5399
    %v5592 = vunpack.c.h.b16 %v5399
    %v5593 = vunpack.c.l.b16 %v5400
    %v5594 = vunpack.c.h.b16 %v5400
    %v5595 = vunpack.c.l.b16 %v5401
    %v5596 = vunpack.c.l.b16 %v5402
    %v5597 = vunpack.c.h.b16 %v5402
    %v5598 = vunpack.c.l.b16 %v5403
    %v5599 = vunpack.c.h.b16 %v5403
    %v5600 = vunpack.c.l.b16 %v5404
    %v5601 = vunpack.c.l.b16 %v5405
    %v5602 = vunpack.c.h.b16 %v5405
    %v5603 = vunpack.c.l.b16 %v5406
    %v5604 = vunpack.c.h.b16 %v5406
    %v5605 = vunpack.c.l.b16 %v5407
    %v5606 = vunpack.c.l.b16 %v5408
    %v5607 = vunpack.c.h.b16 %v5408
    %v5608 = vunpack.c.l.b16 %v5409
    %v5609 = vunpack.c.h.b16 %v5409
    %v5610 = vunpack.c.l.b16 %v5410
    %v5611 = vunpack.c.l.b16 %v5411
    %v5612 = vunpack.c.h.b16 %v5411
    %v5613 = vunpack.c.l.b16 %v5412
    %v5614 = vunpack.c.h.b16 %v5412
    %v5615 = vunpack.c.l.b16 %v5413
    %v5616 = vunpack.c.l.b16 %v5414
    %v5617 = vunpack.c.h.b16 %v5414
    %v5618 = vunpack.c.l.b16 %v5415
    %v5619 = vunpack.c.h.b16 %v5415
    %v5620 = vunpack.c.l.b16 %v5416
    %v5621 = vunpack.c.l.b16 %v5417
    %v5622 = vunpack.c.h.b16 %v5417
    %v5623 = vunpack.c.l.b16 %v5418
    %v5624 = vunpack.c.h.b16 %v5418
    %v5625 = vunpack.c.l.b16 %v5419
    %v5626 = vunpack.c.l.b16 %v5420
    %v5627 = vunpack.c.h.b16 %v5420
    %v5628 = vunpack.c.l.b16 %v5421
    %v5629 = vunpack.c.h.b16 %v5421
    %v5630 = vunpack.c.l.b16 %v5422
    %v5631 = vunpack.c.l.b16 %v5423
    %v5632 = vunpack.c.h.b16 %v5423
    %v5633 = vunpack.c.l.b16 %v5424
    %v5634 = vunpack.c.h.b16 %v5424
    %v5635 = vunpack.c.l.b16 %v5425
    %v5636 = vunpack.c.l.b16 %v5426
    %v5637 = vunpack.c.h.b16 %v5426
    %v5638 = vunpack.c.l.b16 %v5427
    %v5639 = vunpack.c.h.b16 %v5427
    %v5640 = vunpack.c.l.b16 %v5428
    %v5641 = vunpack.c.l.b16 %v5429
    %v5642 = vunpack.c.h.b16 %v5429
    %v5643 = vunpack.c.l.b16 %v5430
    %v5644 = vunpack.c.h.b16 %v5430
    %v5645 = vunpack.c.l.b16 %v5431
    %v5646 = vunpack.c.l.b16 %v5432
    %v5647 = vunpack.c.h.b16 %v5432
    %v5648 = vunpack.c.l.b16 %v5433
    %v5649 = vunpack.c.h.b16 %v5433
    %v5650 = vunpack.c.l.b16 %v5434
    %v5651 = vunpack.c.l.b16 %v5435
    %v5652 = vunpack.c.h.b16 %v5435
    %v5653 = vunpack.c.l.b16 %v5436
    %v5654 = vunpack.c.h.b16 %v5436
    %v5655 = vunpack.c.l.b16 %v5437
    %v5656 = vunpack.c.l.b16 %v5438
    %v5657 = vunpack.c.h.b16 %v5438
    %v5658 = vunpack.c.l.b16 %v5439
    %v5659 = vunpack.c.h.b16 %v5439
    %v5660 = vunpack.c.l.b16 %v5440
    %v5661 = vunpack.c.l.b16 %v5441
    %v5662 = vunpack.c.h.b16 %v5441
    %v5663 = vunpack.c.l.b16 %v5442
    %v5664 = vunpack.c.h.b16 %v5442
    %v5665 = vunpack.c.l.b16 %v5443
    %v5666 = vunpack.c.l.b16 %v5444
    %v5667 = vunpack.c.h.b16 %v5444
    %v5668 = vunpack.c.l.b16 %v5445
    %v5669 = vunpack.c.h.b16 %v5445
    %v5670 = vunpack.c.l.b16 %v5446
    %v5671 = vunpack.c.l.b16 %v5447
    %v5672 = vunpack.c.h.b16 %v5447
    %v5673 = vunpack.c.l.b16 %v5448
    %v5674 = vunpack.c.h.b16 %v5448
    %v5675 = vunpack.c.l.b16 %v5449
    %v5676 = vunpack.c.l.b16 %v5450
    %v5677 = vunpack.c.h.b16 %v5450
    %v5678 = vunpack.c.l.b16 %v5451
    %v5679 = vunpack.c.h.b16 %v5451
    %v5680 = vunpack.c.l.b16 %v5452
    %v5681 = vunpack.c.l.b16 %v5453
    %v5682 = vunpack.c.h.b16 %v5453
    %v5683 = vunpack.c.l.b16 %v5454
    %v5684 = vunpack.c.h.b16 %v5454
    %v5685 = vunpack.c.l.b16 %v5455
    %v5686 = vunpack.c.l.b16 %v5456
    %v5687 = vunpack.c.h.b16 %v5456
    %v5688 = vunpack.c.l.b16 %v5457
    %v5689 = vunpack.c.h.b16 %v5457
    %v5690 = vunpack.c.l.b16 %v5458
    %v5691 = vunpack.c.l.b16 %v5459
    %v5692 = vunpack.c.h.b16 %v5459
    %v5693 = vunpack.c.l.b16 %v5460
    %v5694 = vunpack.c.h.b16 %v5460
    %v5695 = vunpack.c.l.b16 %v5461
    %v5696 = vunpack.c.l.b16 %v5462
    %v5697 = vunpack.c.h.b16 %v5462
    %v5698 = vunpack.c.l.b16 %v5463
    %v5699 = vunpack.c.h.b16 %v5463
    %v5700 = vunpack.c.l.b16 %v5464
    %v5701 = vunpack.c.l.b16 %v5465
    %v5702 = vunpack.c.h.b16 %v5465
    %v5703 = vunpack.c.l.b16 %v5466
    %v5704 = vunpack.c.h.b16 %v5466
    %v5705 = vunpack.c.l.b16 %v5467
    %v5706 = vunpack.c.l.b16 %v5468
    %v5707 = vunpack.c.h.b16 %v5468
    %v5708 = vunpack.c.l.b16 %v5469
    %v5709 = vunpack.c.h.b16 %v5469
    %v5710 = vunpack.c.l.b16 %v5470
    %v5711 = vunpack.c.l.b16 %v5471
    %v5712 = vunpack.c.h.b16 %v5471
    %v5713 = vunpack.c.l.b16 %v5472
    %v5714 = vunpack.c.h.b16 %v5472
    %v5715 = vunpack.c.l.b16 %v5473
    %v5716 = vunpack.c.l.b16 %v5474
    %v5717 = vunpack.c.h.b16 %v5474
    %v5718 = vunpack.c.l.b16 %v5475
    %v5719 = vunpack.c.h.b16 %v5475
    %v5720 = vunpack.c.l.b16 %v5476
    %v5721 = vunpack.c.l.b16 %v5477
    %v5722 = vunpack.c.h.b16 %v5477
    %v5723 = vunpack.c.l.b16 %v5478
    %v5724 = vunpack.c.h.b16 %v5478
    %v5725 = vunpack.c.l.b16 %v5479
    %v5726 = vunpack.c.l.b16 %v5480
    %v5727 = vunpack.c.h.b16 %v5480
    %v5728 = vunpack.c.l.b16 %v5481
    %v5729 = vunpack.c.h.b16 %v5481
    %v5730 = vunpack.c.l.b16 %v5482
    %v5731 = vunpack.c.l.b16 %v5483
    %v5732 = vunpack.c.h.b16 %v5483
    %v5733 = vunpack.c.l.b16 %v5484
    %v5734 = vunpack.c.h.b16 %v5484
    %v5735 = vunpack.c.l.b16 %v5485
    %v5736 = vunpack.c.l.b16 %v5486
    %v5737 = vunpack.c.h.b16 %v5486
    %v5738 = vunpack.c.l.b16 %v5487
    %v5739 = vunpack.c.h.b16 %v5487
    %v5740 = vunpack.c.l.b16 %v5488
    %v5741 = vunpack.c.l.b16 %v5489
    %v5742 = vunpack.c.h.b16 %v5489
    %v5743 = vunpack.c.l.b16 %v5490
    %v5744 = vunpack.c.h.b16 %v5490
    %v5745 = vunpack.c.l.b16 %v5491
    %v5746 = vunpack.c.l.b16 %v5492
    %v5747 = vunpack.c.h.b16 %v5492
    %v5748 = vunpack.c.l.b16 %v5493
    %v5749 = vunpack.c.h.b16 %v5493
    %v5750 = vunpack.c.l.b16 %v5494
    %v5751 = vpack.c.b16 %v5596, %v5591
    %v5752 = vpack.c.b16 %v5597, %v5592
    %v5753 = vpack.c.b16 %v5598, %v5593
    %v5754 = vpack.c.b16 %v5599, %v5594
    %v5755 = vpack.c.b16 %v5600, %v5595
    %v5756 = vpack.c.b16 %v5606, %v5601
    %v5757 = vpack.c.b16 %v5607, %v5602
    %v5758 = vpack.c.b16 %v5608, %v5603
    %v5759 = vpack.c.b16 %v5609, %v5604
    %v5760 = vpack.c.b16 %v5610, %v5605
    %v5761 = vpack.c.b16 %v5616, %v5611
    %v5762 = vpack.c.b16 %v5617, %v5612
    %v5763 = vpack.c.b16 %v5618, %v5613
    %v5764 = vpack.c.b16 %v5619, %v5614
    %v5765 = vpack.c.b16 %v5620, %v5615
    %v5766 = vpack.c.b16 %v5626, %v5621
    %v5767 = vpack.c.b16 %v5627, %v5622
    %v5768 = vpack.c.b16 %v5628, %v5623
    %v5769 = vpack.c.b16 %v5629, %v5624
    %v5770 = vpack.c.b16 %v5630, %v5625
    %v5771 = vpack.c.b16 %v5636, %v5631
    %v5772 = vpack.c.b16 %v5637, %v5632
    %v5773 = vpack.c.b16 %v5638, %v5633
    %v5774 = vpack.c.b16 %v5639, %v5634
    %v5775 = vpack.c.b16 %v5640, %v5635
    %v5776 = vpack.c.b16 %v5646, %v5641
    %v5777 = vpack.c.b16 %v5647, %v5642
    %v5778 = vpack.c.b16 %v5648, %v5643
    %v5779 = vpack.c.b16 %v5649, %v5644
    %v5780 = vpack.c.b16 %v5650, %v5645
    %v5781 = vpack.c.b16 %v5656, %v5651
    %v5782 = vpack.c.b16 %v5657, %v5652
    %v5783 = vpack.c.b16 %v5658, %v5653
    %v5784 = vpack.c.b16 %v5659, %v5654
    %v5785 = vpack.c.b16 %v5660, %v5655
    %v5786 = vpack.c.b16 %v5666, %v5661
    %v5787 = vpack.c.b16 %v5667, %v5662
    %v5788 = vpack.c.b16 %v5668, %v5663
    %v5789 = vpack.c.b16 %v5669, %v5664
    %v5790 = vpack.c.b16 %v5670, %v5665
    %v5791 = vpack.c.b16 %v5676, %v5671
    %v5792 = vpack.c.b16 %v5677, %v5672
    %v5793 = vpack.c.b16 %v5678, %v5673
    %v5794 = vpack.c.b16 %v5679, %v5674
    %v5795 = vpack.c.b16 %v5680, %v5675
    %v5796 = vpack.c.b16 %v5686, %v5681
    %v5797 = vpack.c.b16 %v5687, %v5682
    %v5798 = vpack.c.b16 %v5688, %v5683
    %v5799 = vpack.c.b16 %v5689, %v5684
    %v5800 = vpack.c.b16 %v5690, %v5685
    %v5801 = vpack.c.b16 %v5696, %v5691
    %v5802 = vpack.c.b16 %v5697, %v5692
    %v5803 = vpack.c.b16 %v5698, %v5693
    %v5804 = vpack.c.b16 %v5699, %v5694
    %v5805 = vpack.c.b16 %v5700, %v5695
    %v5806 = vpack.c.b16 %v5706, %v5701
    %v5807 = vpack.c.b16 %v5707, %v5702
    %v5808 = vpack.c.b16 %v5708, %v5703
    %v5809 = vpack.c.b16 %v5709, %v5704
    %v5810 = vpack.c.b16 %v5710, %v5705
    %v5811 = vpack.c.b16 %v5716, %v5711
    %v5812 = vpack.c.b16 %v5717, %v5712
    %v5813 = vpack.c.b16 %v5718, %v5713
    %v5814 = vpack.c.b16 %v5719, %v5714
    %v5815 = vpack.c.b16 %v5720, %v5715
    %v5816 = vpack.c.b16 %v5726, %v5721
    %v5817 = vpack.c.b16 %v5727, %v5722
    %v5818 = vpack.c.b16 %v5728, %v5723
    %v5819 = vpack.c.b16 %v5729, %v5724
    %v5820 = vpack.c.b16 %v5730, %v5725
    %v5821 = vpack.c.b16 %v5736, %v5731
    %v5822 = vpack.c.b16 %v5737, %v5732
    %v5823 = vpack.c.b16 %v5738, %v5733
    %v5824 = vpack.c.b16 %v5739, %v5734
    %v5825 = vpack.c.b16 %v5740, %v5735
    %v5826 = vpack.c.b16 %v5746, %v5741
    %v5827 = vpack.c.b16 %v5747, %v5742
    %v5828 = vpack.c.b16 %v5748, %v5743
    %v5829 = vpack.c.b16 %v5749, %v5744
    %v5830 = vpack.c.b16 %v5750, %v5745
    %5911 = vmatprep.subr.bf16.mxu0 %v5787
    %5912 = vmatpush1.bf16.msra.mxu0 %v5786
    %5913 = vmatprep.subr.bf16.mxu0 %v5782
    %5914 = vmatpush1.bf16.msra.mxu0 %v5781
    %5915 = vmatprep.subr.bf16.mxu0 %v5777
    %5916 = vmatpush1.bf16.msra.mxu0 %v5776
    %5917 = vmatprep.subr.bf16.mxu0 %v5772
    %5918 = vmatpush1.bf16.msra.mxu0 %v5771
    %5919 = vmatprep.subr.bf16.mxu0 %v5767
    %5920 = vmatpush1.bf16.msra.mxu0 %v5766
    %5921 = vmatprep.subr.bf16.mxu0 %v5762
    %5922 = vmatpush1.bf16.msra.mxu0 %v5761
    %5923 = vmatprep.subr.bf16.mxu0 %v5757
    %5924 = vmatpush1.bf16.msra.mxu0 %v5756
    %5925 = vmatprep.subr.bf16.mxu0 %v5752
    %5926 = vmatpush1.bf16.msra.mxu0 %v5751
    %5927 = vmatprep.subr.bf16.mxu0 %v5827
    %5928 = vmatpush2.bf16.msra.mxu0 %v5826
    %5929 = vmatprep.subr.bf16.mxu0 %v5822
    %5930 = vmatpush2.bf16.msra.mxu0 %v5821
    %5931 = vmatprep.subr.bf16.mxu0 %v5817
    %5932 = vmatpush2.bf16.msra.mxu0 %v5816
    %5933 = vmatprep.subr.bf16.mxu0 %v5812
    %5934 = vmatpush2.bf16.msra.mxu0 %v5811
    %5935 = vmatprep.subr.bf16.mxu0 %v5807
    %5936 = vmatpush2.bf16.msra.mxu0 %v5806
    %5937 = vmatprep.subr.bf16.mxu0 %v5802
    %5938 = vmatpush2.bf16.msra.mxu0 %v5801
    %5939 = vmatprep.subr.bf16.mxu0 %v5797
    %5940 = vmatpush2.bf16.msra.mxu0 %v5796
    %5941 = vmatprep.subr.bf16.mxu0 %v5792
    %5942 = vmatpush2.bf16.msra.mxu0 %v5791
    %5943 = vmatprep.mubr.bf16.mxu0 %v5398
    %5944 = vmatmul.mubr.bf16.gmra.mxu0 %v5291
    %v5945 = vpop.f32.mrf.mxu0
    %v5946 = vadd.f32 0.0, %v5945
    %v5947 = vpop.f32.mrf.mxu0
    %v5948 = vadd.f32 0.0, %v5947
    %v5949 = vpop.f32.mrf.mxu0
    %v5950 = vpop.f32.mrf.mxu0
    %5951 = vdwg.mxu0
    %5952 = vmatprep.subr.bf16.mxu0 %v5789
    %5953 = vmatpush1.bf16.msra.mxu0 %v5788
    %5954 = vmatprep.subr.bf16.mxu0 %v5784
    %5955 = vmatpush1.bf16.msra.mxu0 %v5783
    %5956 = vmatprep.subr.bf16.mxu0 %v5779
    %5957 = vmatpush1.bf16.msra.mxu0 %v5778
    %5958 = vmatprep.subr.bf16.mxu0 %v5774
    %5959 = vmatpush1.bf16.msra.mxu0 %v5773
    %5960 = vmatprep.subr.bf16.mxu0 %v5769
    %5961 = vmatpush1.bf16.msra.mxu0 %v5768
    %5962 = vmatprep.subr.bf16.mxu0 %v5764
    %5963 = vmatpush1.bf16.msra.mxu0 %v5763
    %5964 = vmatprep.subr.bf16.mxu0 %v5759
    %5965 = vmatpush1.bf16.msra.mxu0 %v5758
    %5966 = vmatprep.subr.bf16.mxu0 %v5754
    %5967 = vmatpush1.bf16.msra.mxu0 %v5753
    %5968 = vmatprep.subr.bf16.mxu0 %v5829
    %5969 = vmatpush2.bf16.msra.mxu0 %v5828
    %5970 = vmatprep.subr.bf16.mxu0 %v5824
    %5971 = vmatpush2.bf16.msra.mxu0 %v5823
    %5972 = vmatprep.subr.bf16.mxu0 %v5819
    %5973 = vmatpush2.bf16.msra.mxu0 %v5818
    %5974 = vmatprep.subr.bf16.mxu0 %v5814
    %5975 = vmatpush2.bf16.msra.mxu0 %v5813
    %5976 = vmatprep.subr.bf16.mxu0 %v5809
    %5977 = vmatpush2.bf16.msra.mxu0 %v5808
    %5978 = vmatprep.subr.bf16.mxu0 %v5804
    %5979 = vmatpush2.bf16.msra.mxu0 %v5803
    %5980 = vmatprep.subr.bf16.mxu0 %v5799
    %5981 = vmatpush2.bf16.msra.mxu0 %v5798
    %5982 = vmatprep.subr.bf16.mxu0 %v5794
    %5983 = vmatpush2.bf16.msra.mxu0 %v5793
    %5984 = vmatprep.mubr.bf16.mxu0 %v5398
    %5985 = vmatmul.mubr.bf16.gmra.mxu0 %v5291
    %v5986 = vpop.f32.mrf.mxu0
    %v5987 = vadd.f32 0.0, %v5986
    %v5988 = vpop.f32.mrf.mxu0
    %v5989 = vadd.f32 0.0, %v5988
    %v5990 = vpop.f32.mrf.mxu0
    %v5991 = vpop.f32.mrf.mxu0
    %5992 = vdwg.mxu0
    %5993 = vmatprep.subr.bf16.mxu0 0
    %5994 = vmatpush1.bf16.msra.mxu0 %v5790
    %5995 = vmatprep.subr.bf16.mxu0 0
    %5996 = vmatpush1.bf16.msra.mxu0 %v5785
    %5997 = vmatprep.subr.bf16.mxu0 0
    %5998 = vmatpush1.bf16.msra.mxu0 %v5780
    %5999 = vmatprep.subr.bf16.mxu0 0
    %6000 = vmatpush1.bf16.msra.mxu0 %v5775
    %6001 = vmatprep.subr.bf16.mxu0 0
    %6002 = vmatpush1.bf16.msra.mxu0 %v5770
    %6003 = vmatprep.subr.bf16.mxu0 0
    %6004 = vmatpush1.bf16.msra.mxu0 %v5765
    %6005 = vmatprep.subr.bf16.mxu0 0
    %6006 = vmatpush1.bf16.msra.mxu0 %v5760
    %6007 = vmatprep.subr.bf16.mxu0 0
    %6008 = vmatpush1.bf16.msra.mxu0 %v5755
    %6009 = vmatprep.subr.bf16.mxu0 0
    %6010 = vmatpush2.bf16.msra.mxu0 %v5830
    %6011 = vmatprep.subr.bf16.mxu0 0
    %6012 = vmatpush2.bf16.msra.mxu0 %v5825
    %6013 = vmatprep.subr.bf16.mxu0 0
    %6014 = vmatpush2.bf16.msra.mxu0 %v5820
    %6015 = vmatprep.subr.bf16.mxu0 0
    %6016 = vmatpush2.bf16.msra.mxu0 %v5815
    %6017 = vmatprep.subr.bf16.mxu0 0
    %6018 = vmatpush2.bf16.msra.mxu0 %v5810
    %6019 = vmatprep.subr.bf16.mxu0 0
    %6020 = vmatpush2.bf16.msra.mxu0 %v5805
    %6021 = vmatprep.subr.bf16.mxu0 0
    %6022 = vmatpush2.bf16.msra.mxu0 %v5800
    %6023 = vmatprep.subr.bf16.mxu0 0
    %6024 = vmatpush2.bf16.msra.mxu0 %v5795
    %6025 = vmatprep.mubr.bf16.mxu0 %v5398
    %6026 = vmatmul.mubr.bf16.gmra.mxu0 %v5291
    %v6027 = vpop.f32.mrf.mxu0
    %v6028 = vadd.f32 0.0, %v6027
    %v6029 = vpop.f32.mrf.mxu0
    %v6030 = vpop.f32.mrf.mxu0
    %v6031 = vpop.f32.mrf.mxu0
    %6032 = vdwg.mxu0
    %v6033 = vadd.f32 %v5286, %v5946
    %v6034 = vadd.f32 %v5287, %v5948
    %v6035 = vadd.f32 %v5288, %v5987
    %v6036 = vadd.f32 %v5289, %v5989
    %v6037 = vadd.f32 %v5290, %v6028
    %v6038 = vxor.u32 %v6033, 2147483648
    %v6039 = vmul.f32 %v6038, 1.442695
    %v6040 = vpow.pop %v6039
    %v6041 = vadd.f32 %v6040, 1.0
    %v6042 = vrcp.pop %v6041
    %v6043 = vmul.f32 1.0, %v6042
    %v6044 = vxor.u32 %v6034, 2147483648
    %v6045 = vmul.f32 %v6044, 1.442695
    %v6046 = vpow.pop %v6045
    %v6047 = vadd.f32 %v6046, 1.0
    %v6048 = vrcp.pop %v6047
    %v6049 = vmul.f32 1.0, %v6048
    %v6050 = vxor.u32 %v6035, 2147483648
    %v6051 = vmul.f32 %v6050, 1.442695
    %v6052 = vpow.pop %v6051
    %v6053 = vadd.f32 %v6052, 1.0
    %v6054 = vrcp.pop %v6053
    %v6055 = vmul.f32 1.0, %v6054
    %v6056 = vtanh.pop %v6036
    %v6057 = vxor.u32 %v6037, 2147483648
    %v6058 = vmul.f32 %v6057, 1.442695
    %v6059 = vpow.pop %v6058
    %v6060 = vadd.f32 %v6059, 1.0
    %v6061 = vrcp.pop %v6060
    %v6062 = vmul.f32 1.0, %v6061
    %v6063 = vmul.f32 %v6043, %v5277
    %v6064 = vmul.f32 %v6049, %v6056
    %v6065 = vadd.f32 %v6063, %v6064
    %v6066 = vmul.f32 %v6055, %v5397
    %v6067 = vadd.f32 %v6065, %v6066
    %v6068 = vtanh.pop %v6067
    %v6069 = vmul.f32 %v6062, %v6068
    %s6070 = scalar_lea.vmem [#allocation3], 88
    %6071 = vst [vmem:[%s6070] sm:$0xff] %v6069
    %s6072 = smul.u32 7, 6
    %s6073 = smul.addr %s6072, 8
    %s6074 = scalar_lea.vmem [#allocation2], %s6073
    %v6075 = vld [vmem:[%s6074] sm:$0xff]
    %v6076 = vld [vmem:[%s6074 + $0x8] sm:$0xff]
    %v6077 = vld [vmem:[%s6074 + $0x10] sm:$0xff]
    %v6078 = vld [vmem:[%s6074 + $0x18] sm:$0xff]
    %v6079 = vld [vmem:[%s6074 + $0x20] sm:$0xff]
    %v6080 = vld [vmem:[%s6074 + $0x28] sm:$0xff]
    %v6081 = vpack.c.bf16 %v6069, %v6069
    %v6082 = vld [vmem:[#allocation7] sm:$0xf]
    %v6083 = vld [vmem:[#allocation7 + $0x4] sm:$0xf]
    %v6084 = vld [vmem:[#allocation7 + $0x8] sm:$0xf]
    %v6085 = vld [vmem:[#allocation7 + $0xc] sm:$0xf]
    %v6086 = vld [vmem:[#allocation7 + $0x10] sm:$0xf]
    %v6087 = vld [vmem:[#allocation7 + $0x14] sm:$0xf]
    %v6088 = vld [vmem:[#allocation7 + $0x18] sm:$0xf]
    %v6089 = vld [vmem:[#allocation7 + $0x1c] sm:$0xf]
    %v6090 = vld [vmem:[#allocation7 + $0x20] sm:$0xf]
    %v6091 = vld [vmem:[#allocation7 + $0x24] sm:$0xf]
    %v6092 = vld [vmem:[#allocation7 + $0x28] sm:$0xf]
    %v6093 = vld [vmem:[#allocation7 + $0x2c] sm:$0xf]
    %v6094 = vld [vmem:[#allocation7 + $0x30] sm:$0xf]
    %v6095 = vld [vmem:[#allocation7 + $0x34] sm:$0xf]
    %v6096 = vld [vmem:[#allocation7 + $0x38] sm:$0xf]
    %v6097 = vld [vmem:[#allocation7 + $0x3c] sm:$0xf]
    %v6114 = vunpack.c.l.b16 %v6082
    %v6115 = vunpack.c.l.b16 %v6083
    %v6116 = vunpack.c.l.b16 %v6084
    %v6117 = vunpack.c.l.b16 %v6085
    %v6118 = vunpack.c.l.b16 %v6086
    %v6119 = vunpack.c.l.b16 %v6087
    %v6120 = vunpack.c.l.b16 %v6088
    %v6121 = vunpack.c.l.b16 %v6089
    %v6122 = vunpack.c.l.b16 %v6090
    %v6123 = vunpack.c.l.b16 %v6091
    %v6124 = vunpack.c.l.b16 %v6092
    %v6125 = vunpack.c.l.b16 %v6093
    %v6126 = vunpack.c.l.b16 %v6094
    %v6127 = vunpack.c.l.b16 %v6095
    %v6128 = vunpack.c.l.b16 %v6096
    %v6129 = vunpack.c.l.b16 %v6097
    %v6130 = vpack.c.b16 %v6115, %v6114
    %v6131 = vpack.c.b16 %v6117, %v6116
    %v6132 = vpack.c.b16 %v6119, %v6118
    %v6133 = vpack.c.b16 %v6121, %v6120
    %v6134 = vpack.c.b16 %v6123, %v6122
    %v6135 = vpack.c.b16 %v6125, %v6124
    %v6136 = vpack.c.b16 %v6127, %v6126
    %v6137 = vpack.c.b16 %v6129, %v6128
    %6146 = vmatprep.subr.bf16.mxu0 0
    %6147 = vmatpush1.bf16.msra.mxu0 %v6137
    %6148 = vmatprep.subr.bf16.mxu0 0
    %6149 = vmatpush1.bf16.msra.mxu0 %v6136
    %6150 = vmatprep.subr.bf16.mxu0 0
    %6151 = vmatpush1.bf16.msra.mxu0 %v6135
    %6152 = vmatprep.subr.bf16.mxu0 0
    %6153 = vmatpush1.bf16.msra.mxu0 %v6134
    %6154 = vmatprep.subr.bf16.mxu0 0
    %6155 = vmatpush1.bf16.msra.mxu0 %v6133
    %6156 = vmatprep.subr.bf16.mxu0 0
    %6157 = vmatpush1.bf16.msra.mxu0 %v6132
    %6158 = vmatprep.subr.bf16.mxu0 0
    %6159 = vmatpush1.bf16.msra.mxu0 %v6131
    %6160 = vmatprep.subr.bf16.mxu0 0
    %6161 = vmatpush1.bf16.msra.mxu0 %v6130
    %6162 = vmatprep.subr.bf16.mxu0 0
    %6163 = vmatpush2.bf16.msra.mxu0 0
    %6164 = vmatprep.subr.bf16.mxu0 0
    %6165 = vmatpush2.bf16.msra.mxu0 0
    %6166 = vmatprep.subr.bf16.mxu0 0
    %6167 = vmatpush2.bf16.msra.mxu0 0
    %6168 = vmatprep.subr.bf16.mxu0 0
    %6169 = vmatpush2.bf16.msra.mxu0 0
    %6170 = vmatprep.subr.bf16.mxu0 0
    %6171 = vmatpush2.bf16.msra.mxu0 0
    %6172 = vmatprep.subr.bf16.mxu0 0
    %6173 = vmatpush2.bf16.msra.mxu0 0
    %6174 = vmatprep.subr.bf16.mxu0 0
    %6175 = vmatpush2.bf16.msra.mxu0 0
    %6176 = vmatprep.subr.bf16.mxu0 0
    %6177 = vmatpush2.bf16.msra.mxu0 0
    %6178 = vmatprep.mubr.bf16.mxu0 0
    %6179 = vmatmul.mubr.bf16.gmra.mxu0 %v6081
    %v6180 = vpop.f32.mrf.mxu0
    %v6181 = vadd.f32 0.0, %v6180
    %v6182 = vpop.f32.mrf.mxu0
    %v6183 = vpop.f32.mrf.mxu0
    %v6184 = vpop.f32.mrf.mxu0
    %6185 = vdwg.mxu0
    %v6186 = vadd.f32 %v6075, %v6181
    %v6187 = vtanh.pop %v6186
    %v6188 = vpack.c.bf16 %v6187, %v6187
    %v6189 = vld [vmem:[#allocation9] sm:$0xff]
    %v6190 = vld [vmem:[#allocation9 + $0x8] sm:$0xff]
    %v6191 = vld [vmem:[#allocation9 + $0x10] sm:$0xf]
    %v6192 = vld [vmem:[#allocation9 + $0x14] sm:$0xff]
    %v6193 = vld [vmem:[#allocation9 + $0x1c] sm:$0xff]
    %v6194 = vld [vmem:[#allocation9 + $0x24] sm:$0xf]
    %v6195 = vld [vmem:[#allocation9 + $0x28] sm:$0xff]
    %v6196 = vld [vmem:[#allocation9 + $0x30] sm:$0xff]
    %v6197 = vld [vmem:[#allocation9 + $0x38] sm:$0xf]
    %v6198 = vld [vmem:[#allocation9 + $0x3c] sm:$0xff]
    %v6199 = vld [vmem:[#allocation9 + $0x44] sm:$0xff]
    %v6200 = vld [vmem:[#allocation9 + $0x4c] sm:$0xf]
    %v6201 = vld [vmem:[#allocation9 + $0x50] sm:$0xff]
    %v6202 = vld [vmem:[#allocation9 + $0x58] sm:$0xff]
    %v6203 = vld [vmem:[#allocation9 + $0x60] sm:$0xf]
    %v6204 = vld [vmem:[#allocation9 + $0x64] sm:$0xff]
    %v6205 = vld [vmem:[#allocation9 + $0x6c] sm:$0xff]
    %v6206 = vld [vmem:[#allocation9 + $0x74] sm:$0xf]
    %v6207 = vld [vmem:[#allocation9 + $0x78] sm:$0xff]
    %v6208 = vld [vmem:[#allocation9 + $0x80] sm:$0xff]
    %v6209 = vld [vmem:[#allocation9 + $0x88] sm:$0xf]
    %v6210 = vld [vmem:[#allocation9 + $0x8c] sm:$0xff]
    %v6211 = vld [vmem:[#allocation9 + $0x94] sm:$0xff]
    %v6212 = vld [vmem:[#allocation9 + $0x9c] sm:$0xf]
    %v6213 = vld [vmem:[#allocation9 + $0xa0] sm:$0xff]
    %v6214 = vld [vmem:[#allocation9 + $0xa8] sm:$0xff]
    %v6215 = vld [vmem:[#allocation9 + $0xb0] sm:$0xf]
    %v6216 = vld [vmem:[#allocation9 + $0xb4] sm:$0xff]
    %v6217 = vld [vmem:[#allocation9 + $0xbc] sm:$0xff]
    %v6218 = vld [vmem:[#allocation9 + $0xc4] sm:$0xf]
    %v6219 = vld [vmem:[#allocation9 + $0xc8] sm:$0xff]
    %v6220 = vld [vmem:[#allocation9 + $0xd0] sm:$0xff]
    %v6221 = vld [vmem:[#allocation9 + $0xd8] sm:$0xf]
    %v6222 = vld [vmem:[#allocation9 + $0xdc] sm:$0xff]
    %v6223 = vld [vmem:[#allocation9 + $0xe4] sm:$0xff]
    %v6224 = vld [vmem:[#allocation9 + $0xec] sm:$0xf]
    %v6225 = vld [vmem:[#allocation9 + $0xf0] sm:$0xff]
    %v6226 = vld [vmem:[#allocation9 + $0xf8] sm:$0xff]
    %v6227 = vld [vmem:[#allocation9 + $0x100] sm:$0xf]
    %v6228 = vld [vmem:[#allocation9 + $0x104] sm:$0xff]
    %v6229 = vld [vmem:[#allocation9 + $0x10c] sm:$0xff]
    %v6230 = vld [vmem:[#allocation9 + $0x114] sm:$0xf]
    %v6231 = vld [vmem:[#allocation9 + $0x118] sm:$0xff]
    %v6232 = vld [vmem:[#allocation9 + $0x120] sm:$0xff]
    %v6233 = vld [vmem:[#allocation9 + $0x128] sm:$0xf]
    %v6234 = vld [vmem:[#allocation9 + $0x12c] sm:$0xff]
    %v6235 = vld [vmem:[#allocation9 + $0x134] sm:$0xff]
    %v6236 = vld [vmem:[#allocation9 + $0x13c] sm:$0xf]
    %v6237 = vld [vmem:[#allocation9 + $0x140] sm:$0xff]
    %v6238 = vld [vmem:[#allocation9 + $0x148] sm:$0xff]
    %v6239 = vld [vmem:[#allocation9 + $0x150] sm:$0xf]
    %v6240 = vld [vmem:[#allocation9 + $0x154] sm:$0xff]
    %v6241 = vld [vmem:[#allocation9 + $0x15c] sm:$0xff]
    %v6242 = vld [vmem:[#allocation9 + $0x164] sm:$0xf]
    %v6243 = vld [vmem:[#allocation9 + $0x168] sm:$0xff]
    %v6244 = vld [vmem:[#allocation9 + $0x170] sm:$0xff]
    %v6245 = vld [vmem:[#allocation9 + $0x178] sm:$0xf]
    %v6246 = vld [vmem:[#allocation9 + $0x17c] sm:$0xff]
    %v6247 = vld [vmem:[#allocation9 + $0x184] sm:$0xff]
    %v6248 = vld [vmem:[#allocation9 + $0x18c] sm:$0xf]
    %v6249 = vld [vmem:[#allocation9 + $0x190] sm:$0xff]
    %v6250 = vld [vmem:[#allocation9 + $0x198] sm:$0xff]
    %v6251 = vld [vmem:[#allocation9 + $0x1a0] sm:$0xf]
    %v6252 = vld [vmem:[#allocation9 + $0x1a4] sm:$0xff]
    %v6253 = vld [vmem:[#allocation9 + $0x1ac] sm:$0xff]
    %v6254 = vld [vmem:[#allocation9 + $0x1b4] sm:$0xf]
    %v6255 = vld [vmem:[#allocation9 + $0x1b8] sm:$0xff]
    %v6256 = vld [vmem:[#allocation9 + $0x1c0] sm:$0xff]
    %v6257 = vld [vmem:[#allocation9 + $0x1c8] sm:$0xf]
    %v6258 = vld [vmem:[#allocation9 + $0x1cc] sm:$0xff]
    %v6259 = vld [vmem:[#allocation9 + $0x1d4] sm:$0xff]
    %v6260 = vld [vmem:[#allocation9 + $0x1dc] sm:$0xf]
    %v6261 = vld [vmem:[#allocation9 + $0x1e0] sm:$0xff]
    %v6262 = vld [vmem:[#allocation9 + $0x1e8] sm:$0xff]
    %v6263 = vld [vmem:[#allocation9 + $0x1f0] sm:$0xf]
    %v6264 = vld [vmem:[#allocation9 + $0x1f4] sm:$0xff]
    %v6265 = vld [vmem:[#allocation9 + $0x1fc] sm:$0xff]
    %v6266 = vld [vmem:[#allocation9 + $0x204] sm:$0xf]
    %v6267 = vld [vmem:[#allocation9 + $0x208] sm:$0xff]
    %v6268 = vld [vmem:[#allocation9 + $0x210] sm:$0xff]
    %v6269 = vld [vmem:[#allocation9 + $0x218] sm:$0xf]
    %v6270 = vld [vmem:[#allocation9 + $0x21c] sm:$0xff]
    %v6271 = vld [vmem:[#allocation9 + $0x224] sm:$0xff]
    %v6272 = vld [vmem:[#allocation9 + $0x22c] sm:$0xf]
    %v6273 = vld [vmem:[#allocation9 + $0x230] sm:$0xff]
    %v6274 = vld [vmem:[#allocation9 + $0x238] sm:$0xff]
    %v6275 = vld [vmem:[#allocation9 + $0x240] sm:$0xf]
    %v6276 = vld [vmem:[#allocation9 + $0x244] sm:$0xff]
    %v6277 = vld [vmem:[#allocation9 + $0x24c] sm:$0xff]
    %v6278 = vld [vmem:[#allocation9 + $0x254] sm:$0xf]
    %v6279 = vld [vmem:[#allocation9 + $0x258] sm:$0xff]
    %v6280 = vld [vmem:[#allocation9 + $0x260] sm:$0xff]
    %v6281 = vld [vmem:[#allocation9 + $0x268] sm:$0xf]
    %v6282 = vld [vmem:[#allocation9 + $0x26c] sm:$0xff]
    %v6283 = vld [vmem:[#allocation9 + $0x274] sm:$0xff]
    %v6284 = vld [vmem:[#allocation9 + $0x27c] sm:$0xf]
    %v6381 = vunpack.c.l.b16 %v6189
    %v6382 = vunpack.c.h.b16 %v6189
    %v6383 = vunpack.c.l.b16 %v6190
    %v6384 = vunpack.c.h.b16 %v6190
    %v6385 = vunpack.c.l.b16 %v6191
    %v6386 = vunpack.c.l.b16 %v6192
    %v6387 = vunpack.c.h.b16 %v6192
    %v6388 = vunpack.c.l.b16 %v6193
    %v6389 = vunpack.c.h.b16 %v6193
    %v6390 = vunpack.c.l.b16 %v6194
    %v6391 = vunpack.c.l.b16 %v6195
    %v6392 = vunpack.c.h.b16 %v6195
    %v6393 = vunpack.c.l.b16 %v6196
    %v6394 = vunpack.c.h.b16 %v6196
    %v6395 = vunpack.c.l.b16 %v6197
    %v6396 = vunpack.c.l.b16 %v6198
    %v6397 = vunpack.c.h.b16 %v6198
    %v6398 = vunpack.c.l.b16 %v6199
    %v6399 = vunpack.c.h.b16 %v6199
    %v6400 = vunpack.c.l.b16 %v6200
    %v6401 = vunpack.c.l.b16 %v6201
    %v6402 = vunpack.c.h.b16 %v6201
    %v6403 = vunpack.c.l.b16 %v6202
    %v6404 = vunpack.c.h.b16 %v6202
    %v6405 = vunpack.c.l.b16 %v6203
    %v6406 = vunpack.c.l.b16 %v6204
    %v6407 = vunpack.c.h.b16 %v6204
    %v6408 = vunpack.c.l.b16 %v6205
    %v6409 = vunpack.c.h.b16 %v6205
    %v6410 = vunpack.c.l.b16 %v6206
    %v6411 = vunpack.c.l.b16 %v6207
    %v6412 = vunpack.c.h.b16 %v6207
    %v6413 = vunpack.c.l.b16 %v6208
    %v6414 = vunpack.c.h.b16 %v6208
    %v6415 = vunpack.c.l.b16 %v6209
    %v6416 = vunpack.c.l.b16 %v6210
    %v6417 = vunpack.c.h.b16 %v6210
    %v6418 = vunpack.c.l.b16 %v6211
    %v6419 = vunpack.c.h.b16 %v6211
    %v6420 = vunpack.c.l.b16 %v6212
    %v6421 = vunpack.c.l.b16 %v6213
    %v6422 = vunpack.c.h.b16 %v6213
    %v6423 = vunpack.c.l.b16 %v6214
    %v6424 = vunpack.c.h.b16 %v6214
    %v6425 = vunpack.c.l.b16 %v6215
    %v6426 = vunpack.c.l.b16 %v6216
    %v6427 = vunpack.c.h.b16 %v6216
    %v6428 = vunpack.c.l.b16 %v6217
    %v6429 = vunpack.c.h.b16 %v6217
    %v6430 = vunpack.c.l.b16 %v6218
    %v6431 = vunpack.c.l.b16 %v6219
    %v6432 = vunpack.c.h.b16 %v6219
    %v6433 = vunpack.c.l.b16 %v6220
    %v6434 = vunpack.c.h.b16 %v6220
    %v6435 = vunpack.c.l.b16 %v6221
    %v6436 = vunpack.c.l.b16 %v6222
    %v6437 = vunpack.c.h.b16 %v6222
    %v6438 = vunpack.c.l.b16 %v6223
    %v6439 = vunpack.c.h.b16 %v6223
    %v6440 = vunpack.c.l.b16 %v6224
    %v6441 = vunpack.c.l.b16 %v6225
    %v6442 = vunpack.c.h.b16 %v6225
    %v6443 = vunpack.c.l.b16 %v6226
    %v6444 = vunpack.c.h.b16 %v6226
    %v6445 = vunpack.c.l.b16 %v6227
    %v6446 = vunpack.c.l.b16 %v6228
    %v6447 = vunpack.c.h.b16 %v6228
    %v6448 = vunpack.c.l.b16 %v6229
    %v6449 = vunpack.c.h.b16 %v6229
    %v6450 = vunpack.c.l.b16 %v6230
    %v6451 = vunpack.c.l.b16 %v6231
    %v6452 = vunpack.c.h.b16 %v6231
    %v6453 = vunpack.c.l.b16 %v6232
    %v6454 = vunpack.c.h.b16 %v6232
    %v6455 = vunpack.c.l.b16 %v6233
    %v6456 = vunpack.c.l.b16 %v6234
    %v6457 = vunpack.c.h.b16 %v6234
    %v6458 = vunpack.c.l.b16 %v6235
    %v6459 = vunpack.c.h.b16 %v6235
    %v6460 = vunpack.c.l.b16 %v6236
    %v6461 = vunpack.c.l.b16 %v6237
    %v6462 = vunpack.c.h.b16 %v6237
    %v6463 = vunpack.c.l.b16 %v6238
    %v6464 = vunpack.c.h.b16 %v6238
    %v6465 = vunpack.c.l.b16 %v6239
    %v6466 = vunpack.c.l.b16 %v6240
    %v6467 = vunpack.c.h.b16 %v6240
    %v6468 = vunpack.c.l.b16 %v6241
    %v6469 = vunpack.c.h.b16 %v6241
    %v6470 = vunpack.c.l.b16 %v6242
    %v6471 = vunpack.c.l.b16 %v6243
    %v6472 = vunpack.c.h.b16 %v6243
    %v6473 = vunpack.c.l.b16 %v6244
    %v6474 = vunpack.c.h.b16 %v6244
    %v6475 = vunpack.c.l.b16 %v6245
    %v6476 = vunpack.c.l.b16 %v6246
    %v6477 = vunpack.c.h.b16 %v6246
    %v6478 = vunpack.c.l.b16 %v6247
    %v6479 = vunpack.c.h.b16 %v6247
    %v6480 = vunpack.c.l.b16 %v6248
    %v6481 = vunpack.c.l.b16 %v6249
    %v6482 = vunpack.c.h.b16 %v6249
    %v6483 = vunpack.c.l.b16 %v6250
    %v6484 = vunpack.c.h.b16 %v6250
    %v6485 = vunpack.c.l.b16 %v6251
    %v6486 = vunpack.c.l.b16 %v6252
    %v6487 = vunpack.c.h.b16 %v6252
    %v6488 = vunpack.c.l.b16 %v6253
    %v6489 = vunpack.c.h.b16 %v6253
    %v6490 = vunpack.c.l.b16 %v6254
    %v6491 = vunpack.c.l.b16 %v6255
    %v6492 = vunpack.c.h.b16 %v6255
    %v6493 = vunpack.c.l.b16 %v6256
    %v6494 = vunpack.c.h.b16 %v6256
    %v6495 = vunpack.c.l.b16 %v6257
    %v6496 = vunpack.c.l.b16 %v6258
    %v6497 = vunpack.c.h.b16 %v6258
    %v6498 = vunpack.c.l.b16 %v6259
    %v6499 = vunpack.c.h.b16 %v6259
    %v6500 = vunpack.c.l.b16 %v6260
    %v6501 = vunpack.c.l.b16 %v6261
    %v6502 = vunpack.c.h.b16 %v6261
    %v6503 = vunpack.c.l.b16 %v6262
    %v6504 = vunpack.c.h.b16 %v6262
    %v6505 = vunpack.c.l.b16 %v6263
    %v6506 = vunpack.c.l.b16 %v6264
    %v6507 = vunpack.c.h.b16 %v6264
    %v6508 = vunpack.c.l.b16 %v6265
    %v6509 = vunpack.c.h.b16 %v6265
    %v6510 = vunpack.c.l.b16 %v6266
    %v6511 = vunpack.c.l.b16 %v6267
    %v6512 = vunpack.c.h.b16 %v6267
    %v6513 = vunpack.c.l.b16 %v6268
    %v6514 = vunpack.c.h.b16 %v6268
    %v6515 = vunpack.c.l.b16 %v6269
    %v6516 = vunpack.c.l.b16 %v6270
    %v6517 = vunpack.c.h.b16 %v6270
    %v6518 = vunpack.c.l.b16 %v6271
    %v6519 = vunpack.c.h.b16 %v6271
    %v6520 = vunpack.c.l.b16 %v6272
    %v6521 = vunpack.c.l.b16 %v6273
    %v6522 = vunpack.c.h.b16 %v6273
    %v6523 = vunpack.c.l.b16 %v6274
    %v6524 = vunpack.c.h.b16 %v6274
    %v6525 = vunpack.c.l.b16 %v6275
    %v6526 = vunpack.c.l.b16 %v6276
    %v6527 = vunpack.c.h.b16 %v6276
    %v6528 = vunpack.c.l.b16 %v6277
    %v6529 = vunpack.c.h.b16 %v6277
    %v6530 = vunpack.c.l.b16 %v6278
    %v6531 = vunpack.c.l.b16 %v6279
    %v6532 = vunpack.c.h.b16 %v6279
    %v6533 = vunpack.c.l.b16 %v6280
    %v6534 = vunpack.c.h.b16 %v6280
    %v6535 = vunpack.c.l.b16 %v6281
    %v6536 = vunpack.c.l.b16 %v6282
    %v6537 = vunpack.c.h.b16 %v6282
    %v6538 = vunpack.c.l.b16 %v6283
    %v6539 = vunpack.c.h.b16 %v6283
    %v6540 = vunpack.c.l.b16 %v6284
    %v6541 = vpack.c.b16 %v6386, %v6381
    %v6542 = vpack.c.b16 %v6387, %v6382
    %v6543 = vpack.c.b16 %v6388, %v6383
    %v6544 = vpack.c.b16 %v6389, %v6384
    %v6545 = vpack.c.b16 %v6390, %v6385
    %v6546 = vpack.c.b16 %v6396, %v6391
    %v6547 = vpack.c.b16 %v6397, %v6392
    %v6548 = vpack.c.b16 %v6398, %v6393
    %v6549 = vpack.c.b16 %v6399, %v6394
    %v6550 = vpack.c.b16 %v6400, %v6395
    %v6551 = vpack.c.b16 %v6406, %v6401
    %v6552 = vpack.c.b16 %v6407, %v6402
    %v6553 = vpack.c.b16 %v6408, %v6403
    %v6554 = vpack.c.b16 %v6409, %v6404
    %v6555 = vpack.c.b16 %v6410, %v6405
    %v6556 = vpack.c.b16 %v6416, %v6411
    %v6557 = vpack.c.b16 %v6417, %v6412
    %v6558 = vpack.c.b16 %v6418, %v6413
    %v6559 = vpack.c.b16 %v6419, %v6414
    %v6560 = vpack.c.b16 %v6420, %v6415
    %v6561 = vpack.c.b16 %v6426, %v6421
    %v6562 = vpack.c.b16 %v6427, %v6422
    %v6563 = vpack.c.b16 %v6428, %v6423
    %v6564 = vpack.c.b16 %v6429, %v6424
    %v6565 = vpack.c.b16 %v6430, %v6425
    %v6566 = vpack.c.b16 %v6436, %v6431
    %v6567 = vpack.c.b16 %v6437, %v6432
    %v6568 = vpack.c.b16 %v6438, %v6433
    %v6569 = vpack.c.b16 %v6439, %v6434
    %v6570 = vpack.c.b16 %v6440, %v6435
    %v6571 = vpack.c.b16 %v6446, %v6441
    %v6572 = vpack.c.b16 %v6447, %v6442
    %v6573 = vpack.c.b16 %v6448, %v6443
    %v6574 = vpack.c.b16 %v6449, %v6444
    %v6575 = vpack.c.b16 %v6450, %v6445
    %v6576 = vpack.c.b16 %v6456, %v6451
    %v6577 = vpack.c.b16 %v6457, %v6452
    %v6578 = vpack.c.b16 %v6458, %v6453
    %v6579 = vpack.c.b16 %v6459, %v6454
    %v6580 = vpack.c.b16 %v6460, %v6455
    %v6581 = vpack.c.b16 %v6466, %v6461
    %v6582 = vpack.c.b16 %v6467, %v6462
    %v6583 = vpack.c.b16 %v6468, %v6463
    %v6584 = vpack.c.b16 %v6469, %v6464
    %v6585 = vpack.c.b16 %v6470, %v6465
    %v6586 = vpack.c.b16 %v6476, %v6471
    %v6587 = vpack.c.b16 %v6477, %v6472
    %v6588 = vpack.c.b16 %v6478, %v6473
    %v6589 = vpack.c.b16 %v6479, %v6474
    %v6590 = vpack.c.b16 %v6480, %v6475
    %v6591 = vpack.c.b16 %v6486, %v6481
    %v6592 = vpack.c.b16 %v6487, %v6482
    %v6593 = vpack.c.b16 %v6488, %v6483
    %v6594 = vpack.c.b16 %v6489, %v6484
    %v6595 = vpack.c.b16 %v6490, %v6485
    %v6596 = vpack.c.b16 %v6496, %v6491
    %v6597 = vpack.c.b16 %v6497, %v6492
    %v6598 = vpack.c.b16 %v6498, %v6493
    %v6599 = vpack.c.b16 %v6499, %v6494
    %v6600 = vpack.c.b16 %v6500, %v6495
    %v6601 = vpack.c.b16 %v6506, %v6501
    %v6602 = vpack.c.b16 %v6507, %v6502
    %v6603 = vpack.c.b16 %v6508, %v6503
    %v6604 = vpack.c.b16 %v6509, %v6504
    %v6605 = vpack.c.b16 %v6510, %v6505
    %v6606 = vpack.c.b16 %v6516, %v6511
    %v6607 = vpack.c.b16 %v6517, %v6512
    %v6608 = vpack.c.b16 %v6518, %v6513
    %v6609 = vpack.c.b16 %v6519, %v6514
    %v6610 = vpack.c.b16 %v6520, %v6515
    %v6611 = vpack.c.b16 %v6526, %v6521
    %v6612 = vpack.c.b16 %v6527, %v6522
    %v6613 = vpack.c.b16 %v6528, %v6523
    %v6614 = vpack.c.b16 %v6529, %v6524
    %v6615 = vpack.c.b16 %v6530, %v6525
    %v6616 = vpack.c.b16 %v6536, %v6531
    %v6617 = vpack.c.b16 %v6537, %v6532
    %v6618 = vpack.c.b16 %v6538, %v6533
    %v6619 = vpack.c.b16 %v6539, %v6534
    %v6620 = vpack.c.b16 %v6540, %v6535
    %6701 = vmatprep.subr.bf16.mxu0 %v6577
    %6702 = vmatpush1.bf16.msra.mxu0 %v6576
    %6703 = vmatprep.subr.bf16.mxu0 %v6572
    %6704 = vmatpush1.bf16.msra.mxu0 %v6571
    %6705 = vmatprep.subr.bf16.mxu0 %v6567
    %6706 = vmatpush1.bf16.msra.mxu0 %v6566
    %6707 = vmatprep.subr.bf16.mxu0 %v6562
    %6708 = vmatpush1.bf16.msra.mxu0 %v6561
    %6709 = vmatprep.subr.bf16.mxu0 %v6557
    %6710 = vmatpush1.bf16.msra.mxu0 %v6556
    %6711 = vmatprep.subr.bf16.mxu0 %v6552
    %6712 = vmatpush1.bf16.msra.mxu0 %v6551
    %6713 = vmatprep.subr.bf16.mxu0 %v6547
    %6714 = vmatpush1.bf16.msra.mxu0 %v6546
    %6715 = vmatprep.subr.bf16.mxu0 %v6542
    %6716 = vmatpush1.bf16.msra.mxu0 %v6541
    %6717 = vmatprep.subr.bf16.mxu0 %v6617
    %6718 = vmatpush2.bf16.msra.mxu0 %v6616
    %6719 = vmatprep.subr.bf16.mxu0 %v6612
    %6720 = vmatpush2.bf16.msra.mxu0 %v6611
    %6721 = vmatprep.subr.bf16.mxu0 %v6607
    %6722 = vmatpush2.bf16.msra.mxu0 %v6606
    %6723 = vmatprep.subr.bf16.mxu0 %v6602
    %6724 = vmatpush2.bf16.msra.mxu0 %v6601
    %6725 = vmatprep.subr.bf16.mxu0 %v6597
    %6726 = vmatpush2.bf16.msra.mxu0 %v6596
    %6727 = vmatprep.subr.bf16.mxu0 %v6592
    %6728 = vmatpush2.bf16.msra.mxu0 %v6591
    %6729 = vmatprep.subr.bf16.mxu0 %v6587
    %6730 = vmatpush2.bf16.msra.mxu0 %v6586
    %6731 = vmatprep.subr.bf16.mxu0 %v6582
    %6732 = vmatpush2.bf16.msra.mxu0 %v6581
    %6733 = vmatprep.mubr.bf16.mxu0 %v6188
    %6734 = vmatmul.mubr.bf16.gmra.mxu0 %v6081
    %v6735 = vpop.f32.mrf.mxu0
    %v6736 = vadd.f32 0.0, %v6735
    %v6737 = vpop.f32.mrf.mxu0
    %v6738 = vadd.f32 0.0, %v6737
    %v6739 = vpop.f32.mrf.mxu0
    %v6740 = vpop.f32.mrf.mxu0
    %6741 = vdwg.mxu0
    %6742 = vmatprep.subr.bf16.mxu0 %v6579
    %6743 = vmatpush1.bf16.msra.mxu0 %v6578
    %6744 = vmatprep.subr.bf16.mxu0 %v6574
    %6745 = vmatpush1.bf16.msra.mxu0 %v6573
    %6746 = vmatprep.subr.bf16.mxu0 %v6569
    %6747 = vmatpush1.bf16.msra.mxu0 %v6568
    %6748 = vmatprep.subr.bf16.mxu0 %v6564
    %6749 = vmatpush1.bf16.msra.mxu0 %v6563
    %6750 = vmatprep.subr.bf16.mxu0 %v6559
    %6751 = vmatpush1.bf16.msra.mxu0 %v6558
    %6752 = vmatprep.subr.bf16.mxu0 %v6554
    %6753 = vmatpush1.bf16.msra.mxu0 %v6553
    %6754 = vmatprep.subr.bf16.mxu0 %v6549
    %6755 = vmatpush1.bf16.msra.mxu0 %v6548
    %6756 = vmatprep.subr.bf16.mxu0 %v6544
    %6757 = vmatpush1.bf16.msra.mxu0 %v6543
    %6758 = vmatprep.subr.bf16.mxu0 %v6619
    %6759 = vmatpush2.bf16.msra.mxu0 %v6618
    %6760 = vmatprep.subr.bf16.mxu0 %v6614
    %6761 = vmatpush2.bf16.msra.mxu0 %v6613
    %6762 = vmatprep.subr.bf16.mxu0 %v6609
    %6763 = vmatpush2.bf16.msra.mxu0 %v6608
    %6764 = vmatprep.subr.bf16.mxu0 %v6604
    %6765 = vmatpush2.bf16.msra.mxu0 %v6603
    %6766 = vmatprep.subr.bf16.mxu0 %v6599
    %6767 = vmatpush2.bf16.msra.mxu0 %v6598
    %6768 = vmatprep.subr.bf16.mxu0 %v6594
    %6769 = vmatpush2.bf16.msra.mxu0 %v6593
    %6770 = vmatprep.subr.bf16.mxu0 %v6589
    %6771 = vmatpush2.bf16.msra.mxu0 %v6588
    %6772 = vmatprep.subr.bf16.mxu0 %v6584
    %6773 = vmatpush2.bf16.msra.mxu0 %v6583
    %6774 = vmatprep.mubr.bf16.mxu0 %v6188
    %6775 = vmatmul.mubr.bf16.gmra.mxu0 %v6081
    %v6776 = vpop.f32.mrf.mxu0
    %v6777 = vadd.f32 0.0, %v6776
    %v6778 = vpop.f32.mrf.mxu0
    %v6779 = vadd.f32 0.0, %v6778
    %v6780 = vpop.f32.mrf.mxu0
    %v6781 = vpop.f32.mrf.mxu0
    %6782 = vdwg.mxu0
    %6783 = vmatprep.subr.bf16.mxu0 0
    %6784 = vmatpush1.bf16.msra.mxu0 %v6580
    %6785 = vmatprep.subr.bf16.mxu0 0
    %6786 = vmatpush1.bf16.msra.mxu0 %v6575
    %6787 = vmatprep.subr.bf16.mxu0 0
    %6788 = vmatpush1.bf16.msra.mxu0 %v6570
    %6789 = vmatprep.subr.bf16.mxu0 0
    %6790 = vmatpush1.bf16.msra.mxu0 %v6565
    %6791 = vmatprep.subr.bf16.mxu0 0
    %6792 = vmatpush1.bf16.msra.mxu0 %v6560
    %6793 = vmatprep.subr.bf16.mxu0 0
    %6794 = vmatpush1.bf16.msra.mxu0 %v6555
    %6795 = vmatprep.subr.bf16.mxu0 0
    %6796 = vmatpush1.bf16.msra.mxu0 %v6550
    %6797 = vmatprep.subr.bf16.mxu0 0
    %6798 = vmatpush1.bf16.msra.mxu0 %v6545
    %6799 = vmatprep.subr.bf16.mxu0 0
    %6800 = vmatpush2.bf16.msra.mxu0 %v6620
    %6801 = vmatprep.subr.bf16.mxu0 0
    %6802 = vmatpush2.bf16.msra.mxu0 %v6615
    %6803 = vmatprep.subr.bf16.mxu0 0
    %6804 = vmatpush2.bf16.msra.mxu0 %v6610
    %6805 = vmatprep.subr.bf16.mxu0 0
    %6806 = vmatpush2.bf16.msra.mxu0 %v6605
    %6807 = vmatprep.subr.bf16.mxu0 0
    %6808 = vmatpush2.bf16.msra.mxu0 %v6600
    %6809 = vmatprep.subr.bf16.mxu0 0
    %6810 = vmatpush2.bf16.msra.mxu0 %v6595
    %6811 = vmatprep.subr.bf16.mxu0 0
    %6812 = vmatpush2.bf16.msra.mxu0 %v6590
    %6813 = vmatprep.subr.bf16.mxu0 0
    %6814 = vmatpush2.bf16.msra.mxu0 %v6585
    %6815 = vmatprep.mubr.bf16.mxu0 %v6188
    %6816 = vmatmul.mubr.bf16.gmra.mxu0 %v6081
    %v6817 = vpop.f32.mrf.mxu0
    %v6818 = vadd.f32 0.0, %v6817
    %v6819 = vpop.f32.mrf.mxu0
    %v6820 = vpop.f32.mrf.mxu0
    %v6821 = vpop.f32.mrf.mxu0
    %6822 = vdwg.mxu0
    %v6823 = vadd.f32 %v6076, %v6736
    %v6824 = vadd.f32 %v6077, %v6738
    %v6825 = vadd.f32 %v6078, %v6777
    %v6826 = vadd.f32 %v6079, %v6779
    %v6827 = vadd.f32 %v6080, %v6818
    %v6828 = vxor.u32 %v6823, 2147483648
    %v6829 = vmul.f32 %v6828, 1.442695
    %v6830 = vpow.pop %v6829
    %v6831 = vadd.f32 %v6830, 1.0
    %v6832 = vrcp.pop %v6831
    %v6833 = vmul.f32 1.0, %v6832
    %v6834 = vxor.u32 %v6824, 2147483648
    %v6835 = vmul.f32 %v6834, 1.442695
    %v6836 = vpow.pop %v6835
    %v6837 = vadd.f32 %v6836, 1.0
    %v6838 = vrcp.pop %v6837
    %v6839 = vmul.f32 1.0, %v6838
    %v6840 = vxor.u32 %v6825, 2147483648
    %v6841 = vmul.f32 %v6840, 1.442695
    %v6842 = vpow.pop %v6841
    %v6843 = vadd.f32 %v6842, 1.0
    %v6844 = vrcp.pop %v6843
    %v6845 = vmul.f32 1.0, %v6844
    %v6846 = vtanh.pop %v6826
    %v6847 = vxor.u32 %v6827, 2147483648
    %v6848 = vmul.f32 %v6847, 1.442695
    %v6849 = vpow.pop %v6848
    %v6850 = vadd.f32 %v6849, 1.0
    %v6851 = vrcp.pop %v6850
    %v6852 = vmul.f32 1.0, %v6851
    %v6853 = vmul.f32 %v6833, %v6067
    %v6854 = vmul.f32 %v6839, %v6846
    %v6855 = vadd.f32 %v6853, %v6854
    %v6856 = vmul.f32 %v6845, %v6187
    %v6857 = vadd.f32 %v6855, %v6856
    %v6858 = vtanh.pop %v6857
    %v6859 = vmul.f32 %v6852, %v6858
    %s6860 = scalar_lea.vmem [#allocation3], 96
    %6861 = vst [vmem:[%s6860] sm:$0xff] %v6859
    %v6862 = vld [vmem:[%s3700] sm:$0xff]
    %v6863 = vld [vmem:[%s3700 + $0x8] sm:$0xff]
    %v6864 = vld [vmem:[%s3700 + $0x10] sm:$0xff]
    %v6865 = vld [vmem:[%s3700 + $0x18] sm:$0xff]
    %v6866 = vld [vmem:[%s3700 + $0x20] sm:$0xff]
    %v6867 = vpack.c.bf16 %v6859, %v6859
    %v6868 = vpack.c.bf16 %v6857, %v6857
    %v6869 = vld [vmem:[#allocation12] sm:$0xf]
    %v6870 = vld [vmem:[#allocation12 + $0x4] sm:$0xf]
    %v6871 = vld [vmem:[#allocation12 + $0x8] sm:$0xf]
    %v6872 = vld [vmem:[#allocation12 + $0xc] sm:$0xf]
    %v6873 = vld [vmem:[#allocation12 + $0x10] sm:$0xf]
    %v6874 = vld [vmem:[#allocation12 + $0x14] sm:$0xf]
    %v6875 = vld [vmem:[#allocation12 + $0x18] sm:$0xf]
    %v6876 = vld [vmem:[#allocation12 + $0x1c] sm:$0xf]
    %v6877 = vld [vmem:[#allocation12 + $0x20] sm:$0xf]
    %v6878 = vld [vmem:[#allocation12 + $0x24] sm:$0xf]
    %v6879 = vld [vmem:[#allocation12 + $0x28] sm:$0xf]
    %v6880 = vld [vmem:[#allocation12 + $0x2c] sm:$0xf]
    %v6881 = vld [vmem:[#allocation12 + $0x30] sm:$0xf]
    %v6882 = vld [vmem:[#allocation12 + $0x34] sm:$0xf]
    %v6883 = vld [vmem:[#allocation12 + $0x38] sm:$0xf]
    %v6884 = vld [vmem:[#allocation12 + $0x3c] sm:$0xf]
    %v6885 = vld [vmem:[#allocation12 + $0x40] sm:$0xf]
    %v6886 = vld [vmem:[#allocation12 + $0x44] sm:$0xf]
    %v6887 = vld [vmem:[#allocation12 + $0x48] sm:$0xf]
    %v6888 = vld [vmem:[#allocation12 + $0x4c] sm:$0xf]
    %v6889 = vld [vmem:[#allocation12 + $0x50] sm:$0xf]
    %v6890 = vld [vmem:[#allocation12 + $0x54] sm:$0xf]
    %v6891 = vld [vmem:[#allocation12 + $0x58] sm:$0xf]
    %v6892 = vld [vmem:[#allocation12 + $0x5c] sm:$0xf]
    %v6893 = vld [vmem:[#allocation12 + $0x60] sm:$0xf]
    %v6894 = vld [vmem:[#allocation12 + $0x64] sm:$0xf]
    %v6895 = vld [vmem:[#allocation12 + $0x68] sm:$0xf]
    %v6896 = vld [vmem:[#allocation12 + $0x6c] sm:$0xf]
    %v6897 = vld [vmem:[#allocation12 + $0x70] sm:$0xf]
    %v6898 = vld [vmem:[#allocation12 + $0x74] sm:$0xf]
    %v6899 = vld [vmem:[#allocation12 + $0x78] sm:$0xf]
    %v6900 = vld [vmem:[#allocation12 + $0x7c] sm:$0xf]
    %v6933 = vunpack.c.l.b16 %v6869
    %v6934 = vunpack.c.l.b16 %v6870
    %v6935 = vunpack.c.l.b16 %v6871
    %v6936 = vunpack.c.l.b16 %v6872
    %v6937 = vunpack.c.l.b16 %v6873
    %v6938 = vunpack.c.l.b16 %v6874
    %v6939 = vunpack.c.l.b16 %v6875
    %v6940 = vunpack.c.l.b16 %v6876
    %v6941 = vunpack.c.l.b16 %v6877
    %v6942 = vunpack.c.l.b16 %v6878
    %v6943 = vunpack.c.l.b16 %v6879
    %v6944 = vunpack.c.l.b16 %v6880
    %v6945 = vunpack.c.l.b16 %v6881
    %v6946 = vunpack.c.l.b16 %v6882
    %v6947 = vunpack.c.l.b16 %v6883
    %v6948 = vunpack.c.l.b16 %v6884
    %v6949 = vunpack.c.l.b16 %v6885
    %v6950 = vunpack.c.l.b16 %v6886
    %v6951 = vunpack.c.l.b16 %v6887
    %v6952 = vunpack.c.l.b16 %v6888
    %v6953 = vunpack.c.l.b16 %v6889
    %v6954 = vunpack.c.l.b16 %v6890
    %v6955 = vunpack.c.l.b16 %v6891
    %v6956 = vunpack.c.l.b16 %v6892
    %v6957 = vunpack.c.l.b16 %v6893
    %v6958 = vunpack.c.l.b16 %v6894
    %v6959 = vunpack.c.l.b16 %v6895
    %v6960 = vunpack.c.l.b16 %v6896
    %v6961 = vunpack.c.l.b16 %v6897
    %v6962 = vunpack.c.l.b16 %v6898
    %v6963 = vunpack.c.l.b16 %v6899
    %v6964 = vunpack.c.l.b16 %v6900
    %v6965 = vpack.c.b16 %v6934, %v6933
    %v6966 = vpack.c.b16 %v6936, %v6935
    %v6967 = vpack.c.b16 %v6938, %v6937
    %v6968 = vpack.c.b16 %v6940, %v6939
    %v6969 = vpack.c.b16 %v6942, %v6941
    %v6970 = vpack.c.b16 %v6944, %v6943
    %v6971 = vpack.c.b16 %v6946, %v6945
    %v6972 = vpack.c.b16 %v6948, %v6947
    %v6973 = vpack.c.b16 %v6950, %v6949
    %v6974 = vpack.c.b16 %v6952, %v6951
    %v6975 = vpack.c.b16 %v6954, %v6953
    %v6976 = vpack.c.b16 %v6956, %v6955
    %v6977 = vpack.c.b16 %v6958, %v6957
    %v6978 = vpack.c.b16 %v6960, %v6959
    %v6979 = vpack.c.b16 %v6962, %v6961
    %v6980 = vpack.c.b16 %v6964, %v6963
    %6997 = vmatprep.subr.bf16.mxu0 0
    %6998 = vmatpush1.bf16.msra.mxu0 %v6972
    %6999 = vmatprep.subr.bf16.mxu0 0
    %7000 = vmatpush1.bf16.msra.mxu0 %v6971
    %7001 = vmatprep.subr.bf16.mxu0 0
    %7002 = vmatpush1.bf16.msra.mxu0 %v6970
    %7003 = vmatprep.subr.bf16.mxu0 0
    %7004 = vmatpush1.bf16.msra.mxu0 %v6969
    %7005 = vmatprep.subr.bf16.mxu0 0
    %7006 = vmatpush1.bf16.msra.mxu0 %v6968
    %7007 = vmatprep.subr.bf16.mxu0 0
    %7008 = vmatpush1.bf16.msra.mxu0 %v6967
    %7009 = vmatprep.subr.bf16.mxu0 0
    %7010 = vmatpush1.bf16.msra.mxu0 %v6966
    %7011 = vmatprep.subr.bf16.mxu0 0
    %7012 = vmatpush1.bf16.msra.mxu0 %v6965
    %7013 = vmatprep.subr.bf16.mxu0 0
    %7014 = vmatpush2.bf16.msra.mxu0 %v6980
    %7015 = vmatprep.subr.bf16.mxu0 0
    %7016 = vmatpush2.bf16.msra.mxu0 %v6979
    %7017 = vmatprep.subr.bf16.mxu0 0
    %7018 = vmatpush2.bf16.msra.mxu0 %v6978
    %7019 = vmatprep.subr.bf16.mxu0 0
    %7020 = vmatpush2.bf16.msra.mxu0 %v6977
    %7021 = vmatprep.subr.bf16.mxu0 0
    %7022 = vmatpush2.bf16.msra.mxu0 %v6976
    %7023 = vmatprep.subr.bf16.mxu0 0
    %7024 = vmatpush2.bf16.msra.mxu0 %v6975
    %7025 = vmatprep.subr.bf16.mxu0 0
    %7026 = vmatpush2.bf16.msra.mxu0 %v6974
    %7027 = vmatprep.subr.bf16.mxu0 0
    %7028 = vmatpush2.bf16.msra.mxu0 %v6973
    %7029 = vmatprep.mubr.bf16.mxu0 %v6868
    %7030 = vmatmul.mubr.bf16.gmra.mxu0 %v6867
    %v7031 = vpop.f32.mrf.mxu0
    %v7032 = vadd.f32 0.0, %v7031
    %v7033 = vpop.f32.mrf.mxu0
    %v7034 = vpop.f32.mrf.mxu0
    %v7035 = vpop.f32.mrf.mxu0
    %7036 = vdwg.mxu0
    %v7037 = vpack.c.bf16 %v6863, %v6862
    %v7038 = vpack.c.bf16 %v6865, %v6864
    %v7039 = vpack.c.bf16 %v6866, %v6866
    %v7040 = vld [vmem:[#allocation13] sm:$0xf]
    %v7041 = vld [vmem:[#allocation13 + $0x4] sm:$0xf]
    %v7042 = vld [vmem:[#allocation13 + $0x8] sm:$0xf]
    %v7043 = vld [vmem:[#allocation13 + $0xc] sm:$0xf]
    %v7044 = vld [vmem:[#allocation13 + $0x10] sm:$0xf]
    %v7045 = vld [vmem:[#allocation13 + $0x14] sm:$0xf]
    %v7046 = vld [vmem:[#allocation13 + $0x18] sm:$0xf]
    %v7047 = vld [vmem:[#allocation13 + $0x1c] sm:$0xf]
    %v7048 = vld [vmem:[#allocation13 + $0x20] sm:$0xf]
    %v7049 = vld [vmem:[#allocation13 + $0x24] sm:$0xf]
    %v7050 = vld [vmem:[#allocation13 + $0x28] sm:$0xf]
    %v7051 = vld [vmem:[#allocation13 + $0x2c] sm:$0xf]
    %v7052 = vld [vmem:[#allocation13 + $0x30] sm:$0xf]
    %v7053 = vld [vmem:[#allocation13 + $0x34] sm:$0xf]
    %v7054 = vld [vmem:[#allocation13 + $0x38] sm:$0xf]
    %v7055 = vld [vmem:[#allocation13 + $0x3c] sm:$0xf]
    %v7072 = vunpack.c.l.b16 %v7040
    %v7073 = vunpack.c.l.b16 %v7041
    %v7074 = vunpack.c.l.b16 %v7042
    %v7075 = vunpack.c.l.b16 %v7043
    %v7076 = vunpack.c.l.b16 %v7044
    %v7077 = vunpack.c.l.b16 %v7045
    %v7078 = vunpack.c.l.b16 %v7046
    %v7079 = vunpack.c.l.b16 %v7047
    %v7080 = vunpack.c.l.b16 %v7048
    %v7081 = vunpack.c.l.b16 %v7049
    %v7082 = vunpack.c.l.b16 %v7050
    %v7083 = vunpack.c.l.b16 %v7051
    %v7084 = vunpack.c.l.b16 %v7052
    %v7085 = vunpack.c.l.b16 %v7053
    %v7086 = vunpack.c.l.b16 %v7054
    %v7087 = vunpack.c.l.b16 %v7055
    %v7088 = vpack.c.b16 %v7073, %v7072
    %v7089 = vpack.c.b16 %v7075, %v7074
    %v7090 = vpack.c.b16 %v7077, %v7076
    %v7091 = vpack.c.b16 %v7079, %v7078
    %v7092 = vpack.c.b16 %v7081, %v7080
    %v7093 = vpack.c.b16 %v7083, %v7082
    %v7094 = vpack.c.b16 %v7085, %v7084
    %v7095 = vpack.c.b16 %v7087, %v7086
    %7104 = vmatprep.subr.bf16.mxu0 0
    %7105 = vmatpush1.bf16.msra.mxu0 %v7095
    %7106 = vmatprep.subr.bf16.mxu0 0
    %7107 = vmatpush1.bf16.msra.mxu0 %v7094
    %7108 = vmatprep.subr.bf16.mxu0 0
    %7109 = vmatpush1.bf16.msra.mxu0 %v7093
    %7110 = vmatprep.subr.bf16.mxu0 0
    %7111 = vmatpush1.bf16.msra.mxu0 %v7092
    %7112 = vmatprep.subr.bf16.mxu0 0
    %7113 = vmatpush1.bf16.msra.mxu0 %v7091
    %7114 = vmatprep.subr.bf16.mxu0 0
    %7115 = vmatpush1.bf16.msra.mxu0 %v7090
    %7116 = vmatprep.subr.bf16.mxu0 0
    %7117 = vmatpush1.bf16.msra.mxu0 %v7089
    %7118 = vmatprep.subr.bf16.mxu0 0
    %7119 = vmatpush1.bf16.msra.mxu0 %v7088
    %7120 = vmatprep.subr.bf16.mxu0 0
    %7121 = vmatpush2.bf16.msra.mxu0 0
    %7122 = vmatprep.subr.bf16.mxu0 0
    %7123 = vmatpush2.bf16.msra.mxu0 0
    %7124 = vmatprep.subr.bf16.mxu0 0
    %7125 = vmatpush2.bf16.msra.mxu0 0
    %7126 = vmatprep.subr.bf16.mxu0 0
    %7127 = vmatpush2.bf16.msra.mxu0 0
    %7128 = vmatprep.subr.bf16.mxu0 0
    %7129 = vmatpush2.bf16.msra.mxu0 0
    %7130 = vmatprep.subr.bf16.mxu0 0
    %7131 = vmatpush2.bf16.msra.mxu0 0
    %7132 = vmatprep.subr.bf16.mxu0 0
    %7133 = vmatpush2.bf16.msra.mxu0 0
    %7134 = vmatprep.subr.bf16.mxu0 0
    %7135 = vmatpush2.bf16.msra.mxu0 0
    %7136 = vmatprep.mubr.bf16.mxu0 0
    %7137 = vmatmul.mubr.bf16.gmra.mxu0 %v7037
    %v7138 = vpop.f32.mrf.mxu0
    %v7139 = vadd.f32 0.0, %v7138
    %v7140 = vpop.f32.mrf.mxu0
    %v7141 = vpop.f32.mrf.mxu0
    %v7142 = vadd.f32 0.0, %v7141
    %v7143 = vpop.f32.mrf.mxu0
    %7144 = vmatprep.mubr.bf16.mxu0 0
    %7145 = vmatmul.mubr.bf16.gmra.mxu0 %v7038
    %v7146 = vpop.f32.mrf.mxu0
    %v7147 = vadd.f32 0.0, %v7146
    %v7148 = vpop.f32.mrf.mxu0
    %v7149 = vpop.f32.mrf.mxu0
    %v7150 = vadd.f32 0.0, %v7149
    %v7151 = vpop.f32.mrf.mxu0
    %7152 = vmatprep.mubr.bf16.mxu0 0
    %7153 = vmatmul.mubr.bf16.gmra.mxu0 %v7039
    %v7154 = vpop.f32.mrf.mxu0
    %v7155 = vadd.f32 0.0, %v7154
    %v7156 = vpop.f32.mrf.mxu0
    %v7157 = vpop.f32.mrf.mxu0
    %v7158 = vpop.f32.mrf.mxu0
    %7159 = vdwg.mxu0
    %v7160 = vadd.f32 %v7032, %v7139
    %v7161 = vadd.f32 %v7032, %v7142
    %v7162 = vadd.f32 %v7032, %v7147
    %v7163 = vadd.f32 %v7032, %v7150
    %v7164 = vadd.f32 %v7032, %v7155
    %v7165 = vld [vmem:[%s7] sm:$0x1]
    %v7167 = vlaneseq
    %v7168 = vshrl.u32 %v7167, 7
    %v7169 = vsub.s32 0, %v7168
    %v7170 = vrot.slane %v7165, %v7169
    %v7172 = vadd.f32 %v7160, %v7170
    %v7173 = vadd.f32 %v7161, %v7170
    %v7174 = vadd.f32 %v7162, %v7170
    %v7175 = vadd.f32 %v7163, %v7170
    %v7176 = vadd.f32 %v7164, %v7170
    %v7177 = vtanh.pop %v7172
    %v7178 = vtanh.pop %v7173
    %v7179 = vtanh.pop %v7174
    %v7180 = vtanh.pop %v7175
    %v7181 = vtanh.pop %v7176
    %v7182 = vld [vmem:[%s8] sm:$0x1]
    %v7184 = vlaneseq
    %v7185 = vshrl.u32 %v7184, 7
    %v7186 = vsub.s32 0, %v7185
    %v7187 = vrot.slane %v7182, %v7186
    %v7189 = vmul.f32 %v7177, %v7187
    %v7190 = vmul.f32 %v7178, %v7187
    %v7191 = vmul.f32 %v7179, %v7187
    %v7192 = vmul.f32 %v7180, %v7187
    %v7193 = vmul.f32 %v7181, %v7187
    %7194 = vadd.xlane.f32.xlu0 %v7189
    %v7195 = vpop.xlane.xlu0 %7194
    %7196 = vadd.xlane.f32.xlu0 %v7190
    %v7197 = vpop.xlane.xlu0 %7196
    %7198 = vadd.xlane.f32.xlu0 %v7191
    %v7199 = vpop.xlane.xlu0 %7198
    %7200 = vadd.xlane.f32.xlu0 %v7192
    %v7201 = vpop.xlane.xlu0 %7200
    %7202 = vadd.xlane.f32.xlu0 %v7193
    %v7203 = vpop.xlane.xlu0 %7202
    %v7204 = vmax.f32 %v7195, %v7203
    %v7205 = vmax.f32 %v7204, %v7197
    %v7206 = vmax.f32 %v7199, %v7201
    %v7207 = vmax.f32 %v7205, %v7206
    %v7208 = vsub.f32 %v7195, %v7207
    %v7209 = vsub.f32 %v7197, %v7207
    %v7210 = vsub.f32 %v7199, %v7207
    %v7211 = vsub.f32 %v7201, %v7207
    %v7212 = vsub.f32 %v7203, %v7207
    %v7213 = vmul.f32 %v7208, 1.442695
    %v7214 = vpow.pop %v7213
    %v7215 = vmul.f32 %v7209, 1.442695
    %v7216 = vpow.pop %v7215
    %v7217 = vmul.f32 %v7210, 1.442695
    %v7218 = vpow.pop %v7217
    %v7219 = vmul.f32 %v7211, 1.442695
    %v7220 = vpow.pop %v7219
    %v7221 = vmul.f32 %v7212, 1.442695
    %v7222 = vpow.pop %v7221
    %v7223 = vadd.f32 %v7214, %v7216
    %v7224 = vadd.f32 %v7223, %v7218
    %v7225 = vadd.f32 %v7224, %v7220
    %v7226 = vadd.f32 %v7225, %v7222
    %v7227 = vrcp.pop %v7226
    %v7228 = vmul.f32 %v7214, %v7227
    %v7229 = vmul.f32 %v7216, %v7227
    %v7230 = vmul.f32 %v7218, %v7227
    %v7231 = vmul.f32 %v7220, %v7227
    %v7232 = vmul.f32 %v7222, %v7227
    %v7233 = vmul.f32 %v7228, %v6862
    %v7234 = vmul.f32 %v7229, %v6863
    %v7235 = vmul.f32 %v7230, %v6864
    %v7236 = vmul.f32 %v7231, %v6865
    %v7237 = vmul.f32 %v7232, %v6866
    %v7238 = vadd.f32 %v7233, %v7234
    %v7239 = vadd.f32 %v7238, %v7235
    %v7240 = vadd.f32 %v7239, %v7236
    %v7241 = vadd.f32 %v7240, %v7237
    %s7242 = scalar_lea.vmem [#allocation5], 56
    %v7243 = vld [vmem:[%s7242] sm:$0xff]
    %v7244 = vpack.c.bf16 %v7243, %v7243
    %v7245 = vld [vmem:[#allocation15] sm:$0xf]
    %v7246 = vld [vmem:[#allocation15 + $0x4] sm:$0xf]
    %v7247 = vld [vmem:[#allocation15 + $0x8] sm:$0xf]
    %v7248 = vld [vmem:[#allocation15 + $0xc] sm:$0xf]
    %v7249 = vld [vmem:[#allocation15 + $0x10] sm:$0xf]
    %v7250 = vld [vmem:[#allocation15 + $0x14] sm:$0xf]
    %v7251 = vld [vmem:[#allocation15 + $0x18] sm:$0xf]
    %v7252 = vld [vmem:[#allocation15 + $0x1c] sm:$0xf]
    %v7253 = vld [vmem:[#allocation15 + $0x20] sm:$0xf]
    %v7254 = vld [vmem:[#allocation15 + $0x24] sm:$0xf]
    %v7255 = vld [vmem:[#allocation15 + $0x28] sm:$0xf]
    %v7256 = vld [vmem:[#allocation15 + $0x2c] sm:$0xf]
    %v7257 = vld [vmem:[#allocation15 + $0x30] sm:$0xf]
    %v7258 = vld [vmem:[#allocation15 + $0x34] sm:$0xf]
    %v7259 = vld [vmem:[#allocation15 + $0x38] sm:$0xf]
    %v7260 = vld [vmem:[#allocation15 + $0x3c] sm:$0xf]
    %v7261 = vpack.c.bf16 %v7241, %v7241
    %v7262 = vld [vmem:[#allocation16] sm:$0xf]
    %v7263 = vld [vmem:[#allocation16 + $0x4] sm:$0xf]
    %v7264 = vld [vmem:[#allocation16 + $0x8] sm:$0xf]
    %v7265 = vld [vmem:[#allocation16 + $0xc] sm:$0xf]
    %v7266 = vld [vmem:[#allocation16 + $0x10] sm:$0xf]
    %v7267 = vld [vmem:[#allocation16 + $0x14] sm:$0xf]
    %v7268 = vld [vmem:[#allocation16 + $0x18] sm:$0xf]
    %v7269 = vld [vmem:[#allocation16 + $0x1c] sm:$0xf]
    %v7270 = vld [vmem:[#allocation16 + $0x20] sm:$0xf]
    %v7271 = vld [vmem:[#allocation16 + $0x24] sm:$0xf]
    %v7272 = vld [vmem:[#allocation16 + $0x28] sm:$0xf]
    %v7273 = vld [vmem:[#allocation16 + $0x2c] sm:$0xf]
    %v7274 = vld [vmem:[#allocation16 + $0x30] sm:$0xf]
    %v7275 = vld [vmem:[#allocation16 + $0x34] sm:$0xf]
    %v7276 = vld [vmem:[#allocation16 + $0x38] sm:$0xf]
    %v7277 = vld [vmem:[#allocation16 + $0x3c] sm:$0xf]
    %v7294 = vunpack.c.l.b16 %v7262
    %v7295 = vunpack.c.l.b16 %v7263
    %v7296 = vunpack.c.l.b16 %v7264
    %v7297 = vunpack.c.l.b16 %v7265
    %v7298 = vunpack.c.l.b16 %v7266
    %v7299 = vunpack.c.l.b16 %v7267
    %v7300 = vunpack.c.l.b16 %v7268
    %v7301 = vunpack.c.l.b16 %v7269
    %v7302 = vunpack.c.l.b16 %v7270
    %v7303 = vunpack.c.l.b16 %v7271
    %v7304 = vunpack.c.l.b16 %v7272
    %v7305 = vunpack.c.l.b16 %v7273
    %v7306 = vunpack.c.l.b16 %v7274
    %v7307 = vunpack.c.l.b16 %v7275
    %v7308 = vunpack.c.l.b16 %v7276
    %v7309 = vunpack.c.l.b16 %v7277
    %v7310 = vpack.c.b16 %v7295, %v7294
    %v7311 = vpack.c.b16 %v7297, %v7296
    %v7312 = vpack.c.b16 %v7299, %v7298
    %v7313 = vpack.c.b16 %v7301, %v7300
    %v7314 = vpack.c.b16 %v7303, %v7302
    %v7315 = vpack.c.b16 %v7305, %v7304
    %v7316 = vpack.c.b16 %v7307, %v7306
    %v7317 = vpack.c.b16 %v7309, %v7308
    %7326 = vmatprep.subr.bf16.mxu0 0
    %7327 = vmatpush1.bf16.msra.mxu0 %v7317
    %7328 = vmatprep.subr.bf16.mxu0 0
    %7329 = vmatpush1.bf16.msra.mxu0 %v7316
    %7330 = vmatprep.subr.bf16.mxu0 0
    %7331 = vmatpush1.bf16.msra.mxu0 %v7315
    %7332 = vmatprep.subr.bf16.mxu0 0
    %7333 = vmatpush1.bf16.msra.mxu0 %v7314
    %7334 = vmatprep.subr.bf16.mxu0 0
    %7335 = vmatpush1.bf16.msra.mxu0 %v7313
    %7336 = vmatprep.subr.bf16.mxu0 0
    %7337 = vmatpush1.bf16.msra.mxu0 %v7312
    %7338 = vmatprep.subr.bf16.mxu0 0
    %7339 = vmatpush1.bf16.msra.mxu0 %v7311
    %7340 = vmatprep.subr.bf16.mxu0 0
    %7341 = vmatpush1.bf16.msra.mxu0 %v7310
    %7342 = vmatprep.subr.bf16.mxu0 0
    %7343 = vmatpush2.bf16.msra.mxu0 0
    %7344 = vmatprep.subr.bf16.mxu0 0
    %7345 = vmatpush2.bf16.msra.mxu0 0
    %7346 = vmatprep.subr.bf16.mxu0 0
    %7347 = vmatpush2.bf16.msra.mxu0 0
    %7348 = vmatprep.subr.bf16.mxu0 0
    %7349 = vmatpush2.bf16.msra.mxu0 0
    %7350 = vmatprep.subr.bf16.mxu0 0
    %7351 = vmatpush2.bf16.msra.mxu0 0
    %7352 = vmatprep.subr.bf16.mxu0 0
    %7353 = vmatpush2.bf16.msra.mxu0 0
    %7354 = vmatprep.subr.bf16.mxu0 0
    %7355 = vmatpush2.bf16.msra.mxu0 0
    %7356 = vmatprep.subr.bf16.mxu0 0
    %7357 = vmatpush2.bf16.msra.mxu0 0
    %7358 = vmatprep.mubr.bf16.mxu0 0
    %7359 = vmatmul.mubr.bf16.gmra.mxu0 %v7261
    %v7360 = vpop.f32.mrf.mxu0
    %v7361 = vadd.f32 0.0, %v7360
    %v7362 = vpop.f32.mrf.mxu0
    %v7363 = vpop.f32.mrf.mxu0
    %v7364 = vpop.f32.mrf.mxu0
    %7365 = vdwg.mxu0
    %v7382 = vunpack.c.l.b16 %v7245
    %v7383 = vunpack.c.l.b16 %v7246
    %v7384 = vunpack.c.l.b16 %v7247
    %v7385 = vunpack.c.l.b16 %v7248
    %v7386 = vunpack.c.l.b16 %v7249
    %v7387 = vunpack.c.l.b16 %v7250
    %v7388 = vunpack.c.l.b16 %v7251
    %v7389 = vunpack.c.l.b16 %v7252
    %v7390 = vunpack.c.l.b16 %v7253
    %v7391 = vunpack.c.l.b16 %v7254
    %v7392 = vunpack.c.l.b16 %v7255
    %v7393 = vunpack.c.l.b16 %v7256
    %v7394 = vunpack.c.l.b16 %v7257
    %v7395 = vunpack.c.l.b16 %v7258
    %v7396 = vunpack.c.l.b16 %v7259
    %v7397 = vunpack.c.l.b16 %v7260
    %v7398 = vpack.c.b16 %v7383, %v7382
    %v7399 = vpack.c.b16 %v7385, %v7384
    %v7400 = vpack.c.b16 %v7387, %v7386
    %v7401 = vpack.c.b16 %v7389, %v7388
    %v7402 = vpack.c.b16 %v7391, %v7390
    %v7403 = vpack.c.b16 %v7393, %v7392
    %v7404 = vpack.c.b16 %v7395, %v7394
    %v7405 = vpack.c.b16 %v7397, %v7396
    %7414 = vmatprep.subr.bf16.mxu0 0
    %7415 = vmatpush1.bf16.msra.mxu0 %v7405
    %7416 = vmatprep.subr.bf16.mxu0 0
    %7417 = vmatpush1.bf16.msra.mxu0 %v7404
    %7418 = vmatprep.subr.bf16.mxu0 0
    %7419 = vmatpush1.bf16.msra.mxu0 %v7403
    %7420 = vmatprep.subr.bf16.mxu0 0
    %7421 = vmatpush1.bf16.msra.mxu0 %v7402
    %7422 = vmatprep.subr.bf16.mxu0 0
    %7423 = vmatpush1.bf16.msra.mxu0 %v7401
    %7424 = vmatprep.subr.bf16.mxu0 0
    %7425 = vmatpush1.bf16.msra.mxu0 %v7400
    %7426 = vmatprep.subr.bf16.mxu0 0
    %7427 = vmatpush1.bf16.msra.mxu0 %v7399
    %7428 = vmatprep.subr.bf16.mxu0 0
    %7429 = vmatpush1.bf16.msra.mxu0 %v7398
    %7430 = vmatprep.subr.bf16.mxu0 0
    %7431 = vmatpush2.bf16.msra.mxu0 0
    %7432 = vmatprep.subr.bf16.mxu0 0
    %7433 = vmatpush2.bf16.msra.mxu0 0
    %7434 = vmatprep.subr.bf16.mxu0 0
    %7435 = vmatpush2.bf16.msra.mxu0 0
    %7436 = vmatprep.subr.bf16.mxu0 0
    %7437 = vmatpush2.bf16.msra.mxu0 0
    %7438 = vmatprep.subr.bf16.mxu0 0
    %7439 = vmatpush2.bf16.msra.mxu0 0
    %7440 = vmatprep.subr.bf16.mxu0 0
    %7441 = vmatpush2.bf16.msra.mxu0 0
    %7442 = vmatprep.subr.bf16.mxu0 0
    %7443 = vmatpush2.bf16.msra.mxu0 0
    %7444 = vmatprep.subr.bf16.mxu0 0
    %7445 = vmatpush2.bf16.msra.mxu0 0
    %7446 = vmatprep.mubr.bf16.mxu0 0
    %7447 = vmatmul.mubr.bf16.gmra.mxu0 %v6867
    %v7448 = vpop.f32.mrf.mxu0
    %v7449 = vadd.f32 %v7361, %v7448
    %v7450 = vpop.f32.mrf.mxu0
    %v7451 = vpop.f32.mrf.mxu0
    %v7452 = vpop.f32.mrf.mxu0
    %7453 = vdwg.mxu0
    %v7454 = vld [vmem:[%s11] sm:$0xf]
    %v7455 = vld [vmem:[%s11 + $0x4] sm:$0x1]
    %v7458 = vunpack.c.l.b16 %v7454
    %v7459 = vunpack.c.l.b16 %v7455
    %v7460 = vpack.c.b16 %v7459, %v7458
    %v7462 = vsel %vm236, %v7244, 0
    %v7465 = vand.u32 %v7460, %v252
    %7467 = vmatprep.subr.bf16.mxu0 0
    %7468 = vmatpush1.bf16.msra.mxu0 0
    %7469 = vmatprep.subr.bf16.mxu0 0
    %7470 = vmatpush1.bf16.msra.mxu0 0
    %7471 = vmatprep.subr.bf16.mxu0 0
    %7472 = vmatpush1.bf16.msra.mxu0 0
    %7473 = vmatprep.subr.bf16.mxu0 0
    %7474 = vmatpush1.bf16.msra.mxu0 0
    %7475 = vmatprep.subr.bf16.mxu0 0
    %7476 = vmatpush1.bf16.msra.mxu0 0
    %7477 = vmatprep.subr.bf16.mxu0 0
    %7478 = vmatpush1.bf16.msra.mxu0 0
    %7479 = vmatprep.subr.bf16.mxu0 0
    %7480 = vmatpush1.bf16.msra.mxu0 0
    %7481 = vmatprep.subr.bf16.mxu0 0
    %7482 = vmatpush1.bf16.msra.mxu0 %v7465
    %7483 = vmatprep.subr.bf16.mxu0 0
    %7484 = vmatpush2.bf16.msra.mxu0 0
    %7485 = vmatprep.subr.bf16.mxu0 0
    %7486 = vmatpush2.bf16.msra.mxu0 0
    %7487 = vmatprep.subr.bf16.mxu0 0
    %7488 = vmatpush2.bf16.msra.mxu0 0
    %7489 = vmatprep.subr.bf16.mxu0 0
    %7490 = vmatpush2.bf16.msra.mxu0 0
    %7491 = vmatprep.subr.bf16.mxu0 0
    %7492 = vmatpush2.bf16.msra.mxu0 0
    %7493 = vmatprep.subr.bf16.mxu0 0
    %7494 = vmatpush2.bf16.msra.mxu0 0
    %7495 = vmatprep.subr.bf16.mxu0 0
    %7496 = vmatpush2.bf16.msra.mxu0 0
    %7497 = vmatprep.subr.bf16.mxu0 0
    %7498 = vmatpush2.bf16.msra.mxu0 0
    %7499 = vmatprep.mubr.bf16.mxu0 0
    %7500 = vmatmul.mubr.bf16.gmra.mxu0 %v7462
    %v7501 = vpop.f32.mrf.mxu0
    %v7502 = vadd.f32 0.0, %v7501
    %v7503 = vpop.f32.mrf.mxu0
    %v7504 = vpop.f32.mrf.mxu0
    %v7505 = vpop.f32.mrf.mxu0
    %7506 = vdwg.mxu0
    %v7507 = vadd.f32 %v7449, %v7502
    %v7508 = vld [vmem:[%s12] sm:$0x1]
    %v7510 = vlaneseq
    %v7511 = vshrl.u32 %v7510, 7
    %v7512 = vsub.s32 0, %v7511
    %v7513 = vrot.slane %v7508, %v7512
    %v7515 = vadd.f32 %v7507, %v7513
    %v7516 = vtanh.pop %v7515
    %v7517 = vld [vmem:[%s13] sm:$0x1]
    %v7519 = vlaneseq
    %v7520 = vshrl.u32 %v7519, 7
    %v7521 = vsub.s32 0, %v7520
    %v7522 = vrot.slane %v7517, %v7521
    %v7524 = vmul.f32 %v7516, %v7522
    %7525 = vadd.xlane.f32.xlu0 %v7524
    %v7526 = vpop.xlane.xlu0 %7525
    %v7527 = vld [vmem:[#allocation4] sm:$0x1]
    %v7529 = vlaneseq
    %v7530 = vshrl.u32 %v7529, 7
    %v7531 = vsub.s32 0, %v7530
    %v7532 = vrot.slane %v7527, %v7531
    %v7534 = vadd.f32 %v7526, %v7532
    %v7535 = vxor.u32 %v7534, 2147483648
    %v7536 = vmul.f32 %v7535, 1.442695
    %v7537 = vpow.pop %v7536
    %v7538 = vadd.f32 %v7537, 1.0
    %v7539 = vrcp.pop %v7538
    %v7540 = vmul.f32 1.0, %v7539
    %vm7541 = vcmask 7168
    %7542 = vst.msk [vmem:[%s15] sm:$0xff] %vm7541, %v7540
    // Predicated region
    $region94: #{tpu_custom_call.1} parent=1 // pred_check
      _
    $region95: #{tpu_custom_call.1} parent=1 // pred_check_branch
      %7544 = sbr.rel (0) target = $region97
    $region96: #{tpu_custom_call.1} parent=1 // pred_region
      _
    $region97: #{tpu_custom_call.1} parent=1 // pred_fallthru
      _
    // Predicated region
    $region98: #{tpu_custom_call.1} parent=1 // pred_check
      _
    $region99: #{tpu_custom_call.1} parent=1 // pred_check_branch
      %7546 = sbr.rel (0) target = $region101
    $region100: #{tpu_custom_call.1} parent=1 // pred_region
      _
    $region101: #{tpu_custom_call.1} parent=1 // pred_fallthru
      _
    %7547 = vsyncpa [#allocation6], 1
    %7548 = vsyncpa [#allocation8], 1
    %7549 = vsyncpa [#allocation11], 1
    %7550 = vsyncpa [#allocation14], 1
    %7551 = vsyncpa [#allocation17], 1

</llo_original>
